<compile_context>
chip_gen: v6e
topology: v6e:2x2x1
jax: 0.10.0
libtpu: 0.0.40
codegen_flags: <defaults>
</compile_context>

<pallas_src>
import jax
import jax.numpy as jnp
from jax.experimental import pallas as pl
from jax.experimental.pallas import tpu as pltpu

LPAD = 8  # wide left spatial pad along W (sublane dim) -> aligned interior stores


# ----------------------------------------------------------------------------
# Fused forward kernel
# ----------------------------------------------------------------------------
def discriminator_kernel(x_ref, w1_ref, w2_ref, w3_ref, w4_ref,
                         e1_ref, e2_ref, e3_ref, e4_ref,
                         wh_ref, bh_ref,
                         out_ref,
                         slab1_ref, slab2_ref, slab3_ref, slab4_ref,
                         act2_ref, act3_ref, act4_ref):
    B = x_ref.shape[0]

    in_refs = [x_ref, act2_ref, act3_ref, act4_ref]
    slab_refs = [slab1_ref, slab2_ref, slab3_ref, slab4_ref]
    w_refs = [w1_ref, w2_ref, w3_ref, w4_ref]
    e_refs = [e1_ref, e2_ref, e3_ref, e4_ref]
    nxt_refs = [act2_ref, act3_ref, act4_ref, None]

    y = None
    for i in range(4):
        in_ref, slab_ref = in_refs[i], slab_refs[i]
        w_ref, e_ref = w_refs[i], e_refs[i]
        Cin = in_ref.shape[3]
        Cout = w_ref.shape[1]
        Ho, Wo = slab_ref.shape[1], slab_ref.shape[2]
        K = w_ref.shape[0]            # 9 * Cin
        M = B * Ho * Wo

        # ---- im2col: 9 double-strided tap reads -> lane-concatenated slab ----
        for kh in range(3):
            for kw in range(3):
                t = kh * 3 + kw
                slab_ref[:, :, :, t * Cin:(t + 1) * Cin] = in_ref[
                    :, pl.ds(kh, Ho, stride=2),
                    pl.ds(LPAD - 1 + kw, Wo, stride=2), :]

        # ---- one fused MXU matmul per block (K = 9*Cin), bf16 ops, f32 acc ---
        a = slab_ref[...].reshape(M, K).astype(jnp.bfloat16)
        y = jnp.dot(a, w_ref[...], preferred_element_type=jnp.float32)

        # conv bias -> LeakyReLU(0.2) -> Dropout2d (eval: identity) -> BN affine
        y = y + e_ref[0:1, :]
        y = jnp.where(y > 0.0, y, 0.2 * y)
        y = y * e_ref[1:2, :] + e_ref[2:3, :]

        if i < 3:
            nxt = nxt_refs[i]
            Hp_n, Wp_n = nxt.shape[1], nxt.shape[2]
            # zero only the border strips the next block actually reads
            nxt[:, 0:1, :, :] = jnp.zeros((B, 1, Wp_n, Cout), jnp.float32)
            nxt[:, :, LPAD - 1:LPAD, :] = jnp.zeros((B, Hp_n, 1, Cout), jnp.float32)
            nxt[:, 1:Ho + 1, LPAD:LPAD + Wo, :] = y.reshape(B, Ho, Wo, Cout)

    # ---- heads: single (B, 512) x (512, 128) matmul --------------------------
    # y is (B*4, 128); row b*4 + p holds the final 2x2 map at p = h*2 + w.
    y4 = y.reshape(B, 4, 128)
    feats = jnp.concatenate(
        [y4[:, 0, :], y4[:, 1, :], y4[:, 2, :], y4[:, 3, :]], axis=-1)  # (B, 512)
    logits = jnp.dot(feats.astype(jnp.bfloat16), wh_ref[...],
                     preferred_element_type=jnp.float32) + bh_ref[...]   # (B, 128)

    lane = jax.lax.broadcasted_iota(jnp.int32, logits.shape, 1)
    is_cls = (lane >= 1) & (lane < 11)              # class columns 1..10
    sig = 1.0 / (1.0 + jnp.exp(-logits))            # sigmoid (adversarial head)
    masked = jnp.where(is_cls, logits, -1e30)
    m = jnp.max(masked, axis=-1, keepdims=True)
    e = jnp.where(is_cls, jnp.exp(masked - m), 0.0)
    probs = e / jnp.sum(e, axis=-1, keepdims=True)  # exact softmax (aux head)
    out_ref[...] = jnp.where(lane == 0, sig, jnp.where(is_cls, probs, 0.0))


# ----------------------------------------------------------------------------
# Wrapper
# ----------------------------------------------------------------------------
def _scratch_shapes(b):
    return [
        pltpu.VMEM((b, 16, 16, 72), jnp.float32),   # block-1 im2col slab
        pltpu.VMEM((b, 8, 8, 144), jnp.float32),    # block-2 im2col slab
        pltpu.VMEM((b, 4, 4, 288), jnp.float32),    # block-3 im2col slab
        pltpu.VMEM((b, 2, 2, 576), jnp.float32),    # block-4 im2col slab
        pltpu.VMEM((b, 18, 25, 16), jnp.float32),   # block-1 output (padded)
        pltpu.VMEM((b, 10, 17, 32), jnp.float32),   # block-2 output (padded)
        pltpu.VMEM((b, 6, 13, 64), jnp.float32),    # block-3 output (padded)
    ]


def _full_spec(arr):
    nd = arr.ndim
    return pl.BlockSpec(arr.shape, lambda b: (0,) * nd)


def _on_multi_core_tpu():
    try:
        kind = jax.devices()[0].device_kind.lower()
    except Exception:
        return False
    return ("v7" in kind) or ("7x" in kind)


def discriminator_forward(img_nchw, params, grid_over_batch=None):
    """Fused forward pass. Returns (validity (B, 1), label (B, 10))."""
    if grid_over_batch is None:
        # v7x has 2 TensorCores/chip: shard the batch across them.
        grid_over_batch = _on_multi_core_tpu()
    B = img_nchw.shape[0]

    # NCHW -> NHWC; spatial pad (H: 1/1, W: LPAD/1), channel pad 3 -> 8 so the
    # contraction and all in-kernel stores stay (8, 128)-friendly.
    x = jnp.transpose(img_nchw, (0, 2, 3, 1)).astype(jnp.float32)
    x = jnp.pad(x, ((0, 0), (1, 1), (LPAD, 1), (0, 8 - x.shape[-1])))

    # MXU operands in bf16 (cast in the wrapper); accumulation stays f32.
    args = (x,
            params["w1"].astype(jnp.bfloat16), params["w2"].astype(jnp.bfloat16),
            params["w3"].astype(jnp.bfloat16), params["w4"].astype(jnp.bfloat16),
            params["e1"], params["e2"], params["e3"], params["e4"],
            params["wh"].astype(jnp.bfloat16), params["bh"])

    out_shape = jax.ShapeDtypeStruct((B, 128), jnp.float32)

    if grid_over_batch:
        in_specs = [pl.BlockSpec((1,) + x.shape[1:], lambda b: (b, 0, 0, 0))]
        in_specs += [_full_spec(a) for a in args[1:]]
        out = pl.pallas_call(
            discriminator_kernel,
            out_shape=out_shape,
            grid=(B,),
            in_specs=in_specs,
            out_specs=pl.BlockSpec((1, 128), lambda b: (b, 0)),
            scratch_shapes=_scratch_shapes(1),
            compiler_params=pltpu.CompilerParams(
                dimension_semantics=("parallel",)),
        )(*args)
    else:
        vmem = pl.BlockSpec(memory_space=pltpu.MemorySpace.VMEM)
        out = pl.pallas_call(
            discriminator_kernel,
            out_shape=out_shape,
            in_specs=[vmem] * len(args),
            out_specs=vmem,
            scratch_shapes=_scratch_shapes(B),
        )(*args)

    validity = out[:, 0:1]   # sigmoid(adv logit)
    label = out[:, 1:11]     # softmax over 10 classes
    return validity, label


# ----------------------------------------------------------------------------
# Deterministic synthetic parameters (kernel-friendly layouts)
# ----------------------------------------------------------------------------
def make_params(key):
    chans = [3, 16, 32, 64, 128]
    use_bn = [False, True, True, True]
    eps = 0.8
    params = {}
    for i in range(4):
        cin, cout = chans[i], chans[i + 1]
        key, kw_, kb_, kg_, kbe_ = jax.random.split(key, 5)
        fan_in = cin * 9
        w = jax.random.normal(kw_, (cout, cin, 3, 3), jnp.float32) / jnp.sqrt(fan_in)
        w = jnp.transpose(w, (2, 3, 1, 0))                    # (kh, kw, Cin, Cout)
        cin_p = 8 if i == 0 else cin                          # image channels 3 -> 8
        if cin_p != cin:
            w = jnp.pad(w, ((0, 0), (0, 0), (0, cin_p - cin), (0, 0)))
        params[f"w{i + 1}"] = w.reshape(9 * cin_p, cout)      # fused K = 9*Cin

        b = jax.random.normal(kb_, (cout,), jnp.float32) * 0.01
        if use_bn[i]:
            gamma = 1.0 + 0.1 * jax.random.normal(kg_, (cout,), jnp.float32)
            beta = 0.1 * jax.random.normal(kbe_, (cout,), jnp.float32)
            run_mean = jnp.zeros((cout,), jnp.float32)
            run_var = jnp.ones((cout,), jnp.float32)
            scale = gamma / jnp.sqrt(run_var + eps)           # general eval-BN fold
            shift = beta - run_mean * scale
        else:
            scale = jnp.ones((cout,), jnp.float32)
            shift = jnp.zeros((cout,), jnp.float32)
        params[f"e{i + 1}"] = jnp.stack([b, scale, shift], axis=0)   # (3, Cout)

    feat_dim = 128 * (32 // 2 ** 4) ** 2                      # 512
    key, k1, k2, k3, k4 = jax.random.split(key, 5)
    adv_w = jax.random.normal(k1, (feat_dim, 1), jnp.float32) / jnp.sqrt(feat_dim)
    adv_b = jax.random.normal(k2, (1,), jnp.float32) * 0.01
    aux_w = jax.random.normal(k3, (feat_dim, 10), jnp.float32) / jnp.sqrt(feat_dim)
    aux_b = jax.random.normal(k4, (10,), jnp.float32) * 0.01
    w_all = jnp.concatenate(
        [adv_w, aux_w, jnp.zeros((feat_dim, 128 - 11), jnp.float32)], axis=1)  # (512, 128)
    # reorder rows from PyTorch flatten index c*4 + p to kernel head index p*128 + c
    params["wh"] = jnp.transpose(w_all.reshape(128, 4, 128), (1, 0, 2)).reshape(512, 128)
    params["bh"] = jnp.concatenate(
        [adv_b, aux_b, jnp.zeros((128 - 11,), jnp.float32)]).reshape(1, 128)
    return params


if __name__ == "__main__":
    key = jax.random.PRNGKey(0)
    key, k_img = jax.random.split(key)
    img = jax.random.normal(k_img, (2, 3, 32, 32), jnp.float32)  # NCHW, like PyTorch
    params = make_params(key)

    fwd = jax.jit(discriminator_forward, static_argnames=("grid_over_batch",))

    # auto path (single call on v5e/v6e, batch grid on v7x)
    validity, label = fwd(img, params)
    validity = jax.block_until_ready(validity)
    label = jax.block_until_ready(label)

    assert validity.shape == (2, 1)
    assert label.shape == (2, 10)
    assert bool(jnp.all((validity > 0) & (validity < 1)))
    assert bool(jnp.all(label >= 0))
    assert bool(jnp.allclose(jnp.sum(label, axis=-1), 1.0, atol=1e-5))

    # exercise BOTH paths (single fused call and v7x-style batch grid) and
    # check they agree.
    v0, l0 = fwd(img, params, grid_over_batch=False)
    v1, l1 = fwd(img, params, grid_over_batch=True)
    jax.block_until_ready((v0, l0, v1, l1))
    assert bool(jnp.allclose(v0, v1, atol=1e-5, rtol=1e-5))
    assert bool(jnp.allclose(l0, l1, atol=1e-5, rtol=1e-5))

    print("KERNEL_OK")
</pallas_src>

<mosaic_0001>
module attributes {stable_mosaic.version = 11 : i64} {
  func.func @discriminator_kernel(%arg0: memref<2x34x41x8xf32, #tpu.memory_space<vmem>>, %arg1: memref<72x16xbf16, #tpu.memory_space<vmem>>, %arg2: memref<144x32xbf16, #tpu.memory_space<vmem>>, %arg3: memref<288x64xbf16, #tpu.memory_space<vmem>>, %arg4: memref<576x128xbf16, #tpu.memory_space<vmem>>, %arg5: memref<3x16xf32, #tpu.memory_space<vmem>>, %arg6: memref<3x32xf32, #tpu.memory_space<vmem>>, %arg7: memref<3x64xf32, #tpu.memory_space<vmem>>, %arg8: memref<3x128xf32, #tpu.memory_space<vmem>>, %arg9: memref<512x128xbf16, #tpu.memory_space<vmem>>, %arg10: memref<1x128xf32, #tpu.memory_space<vmem>>, %arg11: memref<2x128xf32, #tpu.memory_space<vmem>>, %arg12: memref<2x16x16x72xf32, #tpu.memory_space<vmem>>, %arg13: memref<2x8x8x144xf32, #tpu.memory_space<vmem>>, %arg14: memref<2x4x4x288xf32, #tpu.memory_space<vmem>>, %arg15: memref<2x2x2x576xf32, #tpu.memory_space<vmem>>, %arg16: memref<2x18x25x16xf32, #tpu.memory_space<vmem>>, %arg17: memref<2x10x17x32xf32, #tpu.memory_space<vmem>>, %arg18: memref<2x6x13x64xf32, #tpu.memory_space<vmem>>) attributes {dimension_semantics = [], scalar_prefetch = 0 : i64, scratch_operands = 7 : i64, tpu.core_type = #tpu.core_type<tc>} {
    %c0 = arith.constant 0 : index
    %c0_0 = arith.constant 0 : index
    %c7 = arith.constant 7 : index
    %c0_1 = arith.constant 0 : index
    %0 = tpu.strided_load %arg0[%c0, %c0_0, %c7, %c0_1] {strides = array<i32: 1, 2, 2, 1>} : memref<2x34x41x8xf32, #tpu.memory_space<vmem>>, vector<2x16x16x8xf32>
    %c0_2 = arith.constant 0 : index
    %c0_3 = arith.constant 0 : index
    %c0_4 = arith.constant 0 : index
    %c0_5 = arith.constant 0 : index
    %1 = vector.load %arg12[%c0_2, %c0_3, %c0_4, %c0_5] : memref<2x16x16x72xf32, #tpu.memory_space<vmem>>, vector<2x16x16x8xf32>
    tpu.vector_store %arg12[%c0_2, %c0_3, %c0_4, %c0_5], %0 {strides = array<i32>} : memref<2x16x16x72xf32, #tpu.memory_space<vmem>>, vector<2x16x16x8xf32>,
    %c0_6 = arith.constant 0 : index
    %c0_7 = arith.constant 0 : index
    %c8 = arith.constant 8 : index
    %c0_8 = arith.constant 0 : index
    %2 = tpu.strided_load %arg0[%c0_6, %c0_7, %c8, %c0_8] {strides = array<i32: 1, 2, 2, 1>} : memref<2x34x41x8xf32, #tpu.memory_space<vmem>>, vector<2x16x16x8xf32>
    %c0_9 = arith.constant 0 : index
    %c0_10 = arith.constant 0 : index
    %c0_11 = arith.constant 0 : index
    %c8_12 = arith.constant 8 : index
    %3 = vector.load %arg12[%c0_9, %c0_10, %c0_11, %c8_12] : memref<2x16x16x72xf32, #tpu.memory_space<vmem>>, vector<2x16x16x8xf32>
    tpu.vector_store %arg12[%c0_9, %c0_10, %c0_11, %c8_12], %2 {strides = array<i32>} : memref<2x16x16x72xf32, #tpu.memory_space<vmem>>, vector<2x16x16x8xf32>,
    %c0_13 = arith.constant 0 : index
    %c0_14 = arith.constant 0 : index
    %c9 = arith.constant 9 : index
    %c0_15 = arith.constant 0 : index
    %4 = tpu.strided_load %arg0[%c0_13, %c0_14, %c9, %c0_15] {strides = array<i32: 1, 2, 2, 1>} : memref<2x34x41x8xf32, #tpu.memory_space<vmem>>, vector<2x16x16x8xf32>
    %c0_16 = arith.constant 0 : index
    %c0_17 = arith.constant 0 : index
    %c0_18 = arith.constant 0 : index
    %c16 = arith.constant 16 : index
    %5 = vector.load %arg12[%c0_16, %c0_17, %c0_18, %c16] : memref<2x16x16x72xf32, #tpu.memory_space<vmem>>, vector<2x16x16x8xf32>
    tpu.vector_store %arg12[%c0_16, %c0_17, %c0_18, %c16], %4 {strides = array<i32>} : memref<2x16x16x72xf32, #tpu.memory_space<vmem>>, vector<2x16x16x8xf32>,
    %c0_19 = arith.constant 0 : index
    %c1 = arith.constant 1 : index
    %c7_20 = arith.constant 7 : index
    %c0_21 = arith.constant 0 : index
    %6 = tpu.strided_load %arg0[%c0_19, %c1, %c7_20, %c0_21] {strides = array<i32: 1, 2, 2, 1>} : memref<2x34x41x8xf32, #tpu.memory_space<vmem>>, vector<2x16x16x8xf32>
    %c0_22 = arith.constant 0 : index
    %c0_23 = arith.constant 0 : index
    %c0_24 = arith.constant 0 : index
    %c24 = arith.constant 24 : index
    %7 = vector.load %arg12[%c0_22, %c0_23, %c0_24, %c24] : memref<2x16x16x72xf32, #tpu.memory_space<vmem>>, vector<2x16x16x8xf32>
    tpu.vector_store %arg12[%c0_22, %c0_23, %c0_24, %c24], %6 {strides = array<i32>} : memref<2x16x16x72xf32, #tpu.memory_space<vmem>>, vector<2x16x16x8xf32>,
    %c0_25 = arith.constant 0 : index
    %c1_26 = arith.constant 1 : index
    %c8_27 = arith.constant 8 : index
    %c0_28 = arith.constant 0 : index
    %8 = tpu.strided_load %arg0[%c0_25, %c1_26, %c8_27, %c0_28] {strides = array<i32: 1, 2, 2, 1>} : memref<2x34x41x8xf32, #tpu.memory_space<vmem>>, vector<2x16x16x8xf32>
    %c0_29 = arith.constant 0 : index
    %c0_30 = arith.constant 0 : index
    %c0_31 = arith.constant 0 : index
    %c32 = arith.constant 32 : index
    %9 = vector.load %arg12[%c0_29, %c0_30, %c0_31, %c32] : memref<2x16x16x72xf32, #tpu.memory_space<vmem>>, vector<2x16x16x8xf32>
    tpu.vector_store %arg12[%c0_29, %c0_30, %c0_31, %c32], %8 {strides = array<i32>} : memref<2x16x16x72xf32, #tpu.memory_space<vmem>>, vector<2x16x16x8xf32>,
    %c0_32 = arith.constant 0 : index
    %c1_33 = arith.constant 1 : index
    %c9_34 = arith.constant 9 : index
    %c0_35 = arith.constant 0 : index
    %10 = tpu.strided_load %arg0[%c0_32, %c1_33, %c9_34, %c0_35] {strides = array<i32: 1, 2, 2, 1>} : memref<2x34x41x8xf32, #tpu.memory_space<vmem>>, vector<2x16x16x8xf32>
    %c0_36 = arith.constant 0 : index
    %c0_37 = arith.constant 0 : index
    %c0_38 = arith.constant 0 : index
    %c40 = arith.constant 40 : index
    %11 = vector.load %arg12[%c0_36, %c0_37, %c0_38, %c40] : memref<2x16x16x72xf32, #tpu.memory_space<vmem>>, vector<2x16x16x8xf32>
    tpu.vector_store %arg12[%c0_36, %c0_37, %c0_38, %c40], %10 {strides = array<i32>} : memref<2x16x16x72xf32, #tpu.memory_space<vmem>>, vector<2x16x16x8xf32>,
    %c0_39 = arith.constant 0 : index
    %c2 = arith.constant 2 : index
    %c7_40 = arith.constant 7 : index
    %c0_41 = arith.constant 0 : index
    %12 = tpu.strided_load %arg0[%c0_39, %c2, %c7_40, %c0_41] {strides = array<i32: 1, 2, 2, 1>} : memref<2x34x41x8xf32, #tpu.memory_space<vmem>>, vector<2x16x16x8xf32>
    %c0_42 = arith.constant 0 : index
    %c0_43 = arith.constant 0 : index
    %c0_44 = arith.constant 0 : index
    %c48 = arith.constant 48 : index
    %13 = vector.load %arg12[%c0_42, %c0_43, %c0_44, %c48] : memref<2x16x16x72xf32, #tpu.memory_space<vmem>>, vector<2x16x16x8xf32>
    tpu.vector_store %arg12[%c0_42, %c0_43, %c0_44, %c48], %12 {strides = array<i32>} : memref<2x16x16x72xf32, #tpu.memory_space<vmem>>, vector<2x16x16x8xf32>,
    %c0_45 = arith.constant 0 : index
    %c2_46 = arith.constant 2 : index
    %c8_47 = arith.constant 8 : index
    %c0_48 = arith.constant 0 : index
    %14 = tpu.strided_load %arg0[%c0_45, %c2_46, %c8_47, %c0_48] {strides = array<i32: 1, 2, 2, 1>} : memref<2x34x41x8xf32, #tpu.memory_space<vmem>>, vector<2x16x16x8xf32>
    %c0_49 = arith.constant 0 : index
    %c0_50 = arith.constant 0 : index
    %c0_51 = arith.constant 0 : index
    %c56 = arith.constant 56 : index
    %15 = vector.load %arg12[%c0_49, %c0_50, %c0_51, %c56] : memref<2x16x16x72xf32, #tpu.memory_space<vmem>>, vector<2x16x16x8xf32>
    tpu.vector_store %arg12[%c0_49, %c0_50, %c0_51, %c56], %14 {strides = array<i32>} : memref<2x16x16x72xf32, #tpu.memory_space<vmem>>, vector<2x16x16x8xf32>,
    %c0_52 = arith.constant 0 : index
    %c2_53 = arith.constant 2 : index
    %c9_54 = arith.constant 9 : index
    %c0_55 = arith.constant 0 : index
    %16 = tpu.strided_load %arg0[%c0_52, %c2_53, %c9_54, %c0_55] {strides = array<i32: 1, 2, 2, 1>} : memref<2x34x41x8xf32, #tpu.memory_space<vmem>>, vector<2x16x16x8xf32>
    %c0_56 = arith.constant 0 : index
    %c0_57 = arith.constant 0 : index
    %c0_58 = arith.constant 0 : index
    %c64 = arith.constant 64 : index
    %17 = vector.load %arg12[%c0_56, %c0_57, %c0_58, %c64] : memref<2x16x16x72xf32, #tpu.memory_space<vmem>>, vector<2x16x16x8xf32>
    tpu.vector_store %arg12[%c0_56, %c0_57, %c0_58, %c64], %16 {strides = array<i32>} : memref<2x16x16x72xf32, #tpu.memory_space<vmem>>, vector<2x16x16x8xf32>,
    %c0_59 = arith.constant 0 : index
    %c0_60 = arith.constant 0 : index
    %c0_61 = arith.constant 0 : index
    %c0_62 = arith.constant 0 : index
    %18 = vector.load %arg12[%c0_59, %c0_60, %c0_61, %c0_62] : memref<2x16x16x72xf32, #tpu.memory_space<vmem>>, vector<2x16x16x72xf32>
    %19 = vector.shape_cast %18 : vector<2x16x16x72xf32> to vector<512x72xf32>
    %20 = arith.truncf %19 : vector<512x72xf32> to vector<512x72xbf16>
    %c0_63 = arith.constant 0 : index
    %c0_64 = arith.constant 0 : index
    %21 = vector.load %arg1[%c0_63, %c0_64] : memref<72x16xbf16, #tpu.memory_space<vmem>>, vector<72x16xbf16>
    %cst = arith.constant dense<0.000000e+00> : vector<512x16xf32>
    %22 = tpu.matmul %20, %21, %cst {dimension_numbers = #tpu.dot_dimension_numbers<[1], [0], [0], [1], [0, 0, 1, 1], [], []>} : vector<512x72xbf16>, vector<72x16xbf16>, vector<512x16xf32> -> vector<512x16xf32>
    %c0_65 = arith.constant 0 : index
    %c0_66 = arith.constant 0 : index
    %23 = vector.load %arg5[%c0_65, %c0_66] : memref<3x16xf32, #tpu.memory_space<vmem>>, vector<1x16xf32>
    %24 = vector.broadcast %23 : vector<1x16xf32> to vector<512x16xf32>
    %25 = arith.addf %22, %24 : vector<512x16xf32>
    %cst_67 = arith.constant 0.000000e+00 : f32
    %26 = vector.broadcast %cst_67 : f32 to vector<512x16xf32>
    %27 = arith.cmpf ogt, %25, %26 : vector<512x16xf32>
    %cst_68 = arith.constant 2.000000e-01 : f32
    %28 = vector.broadcast %cst_68 : f32 to vector<512x16xf32>
    %29 = arith.mulf %28, %25 : vector<512x16xf32>
    %30 = arith.select %27, %25, %29 : vector<512x16xi1>, vector<512x16xf32>
    %c1_69 = arith.constant 1 : index
    %c0_70 = arith.constant 0 : index
    %31 = vector.load %arg5[%c1_69, %c0_70] : memref<3x16xf32, #tpu.memory_space<vmem>>, vector<1x16xf32>
    %32 = vector.broadcast %31 : vector<1x16xf32> to vector<512x16xf32>
    %33 = arith.mulf %30, %32 : vector<512x16xf32>
    %c2_71 = arith.constant 2 : index
    %c0_72 = arith.constant 0 : index
    %34 = vector.load %arg5[%c2_71, %c0_72] : memref<3x16xf32, #tpu.memory_space<vmem>>, vector<1x16xf32>
    %35 = vector.broadcast %34 : vector<1x16xf32> to vector<512x16xf32>
    %36 = arith.addf %33, %35 : vector<512x16xf32>
    %cst_73 = arith.constant 0.000000e+00 : f32
    %37 = vector.broadcast %cst_73 : f32 to vector<2x1x25x16xf32>
    %c0_74 = arith.constant 0 : index
    %c0_75 = arith.constant 0 : index
    %c0_76 = arith.constant 0 : index
    %c0_77 = arith.constant 0 : index
    %38 = vector.load %arg16[%c0_74, %c0_75, %c0_76, %c0_77] : memref<2x18x25x16xf32, #tpu.memory_space<vmem>>, vector<2x1x25x16xf32>
    tpu.vector_store %arg16[%c0_74, %c0_75, %c0_76, %c0_77], %37 {strides = array<i32>} : memref<2x18x25x16xf32, #tpu.memory_space<vmem>>, vector<2x1x25x16xf32>,
    %cst_78 = arith.constant 0.000000e+00 : f32
    %39 = vector.broadcast %cst_78 : f32 to vector<2x18x1x16xf32>
    %c0_79 = arith.constant 0 : index
    %c0_80 = arith.constant 0 : index
    %c7_81 = arith.constant 7 : index
    %c0_82 = arith.constant 0 : index
    %40 = vector.load %arg16[%c0_79, %c0_80, %c7_81, %c0_82] : memref<2x18x25x16xf32, #tpu.memory_space<vmem>>, vector<2x18x1x16xf32>
    tpu.vector_store %arg16[%c0_79, %c0_80, %c7_81, %c0_82], %39 {strides = array<i32>} : memref<2x18x25x16xf32, #tpu.memory_space<vmem>>, vector<2x18x1x16xf32>,
    %41 = vector.shape_cast %36 : vector<512x16xf32> to vector<2x16x16x16xf32>
    %c0_83 = arith.constant 0 : index
    %c1_84 = arith.constant 1 : index
    %c8_85 = arith.constant 8 : index
    %c0_86 = arith.constant 0 : index
    %42 = vector.load %arg16[%c0_83, %c1_84, %c8_85, %c0_86] : memref<2x18x25x16xf32, #tpu.memory_space<vmem>>, vector<2x16x16x16xf32>
    tpu.vector_store %arg16[%c0_83, %c1_84, %c8_85, %c0_86], %41 {strides = array<i32>} : memref<2x18x25x16xf32, #tpu.memory_space<vmem>>, vector<2x16x16x16xf32>,
    %c0_87 = arith.constant 0 : index
    %c0_88 = arith.constant 0 : index
    %c7_89 = arith.constant 7 : index
    %c0_90 = arith.constant 0 : index
    %43 = tpu.strided_load %arg16[%c0_87, %c0_88, %c7_89, %c0_90] {strides = array<i32: 1, 2, 2, 1>} : memref<2x18x25x16xf32, #tpu.memory_space<vmem>>, vector<2x8x8x16xf32>
    %c0_91 = arith.constant 0 : index
    %c0_92 = arith.constant 0 : index
    %c0_93 = arith.constant 0 : index
    %c0_94 = arith.constant 0 : index
    %44 = vector.load %arg13[%c0_91, %c0_92, %c0_93, %c0_94] : memref<2x8x8x144xf32, #tpu.memory_space<vmem>>, vector<2x8x8x16xf32>
    tpu.vector_store %arg13[%c0_91, %c0_92, %c0_93, %c0_94], %43 {strides = array<i32>} : memref<2x8x8x144xf32, #tpu.memory_space<vmem>>, vector<2x8x8x16xf32>,
    %c0_95 = arith.constant 0 : index
    %c0_96 = arith.constant 0 : index
    %c8_97 = arith.constant 8 : index
    %c0_98 = arith.constant 0 : index
    %45 = tpu.strided_load %arg16[%c0_95, %c0_96, %c8_97, %c0_98] {strides = array<i32: 1, 2, 2, 1>} : memref<2x18x25x16xf32, #tpu.memory_space<vmem>>, vector<2x8x8x16xf32>
    %c0_99 = arith.constant 0 : index
    %c0_100 = arith.constant 0 : index
    %c0_101 = arith.constant 0 : index
    %c16_102 = arith.constant 16 : index
    %46 = vector.load %arg13[%c0_99, %c0_100, %c0_101, %c16_102] : memref<2x8x8x144xf32, #tpu.memory_space<vmem>>, vector<2x8x8x16xf32>
    tpu.vector_store %arg13[%c0_99, %c0_100, %c0_101, %c16_102], %45 {strides = array<i32>} : memref<2x8x8x144xf32, #tpu.memory_space<vmem>>, vector<2x8x8x16xf32>,
    %c0_103 = arith.constant 0 : index
    %c0_104 = arith.constant 0 : index
    %c9_105 = arith.constant 9 : index
    %c0_106 = arith.constant 0 : index
    %47 = tpu.strided_load %arg16[%c0_103, %c0_104, %c9_105, %c0_106] {strides = array<i32: 1, 2, 2, 1>} : memref<2x18x25x16xf32, #tpu.memory_space<vmem>>, vector<2x8x8x16xf32>
    %c0_107 = arith.constant 0 : index
    %c0_108 = arith.constant 0 : index
    %c0_109 = arith.constant 0 : index
    %c32_110 = arith.constant 32 : index
    %48 = vector.load %arg13[%c0_107, %c0_108, %c0_109, %c32_110] : memref<2x8x8x144xf32, #tpu.memory_space<vmem>>, vector<2x8x8x16xf32>
    tpu.vector_store %arg13[%c0_107, %c0_108, %c0_109, %c32_110], %47 {strides = array<i32>} : memref<2x8x8x144xf32, #tpu.memory_space<vmem>>, vector<2x8x8x16xf32>,
    %c0_111 = arith.constant 0 : index
    %c1_112 = arith.constant 1 : index
    %c7_113 = arith.constant 7 : index
    %c0_114 = arith.constant 0 : index
    %49 = tpu.strided_load %arg16[%c0_111, %c1_112, %c7_113, %c0_114] {strides = array<i32: 1, 2, 2, 1>} : memref<2x18x25x16xf32, #tpu.memory_space<vmem>>, vector<2x8x8x16xf32>
    %c0_115 = arith.constant 0 : index
    %c0_116 = arith.constant 0 : index
    %c0_117 = arith.constant 0 : index
    %c48_118 = arith.constant 48 : index
    %50 = vector.load %arg13[%c0_115, %c0_116, %c0_117, %c48_118] : memref<2x8x8x144xf32, #tpu.memory_space<vmem>>, vector<2x8x8x16xf32>
    tpu.vector_store %arg13[%c0_115, %c0_116, %c0_117, %c48_118], %49 {strides = array<i32>} : memref<2x8x8x144xf32, #tpu.memory_space<vmem>>, vector<2x8x8x16xf32>,
    %c0_119 = arith.constant 0 : index
    %c1_120 = arith.constant 1 : index
    %c8_121 = arith.constant 8 : index
    %c0_122 = arith.constant 0 : index
    %51 = tpu.strided_load %arg16[%c0_119, %c1_120, %c8_121, %c0_122] {strides = array<i32: 1, 2, 2, 1>} : memref<2x18x25x16xf32, #tpu.memory_space<vmem>>, vector<2x8x8x16xf32>
    %c0_123 = arith.constant 0 : index
    %c0_124 = arith.constant 0 : index
    %c0_125 = arith.constant 0 : index
    %c64_126 = arith.constant 64 : index
    %52 = vector.load %arg13[%c0_123, %c0_124, %c0_125, %c64_126] : memref<2x8x8x144xf32, #tpu.memory_space<vmem>>, vector<2x8x8x16xf32>
    tpu.vector_store %arg13[%c0_123, %c0_124, %c0_125, %c64_126], %51 {strides = array<i32>} : memref<2x8x8x144xf32, #tpu.memory_space<vmem>>, vector<2x8x8x16xf32>,
    %c0_127 = arith.constant 0 : index
    %c1_128 = arith.constant 1 : index
    %c9_129 = arith.constant 9 : index
    %c0_130 = arith.constant 0 : index
    %53 = tpu.strided_load %arg16[%c0_127, %c1_128, %c9_129, %c0_130] {strides = array<i32: 1, 2, 2, 1>} : memref<2x18x25x16xf32, #tpu.memory_space<vmem>>, vector<2x8x8x16xf32>
    %c0_131 = arith.constant 0 : index
    %c0_132 = arith.constant 0 : index
    %c0_133 = arith.constant 0 : index
    %c80 = arith.constant 80 : index
    %54 = vector.load %arg13[%c0_131, %c0_132, %c0_133, %c80] : memref<2x8x8x144xf32, #tpu.memory_space<vmem>>, vector<2x8x8x16xf32>
    tpu.vector_store %arg13[%c0_131, %c0_132, %c0_133, %c80], %53 {strides = array<i32>} : memref<2x8x8x144xf32, #tpu.memory_space<vmem>>, vector<2x8x8x16xf32>,
    %c0_134 = arith.constant 0 : index
    %c2_135 = arith.constant 2 : index
    %c7_136 = arith.constant 7 : index
    %c0_137 = arith.constant 0 : index
    %55 = tpu.strided_load %arg16[%c0_134, %c2_135, %c7_136, %c0_137] {strides = array<i32: 1, 2, 2, 1>} : memref<2x18x25x16xf32, #tpu.memory_space<vmem>>, vector<2x8x8x16xf32>
    %c0_138 = arith.constant 0 : index
    %c0_139 = arith.constant 0 : index
    %c0_140 = arith.constant 0 : index
    %c96 = arith.constant 96 : index
    %56 = vector.load %arg13[%c0_138, %c0_139, %c0_140, %c96] : memref<2x8x8x144xf32, #tpu.memory_space<vmem>>, vector<2x8x8x16xf32>
    tpu.vector_store %arg13[%c0_138, %c0_139, %c0_140, %c96], %55 {strides = array<i32>} : memref<2x8x8x144xf32, #tpu.memory_space<vmem>>, vector<2x8x8x16xf32>,
    %c0_141 = arith.constant 0 : index
    %c2_142 = arith.constant 2 : index
    %c8_143 = arith.constant 8 : index
    %c0_144 = arith.constant 0 : index
    %57 = tpu.strided_load %arg16[%c0_141, %c2_142, %c8_143, %c0_144] {strides = array<i32: 1, 2, 2, 1>} : memref<2x18x25x16xf32, #tpu.memory_space<vmem>>, vector<2x8x8x16xf32>
    %c0_145 = arith.constant 0 : index
    %c0_146 = arith.constant 0 : index
    %c0_147 = arith.constant 0 : index
    %c112 = arith.constant 112 : index
    %58 = vector.load %arg13[%c0_145, %c0_146, %c0_147, %c112] : memref<2x8x8x144xf32, #tpu.memory_space<vmem>>, vector<2x8x8x16xf32>
    tpu.vector_store %arg13[%c0_145, %c0_146, %c0_147, %c112], %57 {strides = array<i32>} : memref<2x8x8x144xf32, #tpu.memory_space<vmem>>, vector<2x8x8x16xf32>,
    %c0_148 = arith.constant 0 : index
    %c2_149 = arith.constant 2 : index
    %c9_150 = arith.constant 9 : index
    %c0_151 = arith.constant 0 : index
    %59 = tpu.strided_load %arg16[%c0_148, %c2_149, %c9_150, %c0_151] {strides = array<i32: 1, 2, 2, 1>} : memref<2x18x25x16xf32, #tpu.memory_space<vmem>>, vector<2x8x8x16xf32>
    %c0_152 = arith.constant 0 : index
    %c0_153 = arith.constant 0 : index
    %c0_154 = arith.constant 0 : index
    %c128 = arith.constant 128 : index
    %60 = vector.load %arg13[%c0_152, %c0_153, %c0_154, %c128] : memref<2x8x8x144xf32, #tpu.memory_space<vmem>>, vector<2x8x8x16xf32>
    tpu.vector_store %arg13[%c0_152, %c0_153, %c0_154, %c128], %59 {strides = array<i32>} : memref<2x8x8x144xf32, #tpu.memory_space<vmem>>, vector<2x8x8x16xf32>,
    %c0_155 = arith.constant 0 : index
    %c0_156 = arith.constant 0 : index
    %c0_157 = arith.constant 0 : index
    %c0_158 = arith.constant 0 : index
    %61 = vector.load %arg13[%c0_155, %c0_156, %c0_157, %c0_158] : memref<2x8x8x144xf32, #tpu.memory_space<vmem>>, vector<2x8x8x144xf32>
    %62 = vector.shape_cast %61 : vector<2x8x8x144xf32> to vector<128x144xf32>
    %63 = arith.truncf %62 : vector<128x144xf32> to vector<128x144xbf16>
    %c0_159 = arith.constant 0 : index
    %c0_160 = arith.constant 0 : index
    %64 = vector.load %arg2[%c0_159, %c0_160] : memref<144x32xbf16, #tpu.memory_space<vmem>>, vector<144x32xbf16>
    %cst_161 = arith.constant dense<0.000000e+00> : vector<128x32xf32>
    %65 = tpu.matmul %63, %64, %cst_161 {dimension_numbers = #tpu.dot_dimension_numbers<[1], [0], [0], [1], [0, 0, 1, 1], [], []>} : vector<128x144xbf16>, vector<144x32xbf16>, vector<128x32xf32> -> vector<128x32xf32>
    %c0_162 = arith.constant 0 : index
    %c0_163 = arith.constant 0 : index
    %66 = vector.load %arg6[%c0_162, %c0_163] : memref<3x32xf32, #tpu.memory_space<vmem>>, vector<1x32xf32>
    %67 = vector.broadcast %66 : vector<1x32xf32> to vector<128x32xf32>
    %68 = arith.addf %65, %67 : vector<128x32xf32>
    %cst_164 = arith.constant 0.000000e+00 : f32
    %69 = vector.broadcast %cst_164 : f32 to vector<128x32xf32>
    %70 = arith.cmpf ogt, %68, %69 : vector<128x32xf32>
    %cst_165 = arith.constant 2.000000e-01 : f32
    %71 = vector.broadcast %cst_165 : f32 to vector<128x32xf32>
    %72 = arith.mulf %71, %68 : vector<128x32xf32>
    %73 = arith.select %70, %68, %72 : vector<128x32xi1>, vector<128x32xf32>
    %c1_166 = arith.constant 1 : index
    %c0_167 = arith.constant 0 : index
    %74 = vector.load %arg6[%c1_166, %c0_167] : memref<3x32xf32, #tpu.memory_space<vmem>>, vector<1x32xf32>
    %75 = vector.broadcast %74 : vector<1x32xf32> to vector<128x32xf32>
    %76 = arith.mulf %73, %75 : vector<128x32xf32>
    %c2_168 = arith.constant 2 : index
    %c0_169 = arith.constant 0 : index
    %77 = vector.load %arg6[%c2_168, %c0_169] : memref<3x32xf32, #tpu.memory_space<vmem>>, vector<1x32xf32>
    %78 = vector.broadcast %77 : vector<1x32xf32> to vector<128x32xf32>
    %79 = arith.addf %76, %78 : vector<128x32xf32>
    %cst_170 = arith.constant 0.000000e+00 : f32
    %80 = vector.broadcast %cst_170 : f32 to vector<2x1x17x32xf32>
    %c0_171 = arith.constant 0 : index
    %c0_172 = arith.constant 0 : index
    %c0_173 = arith.constant 0 : index
    %c0_174 = arith.constant 0 : index
    %81 = vector.load %arg17[%c0_171, %c0_172, %c0_173, %c0_174] : memref<2x10x17x32xf32, #tpu.memory_space<vmem>>, vector<2x1x17x32xf32>
    tpu.vector_store %arg17[%c0_171, %c0_172, %c0_173, %c0_174], %80 {strides = array<i32>} : memref<2x10x17x32xf32, #tpu.memory_space<vmem>>, vector<2x1x17x32xf32>,
    %cst_175 = arith.constant 0.000000e+00 : f32
    %82 = vector.broadcast %cst_175 : f32 to vector<2x10x1x32xf32>
    %c0_176 = arith.constant 0 : index
    %c0_177 = arith.constant 0 : index
    %c7_178 = arith.constant 7 : index
    %c0_179 = arith.constant 0 : index
    %83 = vector.load %arg17[%c0_176, %c0_177, %c7_178, %c0_179] : memref<2x10x17x32xf32, #tpu.memory_space<vmem>>, vector<2x10x1x32xf32>
    tpu.vector_store %arg17[%c0_176, %c0_177, %c7_178, %c0_179], %82 {strides = array<i32>} : memref<2x10x17x32xf32, #tpu.memory_space<vmem>>, vector<2x10x1x32xf32>,
    %84 = vector.shape_cast %79 : vector<128x32xf32> to vector<2x8x8x32xf32>
    %c0_180 = arith.constant 0 : index
    %c1_181 = arith.constant 1 : index
    %c8_182 = arith.constant 8 : index
    %c0_183 = arith.constant 0 : index
    %85 = vector.load %arg17[%c0_180, %c1_181, %c8_182, %c0_183] : memref<2x10x17x32xf32, #tpu.memory_space<vmem>>, vector<2x8x8x32xf32>
    tpu.vector_store %arg17[%c0_180, %c1_181, %c8_182, %c0_183], %84 {strides = array<i32>} : memref<2x10x17x32xf32, #tpu.memory_space<vmem>>, vector<2x8x8x32xf32>,
    %c0_184 = arith.constant 0 : index
    %c0_185 = arith.constant 0 : index
    %c7_186 = arith.constant 7 : index
    %c0_187 = arith.constant 0 : index
    %86 = tpu.strided_load %arg17[%c0_184, %c0_185, %c7_186, %c0_187] {strides = array<i32: 1, 2, 2, 1>} : memref<2x10x17x32xf32, #tpu.memory_space<vmem>>, vector<2x4x4x32xf32>
    %c0_188 = arith.constant 0 : index
    %c0_189 = arith.constant 0 : index
    %c0_190 = arith.constant 0 : index
    %c0_191 = arith.constant 0 : index
    %87 = vector.load %arg14[%c0_188, %c0_189, %c0_190, %c0_191] : memref<2x4x4x288xf32, #tpu.memory_space<vmem>>, vector<2x4x4x32xf32>
    tpu.vector_store %arg14[%c0_188, %c0_189, %c0_190, %c0_191], %86 {strides = array<i32>} : memref<2x4x4x288xf32, #tpu.memory_space<vmem>>, vector<2x4x4x32xf32>,
    %c0_192 = arith.constant 0 : index
    %c0_193 = arith.constant 0 : index
    %c8_194 = arith.constant 8 : index
    %c0_195 = arith.constant 0 : index
    %88 = tpu.strided_load %arg17[%c0_192, %c0_193, %c8_194, %c0_195] {strides = array<i32: 1, 2, 2, 1>} : memref<2x10x17x32xf32, #tpu.memory_space<vmem>>, vector<2x4x4x32xf32>
    %c0_196 = arith.constant 0 : index
    %c0_197 = arith.constant 0 : index
    %c0_198 = arith.constant 0 : index
    %c32_199 = arith.constant 32 : index
    %89 = vector.load %arg14[%c0_196, %c0_197, %c0_198, %c32_199] : memref<2x4x4x288xf32, #tpu.memory_space<vmem>>, vector<2x4x4x32xf32>
    tpu.vector_store %arg14[%c0_196, %c0_197, %c0_198, %c32_199], %88 {strides = array<i32>} : memref<2x4x4x288xf32, #tpu.memory_space<vmem>>, vector<2x4x4x32xf32>,
    %c0_200 = arith.constant 0 : index
    %c0_201 = arith.constant 0 : index
    %c9_202 = arith.constant 9 : index
    %c0_203 = arith.constant 0 : index
    %90 = tpu.strided_load %arg17[%c0_200, %c0_201, %c9_202, %c0_203] {strides = array<i32: 1, 2, 2, 1>} : memref<2x10x17x32xf32, #tpu.memory_space<vmem>>, vector<2x4x4x32xf32>
    %c0_204 = arith.constant 0 : index
    %c0_205 = arith.constant 0 : index
    %c0_206 = arith.constant 0 : index
    %c64_207 = arith.constant 64 : index
    %91 = vector.load %arg14[%c0_204, %c0_205, %c0_206, %c64_207] : memref<2x4x4x288xf32, #tpu.memory_space<vmem>>, vector<2x4x4x32xf32>
    tpu.vector_store %arg14[%c0_204, %c0_205, %c0_206, %c64_207], %90 {strides = array<i32>} : memref<2x4x4x288xf32, #tpu.memory_space<vmem>>, vector<2x4x4x32xf32>,
    %c0_208 = arith.constant 0 : index
    %c1_209 = arith.constant 1 : index
    %c7_210 = arith.constant 7 : index
    %c0_211 = arith.constant 0 : index
    %92 = tpu.strided_load %arg17[%c0_208, %c1_209, %c7_210, %c0_211] {strides = array<i32: 1, 2, 2, 1>} : memref<2x10x17x32xf32, #tpu.memory_space<vmem>>, vector<2x4x4x32xf32>
    %c0_212 = arith.constant 0 : index
    %c0_213 = arith.constant 0 : index
    %c0_214 = arith.constant 0 : index
    %c96_215 = arith.constant 96 : index
    %93 = vector.load %arg14[%c0_212, %c0_213, %c0_214, %c96_215] : memref<2x4x4x288xf32, #tpu.memory_space<vmem>>, vector<2x4x4x32xf32>
    tpu.vector_store %arg14[%c0_212, %c0_213, %c0_214, %c96_215], %92 {strides = array<i32>} : memref<2x4x4x288xf32, #tpu.memory_space<vmem>>, vector<2x4x4x32xf32>,
    %c0_216 = arith.constant 0 : index
    %c1_217 = arith.constant 1 : index
    %c8_218 = arith.constant 8 : index
    %c0_219 = arith.constant 0 : index
    %94 = tpu.strided_load %arg17[%c0_216, %c1_217, %c8_218, %c0_219] {strides = array<i32: 1, 2, 2, 1>} : memref<2x10x17x32xf32, #tpu.memory_space<vmem>>, vector<2x4x4x32xf32>
    %c0_220 = arith.constant 0 : index
    %c0_221 = arith.constant 0 : index
    %c0_222 = arith.constant 0 : index
    %c128_223 = arith.constant 128 : index
    %95 = vector.load %arg14[%c0_220, %c0_221, %c0_222, %c128_223] : memref<2x4x4x288xf32, #tpu.memory_space<vmem>>, vector<2x4x4x32xf32>
    tpu.vector_store %arg14[%c0_220, %c0_221, %c0_222, %c128_223], %94 {strides = array<i32>} : memref<2x4x4x288xf32, #tpu.memory_space<vmem>>, vector<2x4x4x32xf32>,
    %c0_224 = arith.constant 0 : index
    %c1_225 = arith.constant 1 : index
    %c9_226 = arith.constant 9 : index
    %c0_227 = arith.constant 0 : index
    %96 = tpu.strided_load %arg17[%c0_224, %c1_225, %c9_226, %c0_227] {strides = array<i32: 1, 2, 2, 1>} : memref<2x10x17x32xf32, #tpu.memory_space<vmem>>, vector<2x4x4x32xf32>
    %c0_228 = arith.constant 0 : index
    %c0_229 = arith.constant 0 : index
    %c0_230 = arith.constant 0 : index
    %c160 = arith.constant 160 : index
    %97 = vector.load %arg14[%c0_228, %c0_229, %c0_230, %c160] : memref<2x4x4x288xf32, #tpu.memory_space<vmem>>, vector<2x4x4x32xf32>
    tpu.vector_store %arg14[%c0_228, %c0_229, %c0_230, %c160], %96 {strides = array<i32>} : memref<2x4x4x288xf32, #tpu.memory_space<vmem>>, vector<2x4x4x32xf32>,
    %c0_231 = arith.constant 0 : index
    %c2_232 = arith.constant 2 : index
    %c7_233 = arith.constant 7 : index
    %c0_234 = arith.constant 0 : index
    %98 = tpu.strided_load %arg17[%c0_231, %c2_232, %c7_233, %c0_234] {strides = array<i32: 1, 2, 2, 1>} : memref<2x10x17x32xf32, #tpu.memory_space<vmem>>, vector<2x4x4x32xf32>
    %c0_235 = arith.constant 0 : index
    %c0_236 = arith.constant 0 : index
    %c0_237 = arith.constant 0 : index
    %c192 = arith.constant 192 : index
    %99 = vector.load %arg14[%c0_235, %c0_236, %c0_237, %c192] : memref<2x4x4x288xf32, #tpu.memory_space<vmem>>, vector<2x4x4x32xf32>
    tpu.vector_store %arg14[%c0_235, %c0_236, %c0_237, %c192], %98 {strides = array<i32>} : memref<2x4x4x288xf32, #tpu.memory_space<vmem>>, vector<2x4x4x32xf32>,
    %c0_238 = arith.constant 0 : index
    %c2_239 = arith.constant 2 : index
    %c8_240 = arith.constant 8 : index
    %c0_241 = arith.constant 0 : index
    %100 = tpu.strided_load %arg17[%c0_238, %c2_239, %c8_240, %c0_241] {strides = array<i32: 1, 2, 2, 1>} : memref<2x10x17x32xf32, #tpu.memory_space<vmem>>, vector<2x4x4x32xf32>
    %c0_242 = arith.constant 0 : index
    %c0_243 = arith.constant 0 : index
    %c0_244 = arith.constant 0 : index
    %c224 = arith.constant 224 : index
    %101 = vector.load %arg14[%c0_242, %c0_243, %c0_244, %c224] : memref<2x4x4x288xf32, #tpu.memory_space<vmem>>, vector<2x4x4x32xf32>
    tpu.vector_store %arg14[%c0_242, %c0_243, %c0_244, %c224], %100 {strides = array<i32>} : memref<2x4x4x288xf32, #tpu.memory_space<vmem>>, vector<2x4x4x32xf32>,
    %c0_245 = arith.constant 0 : index
    %c2_246 = arith.constant 2 : index
    %c9_247 = arith.constant 9 : index
    %c0_248 = arith.constant 0 : index
    %102 = tpu.strided_load %arg17[%c0_245, %c2_246, %c9_247, %c0_248] {strides = array<i32: 1, 2, 2, 1>} : memref<2x10x17x32xf32, #tpu.memory_space<vmem>>, vector<2x4x4x32xf32>
    %c0_249 = arith.constant 0 : index
    %c0_250 = arith.constant 0 : index
    %c0_251 = arith.constant 0 : index
    %c256 = arith.constant 256 : index
    %103 = vector.load %arg14[%c0_249, %c0_250, %c0_251, %c256] : memref<2x4x4x288xf32, #tpu.memory_space<vmem>>, vector<2x4x4x32xf32>
    tpu.vector_store %arg14[%c0_249, %c0_250, %c0_251, %c256], %102 {strides = array<i32>} : memref<2x4x4x288xf32, #tpu.memory_space<vmem>>, vector<2x4x4x32xf32>,
    %c0_252 = arith.constant 0 : index
    %c0_253 = arith.constant 0 : index
    %c0_254 = arith.constant 0 : index
    %c0_255 = arith.constant 0 : index
    %104 = vector.load %arg14[%c0_252, %c0_253, %c0_254, %c0_255] : memref<2x4x4x288xf32, #tpu.memory_space<vmem>>, vector<2x4x4x288xf32>
    %105 = vector.shape_cast %104 : vector<2x4x4x288xf32> to vector<32x288xf32>
    %106 = arith.truncf %105 : vector<32x288xf32> to vector<32x288xbf16>
    %c0_256 = arith.constant 0 : index
    %c0_257 = arith.constant 0 : index
    %107 = vector.load %arg3[%c0_256, %c0_257] : memref<288x64xbf16, #tpu.memory_space<vmem>>, vector<288x64xbf16>
    %cst_258 = arith.constant dense<0.000000e+00> : vector<32x64xf32>
    %108 = tpu.matmul %106, %107, %cst_258 {dimension_numbers = #tpu.dot_dimension_numbers<[1], [0], [0], [1], [0, 0, 1, 1], [], []>} : vector<32x288xbf16>, vector<288x64xbf16>, vector<32x64xf32> -> vector<32x64xf32>
    %c0_259 = arith.constant 0 : index
    %c0_260 = arith.constant 0 : index
    %109 = vector.load %arg7[%c0_259, %c0_260] : memref<3x64xf32, #tpu.memory_space<vmem>>, vector<1x64xf32>
    %110 = vector.broadcast %109 : vector<1x64xf32> to vector<32x64xf32>
    %111 = arith.addf %108, %110 : vector<32x64xf32>
    %cst_261 = arith.constant 0.000000e+00 : f32
    %112 = vector.broadcast %cst_261 : f32 to vector<32x64xf32>
    %113 = arith.cmpf ogt, %111, %112 : vector<32x64xf32>
    %cst_262 = arith.constant 2.000000e-01 : f32
    %114 = vector.broadcast %cst_262 : f32 to vector<32x64xf32>
    %115 = arith.mulf %114, %111 : vector<32x64xf32>
    %116 = arith.select %113, %111, %115 : vector<32x64xi1>, vector<32x64xf32>
    %c1_263 = arith.constant 1 : index
    %c0_264 = arith.constant 0 : index
    %117 = vector.load %arg7[%c1_263, %c0_264] : memref<3x64xf32, #tpu.memory_space<vmem>>, vector<1x64xf32>
    %118 = vector.broadcast %117 : vector<1x64xf32> to vector<32x64xf32>
    %119 = arith.mulf %116, %118 : vector<32x64xf32>
    %c2_265 = arith.constant 2 : index
    %c0_266 = arith.constant 0 : index
    %120 = vector.load %arg7[%c2_265, %c0_266] : memref<3x64xf32, #tpu.memory_space<vmem>>, vector<1x64xf32>
    %121 = vector.broadcast %120 : vector<1x64xf32> to vector<32x64xf32>
    %122 = arith.addf %119, %121 : vector<32x64xf32>
    %cst_267 = arith.constant 0.000000e+00 : f32
    %123 = vector.broadcast %cst_267 : f32 to vector<2x1x13x64xf32>
    %c0_268 = arith.constant 0 : index
    %c0_269 = arith.constant 0 : index
    %c0_270 = arith.constant 0 : index
    %c0_271 = arith.constant 0 : index
    %124 = vector.load %arg18[%c0_268, %c0_269, %c0_270, %c0_271] : memref<2x6x13x64xf32, #tpu.memory_space<vmem>>, vector<2x1x13x64xf32>
    tpu.vector_store %arg18[%c0_268, %c0_269, %c0_270, %c0_271], %123 {strides = array<i32>} : memref<2x6x13x64xf32, #tpu.memory_space<vmem>>, vector<2x1x13x64xf32>,
    %cst_272 = arith.constant 0.000000e+00 : f32
    %125 = vector.broadcast %cst_272 : f32 to vector<2x6x1x64xf32>
    %c0_273 = arith.constant 0 : index
    %c0_274 = arith.constant 0 : index
    %c7_275 = arith.constant 7 : index
    %c0_276 = arith.constant 0 : index
    %126 = vector.load %arg18[%c0_273, %c0_274, %c7_275, %c0_276] : memref<2x6x13x64xf32, #tpu.memory_space<vmem>>, vector<2x6x1x64xf32>
    tpu.vector_store %arg18[%c0_273, %c0_274, %c7_275, %c0_276], %125 {strides = array<i32>} : memref<2x6x13x64xf32, #tpu.memory_space<vmem>>, vector<2x6x1x64xf32>,
    %127 = vector.shape_cast %122 : vector<32x64xf32> to vector<2x4x4x64xf32>
    %c0_277 = arith.constant 0 : index
    %c1_278 = arith.constant 1 : index
    %c8_279 = arith.constant 8 : index
    %c0_280 = arith.constant 0 : index
    %128 = vector.load %arg18[%c0_277, %c1_278, %c8_279, %c0_280] : memref<2x6x13x64xf32, #tpu.memory_space<vmem>>, vector<2x4x4x64xf32>
    tpu.vector_store %arg18[%c0_277, %c1_278, %c8_279, %c0_280], %127 {strides = array<i32>} : memref<2x6x13x64xf32, #tpu.memory_space<vmem>>, vector<2x4x4x64xf32>,
    %c0_281 = arith.constant 0 : index
    %c0_282 = arith.constant 0 : index
    %c7_283 = arith.constant 7 : index
    %c0_284 = arith.constant 0 : index
    %129 = tpu.strided_load %arg18[%c0_281, %c0_282, %c7_283, %c0_284] {strides = array<i32: 1, 2, 2, 1>} : memref<2x6x13x64xf32, #tpu.memory_space<vmem>>, vector<2x2x2x64xf32>
    %c0_285 = arith.constant 0 : index
    %c0_286 = arith.constant 0 : index
    %c0_287 = arith.constant 0 : index
    %c0_288 = arith.constant 0 : index
    %130 = vector.load %arg15[%c0_285, %c0_286, %c0_287, %c0_288] : memref<2x2x2x576xf32, #tpu.memory_space<vmem>>, vector<2x2x2x64xf32>
    tpu.vector_store %arg15[%c0_285, %c0_286, %c0_287, %c0_288], %129 {strides = array<i32>} : memref<2x2x2x576xf32, #tpu.memory_space<vmem>>, vector<2x2x2x64xf32>,
    %c0_289 = arith.constant 0 : index
    %c0_290 = arith.constant 0 : index
    %c8_291 = arith.constant 8 : index
    %c0_292 = arith.constant 0 : index
    %131 = tpu.strided_load %arg18[%c0_289, %c0_290, %c8_291, %c0_292] {strides = array<i32: 1, 2, 2, 1>} : memref<2x6x13x64xf32, #tpu.memory_space<vmem>>, vector<2x2x2x64xf32>
    %c0_293 = arith.constant 0 : index
    %c0_294 = arith.constant 0 : index
    %c0_295 = arith.constant 0 : index
    %c64_296 = arith.constant 64 : index
    %132 = vector.load %arg15[%c0_293, %c0_294, %c0_295, %c64_296] : memref<2x2x2x576xf32, #tpu.memory_space<vmem>>, vector<2x2x2x64xf32>
    tpu.vector_store %arg15[%c0_293, %c0_294, %c0_295, %c64_296], %131 {strides = array<i32>} : memref<2x2x2x576xf32, #tpu.memory_space<vmem>>, vector<2x2x2x64xf32>,
    %c0_297 = arith.constant 0 : index
    %c0_298 = arith.constant 0 : index
    %c9_299 = arith.constant 9 : index
    %c0_300 = arith.constant 0 : index
    %133 = tpu.strided_load %arg18[%c0_297, %c0_298, %c9_299, %c0_300] {strides = array<i32: 1, 2, 2, 1>} : memref<2x6x13x64xf32, #tpu.memory_space<vmem>>, vector<2x2x2x64xf32>
    %c0_301 = arith.constant 0 : index
    %c0_302 = arith.constant 0 : index
    %c0_303 = arith.constant 0 : index
    %c128_304 = arith.constant 128 : index
    %134 = vector.load %arg15[%c0_301, %c0_302, %c0_303, %c128_304] : memref<2x2x2x576xf32, #tpu.memory_space<vmem>>, vector<2x2x2x64xf32>
    tpu.vector_store %arg15[%c0_301, %c0_302, %c0_303, %c128_304], %133 {strides = array<i32>} : memref<2x2x2x576xf32, #tpu.memory_space<vmem>>, vector<2x2x2x64xf32>,
    %c0_305 = arith.constant 0 : index
    %c1_306 = arith.constant 1 : index
    %c7_307 = arith.constant 7 : index
    %c0_308 = arith.constant 0 : index
    %135 = tpu.strided_load %arg18[%c0_305, %c1_306, %c7_307, %c0_308] {strides = array<i32: 1, 2, 2, 1>} : memref<2x6x13x64xf32, #tpu.memory_space<vmem>>, vector<2x2x2x64xf32>
    %c0_309 = arith.constant 0 : index
    %c0_310 = arith.constant 0 : index
    %c0_311 = arith.constant 0 : index
    %c192_312 = arith.constant 192 : index
    %136 = vector.load %arg15[%c0_309, %c0_310, %c0_311, %c192_312] : memref<2x2x2x576xf32, #tpu.memory_space<vmem>>, vector<2x2x2x64xf32>
    tpu.vector_store %arg15[%c0_309, %c0_310, %c0_311, %c192_312], %135 {strides = array<i32>} : memref<2x2x2x576xf32, #tpu.memory_space<vmem>>, vector<2x2x2x64xf32>,
    %c0_313 = arith.constant 0 : index
    %c1_314 = arith.constant 1 : index
    %c8_315 = arith.constant 8 : index
    %c0_316 = arith.constant 0 : index
    %137 = tpu.strided_load %arg18[%c0_313, %c1_314, %c8_315, %c0_316] {strides = array<i32: 1, 2, 2, 1>} : memref<2x6x13x64xf32, #tpu.memory_space<vmem>>, vector<2x2x2x64xf32>
    %c0_317 = arith.constant 0 : index
    %c0_318 = arith.constant 0 : index
    %c0_319 = arith.constant 0 : index
    %c256_320 = arith.constant 256 : index
    %138 = vector.load %arg15[%c0_317, %c0_318, %c0_319, %c256_320] : memref<2x2x2x576xf32, #tpu.memory_space<vmem>>, vector<2x2x2x64xf32>
    tpu.vector_store %arg15[%c0_317, %c0_318, %c0_319, %c256_320], %137 {strides = array<i32>} : memref<2x2x2x576xf32, #tpu.memory_space<vmem>>, vector<2x2x2x64xf32>,
    %c0_321 = arith.constant 0 : index
    %c1_322 = arith.constant 1 : index
    %c9_323 = arith.constant 9 : index
    %c0_324 = arith.constant 0 : index
    %139 = tpu.strided_load %arg18[%c0_321, %c1_322, %c9_323, %c0_324] {strides = array<i32: 1, 2, 2, 1>} : memref<2x6x13x64xf32, #tpu.memory_space<vmem>>, vector<2x2x2x64xf32>
    %c0_325 = arith.constant 0 : index
    %c0_326 = arith.constant 0 : index
    %c0_327 = arith.constant 0 : index
    %c320 = arith.constant 320 : index
    %140 = vector.load %arg15[%c0_325, %c0_326, %c0_327, %c320] : memref<2x2x2x576xf32, #tpu.memory_space<vmem>>, vector<2x2x2x64xf32>
    tpu.vector_store %arg15[%c0_325, %c0_326, %c0_327, %c320], %139 {strides = array<i32>} : memref<2x2x2x576xf32, #tpu.memory_space<vmem>>, vector<2x2x2x64xf32>,
    %c0_328 = arith.constant 0 : index
    %c2_329 = arith.constant 2 : index
    %c7_330 = arith.constant 7 : index
    %c0_331 = arith.constant 0 : index
    %141 = tpu.strided_load %arg18[%c0_328, %c2_329, %c7_330, %c0_331] {strides = array<i32: 1, 2, 2, 1>} : memref<2x6x13x64xf32, #tpu.memory_space<vmem>>, vector<2x2x2x64xf32>
    %c0_332 = arith.constant 0 : index
    %c0_333 = arith.constant 0 : index
    %c0_334 = arith.constant 0 : index
    %c384 = arith.constant 384 : index
    %142 = vector.load %arg15[%c0_332, %c0_333, %c0_334, %c384] : memref<2x2x2x576xf32, #tpu.memory_space<vmem>>, vector<2x2x2x64xf32>
    tpu.vector_store %arg15[%c0_332, %c0_333, %c0_334, %c384], %141 {strides = array<i32>} : memref<2x2x2x576xf32, #tpu.memory_space<vmem>>, vector<2x2x2x64xf32>,
    %c0_335 = arith.constant 0 : index
    %c2_336 = arith.constant 2 : index
    %c8_337 = arith.constant 8 : index
    %c0_338 = arith.constant 0 : index
    %143 = tpu.strided_load %arg18[%c0_335, %c2_336, %c8_337, %c0_338] {strides = array<i32: 1, 2, 2, 1>} : memref<2x6x13x64xf32, #tpu.memory_space<vmem>>, vector<2x2x2x64xf32>
    %c0_339 = arith.constant 0 : index
    %c0_340 = arith.constant 0 : index
    %c0_341 = arith.constant 0 : index
    %c448 = arith.constant 448 : index
    %144 = vector.load %arg15[%c0_339, %c0_340, %c0_341, %c448] : memref<2x2x2x576xf32, #tpu.memory_space<vmem>>, vector<2x2x2x64xf32>
    tpu.vector_store %arg15[%c0_339, %c0_340, %c0_341, %c448], %143 {strides = array<i32>} : memref<2x2x2x576xf32, #tpu.memory_space<vmem>>, vector<2x2x2x64xf32>,
    %c0_342 = arith.constant 0 : index
    %c2_343 = arith.constant 2 : index
    %c9_344 = arith.constant 9 : index
    %c0_345 = arith.constant 0 : index
    %145 = tpu.strided_load %arg18[%c0_342, %c2_343, %c9_344, %c0_345] {strides = array<i32: 1, 2, 2, 1>} : memref<2x6x13x64xf32, #tpu.memory_space<vmem>>, vector<2x2x2x64xf32>
    %c0_346 = arith.constant 0 : index
    %c0_347 = arith.constant 0 : index
    %c0_348 = arith.constant 0 : index
    %c512 = arith.constant 512 : index
    %146 = vector.load %arg15[%c0_346, %c0_347, %c0_348, %c512] : memref<2x2x2x576xf32, #tpu.memory_space<vmem>>, vector<2x2x2x64xf32>
    tpu.vector_store %arg15[%c0_346, %c0_347, %c0_348, %c512], %145 {strides = array<i32>} : memref<2x2x2x576xf32, #tpu.memory_space<vmem>>, vector<2x2x2x64xf32>,
    %c0_349 = arith.constant 0 : index
    %c0_350 = arith.constant 0 : index
    %c0_351 = arith.constant 0 : index
    %c0_352 = arith.constant 0 : index
    %147 = vector.load %arg15[%c0_349, %c0_350, %c0_351, %c0_352] : memref<2x2x2x576xf32, #tpu.memory_space<vmem>>, vector<2x2x2x576xf32>
    %148 = vector.shape_cast %147 : vector<2x2x2x576xf32> to vector<8x576xf32>
    %149 = arith.truncf %148 : vector<8x576xf32> to vector<8x576xbf16>
    %c0_353 = arith.constant 0 : index
    %c0_354 = arith.constant 0 : index
    %150 = vector.load %arg4[%c0_353, %c0_354] : memref<576x128xbf16, #tpu.memory_space<vmem>>, vector<576x128xbf16>
    %cst_355 = arith.constant dense<0.000000e+00> : vector<8x128xf32>
    %151 = tpu.matmul %149, %150, %cst_355 {dimension_numbers = #tpu.dot_dimension_numbers<[1], [0], [0], [1], [0, 0, 1, 1], [], []>} : vector<8x576xbf16>, vector<576x128xbf16>, vector<8x128xf32> -> vector<8x128xf32>
    %c0_356 = arith.constant 0 : index
    %c0_357 = arith.constant 0 : index
    %152 = vector.load %arg8[%c0_356, %c0_357] : memref<3x128xf32, #tpu.memory_space<vmem>>, vector<1x128xf32>
    %153 = vector.broadcast %152 : vector<1x128xf32> to vector<8x128xf32>
    %154 = arith.addf %151, %153 : vector<8x128xf32>
    %cst_358 = arith.constant 0.000000e+00 : f32
    %155 = vector.broadcast %cst_358 : f32 to vector<8x128xf32>
    %156 = arith.cmpf ogt, %154, %155 : vector<8x128xf32>
    %cst_359 = arith.constant 2.000000e-01 : f32
    %157 = vector.broadcast %cst_359 : f32 to vector<8x128xf32>
    %158 = arith.mulf %157, %154 : vector<8x128xf32>
    %159 = arith.select %156, %154, %158 : vector<8x128xi1>, vector<8x128xf32>
    %c1_360 = arith.constant 1 : index
    %c0_361 = arith.constant 0 : index
    %160 = vector.load %arg8[%c1_360, %c0_361] : memref<3x128xf32, #tpu.memory_space<vmem>>, vector<1x128xf32>
    %161 = vector.broadcast %160 : vector<1x128xf32> to vector<8x128xf32>
    %162 = arith.mulf %159, %161 : vector<8x128xf32>
    %c2_362 = arith.constant 2 : index
    %c0_363 = arith.constant 0 : index
    %163 = vector.load %arg8[%c2_362, %c0_363] : memref<3x128xf32, #tpu.memory_space<vmem>>, vector<1x128xf32>
    %164 = vector.broadcast %163 : vector<1x128xf32> to vector<8x128xf32>
    %165 = arith.addf %162, %164 : vector<8x128xf32>
    %166 = vector.shape_cast %165 : vector<8x128xf32> to vector<2x4x128xf32>
    %167 = vector.extract_strided_slice %166 {offsets = [0, 0, 0], sizes = [2, 1, 128], strides = [1, 1, 1]} : vector<2x4x128xf32> to vector<2x1x128xf32>
    %168 = vector.shape_cast %167 : vector<2x1x128xf32> to vector<2x128xf32>
    %169 = vector.extract_strided_slice %166 {offsets = [0, 1, 0], sizes = [2, 1, 128], strides = [1, 1, 1]} : vector<2x4x128xf32> to vector<2x1x128xf32>
    %170 = vector.shape_cast %169 : vector<2x1x128xf32> to vector<2x128xf32>
    %171 = vector.extract_strided_slice %166 {offsets = [0, 2, 0], sizes = [2, 1, 128], strides = [1, 1, 1]} : vector<2x4x128xf32> to vector<2x1x128xf32>
    %172 = vector.shape_cast %171 : vector<2x1x128xf32> to vector<2x128xf32>
    %173 = vector.extract_strided_slice %166 {offsets = [0, 3, 0], sizes = [2, 1, 128], strides = [1, 1, 1]} : vector<2x4x128xf32> to vector<2x1x128xf32>
    %174 = vector.shape_cast %173 : vector<2x1x128xf32> to vector<2x128xf32>
    %175 = tpu.concatenate %168, %170, %172, %174 in 1 : vector<2x128xf32>, vector<2x128xf32>, vector<2x128xf32>, vector<2x128xf32> -> vector<2x512xf32>
    %176 = arith.truncf %175 : vector<2x512xf32> to vector<2x512xbf16>
    %c0_364 = arith.constant 0 : index
    %c0_365 = arith.constant 0 : index
    %177 = vector.load %arg9[%c0_364, %c0_365] : memref<512x128xbf16, #tpu.memory_space<vmem>>, vector<512x128xbf16>
    %cst_366 = arith.constant dense<0.000000e+00> : vector<2x128xf32>
    %178 = tpu.matmul %176, %177, %cst_366 {dimension_numbers = #tpu.dot_dimension_numbers<[1], [0], [0], [1], [0, 0, 1, 1], [], []>} : vector<2x512xbf16>, vector<512x128xbf16>, vector<2x128xf32> -> vector<2x128xf32>
    %c0_367 = arith.constant 0 : index
    %c0_368 = arith.constant 0 : index
    %179 = vector.load %arg10[%c0_367, %c0_368] : memref<1x128xf32, #tpu.memory_space<vmem>>, vector<1x128xf32>
    %180 = vector.broadcast %179 : vector<1x128xf32> to vector<2x128xf32>
    %181 = arith.addf %178, %180 : vector<2x128xf32>
    %182 = tpu.iota {dimensions = array<i32: 1>} : vector<2x128xi32>
    %c1_i32 = arith.constant 1 : i32
    %183 = vector.broadcast %c1_i32 : i32 to vector<2x128xi32>
    %184 = arith.cmpi sge, %182, %183 : vector<2x128xi32>
    %c11_i32 = arith.constant 11 : i32
    %185 = vector.broadcast %c11_i32 : i32 to vector<2x128xi32>
    %186 = arith.cmpi slt, %182, %185 : vector<2x128xi32>
    %187 = arith.andi %184, %186 : vector<2x128xi1>
    %cst_369 = arith.constant 0.000000e+00 : f32
    %188 = vector.broadcast %cst_369 : f32 to vector<2x128xf32>
    %189 = arith.subf %188, %181 : vector<2x128xf32>
    %190 = math.exp %189 : vector<2x128xf32>
    %cst_370 = arith.constant 1.000000e+00 : f32
    %191 = vector.broadcast %cst_370 : f32 to vector<2x128xf32>
    %192 = arith.addf %191, %190 : vector<2x128xf32>
    %cst_371 = arith.constant 1.000000e+00 : f32
    %193 = vector.broadcast %cst_371 : f32 to vector<2x128xf32>
    %194 = arith.divf %193, %192 : vector<2x128xf32>
    %cst_372 = arith.constant -1.000000e+30 : f32
    %195 = vector.broadcast %cst_372 : f32 to vector<2x128xf32>
    %196 = arith.select %187, %181, %195 : vector<2x128xi1>, vector<2x128xf32>
    %cst_373 = arith.constant dense<0xFF800000> : vector<2xf32>
    %197 = vector.multi_reduction <maximumf>, %196, %cst_373 [1] : vector<2x128xf32> to vector<2xf32>
    %198 = vector.shape_cast %197 : vector<2xf32> to vector<2x1xf32>
    %199 = vector.broadcast %198 : vector<2x1xf32> to vector<2x128xf32>
    %200 = arith.subf %196, %199 : vector<2x128xf32>
    %201 = math.exp %200 : vector<2x128xf32>
    %cst_374 = arith.constant 0.000000e+00 : f32
    %202 = vector.broadcast %cst_374 : f32 to vector<2x128xf32>
    %203 = arith.select %187, %201, %202 : vector<2x128xi1>, vector<2x128xf32>
    %cst_375 = arith.constant dense<0.000000e+00> : vector<2xf32>
    %204 = vector.multi_reduction <add>, %203, %cst_375 [1] : vector<2x128xf32> to vector<2xf32>
    %205 = vector.shape_cast %204 : vector<2xf32> to vector<2x1xf32>
    %206 = vector.broadcast %205 : vector<2x1xf32> to vector<2x128xf32>
    %207 = arith.divf %203, %206 : vector<2x128xf32>
    %c0_i32 = arith.constant 0 : i32
    %208 = vector.broadcast %c0_i32 : i32 to vector<2x128xi32>
    %209 = arith.cmpi eq, %182, %208 : vector<2x128xi32>
    %cst_376 = arith.constant 0.000000e+00 : f32
    %210 = vector.broadcast %cst_376 : f32 to vector<2x128xf32>
    %211 = arith.select %187, %207, %210 : vector<2x128xi1>, vector<2x128xf32>
    %212 = arith.select %209, %194, %211 : vector<2x128xi1>, vector<2x128xf32>
    %c0_377 = arith.constant 0 : index
    %c0_378 = arith.constant 0 : index
    %213 = vector.load %arg11[%c0_377, %c0_378] : memref<2x128xf32, #tpu.memory_space<vmem>>, vector<2x128xf32>
    tpu.vector_store %arg11[%c0_377, %c0_378], %212 {strides = array<i32>} : memref<2x128xf32, #tpu.memory_space<vmem>>, vector<2x128xf32>,
    return
  }
}

</mosaic_0001>

<llo_original>
// kernel: discriminator_forward.1
$region0: #{discriminator_forward.1}
  #allocation0 [shape = 'u32[]', space=smem, size = 0x4, offset = 0x4, fixed_abs, tag = 'smem constant byte address 0x4 - core index']
  #allocation1 [shape = 'u32[144,128]{1,0:T(1,128)}', space=vmem, size = 0x12000, scoped, tag = 'internal scratch']
  #allocation2 [shape = 'f32[2,16,16,72]{3,2,1,0:T(8,128)}', space=vmem, size = 0x40000, scoped, tag = 'scratch operand']
  #allocation3 [shape = 'f32[2,8,8,144]{3,2,1,0:T(8,128)}', space=vmem, size = 0x20000, scoped, tag = 'scratch operand']
  #allocation4 [shape = 'f32[2,4,4,288]{3,2,1,0:T(4,128)}', space=vmem, size = 0xc000, scoped, tag = 'scratch operand']
  #allocation5 [shape = 'f32[2,2,2,576]{3,2,1,0:T(2,128)}', space=vmem, size = 0x5000, scoped, tag = 'scratch operand']
  #allocation6 [shape = 'f32[2,18,25,16]{3,2,1,0:T(8,128)}', space=vmem, size = 0x90000, scoped, tag = 'scratch operand']
  #allocation7 [shape = 'f32[2,10,17,32]{3,2,1,0:T(8,128)}', space=vmem, size = 0x3c000, scoped, tag = 'scratch operand']
  #allocation8 [shape = 'f32[2,6,13,64]{3,2,1,0:T(8,128)}', space=vmem, size = 0x18000, scoped, tag = 'scratch operand']
  %s0 = inlined_call_operand.vmem [shape: f32[2,34,41,8], index: 0, kind: input, shape index: {}]
  %s1 = inlined_call_operand.vmem [shape: bf16[72,16], index: 1, kind: input, shape index: {}]
  %s2 = inlined_call_operand.vmem [shape: bf16[144,32], index: 2, kind: input, shape index: {}]
  %s3 = inlined_call_operand.vmem [shape: bf16[288,64], index: 3, kind: input, shape index: {}]
  %s4 = inlined_call_operand.vmem [shape: bf16[576,128], index: 4, kind: input, shape index: {}]
  %s5 = inlined_call_operand.vmem [shape: f32[3,16], index: 5, kind: input, shape index: {}]
  %s6 = inlined_call_operand.vmem [shape: f32[3,32], index: 6, kind: input, shape index: {}]
  %s7 = inlined_call_operand.vmem [shape: f32[3,64], index: 7, kind: input, shape index: {}]
  %s8 = inlined_call_operand.vmem [shape: f32[3,128], index: 8, kind: input, shape index: {}]
  %s9 = inlined_call_operand.vmem [shape: bf16[512,128], index: 9, kind: input, shape index: {}]
  %s10 = inlined_call_operand.vmem [shape: f32[1,128], index: 10, kind: input, shape index: {}]
  %s11 = inlined_call_operand.vmem [shape: f32[2,128], index: 11, kind: output, shape index: {}]
  %s12 = sld [smem:[#allocation0]]
  $region54: #{discriminator_forward.1} parent=0
    _
  %s14 = ssub.s32 1, %s12
  %s15 = scalar_select 0, %s14, %s12
  // Predicated region
  $region2: #{discriminator_forward.1} parent=0 // pred_check
    _
  $region3: #{discriminator_forward.1} parent=0 // pred_check_branch
    %17 = sbr.rel (0) target = $region5
  $region4: #{discriminator_forward.1} parent=0 // pred_region
    _
  $region5: #{discriminator_forward.1} parent=0 // pred_fallthru
    _
  // Predicated region
  $region6: #{discriminator_forward.1} parent=0 // pred_check
    _
  $region7: #{discriminator_forward.1} parent=0 // pred_check_branch
    %19 = sbr.rel (0) target = $region9
  $region8: #{discriminator_forward.1} parent=0 // pred_region
    _
  $region9: #{discriminator_forward.1} parent=0 // pred_fallthru
    _
  // Predicated region
  $region10: #{discriminator_forward.1} parent=0 // pred_check
    _
  $region11: #{discriminator_forward.1} parent=0 // pred_check_branch
    %21 = sbr.rel (0) target = $region13
  $region12: #{discriminator_forward.1} parent=0 // pred_region
    _
  $region13: #{discriminator_forward.1} parent=0 // pred_fallthru
    _
  // Predicated region
  $region14: #{discriminator_forward.1} parent=0 // pred_check
    _
  $region15: #{discriminator_forward.1} parent=0 // pred_check_branch
    %23 = sbr.rel (0) target = $region17
  $region16: #{discriminator_forward.1} parent=0 // pred_region
    _
  $region17: #{discriminator_forward.1} parent=0 // pred_fallthru
    _
  // Predicated region
  $region18: #{discriminator_forward.1} parent=0 // pred_check
    _
  $region19: #{discriminator_forward.1} parent=0 // pred_check_branch
    %25 = sbr.rel (0) target = $region21
  $region20: #{discriminator_forward.1} parent=0 // pred_region
    _
  $region21: #{discriminator_forward.1} parent=0 // pred_fallthru
    _
  // Predicated region
  $region22: #{discriminator_forward.1} parent=0 // pred_check
    _
  $region23: #{discriminator_forward.1} parent=0 // pred_check_branch
    %27 = sbr.rel (0) target = $region25
  $region24: #{discriminator_forward.1} parent=0 // pred_region
    _
  $region25: #{discriminator_forward.1} parent=0 // pred_fallthru
    _
  // Predicated region
  $region26: #{discriminator_forward.1} parent=0 // pred_check
    _
  $region27: #{discriminator_forward.1} parent=0 // pred_check_branch
    %29 = sbr.rel (0) target = $region29
  $region28: #{discriminator_forward.1} parent=0 // pred_region
    _
  $region29: #{discriminator_forward.1} parent=0 // pred_fallthru
    _
  // Predicated region
  $region30: #{discriminator_forward.1} parent=0 // pred_check
    _
  $region31: #{discriminator_forward.1} parent=0 // pred_check_branch
    %31 = sbr.rel (0) target = $region33
  $region32: #{discriminator_forward.1} parent=0 // pred_region
    _
  $region33: #{discriminator_forward.1} parent=0 // pred_fallthru
    _
  // Predicated region
  $region34: #{discriminator_forward.1} parent=0 // pred_check
    _
  $region35: #{discriminator_forward.1} parent=0 // pred_check_branch
    %33 = sbr.rel (0) target = $region37
  $region36: #{discriminator_forward.1} parent=0 // pred_region
    _
  $region37: #{discriminator_forward.1} parent=0 // pred_fallthru
    _
  // Predicated region
  $region38: #{discriminator_forward.1} parent=0 // pred_check
    _
  $region39: #{discriminator_forward.1} parent=0 // pred_check_branch
    %35 = sbr.rel (0) target = $region41
  $region40: #{discriminator_forward.1} parent=0 // pred_region
    _
  $region41: #{discriminator_forward.1} parent=0 // pred_fallthru
    _
  // Predicated region
  $region42: #{discriminator_forward.1} parent=0 // pred_check
    _
  $region43: #{discriminator_forward.1} parent=0 // pred_check_branch
    %37 = sbr.rel (0) target = $region45
  $region44: #{discriminator_forward.1} parent=0 // pred_region
    _
  $region45: #{discriminator_forward.1} parent=0 // pred_fallthru
    _
  %s39 = scalar_lea.vmem %s0, 7
  %v40 = vld [vmem:[%s39] ss:$2 sm:$0xff]
  %s41 = scalar_lea.vmem %s0, 23
  %v42 = vld [vmem:[%s41] ss:$2 sm:$0xff]
  %s43 = scalar_lea.vmem %s0, 103
  %v44 = vld [vmem:[%s43] ss:$2 sm:$0xff]
  %s45 = scalar_lea.vmem %s0, 119
  %v46 = vld [vmem:[%s45] ss:$2 sm:$0xff]
  %s47 = scalar_lea.vmem %s0, 199
  %v48 = vld [vmem:[%s47] ss:$2 sm:$0xff]
  %s49 = scalar_lea.vmem %s0, 215
  %v50 = vld [vmem:[%s49] ss:$2 sm:$0xff]
  %s51 = scalar_lea.vmem %s0, 295
  %v52 = vld [vmem:[%s51] ss:$2 sm:$0xff]
  %s53 = scalar_lea.vmem %s0, 311
  %v54 = vld [vmem:[%s53] ss:$2 sm:$0xff]
  %s55 = scalar_lea.vmem %s0, 391
  %v56 = vld [vmem:[%s55] ss:$2 sm:$0xff]
  %s57 = scalar_lea.vmem %s0, 407
  %v58 = vld [vmem:[%s57] ss:$2 sm:$0xff]
  %s59 = scalar_lea.vmem %s0, 487
  %v60 = vld [vmem:[%s59] ss:$2 sm:$0xff]
  %s61 = scalar_lea.vmem %s0, 503
  %v62 = vld [vmem:[%s61] ss:$2 sm:$0xff]
  %s63 = scalar_lea.vmem %s0, 583
  %v64 = vld [vmem:[%s63] ss:$2 sm:$0xff]
  %s65 = scalar_lea.vmem %s0, 599
  %v66 = vld [vmem:[%s65] ss:$2 sm:$0xff]
  %s67 = scalar_lea.vmem %s0, 679
  %v68 = vld [vmem:[%s67] ss:$2 sm:$0xff]
  %s69 = scalar_lea.vmem %s0, 695
  %v70 = vld [vmem:[%s69] ss:$2 sm:$0xff]
  %s71 = scalar_lea.vmem %s0, 775
  %v72 = vld [vmem:[%s71] ss:$2 sm:$0xff]
  %s73 = scalar_lea.vmem %s0, 791
  %v74 = vld [vmem:[%s73] ss:$2 sm:$0xff]
  %s75 = scalar_lea.vmem %s0, 871
  %v76 = vld [vmem:[%s75] ss:$2 sm:$0xff]
  %s77 = scalar_lea.vmem %s0, 887
  %v78 = vld [vmem:[%s77] ss:$2 sm:$0xff]
  %s79 = scalar_lea.vmem %s0, 967
  %v80 = vld [vmem:[%s79] ss:$2 sm:$0xff]
  %s81 = scalar_lea.vmem %s0, 983
  %v82 = vld [vmem:[%s81] ss:$2 sm:$0xff]
  %s83 = scalar_lea.vmem %s0, 1063
  %v84 = vld [vmem:[%s83] ss:$2 sm:$0xff]
  %s85 = scalar_lea.vmem %s0, 1079
  %v86 = vld [vmem:[%s85] ss:$2 sm:$0xff]
  %s87 = scalar_lea.vmem %s0, 1159
  %v88 = vld [vmem:[%s87] ss:$2 sm:$0xff]
  %s89 = scalar_lea.vmem %s0, 1175
  %v90 = vld [vmem:[%s89] ss:$2 sm:$0xff]
  %s91 = scalar_lea.vmem %s0, 1255
  %v92 = vld [vmem:[%s91] ss:$2 sm:$0xff]
  %s93 = scalar_lea.vmem %s0, 1271
  %v94 = vld [vmem:[%s93] ss:$2 sm:$0xff]
  %s95 = scalar_lea.vmem %s0, 1351
  %v96 = vld [vmem:[%s95] ss:$2 sm:$0xff]
  %s97 = scalar_lea.vmem %s0, 1367
  %v98 = vld [vmem:[%s97] ss:$2 sm:$0xff]
  %s99 = scalar_lea.vmem %s0, 1447
  %v100 = vld [vmem:[%s99] ss:$2 sm:$0xff]
  %s101 = scalar_lea.vmem %s0, 1463
  %v102 = vld [vmem:[%s101] ss:$2 sm:$0xff]
  %s103 = scalar_lea.vmem %s0, 1639
  %v104 = vld [vmem:[%s103] ss:$2 sm:$0xff]
  %s105 = scalar_lea.vmem %s0, 1655
  %v106 = vld [vmem:[%s105] ss:$2 sm:$0xff]
  %s107 = scalar_lea.vmem %s0, 1735
  %v108 = vld [vmem:[%s107] ss:$2 sm:$0xff]
  %s109 = scalar_lea.vmem %s0, 1751
  %v110 = vld [vmem:[%s109] ss:$2 sm:$0xff]
  %s111 = scalar_lea.vmem %s0, 1831
  %v112 = vld [vmem:[%s111] ss:$2 sm:$0xff]
  %s113 = scalar_lea.vmem %s0, 1847
  %v114 = vld [vmem:[%s113] ss:$2 sm:$0xff]
  %s115 = scalar_lea.vmem %s0, 1927
  %v116 = vld [vmem:[%s115] ss:$2 sm:$0xff]
  %s117 = scalar_lea.vmem %s0, 1943
  %v118 = vld [vmem:[%s117] ss:$2 sm:$0xff]
  %s119 = scalar_lea.vmem %s0, 2023
  %v120 = vld [vmem:[%s119] ss:$2 sm:$0xff]
  %s121 = scalar_lea.vmem %s0, 2039
  %v122 = vld [vmem:[%s121] ss:$2 sm:$0xff]
  %s123 = scalar_lea.vmem %s0, 2119
  %v124 = vld [vmem:[%s123] ss:$2 sm:$0xff]
  %s125 = scalar_lea.vmem %s0, 2135
  %v126 = vld [vmem:[%s125] ss:$2 sm:$0xff]
  %s127 = scalar_lea.vmem %s0, 2215
  %v128 = vld [vmem:[%s127] ss:$2 sm:$0xff]
  %s129 = scalar_lea.vmem %s0, 2231
  %v130 = vld [vmem:[%s129] ss:$2 sm:$0xff]
  %s131 = scalar_lea.vmem %s0, 2311
  %v132 = vld [vmem:[%s131] ss:$2 sm:$0xff]
  %s133 = scalar_lea.vmem %s0, 2327
  %v134 = vld [vmem:[%s133] ss:$2 sm:$0xff]
  %s135 = scalar_lea.vmem %s0, 2407
  %v136 = vld [vmem:[%s135] ss:$2 sm:$0xff]
  %s137 = scalar_lea.vmem %s0, 2423
  %v138 = vld [vmem:[%s137] ss:$2 sm:$0xff]
  %s139 = scalar_lea.vmem %s0, 2503
  %v140 = vld [vmem:[%s139] ss:$2 sm:$0xff]
  %s141 = scalar_lea.vmem %s0, 2519
  %v142 = vld [vmem:[%s141] ss:$2 sm:$0xff]
  %s143 = scalar_lea.vmem %s0, 2599
  %v144 = vld [vmem:[%s143] ss:$2 sm:$0xff]
  %s145 = scalar_lea.vmem %s0, 2615
  %v146 = vld [vmem:[%s145] ss:$2 sm:$0xff]
  %s147 = scalar_lea.vmem %s0, 2695
  %v148 = vld [vmem:[%s147] ss:$2 sm:$0xff]
  %s149 = scalar_lea.vmem %s0, 2711
  %v150 = vld [vmem:[%s149] ss:$2 sm:$0xff]
  %s151 = scalar_lea.vmem %s0, 2791
  %v152 = vld [vmem:[%s151] ss:$2 sm:$0xff]
  %s153 = scalar_lea.vmem %s0, 2807
  %v154 = vld [vmem:[%s153] ss:$2 sm:$0xff]
  %s155 = scalar_lea.vmem %s0, 2887
  %v156 = vld [vmem:[%s155] ss:$2 sm:$0xff]
  %s157 = scalar_lea.vmem %s0, 2903
  %v158 = vld [vmem:[%s157] ss:$2 sm:$0xff]
  %s159 = scalar_lea.vmem %s0, 2983
  %v160 = vld [vmem:[%s159] ss:$2 sm:$0xff]
  %s161 = scalar_lea.vmem %s0, 2999
  %v162 = vld [vmem:[%s161] ss:$2 sm:$0xff]
  %s163 = scalar_lea.vmem %s0, 3079
  %v164 = vld [vmem:[%s163] ss:$2 sm:$0xff]
  %s165 = scalar_lea.vmem %s0, 3095
  %v166 = vld [vmem:[%s165] ss:$2 sm:$0xff]
  %vm167 = vcmask 64512
  %168 = vst.msk [vmem:[#allocation2] sm:$0xff] %vm167, %v40
  %169 = vst.msk [vmem:[#allocation2 + $0x8] sm:$0xff] %vm167, %v42
  %170 = vst.msk [vmem:[#allocation2 + $0x10] sm:$0xff] %vm167, %v44
  %171 = vst.msk [vmem:[#allocation2 + $0x18] sm:$0xff] %vm167, %v46
  %172 = vst.msk [vmem:[#allocation2 + $0x20] sm:$0xff] %vm167, %v48
  %173 = vst.msk [vmem:[#allocation2 + $0x28] sm:$0xff] %vm167, %v50
  %174 = vst.msk [vmem:[#allocation2 + $0x30] sm:$0xff] %vm167, %v52
  %175 = vst.msk [vmem:[#allocation2 + $0x38] sm:$0xff] %vm167, %v54
  %176 = vst.msk [vmem:[#allocation2 + $0x40] sm:$0xff] %vm167, %v56
  %177 = vst.msk [vmem:[#allocation2 + $0x48] sm:$0xff] %vm167, %v58
  %178 = vst.msk [vmem:[#allocation2 + $0x50] sm:$0xff] %vm167, %v60
  %179 = vst.msk [vmem:[#allocation2 + $0x58] sm:$0xff] %vm167, %v62
  %180 = vst.msk [vmem:[#allocation2 + $0x60] sm:$0xff] %vm167, %v64
  %181 = vst.msk [vmem:[#allocation2 + $0x68] sm:$0xff] %vm167, %v66
  %182 = vst.msk [vmem:[#allocation2 + $0x70] sm:$0xff] %vm167, %v68
  %183 = vst.msk [vmem:[#allocation2 + $0x78] sm:$0xff] %vm167, %v70
  %184 = vst.msk [vmem:[#allocation2 + $0x80] sm:$0xff] %vm167, %v72
  %185 = vst.msk [vmem:[#allocation2 + $0x88] sm:$0xff] %vm167, %v74
  %186 = vst.msk [vmem:[#allocation2 + $0x90] sm:$0xff] %vm167, %v76
  %187 = vst.msk [vmem:[#allocation2 + $0x98] sm:$0xff] %vm167, %v78
  %188 = vst.msk [vmem:[#allocation2 + $0xa0] sm:$0xff] %vm167, %v80
  %189 = vst.msk [vmem:[#allocation2 + $0xa8] sm:$0xff] %vm167, %v82
  %190 = vst.msk [vmem:[#allocation2 + $0xb0] sm:$0xff] %vm167, %v84
  %191 = vst.msk [vmem:[#allocation2 + $0xb8] sm:$0xff] %vm167, %v86
  %192 = vst.msk [vmem:[#allocation2 + $0xc0] sm:$0xff] %vm167, %v88
  %193 = vst.msk [vmem:[#allocation2 + $0xc8] sm:$0xff] %vm167, %v90
  %194 = vst.msk [vmem:[#allocation2 + $0xd0] sm:$0xff] %vm167, %v92
  %195 = vst.msk [vmem:[#allocation2 + $0xd8] sm:$0xff] %vm167, %v94
  %196 = vst.msk [vmem:[#allocation2 + $0xe0] sm:$0xff] %vm167, %v96
  %197 = vst.msk [vmem:[#allocation2 + $0xe8] sm:$0xff] %vm167, %v98
  %198 = vst.msk [vmem:[#allocation2 + $0xf0] sm:$0xff] %vm167, %v100
  %199 = vst.msk [vmem:[#allocation2 + $0xf8] sm:$0xff] %vm167, %v102
  %200 = vst.msk [vmem:[#allocation2 + $0x100] sm:$0xff] %vm167, %v104
  %201 = vst.msk [vmem:[#allocation2 + $0x108] sm:$0xff] %vm167, %v106
  %202 = vst.msk [vmem:[#allocation2 + $0x110] sm:$0xff] %vm167, %v108
  %203 = vst.msk [vmem:[#allocation2 + $0x118] sm:$0xff] %vm167, %v110
  %204 = vst.msk [vmem:[#allocation2 + $0x120] sm:$0xff] %vm167, %v112
  %205 = vst.msk [vmem:[#allocation2 + $0x128] sm:$0xff] %vm167, %v114
  %206 = vst.msk [vmem:[#allocation2 + $0x130] sm:$0xff] %vm167, %v116
  %207 = vst.msk [vmem:[#allocation2 + $0x138] sm:$0xff] %vm167, %v118
  %208 = vst.msk [vmem:[#allocation2 + $0x140] sm:$0xff] %vm167, %v120
  %209 = vst.msk [vmem:[#allocation2 + $0x148] sm:$0xff] %vm167, %v122
  %210 = vst.msk [vmem:[#allocation2 + $0x150] sm:$0xff] %vm167, %v124
  %211 = vst.msk [vmem:[#allocation2 + $0x158] sm:$0xff] %vm167, %v126
  %212 = vst.msk [vmem:[#allocation2 + $0x160] sm:$0xff] %vm167, %v128
  %213 = vst.msk [vmem:[#allocation2 + $0x168] sm:$0xff] %vm167, %v130
  %214 = vst.msk [vmem:[#allocation2 + $0x170] sm:$0xff] %vm167, %v132
  %215 = vst.msk [vmem:[#allocation2 + $0x178] sm:$0xff] %vm167, %v134
  %216 = vst.msk [vmem:[#allocation2 + $0x180] sm:$0xff] %vm167, %v136
  %217 = vst.msk [vmem:[#allocation2 + $0x188] sm:$0xff] %vm167, %v138
  %218 = vst.msk [vmem:[#allocation2 + $0x190] sm:$0xff] %vm167, %v140
  %219 = vst.msk [vmem:[#allocation2 + $0x198] sm:$0xff] %vm167, %v142
  %220 = vst.msk [vmem:[#allocation2 + $0x1a0] sm:$0xff] %vm167, %v144
  %221 = vst.msk [vmem:[#allocation2 + $0x1a8] sm:$0xff] %vm167, %v146
  %222 = vst.msk [vmem:[#allocation2 + $0x1b0] sm:$0xff] %vm167, %v148
  %223 = vst.msk [vmem:[#allocation2 + $0x1b8] sm:$0xff] %vm167, %v150
  %224 = vst.msk [vmem:[#allocation2 + $0x1c0] sm:$0xff] %vm167, %v152
  %225 = vst.msk [vmem:[#allocation2 + $0x1c8] sm:$0xff] %vm167, %v154
  %226 = vst.msk [vmem:[#allocation2 + $0x1d0] sm:$0xff] %vm167, %v156
  %227 = vst.msk [vmem:[#allocation2 + $0x1d8] sm:$0xff] %vm167, %v158
  %228 = vst.msk [vmem:[#allocation2 + $0x1e0] sm:$0xff] %vm167, %v160
  %229 = vst.msk [vmem:[#allocation2 + $0x1e8] sm:$0xff] %vm167, %v162
  %230 = vst.msk [vmem:[#allocation2 + $0x1f0] sm:$0xff] %vm167, %v164
  %231 = vst.msk [vmem:[#allocation2 + $0x1f8] sm:$0xff] %vm167, %v166
  %s232 = scalar_lea.vmem %s0, 8
  %v233 = vld [vmem:[%s232] ss:$2 sm:$0xff]
  %s234 = scalar_lea.vmem %s0, 24
  %v235 = vld [vmem:[%s234] ss:$2 sm:$0xff]
  %s236 = scalar_lea.vmem %s0, 104
  %v237 = vld [vmem:[%s236] ss:$2 sm:$0xff]
  %s238 = scalar_lea.vmem %s0, 120
  %v239 = vld [vmem:[%s238] ss:$2 sm:$0xff]
  %s240 = scalar_lea.vmem %s0, 200
  %v241 = vld [vmem:[%s240] ss:$2 sm:$0xff]
  %s242 = scalar_lea.vmem %s0, 216
  %v243 = vld [vmem:[%s242] ss:$2 sm:$0xff]
  %s244 = scalar_lea.vmem %s0, 296
  %v245 = vld [vmem:[%s244] ss:$2 sm:$0xff]
  %s246 = scalar_lea.vmem %s0, 312
  %v247 = vld [vmem:[%s246] ss:$2 sm:$0xff]
  %s248 = scalar_lea.vmem %s0, 392
  %v249 = vld [vmem:[%s248] ss:$2 sm:$0xff]
  %s250 = scalar_lea.vmem %s0, 408
  %v251 = vld [vmem:[%s250] ss:$2 sm:$0xff]
  %s252 = scalar_lea.vmem %s0, 488
  %v253 = vld [vmem:[%s252] ss:$2 sm:$0xff]
  %s254 = scalar_lea.vmem %s0, 504
  %v255 = vld [vmem:[%s254] ss:$2 sm:$0xff]
  %s256 = scalar_lea.vmem %s0, 584
  %v257 = vld [vmem:[%s256] ss:$2 sm:$0xff]
  %s258 = scalar_lea.vmem %s0, 600
  %v259 = vld [vmem:[%s258] ss:$2 sm:$0xff]
  %s260 = scalar_lea.vmem %s0, 680
  %v261 = vld [vmem:[%s260] ss:$2 sm:$0xff]
  %s262 = scalar_lea.vmem %s0, 696
  %v263 = vld [vmem:[%s262] ss:$2 sm:$0xff]
  %s264 = scalar_lea.vmem %s0, 776
  %v265 = vld [vmem:[%s264] ss:$2 sm:$0xff]
  %s266 = scalar_lea.vmem %s0, 792
  %v267 = vld [vmem:[%s266] ss:$2 sm:$0xff]
  %s268 = scalar_lea.vmem %s0, 872
  %v269 = vld [vmem:[%s268] ss:$2 sm:$0xff]
  %s270 = scalar_lea.vmem %s0, 888
  %v271 = vld [vmem:[%s270] ss:$2 sm:$0xff]
  %s272 = scalar_lea.vmem %s0, 968
  %v273 = vld [vmem:[%s272] ss:$2 sm:$0xff]
  %s274 = scalar_lea.vmem %s0, 984
  %v275 = vld [vmem:[%s274] ss:$2 sm:$0xff]
  %s276 = scalar_lea.vmem %s0, 1064
  %v277 = vld [vmem:[%s276] ss:$2 sm:$0xff]
  %s278 = scalar_lea.vmem %s0, 1080
  %v279 = vld [vmem:[%s278] ss:$2 sm:$0xff]
  %s280 = scalar_lea.vmem %s0, 1160
  %v281 = vld [vmem:[%s280] ss:$2 sm:$0xff]
  %s282 = scalar_lea.vmem %s0, 1176
  %v283 = vld [vmem:[%s282] ss:$2 sm:$0xff]
  %s284 = scalar_lea.vmem %s0, 1256
  %v285 = vld [vmem:[%s284] ss:$2 sm:$0xff]
  %s286 = scalar_lea.vmem %s0, 1272
  %v287 = vld [vmem:[%s286] ss:$2 sm:$0xff]
  %s288 = scalar_lea.vmem %s0, 1352
  %v289 = vld [vmem:[%s288] ss:$2 sm:$0xff]
  %s290 = scalar_lea.vmem %s0, 1368
  %v291 = vld [vmem:[%s290] ss:$2 sm:$0xff]
  %s292 = scalar_lea.vmem %s0, 1448
  %v293 = vld [vmem:[%s292] ss:$2 sm:$0xff]
  %s294 = scalar_lea.vmem %s0, 1464
  %v295 = vld [vmem:[%s294] ss:$2 sm:$0xff]
  %s296 = scalar_lea.vmem %s0, 1640
  %v297 = vld [vmem:[%s296] ss:$2 sm:$0xff]
  %s298 = scalar_lea.vmem %s0, 1656
  %v299 = vld [vmem:[%s298] ss:$2 sm:$0xff]
  %s300 = scalar_lea.vmem %s0, 1736
  %v301 = vld [vmem:[%s300] ss:$2 sm:$0xff]
  %s302 = scalar_lea.vmem %s0, 1752
  %v303 = vld [vmem:[%s302] ss:$2 sm:$0xff]
  %s304 = scalar_lea.vmem %s0, 1832
  %v305 = vld [vmem:[%s304] ss:$2 sm:$0xff]
  %s306 = scalar_lea.vmem %s0, 1848
  %v307 = vld [vmem:[%s306] ss:$2 sm:$0xff]
  %s308 = scalar_lea.vmem %s0, 1928
  %v309 = vld [vmem:[%s308] ss:$2 sm:$0xff]
  %s310 = scalar_lea.vmem %s0, 1944
  %v311 = vld [vmem:[%s310] ss:$2 sm:$0xff]
  %s312 = scalar_lea.vmem %s0, 2024
  %v313 = vld [vmem:[%s312] ss:$2 sm:$0xff]
  %s314 = scalar_lea.vmem %s0, 2040
  %v315 = vld [vmem:[%s314] ss:$2 sm:$0xff]
  %s316 = scalar_lea.vmem %s0, 2120
  %v317 = vld [vmem:[%s316] ss:$2 sm:$0xff]
  %s318 = scalar_lea.vmem %s0, 2136
  %v319 = vld [vmem:[%s318] ss:$2 sm:$0xff]
  %s320 = scalar_lea.vmem %s0, 2216
  %v321 = vld [vmem:[%s320] ss:$2 sm:$0xff]
  %s322 = scalar_lea.vmem %s0, 2232
  %v323 = vld [vmem:[%s322] ss:$2 sm:$0xff]
  %s324 = scalar_lea.vmem %s0, 2312
  %v325 = vld [vmem:[%s324] ss:$2 sm:$0xff]
  %s326 = scalar_lea.vmem %s0, 2328
  %v327 = vld [vmem:[%s326] ss:$2 sm:$0xff]
  %s328 = scalar_lea.vmem %s0, 2408
  %v329 = vld [vmem:[%s328] ss:$2 sm:$0xff]
  %s330 = scalar_lea.vmem %s0, 2424
  %v331 = vld [vmem:[%s330] ss:$2 sm:$0xff]
  %s332 = scalar_lea.vmem %s0, 2504
  %v333 = vld [vmem:[%s332] ss:$2 sm:$0xff]
  %s334 = scalar_lea.vmem %s0, 2520
  %v335 = vld [vmem:[%s334] ss:$2 sm:$0xff]
  %s336 = scalar_lea.vmem %s0, 2600
  %v337 = vld [vmem:[%s336] ss:$2 sm:$0xff]
  %s338 = scalar_lea.vmem %s0, 2616
  %v339 = vld [vmem:[%s338] ss:$2 sm:$0xff]
  %s340 = scalar_lea.vmem %s0, 2696
  %v341 = vld [vmem:[%s340] ss:$2 sm:$0xff]
  %s342 = scalar_lea.vmem %s0, 2712
  %v343 = vld [vmem:[%s342] ss:$2 sm:$0xff]
  %s344 = scalar_lea.vmem %s0, 2792
  %v345 = vld [vmem:[%s344] ss:$2 sm:$0xff]
  %s346 = scalar_lea.vmem %s0, 2808
  %v347 = vld [vmem:[%s346] ss:$2 sm:$0xff]
  %s348 = scalar_lea.vmem %s0, 2888
  %v349 = vld [vmem:[%s348] ss:$2 sm:$0xff]
  %s350 = scalar_lea.vmem %s0, 2904
  %v351 = vld [vmem:[%s350] ss:$2 sm:$0xff]
  %s352 = scalar_lea.vmem %s0, 2984
  %v353 = vld [vmem:[%s352] ss:$2 sm:$0xff]
  %s354 = scalar_lea.vmem %s0, 3000
  %v355 = vld [vmem:[%s354] ss:$2 sm:$0xff]
  %s356 = scalar_lea.vmem %s0, 3080
  %v357 = vld [vmem:[%s356] ss:$2 sm:$0xff]
  %s358 = scalar_lea.vmem %s0, 3096
  %v359 = vld [vmem:[%s358] ss:$2 sm:$0xff]
  %424 = vrot.lane.b32.xlu0 %v233, 8
  %v425 = vpop.permute.xlu0 %424
  %426 = vrot.lane.b32.xlu0 %v235, 8
  %v427 = vpop.permute.xlu0 %426
  %428 = vrot.lane.b32.xlu0 %v237, 8
  %v429 = vpop.permute.xlu0 %428
  %430 = vrot.lane.b32.xlu0 %v239, 8
  %v431 = vpop.permute.xlu0 %430
  %432 = vrot.lane.b32.xlu0 %v241, 8
  %v433 = vpop.permute.xlu0 %432
  %434 = vrot.lane.b32.xlu0 %v243, 8
  %v435 = vpop.permute.xlu0 %434
  %436 = vrot.lane.b32.xlu0 %v245, 8
  %v437 = vpop.permute.xlu0 %436
  %438 = vrot.lane.b32.xlu0 %v247, 8
  %v439 = vpop.permute.xlu0 %438
  %440 = vrot.lane.b32.xlu0 %v249, 8
  %v441 = vpop.permute.xlu0 %440
  %442 = vrot.lane.b32.xlu0 %v251, 8
  %v443 = vpop.permute.xlu0 %442
  %444 = vrot.lane.b32.xlu0 %v253, 8
  %v445 = vpop.permute.xlu0 %444
  %446 = vrot.lane.b32.xlu0 %v255, 8
  %v447 = vpop.permute.xlu0 %446
  %448 = vrot.lane.b32.xlu0 %v257, 8
  %v449 = vpop.permute.xlu0 %448
  %450 = vrot.lane.b32.xlu0 %v259, 8
  %v451 = vpop.permute.xlu0 %450
  %452 = vrot.lane.b32.xlu0 %v261, 8
  %v453 = vpop.permute.xlu0 %452
  %454 = vrot.lane.b32.xlu0 %v263, 8
  %v455 = vpop.permute.xlu0 %454
  %456 = vrot.lane.b32.xlu0 %v265, 8
  %v457 = vpop.permute.xlu0 %456
  %458 = vrot.lane.b32.xlu0 %v267, 8
  %v459 = vpop.permute.xlu0 %458
  %460 = vrot.lane.b32.xlu0 %v269, 8
  %v461 = vpop.permute.xlu0 %460
  %462 = vrot.lane.b32.xlu0 %v271, 8
  %v463 = vpop.permute.xlu0 %462
  %464 = vrot.lane.b32.xlu0 %v273, 8
  %v465 = vpop.permute.xlu0 %464
  %466 = vrot.lane.b32.xlu0 %v275, 8
  %v467 = vpop.permute.xlu0 %466
  %468 = vrot.lane.b32.xlu0 %v277, 8
  %v469 = vpop.permute.xlu0 %468
  %470 = vrot.lane.b32.xlu0 %v279, 8
  %v471 = vpop.permute.xlu0 %470
  %472 = vrot.lane.b32.xlu0 %v281, 8
  %v473 = vpop.permute.xlu0 %472
  %474 = vrot.lane.b32.xlu0 %v283, 8
  %v475 = vpop.permute.xlu0 %474
  %476 = vrot.lane.b32.xlu0 %v285, 8
  %v477 = vpop.permute.xlu0 %476
  %478 = vrot.lane.b32.xlu0 %v287, 8
  %v479 = vpop.permute.xlu0 %478
  %480 = vrot.lane.b32.xlu0 %v289, 8
  %v481 = vpop.permute.xlu0 %480
  %482 = vrot.lane.b32.xlu0 %v291, 8
  %v483 = vpop.permute.xlu0 %482
  %484 = vrot.lane.b32.xlu0 %v293, 8
  %v485 = vpop.permute.xlu0 %484
  %486 = vrot.lane.b32.xlu0 %v295, 8
  %v487 = vpop.permute.xlu0 %486
  %488 = vrot.lane.b32.xlu0 %v297, 8
  %v489 = vpop.permute.xlu0 %488
  %490 = vrot.lane.b32.xlu0 %v299, 8
  %v491 = vpop.permute.xlu0 %490
  %492 = vrot.lane.b32.xlu0 %v301, 8
  %v493 = vpop.permute.xlu0 %492
  %494 = vrot.lane.b32.xlu0 %v303, 8
  %v495 = vpop.permute.xlu0 %494
  %496 = vrot.lane.b32.xlu0 %v305, 8
  %v497 = vpop.permute.xlu0 %496
  %498 = vrot.lane.b32.xlu0 %v307, 8
  %v499 = vpop.permute.xlu0 %498
  %500 = vrot.lane.b32.xlu0 %v309, 8
  %v501 = vpop.permute.xlu0 %500
  %502 = vrot.lane.b32.xlu0 %v311, 8
  %v503 = vpop.permute.xlu0 %502
  %504 = vrot.lane.b32.xlu0 %v313, 8
  %v505 = vpop.permute.xlu0 %504
  %506 = vrot.lane.b32.xlu0 %v315, 8
  %v507 = vpop.permute.xlu0 %506
  %508 = vrot.lane.b32.xlu0 %v317, 8
  %v509 = vpop.permute.xlu0 %508
  %510 = vrot.lane.b32.xlu0 %v319, 8
  %v511 = vpop.permute.xlu0 %510
  %512 = vrot.lane.b32.xlu0 %v321, 8
  %v513 = vpop.permute.xlu0 %512
  %514 = vrot.lane.b32.xlu0 %v323, 8
  %v515 = vpop.permute.xlu0 %514
  %516 = vrot.lane.b32.xlu0 %v325, 8
  %v517 = vpop.permute.xlu0 %516
  %518 = vrot.lane.b32.xlu0 %v327, 8
  %v519 = vpop.permute.xlu0 %518
  %520 = vrot.lane.b32.xlu0 %v329, 8
  %v521 = vpop.permute.xlu0 %520
  %522 = vrot.lane.b32.xlu0 %v331, 8
  %v523 = vpop.permute.xlu0 %522
  %524 = vrot.lane.b32.xlu0 %v333, 8
  %v525 = vpop.permute.xlu0 %524
  %526 = vrot.lane.b32.xlu0 %v335, 8
  %v527 = vpop.permute.xlu0 %526
  %528 = vrot.lane.b32.xlu0 %v337, 8
  %v529 = vpop.permute.xlu0 %528
  %530 = vrot.lane.b32.xlu0 %v339, 8
  %v531 = vpop.permute.xlu0 %530
  %532 = vrot.lane.b32.xlu0 %v341, 8
  %v533 = vpop.permute.xlu0 %532
  %534 = vrot.lane.b32.xlu0 %v343, 8
  %v535 = vpop.permute.xlu0 %534
  %536 = vrot.lane.b32.xlu0 %v345, 8
  %v537 = vpop.permute.xlu0 %536
  %538 = vrot.lane.b32.xlu0 %v347, 8
  %v539 = vpop.permute.xlu0 %538
  %540 = vrot.lane.b32.xlu0 %v349, 8
  %v541 = vpop.permute.xlu0 %540
  %542 = vrot.lane.b32.xlu0 %v351, 8
  %v543 = vpop.permute.xlu0 %542
  %544 = vrot.lane.b32.xlu0 %v353, 8
  %v545 = vpop.permute.xlu0 %544
  %546 = vrot.lane.b32.xlu0 %v355, 8
  %v547 = vpop.permute.xlu0 %546
  %548 = vrot.lane.b32.xlu0 %v357, 8
  %v549 = vpop.permute.xlu0 %548
  %550 = vrot.lane.b32.xlu0 %v359, 8
  %v551 = vpop.permute.xlu0 %550
  %vm616 = vcmask 130112
  %617 = vst.msk [vmem:[#allocation2] sm:$0xff] %vm616, %v425
  %618 = vst.msk [vmem:[#allocation2 + $0x8] sm:$0xff] %vm616, %v427
  %619 = vst.msk [vmem:[#allocation2 + $0x10] sm:$0xff] %vm616, %v429
  %620 = vst.msk [vmem:[#allocation2 + $0x18] sm:$0xff] %vm616, %v431
  %621 = vst.msk [vmem:[#allocation2 + $0x20] sm:$0xff] %vm616, %v433
  %622 = vst.msk [vmem:[#allocation2 + $0x28] sm:$0xff] %vm616, %v435
  %623 = vst.msk [vmem:[#allocation2 + $0x30] sm:$0xff] %vm616, %v437
  %624 = vst.msk [vmem:[#allocation2 + $0x38] sm:$0xff] %vm616, %v439
  %625 = vst.msk [vmem:[#allocation2 + $0x40] sm:$0xff] %vm616, %v441
  %626 = vst.msk [vmem:[#allocation2 + $0x48] sm:$0xff] %vm616, %v443
  %627 = vst.msk [vmem:[#allocation2 + $0x50] sm:$0xff] %vm616, %v445
  %628 = vst.msk [vmem:[#allocation2 + $0x58] sm:$0xff] %vm616, %v447
  %629 = vst.msk [vmem:[#allocation2 + $0x60] sm:$0xff] %vm616, %v449
  %630 = vst.msk [vmem:[#allocation2 + $0x68] sm:$0xff] %vm616, %v451
  %631 = vst.msk [vmem:[#allocation2 + $0x70] sm:$0xff] %vm616, %v453
  %632 = vst.msk [vmem:[#allocation2 + $0x78] sm:$0xff] %vm616, %v455
  %633 = vst.msk [vmem:[#allocation2 + $0x80] sm:$0xff] %vm616, %v457
  %634 = vst.msk [vmem:[#allocation2 + $0x88] sm:$0xff] %vm616, %v459
  %635 = vst.msk [vmem:[#allocation2 + $0x90] sm:$0xff] %vm616, %v461
  %636 = vst.msk [vmem:[#allocation2 + $0x98] sm:$0xff] %vm616, %v463
  %637 = vst.msk [vmem:[#allocation2 + $0xa0] sm:$0xff] %vm616, %v465
  %638 = vst.msk [vmem:[#allocation2 + $0xa8] sm:$0xff] %vm616, %v467
  %639 = vst.msk [vmem:[#allocation2 + $0xb0] sm:$0xff] %vm616, %v469
  %640 = vst.msk [vmem:[#allocation2 + $0xb8] sm:$0xff] %vm616, %v471
  %641 = vst.msk [vmem:[#allocation2 + $0xc0] sm:$0xff] %vm616, %v473
  %642 = vst.msk [vmem:[#allocation2 + $0xc8] sm:$0xff] %vm616, %v475
  %643 = vst.msk [vmem:[#allocation2 + $0xd0] sm:$0xff] %vm616, %v477
  %644 = vst.msk [vmem:[#allocation2 + $0xd8] sm:$0xff] %vm616, %v479
  %645 = vst.msk [vmem:[#allocation2 + $0xe0] sm:$0xff] %vm616, %v481
  %646 = vst.msk [vmem:[#allocation2 + $0xe8] sm:$0xff] %vm616, %v483
  %647 = vst.msk [vmem:[#allocation2 + $0xf0] sm:$0xff] %vm616, %v485
  %648 = vst.msk [vmem:[#allocation2 + $0xf8] sm:$0xff] %vm616, %v487
  %649 = vst.msk [vmem:[#allocation2 + $0x100] sm:$0xff] %vm616, %v489
  %650 = vst.msk [vmem:[#allocation2 + $0x108] sm:$0xff] %vm616, %v491
  %651 = vst.msk [vmem:[#allocation2 + $0x110] sm:$0xff] %vm616, %v493
  %652 = vst.msk [vmem:[#allocation2 + $0x118] sm:$0xff] %vm616, %v495
  %653 = vst.msk [vmem:[#allocation2 + $0x120] sm:$0xff] %vm616, %v497
  %654 = vst.msk [vmem:[#allocation2 + $0x128] sm:$0xff] %vm616, %v499
  %655 = vst.msk [vmem:[#allocation2 + $0x130] sm:$0xff] %vm616, %v501
  %656 = vst.msk [vmem:[#allocation2 + $0x138] sm:$0xff] %vm616, %v503
  %657 = vst.msk [vmem:[#allocation2 + $0x140] sm:$0xff] %vm616, %v505
  %658 = vst.msk [vmem:[#allocation2 + $0x148] sm:$0xff] %vm616, %v507
  %659 = vst.msk [vmem:[#allocation2 + $0x150] sm:$0xff] %vm616, %v509
  %660 = vst.msk [vmem:[#allocation2 + $0x158] sm:$0xff] %vm616, %v511
  %661 = vst.msk [vmem:[#allocation2 + $0x160] sm:$0xff] %vm616, %v513
  %662 = vst.msk [vmem:[#allocation2 + $0x168] sm:$0xff] %vm616, %v515
  %663 = vst.msk [vmem:[#allocation2 + $0x170] sm:$0xff] %vm616, %v517
  %664 = vst.msk [vmem:[#allocation2 + $0x178] sm:$0xff] %vm616, %v519
  %665 = vst.msk [vmem:[#allocation2 + $0x180] sm:$0xff] %vm616, %v521
  %666 = vst.msk [vmem:[#allocation2 + $0x188] sm:$0xff] %vm616, %v523
  %667 = vst.msk [vmem:[#allocation2 + $0x190] sm:$0xff] %vm616, %v525
  %668 = vst.msk [vmem:[#allocation2 + $0x198] sm:$0xff] %vm616, %v527
  %669 = vst.msk [vmem:[#allocation2 + $0x1a0] sm:$0xff] %vm616, %v529
  %670 = vst.msk [vmem:[#allocation2 + $0x1a8] sm:$0xff] %vm616, %v531
  %671 = vst.msk [vmem:[#allocation2 + $0x1b0] sm:$0xff] %vm616, %v533
  %672 = vst.msk [vmem:[#allocation2 + $0x1b8] sm:$0xff] %vm616, %v535
  %673 = vst.msk [vmem:[#allocation2 + $0x1c0] sm:$0xff] %vm616, %v537
  %674 = vst.msk [vmem:[#allocation2 + $0x1c8] sm:$0xff] %vm616, %v539
  %675 = vst.msk [vmem:[#allocation2 + $0x1d0] sm:$0xff] %vm616, %v541
  %676 = vst.msk [vmem:[#allocation2 + $0x1d8] sm:$0xff] %vm616, %v543
  %677 = vst.msk [vmem:[#allocation2 + $0x1e0] sm:$0xff] %vm616, %v545
  %678 = vst.msk [vmem:[#allocation2 + $0x1e8] sm:$0xff] %vm616, %v547
  %679 = vst.msk [vmem:[#allocation2 + $0x1f0] sm:$0xff] %vm616, %v549
  %680 = vst.msk [vmem:[#allocation2 + $0x1f8] sm:$0xff] %vm616, %v551
  %s681 = scalar_lea.vmem %s0, 9
  %v682 = vld [vmem:[%s681] ss:$2 sm:$0xff]
  %s683 = scalar_lea.vmem %s0, 25
  %v684 = vld [vmem:[%s683] ss:$2 sm:$0xff]
  %s685 = scalar_lea.vmem %s0, 105
  %v686 = vld [vmem:[%s685] ss:$2 sm:$0xff]
  %s687 = scalar_lea.vmem %s0, 121
  %v688 = vld [vmem:[%s687] ss:$2 sm:$0xff]
  %s689 = scalar_lea.vmem %s0, 201
  %v690 = vld [vmem:[%s689] ss:$2 sm:$0xff]
  %s691 = scalar_lea.vmem %s0, 217
  %v692 = vld [vmem:[%s691] ss:$2 sm:$0xff]
  %s693 = scalar_lea.vmem %s0, 297
  %v694 = vld [vmem:[%s693] ss:$2 sm:$0xff]
  %s695 = scalar_lea.vmem %s0, 313
  %v696 = vld [vmem:[%s695] ss:$2 sm:$0xff]
  %s697 = scalar_lea.vmem %s0, 393
  %v698 = vld [vmem:[%s697] ss:$2 sm:$0xff]
  %s699 = scalar_lea.vmem %s0, 409
  %v700 = vld [vmem:[%s699] ss:$2 sm:$0xff]
  %s701 = scalar_lea.vmem %s0, 489
  %v702 = vld [vmem:[%s701] ss:$2 sm:$0xff]
  %s703 = scalar_lea.vmem %s0, 505
  %v704 = vld [vmem:[%s703] ss:$2 sm:$0xff]
  %s705 = scalar_lea.vmem %s0, 585
  %v706 = vld [vmem:[%s705] ss:$2 sm:$0xff]
  %s707 = scalar_lea.vmem %s0, 601
  %v708 = vld [vmem:[%s707] ss:$2 sm:$0xff]
  %s709 = scalar_lea.vmem %s0, 681
  %v710 = vld [vmem:[%s709] ss:$2 sm:$0xff]
  %s711 = scalar_lea.vmem %s0, 697
  %v712 = vld [vmem:[%s711] ss:$2 sm:$0xff]
  %s713 = scalar_lea.vmem %s0, 777
  %v714 = vld [vmem:[%s713] ss:$2 sm:$0xff]
  %s715 = scalar_lea.vmem %s0, 793
  %v716 = vld [vmem:[%s715] ss:$2 sm:$0xff]
  %s717 = scalar_lea.vmem %s0, 873
  %v718 = vld [vmem:[%s717] ss:$2 sm:$0xff]
  %s719 = scalar_lea.vmem %s0, 889
  %v720 = vld [vmem:[%s719] ss:$2 sm:$0xff]
  %s721 = scalar_lea.vmem %s0, 969
  %v722 = vld [vmem:[%s721] ss:$2 sm:$0xff]
  %s723 = scalar_lea.vmem %s0, 985
  %v724 = vld [vmem:[%s723] ss:$2 sm:$0xff]
  %s725 = scalar_lea.vmem %s0, 1065
  %v726 = vld [vmem:[%s725] ss:$2 sm:$0xff]
  %s727 = scalar_lea.vmem %s0, 1081
  %v728 = vld [vmem:[%s727] ss:$2 sm:$0xff]
  %s729 = scalar_lea.vmem %s0, 1161
  %v730 = vld [vmem:[%s729] ss:$2 sm:$0xff]
  %s731 = scalar_lea.vmem %s0, 1177
  %v732 = vld [vmem:[%s731] ss:$2 sm:$0xff]
  %s733 = scalar_lea.vmem %s0, 1257
  %v734 = vld [vmem:[%s733] ss:$2 sm:$0xff]
  %s735 = scalar_lea.vmem %s0, 1273
  %v736 = vld [vmem:[%s735] ss:$2 sm:$0xff]
  %s737 = scalar_lea.vmem %s0, 1353
  %v738 = vld [vmem:[%s737] ss:$2 sm:$0xff]
  %s739 = scalar_lea.vmem %s0, 1369
  %v740 = vld [vmem:[%s739] ss:$2 sm:$0xff]
  %s741 = scalar_lea.vmem %s0, 1449
  %v742 = vld [vmem:[%s741] ss:$2 sm:$0xff]
  %s743 = scalar_lea.vmem %s0, 1465
  %v744 = vld [vmem:[%s743] ss:$2 sm:$0xff]
  %s745 = scalar_lea.vmem %s0, 1641
  %v746 = vld [vmem:[%s745] ss:$2 sm:$0xff]
  %s747 = scalar_lea.vmem %s0, 1657
  %v748 = vld [vmem:[%s747] ss:$2 sm:$0xff]
  %s749 = scalar_lea.vmem %s0, 1737
  %v750 = vld [vmem:[%s749] ss:$2 sm:$0xff]
  %s751 = scalar_lea.vmem %s0, 1753
  %v752 = vld [vmem:[%s751] ss:$2 sm:$0xff]
  %s753 = scalar_lea.vmem %s0, 1833
  %v754 = vld [vmem:[%s753] ss:$2 sm:$0xff]
  %s755 = scalar_lea.vmem %s0, 1849
  %v756 = vld [vmem:[%s755] ss:$2 sm:$0xff]
  %s757 = scalar_lea.vmem %s0, 1929
  %v758 = vld [vmem:[%s757] ss:$2 sm:$0xff]
  %s759 = scalar_lea.vmem %s0, 1945
  %v760 = vld [vmem:[%s759] ss:$2 sm:$0xff]
  %s761 = scalar_lea.vmem %s0, 2025
  %v762 = vld [vmem:[%s761] ss:$2 sm:$0xff]
  %s763 = scalar_lea.vmem %s0, 2041
  %v764 = vld [vmem:[%s763] ss:$2 sm:$0xff]
  %s765 = scalar_lea.vmem %s0, 2121
  %v766 = vld [vmem:[%s765] ss:$2 sm:$0xff]
  %s767 = scalar_lea.vmem %s0, 2137
  %v768 = vld [vmem:[%s767] ss:$2 sm:$0xff]
  %s769 = scalar_lea.vmem %s0, 2217
  %v770 = vld [vmem:[%s769] ss:$2 sm:$0xff]
  %s771 = scalar_lea.vmem %s0, 2233
  %v772 = vld [vmem:[%s771] ss:$2 sm:$0xff]
  %s773 = scalar_lea.vmem %s0, 2313
  %v774 = vld [vmem:[%s773] ss:$2 sm:$0xff]
  %s775 = scalar_lea.vmem %s0, 2329
  %v776 = vld [vmem:[%s775] ss:$2 sm:$0xff]
  %s777 = scalar_lea.vmem %s0, 2409
  %v778 = vld [vmem:[%s777] ss:$2 sm:$0xff]
  %s779 = scalar_lea.vmem %s0, 2425
  %v780 = vld [vmem:[%s779] ss:$2 sm:$0xff]
  %s781 = scalar_lea.vmem %s0, 2505
  %v782 = vld [vmem:[%s781] ss:$2 sm:$0xff]
  %s783 = scalar_lea.vmem %s0, 2521
  %v784 = vld [vmem:[%s783] ss:$2 sm:$0xff]
  %s785 = scalar_lea.vmem %s0, 2601
  %v786 = vld [vmem:[%s785] ss:$2 sm:$0xff]
  %s787 = scalar_lea.vmem %s0, 2617
  %v788 = vld [vmem:[%s787] ss:$2 sm:$0xff]
  %s789 = scalar_lea.vmem %s0, 2697
  %v790 = vld [vmem:[%s789] ss:$2 sm:$0xff]
  %s791 = scalar_lea.vmem %s0, 2713
  %v792 = vld [vmem:[%s791] ss:$2 sm:$0xff]
  %s793 = scalar_lea.vmem %s0, 2793
  %v794 = vld [vmem:[%s793] ss:$2 sm:$0xff]
  %s795 = scalar_lea.vmem %s0, 2809
  %v796 = vld [vmem:[%s795] ss:$2 sm:$0xff]
  %s797 = scalar_lea.vmem %s0, 2889
  %v798 = vld [vmem:[%s797] ss:$2 sm:$0xff]
  %s799 = scalar_lea.vmem %s0, 2905
  %v800 = vld [vmem:[%s799] ss:$2 sm:$0xff]
  %s801 = scalar_lea.vmem %s0, 2985
  %v802 = vld [vmem:[%s801] ss:$2 sm:$0xff]
  %s803 = scalar_lea.vmem %s0, 3001
  %v804 = vld [vmem:[%s803] ss:$2 sm:$0xff]
  %s805 = scalar_lea.vmem %s0, 3081
  %v806 = vld [vmem:[%s805] ss:$2 sm:$0xff]
  %s807 = scalar_lea.vmem %s0, 3097
  %v808 = vld [vmem:[%s807] ss:$2 sm:$0xff]
  %873 = vrot.lane.b32.xlu0 %v682, 16
  %v874 = vpop.permute.xlu0 %873
  %875 = vrot.lane.b32.xlu0 %v684, 16
  %v876 = vpop.permute.xlu0 %875
  %877 = vrot.lane.b32.xlu0 %v686, 16
  %v878 = vpop.permute.xlu0 %877
  %879 = vrot.lane.b32.xlu0 %v688, 16
  %v880 = vpop.permute.xlu0 %879
  %881 = vrot.lane.b32.xlu0 %v690, 16
  %v882 = vpop.permute.xlu0 %881
  %883 = vrot.lane.b32.xlu0 %v692, 16
  %v884 = vpop.permute.xlu0 %883
  %885 = vrot.lane.b32.xlu0 %v694, 16
  %v886 = vpop.permute.xlu0 %885
  %887 = vrot.lane.b32.xlu0 %v696, 16
  %v888 = vpop.permute.xlu0 %887
  %889 = vrot.lane.b32.xlu0 %v698, 16
  %v890 = vpop.permute.xlu0 %889
  %891 = vrot.lane.b32.xlu0 %v700, 16
  %v892 = vpop.permute.xlu0 %891
  %893 = vrot.lane.b32.xlu0 %v702, 16
  %v894 = vpop.permute.xlu0 %893
  %895 = vrot.lane.b32.xlu0 %v704, 16
  %v896 = vpop.permute.xlu0 %895
  %897 = vrot.lane.b32.xlu0 %v706, 16
  %v898 = vpop.permute.xlu0 %897
  %899 = vrot.lane.b32.xlu0 %v708, 16
  %v900 = vpop.permute.xlu0 %899
  %901 = vrot.lane.b32.xlu0 %v710, 16
  %v902 = vpop.permute.xlu0 %901
  %903 = vrot.lane.b32.xlu0 %v712, 16
  %v904 = vpop.permute.xlu0 %903
  %905 = vrot.lane.b32.xlu0 %v714, 16
  %v906 = vpop.permute.xlu0 %905
  %907 = vrot.lane.b32.xlu0 %v716, 16
  %v908 = vpop.permute.xlu0 %907
  %909 = vrot.lane.b32.xlu0 %v718, 16
  %v910 = vpop.permute.xlu0 %909
  %911 = vrot.lane.b32.xlu0 %v720, 16
  %v912 = vpop.permute.xlu0 %911
  %913 = vrot.lane.b32.xlu0 %v722, 16
  %v914 = vpop.permute.xlu0 %913
  %915 = vrot.lane.b32.xlu0 %v724, 16
  %v916 = vpop.permute.xlu0 %915
  %917 = vrot.lane.b32.xlu0 %v726, 16
  %v918 = vpop.permute.xlu0 %917
  %919 = vrot.lane.b32.xlu0 %v728, 16
  %v920 = vpop.permute.xlu0 %919
  %921 = vrot.lane.b32.xlu0 %v730, 16
  %v922 = vpop.permute.xlu0 %921
  %923 = vrot.lane.b32.xlu0 %v732, 16
  %v924 = vpop.permute.xlu0 %923
  %925 = vrot.lane.b32.xlu0 %v734, 16
  %v926 = vpop.permute.xlu0 %925
  %927 = vrot.lane.b32.xlu0 %v736, 16
  %v928 = vpop.permute.xlu0 %927
  %929 = vrot.lane.b32.xlu0 %v738, 16
  %v930 = vpop.permute.xlu0 %929
  %931 = vrot.lane.b32.xlu0 %v740, 16
  %v932 = vpop.permute.xlu0 %931
  %933 = vrot.lane.b32.xlu0 %v742, 16
  %v934 = vpop.permute.xlu0 %933
  %935 = vrot.lane.b32.xlu0 %v744, 16
  %v936 = vpop.permute.xlu0 %935
  %937 = vrot.lane.b32.xlu0 %v746, 16
  %v938 = vpop.permute.xlu0 %937
  %939 = vrot.lane.b32.xlu0 %v748, 16
  %v940 = vpop.permute.xlu0 %939
  %941 = vrot.lane.b32.xlu0 %v750, 16
  %v942 = vpop.permute.xlu0 %941
  %943 = vrot.lane.b32.xlu0 %v752, 16
  %v944 = vpop.permute.xlu0 %943
  %945 = vrot.lane.b32.xlu0 %v754, 16
  %v946 = vpop.permute.xlu0 %945
  %947 = vrot.lane.b32.xlu0 %v756, 16
  %v948 = vpop.permute.xlu0 %947
  %949 = vrot.lane.b32.xlu0 %v758, 16
  %v950 = vpop.permute.xlu0 %949
  %951 = vrot.lane.b32.xlu0 %v760, 16
  %v952 = vpop.permute.xlu0 %951
  %953 = vrot.lane.b32.xlu0 %v762, 16
  %v954 = vpop.permute.xlu0 %953
  %955 = vrot.lane.b32.xlu0 %v764, 16
  %v956 = vpop.permute.xlu0 %955
  %957 = vrot.lane.b32.xlu0 %v766, 16
  %v958 = vpop.permute.xlu0 %957
  %959 = vrot.lane.b32.xlu0 %v768, 16
  %v960 = vpop.permute.xlu0 %959
  %961 = vrot.lane.b32.xlu0 %v770, 16
  %v962 = vpop.permute.xlu0 %961
  %963 = vrot.lane.b32.xlu0 %v772, 16
  %v964 = vpop.permute.xlu0 %963
  %965 = vrot.lane.b32.xlu0 %v774, 16
  %v966 = vpop.permute.xlu0 %965
  %967 = vrot.lane.b32.xlu0 %v776, 16
  %v968 = vpop.permute.xlu0 %967
  %969 = vrot.lane.b32.xlu0 %v778, 16
  %v970 = vpop.permute.xlu0 %969
  %971 = vrot.lane.b32.xlu0 %v780, 16
  %v972 = vpop.permute.xlu0 %971
  %973 = vrot.lane.b32.xlu0 %v782, 16
  %v974 = vpop.permute.xlu0 %973
  %975 = vrot.lane.b32.xlu0 %v784, 16
  %v976 = vpop.permute.xlu0 %975
  %977 = vrot.lane.b32.xlu0 %v786, 16
  %v978 = vpop.permute.xlu0 %977
  %979 = vrot.lane.b32.xlu0 %v788, 16
  %v980 = vpop.permute.xlu0 %979
  %981 = vrot.lane.b32.xlu0 %v790, 16
  %v982 = vpop.permute.xlu0 %981
  %983 = vrot.lane.b32.xlu0 %v792, 16
  %v984 = vpop.permute.xlu0 %983
  %985 = vrot.lane.b32.xlu0 %v794, 16
  %v986 = vpop.permute.xlu0 %985
  %987 = vrot.lane.b32.xlu0 %v796, 16
  %v988 = vpop.permute.xlu0 %987
  %989 = vrot.lane.b32.xlu0 %v798, 16
  %v990 = vpop.permute.xlu0 %989
  %991 = vrot.lane.b32.xlu0 %v800, 16
  %v992 = vpop.permute.xlu0 %991
  %993 = vrot.lane.b32.xlu0 %v802, 16
  %v994 = vpop.permute.xlu0 %993
  %995 = vrot.lane.b32.xlu0 %v804, 16
  %v996 = vpop.permute.xlu0 %995
  %997 = vrot.lane.b32.xlu0 %v806, 16
  %v998 = vpop.permute.xlu0 %997
  %999 = vrot.lane.b32.xlu0 %v808, 16
  %v1000 = vpop.permute.xlu0 %999
  %vm1065 = vcmask 195712
  %1066 = vst.msk [vmem:[#allocation2] sm:$0xff] %vm1065, %v874
  %1067 = vst.msk [vmem:[#allocation2 + $0x8] sm:$0xff] %vm1065, %v876
  %1068 = vst.msk [vmem:[#allocation2 + $0x10] sm:$0xff] %vm1065, %v878
  %1069 = vst.msk [vmem:[#allocation2 + $0x18] sm:$0xff] %vm1065, %v880
  %1070 = vst.msk [vmem:[#allocation2 + $0x20] sm:$0xff] %vm1065, %v882
  %1071 = vst.msk [vmem:[#allocation2 + $0x28] sm:$0xff] %vm1065, %v884
  %1072 = vst.msk [vmem:[#allocation2 + $0x30] sm:$0xff] %vm1065, %v886
  %1073 = vst.msk [vmem:[#allocation2 + $0x38] sm:$0xff] %vm1065, %v888
  %1074 = vst.msk [vmem:[#allocation2 + $0x40] sm:$0xff] %vm1065, %v890
  %1075 = vst.msk [vmem:[#allocation2 + $0x48] sm:$0xff] %vm1065, %v892
  %1076 = vst.msk [vmem:[#allocation2 + $0x50] sm:$0xff] %vm1065, %v894
  %1077 = vst.msk [vmem:[#allocation2 + $0x58] sm:$0xff] %vm1065, %v896
  %1078 = vst.msk [vmem:[#allocation2 + $0x60] sm:$0xff] %vm1065, %v898
  %1079 = vst.msk [vmem:[#allocation2 + $0x68] sm:$0xff] %vm1065, %v900
  %1080 = vst.msk [vmem:[#allocation2 + $0x70] sm:$0xff] %vm1065, %v902
  %1081 = vst.msk [vmem:[#allocation2 + $0x78] sm:$0xff] %vm1065, %v904
  %1082 = vst.msk [vmem:[#allocation2 + $0x80] sm:$0xff] %vm1065, %v906
  %1083 = vst.msk [vmem:[#allocation2 + $0x88] sm:$0xff] %vm1065, %v908
  %1084 = vst.msk [vmem:[#allocation2 + $0x90] sm:$0xff] %vm1065, %v910
  %1085 = vst.msk [vmem:[#allocation2 + $0x98] sm:$0xff] %vm1065, %v912
  %1086 = vst.msk [vmem:[#allocation2 + $0xa0] sm:$0xff] %vm1065, %v914
  %1087 = vst.msk [vmem:[#allocation2 + $0xa8] sm:$0xff] %vm1065, %v916
  %1088 = vst.msk [vmem:[#allocation2 + $0xb0] sm:$0xff] %vm1065, %v918
  %1089 = vst.msk [vmem:[#allocation2 + $0xb8] sm:$0xff] %vm1065, %v920
  %1090 = vst.msk [vmem:[#allocation2 + $0xc0] sm:$0xff] %vm1065, %v922
  %1091 = vst.msk [vmem:[#allocation2 + $0xc8] sm:$0xff] %vm1065, %v924
  %1092 = vst.msk [vmem:[#allocation2 + $0xd0] sm:$0xff] %vm1065, %v926
  %1093 = vst.msk [vmem:[#allocation2 + $0xd8] sm:$0xff] %vm1065, %v928
  %1094 = vst.msk [vmem:[#allocation2 + $0xe0] sm:$0xff] %vm1065, %v930
  %1095 = vst.msk [vmem:[#allocation2 + $0xe8] sm:$0xff] %vm1065, %v932
  %1096 = vst.msk [vmem:[#allocation2 + $0xf0] sm:$0xff] %vm1065, %v934
  %1097 = vst.msk [vmem:[#allocation2 + $0xf8] sm:$0xff] %vm1065, %v936
  %1098 = vst.msk [vmem:[#allocation2 + $0x100] sm:$0xff] %vm1065, %v938
  %1099 = vst.msk [vmem:[#allocation2 + $0x108] sm:$0xff] %vm1065, %v940
  %1100 = vst.msk [vmem:[#allocation2 + $0x110] sm:$0xff] %vm1065, %v942
  %1101 = vst.msk [vmem:[#allocation2 + $0x118] sm:$0xff] %vm1065, %v944
  %1102 = vst.msk [vmem:[#allocation2 + $0x120] sm:$0xff] %vm1065, %v946
  %1103 = vst.msk [vmem:[#allocation2 + $0x128] sm:$0xff] %vm1065, %v948
  %1104 = vst.msk [vmem:[#allocation2 + $0x130] sm:$0xff] %vm1065, %v950
  %1105 = vst.msk [vmem:[#allocation2 + $0x138] sm:$0xff] %vm1065, %v952
  %1106 = vst.msk [vmem:[#allocation2 + $0x140] sm:$0xff] %vm1065, %v954
  %1107 = vst.msk [vmem:[#allocation2 + $0x148] sm:$0xff] %vm1065, %v956
  %1108 = vst.msk [vmem:[#allocation2 + $0x150] sm:$0xff] %vm1065, %v958
  %1109 = vst.msk [vmem:[#allocation2 + $0x158] sm:$0xff] %vm1065, %v960
  %1110 = vst.msk [vmem:[#allocation2 + $0x160] sm:$0xff] %vm1065, %v962
  %1111 = vst.msk [vmem:[#allocation2 + $0x168] sm:$0xff] %vm1065, %v964
  %1112 = vst.msk [vmem:[#allocation2 + $0x170] sm:$0xff] %vm1065, %v966
  %1113 = vst.msk [vmem:[#allocation2 + $0x178] sm:$0xff] %vm1065, %v968
  %1114 = vst.msk [vmem:[#allocation2 + $0x180] sm:$0xff] %vm1065, %v970
  %1115 = vst.msk [vmem:[#allocation2 + $0x188] sm:$0xff] %vm1065, %v972
  %1116 = vst.msk [vmem:[#allocation2 + $0x190] sm:$0xff] %vm1065, %v974
  %1117 = vst.msk [vmem:[#allocation2 + $0x198] sm:$0xff] %vm1065, %v976
  %1118 = vst.msk [vmem:[#allocation2 + $0x1a0] sm:$0xff] %vm1065, %v978
  %1119 = vst.msk [vmem:[#allocation2 + $0x1a8] sm:$0xff] %vm1065, %v980
  %1120 = vst.msk [vmem:[#allocation2 + $0x1b0] sm:$0xff] %vm1065, %v982
  %1121 = vst.msk [vmem:[#allocation2 + $0x1b8] sm:$0xff] %vm1065, %v984
  %1122 = vst.msk [vmem:[#allocation2 + $0x1c0] sm:$0xff] %vm1065, %v986
  %1123 = vst.msk [vmem:[#allocation2 + $0x1c8] sm:$0xff] %vm1065, %v988
  %1124 = vst.msk [vmem:[#allocation2 + $0x1d0] sm:$0xff] %vm1065, %v990
  %1125 = vst.msk [vmem:[#allocation2 + $0x1d8] sm:$0xff] %vm1065, %v992
  %1126 = vst.msk [vmem:[#allocation2 + $0x1e0] sm:$0xff] %vm1065, %v994
  %1127 = vst.msk [vmem:[#allocation2 + $0x1e8] sm:$0xff] %vm1065, %v996
  %1128 = vst.msk [vmem:[#allocation2 + $0x1f0] sm:$0xff] %vm1065, %v998
  %1129 = vst.msk [vmem:[#allocation2 + $0x1f8] sm:$0xff] %vm1065, %v1000
  %s1130 = scalar_lea.vmem %s0, 48
  %s1131 = scalar_lea.vmem %s1130, 7
  %v1132 = vld [vmem:[%s1131] ss:$2 sm:$0xff]
  %s1133 = scalar_lea.vmem %s1130, 23
  %v1134 = vld [vmem:[%s1133] ss:$2 sm:$0xff]
  %s1135 = scalar_lea.vmem %s1130, 103
  %v1136 = vld [vmem:[%s1135] ss:$2 sm:$0xff]
  %s1137 = scalar_lea.vmem %s1130, 119
  %v1138 = vld [vmem:[%s1137] ss:$2 sm:$0xff]
  %s1139 = scalar_lea.vmem %s1130, 199
  %v1140 = vld [vmem:[%s1139] ss:$2 sm:$0xff]
  %s1141 = scalar_lea.vmem %s1130, 215
  %v1142 = vld [vmem:[%s1141] ss:$2 sm:$0xff]
  %s1143 = scalar_lea.vmem %s1130, 295
  %v1144 = vld [vmem:[%s1143] ss:$2 sm:$0xff]
  %s1145 = scalar_lea.vmem %s1130, 311
  %v1146 = vld [vmem:[%s1145] ss:$2 sm:$0xff]
  %s1147 = scalar_lea.vmem %s1130, 391
  %v1148 = vld [vmem:[%s1147] ss:$2 sm:$0xff]
  %s1149 = scalar_lea.vmem %s1130, 407
  %v1150 = vld [vmem:[%s1149] ss:$2 sm:$0xff]
  %s1151 = scalar_lea.vmem %s1130, 487
  %v1152 = vld [vmem:[%s1151] ss:$2 sm:$0xff]
  %s1153 = scalar_lea.vmem %s1130, 503
  %v1154 = vld [vmem:[%s1153] ss:$2 sm:$0xff]
  %s1155 = scalar_lea.vmem %s1130, 583
  %v1156 = vld [vmem:[%s1155] ss:$2 sm:$0xff]
  %s1157 = scalar_lea.vmem %s1130, 599
  %v1158 = vld [vmem:[%s1157] ss:$2 sm:$0xff]
  %s1159 = scalar_lea.vmem %s1130, 679
  %v1160 = vld [vmem:[%s1159] ss:$2 sm:$0xff]
  %s1161 = scalar_lea.vmem %s1130, 695
  %v1162 = vld [vmem:[%s1161] ss:$2 sm:$0xff]
  %s1163 = scalar_lea.vmem %s1130, 775
  %v1164 = vld [vmem:[%s1163] ss:$2 sm:$0xff]
  %s1165 = scalar_lea.vmem %s1130, 791
  %v1166 = vld [vmem:[%s1165] ss:$2 sm:$0xff]
  %s1167 = scalar_lea.vmem %s1130, 871
  %v1168 = vld [vmem:[%s1167] ss:$2 sm:$0xff]
  %s1169 = scalar_lea.vmem %s1130, 887
  %v1170 = vld [vmem:[%s1169] ss:$2 sm:$0xff]
  %s1171 = scalar_lea.vmem %s1130, 967
  %v1172 = vld [vmem:[%s1171] ss:$2 sm:$0xff]
  %s1173 = scalar_lea.vmem %s1130, 983
  %v1174 = vld [vmem:[%s1173] ss:$2 sm:$0xff]
  %s1175 = scalar_lea.vmem %s1130, 1063
  %v1176 = vld [vmem:[%s1175] ss:$2 sm:$0xff]
  %s1177 = scalar_lea.vmem %s1130, 1079
  %v1178 = vld [vmem:[%s1177] ss:$2 sm:$0xff]
  %s1179 = scalar_lea.vmem %s1130, 1159
  %v1180 = vld [vmem:[%s1179] ss:$2 sm:$0xff]
  %s1181 = scalar_lea.vmem %s1130, 1175
  %v1182 = vld [vmem:[%s1181] ss:$2 sm:$0xff]
  %s1183 = scalar_lea.vmem %s1130, 1255
  %v1184 = vld [vmem:[%s1183] ss:$2 sm:$0xff]
  %s1185 = scalar_lea.vmem %s1130, 1271
  %v1186 = vld [vmem:[%s1185] ss:$2 sm:$0xff]
  %s1187 = scalar_lea.vmem %s1130, 1351
  %v1188 = vld [vmem:[%s1187] ss:$2 sm:$0xff]
  %s1189 = scalar_lea.vmem %s1130, 1367
  %v1190 = vld [vmem:[%s1189] ss:$2 sm:$0xff]
  %s1191 = scalar_lea.vmem %s1130, 1447
  %v1192 = vld [vmem:[%s1191] ss:$2 sm:$0xff]
  %s1193 = scalar_lea.vmem %s1130, 1463
  %v1194 = vld [vmem:[%s1193] ss:$2 sm:$0xff]
  %s1195 = scalar_lea.vmem %s1130, 1639
  %v1196 = vld [vmem:[%s1195] ss:$2 sm:$0xff]
  %s1197 = scalar_lea.vmem %s1130, 1655
  %v1198 = vld [vmem:[%s1197] ss:$2 sm:$0xff]
  %s1199 = scalar_lea.vmem %s1130, 1735
  %v1200 = vld [vmem:[%s1199] ss:$2 sm:$0xff]
  %s1201 = scalar_lea.vmem %s1130, 1751
  %v1202 = vld [vmem:[%s1201] ss:$2 sm:$0xff]
  %s1203 = scalar_lea.vmem %s1130, 1831
  %v1204 = vld [vmem:[%s1203] ss:$2 sm:$0xff]
  %s1205 = scalar_lea.vmem %s1130, 1847
  %v1206 = vld [vmem:[%s1205] ss:$2 sm:$0xff]
  %s1207 = scalar_lea.vmem %s1130, 1927
  %v1208 = vld [vmem:[%s1207] ss:$2 sm:$0xff]
  %s1209 = scalar_lea.vmem %s1130, 1943
  %v1210 = vld [vmem:[%s1209] ss:$2 sm:$0xff]
  %s1211 = scalar_lea.vmem %s1130, 2023
  %v1212 = vld [vmem:[%s1211] ss:$2 sm:$0xff]
  %s1213 = scalar_lea.vmem %s1130, 2039
  %v1214 = vld [vmem:[%s1213] ss:$2 sm:$0xff]
  %s1215 = scalar_lea.vmem %s1130, 2119
  %v1216 = vld [vmem:[%s1215] ss:$2 sm:$0xff]
  %s1217 = scalar_lea.vmem %s1130, 2135
  %v1218 = vld [vmem:[%s1217] ss:$2 sm:$0xff]
  %s1219 = scalar_lea.vmem %s1130, 2215
  %v1220 = vld [vmem:[%s1219] ss:$2 sm:$0xff]
  %s1221 = scalar_lea.vmem %s1130, 2231
  %v1222 = vld [vmem:[%s1221] ss:$2 sm:$0xff]
  %s1223 = scalar_lea.vmem %s1130, 2311
  %v1224 = vld [vmem:[%s1223] ss:$2 sm:$0xff]
  %s1225 = scalar_lea.vmem %s1130, 2327
  %v1226 = vld [vmem:[%s1225] ss:$2 sm:$0xff]
  %s1227 = scalar_lea.vmem %s1130, 2407
  %v1228 = vld [vmem:[%s1227] ss:$2 sm:$0xff]
  %s1229 = scalar_lea.vmem %s1130, 2423
  %v1230 = vld [vmem:[%s1229] ss:$2 sm:$0xff]
  %s1231 = scalar_lea.vmem %s1130, 2503
  %v1232 = vld [vmem:[%s1231] ss:$2 sm:$0xff]
  %s1233 = scalar_lea.vmem %s1130, 2519
  %v1234 = vld [vmem:[%s1233] ss:$2 sm:$0xff]
  %s1235 = scalar_lea.vmem %s1130, 2599
  %v1236 = vld [vmem:[%s1235] ss:$2 sm:$0xff]
  %s1237 = scalar_lea.vmem %s1130, 2615
  %v1238 = vld [vmem:[%s1237] ss:$2 sm:$0xff]
  %s1239 = scalar_lea.vmem %s1130, 2695
  %v1240 = vld [vmem:[%s1239] ss:$2 sm:$0xff]
  %s1241 = scalar_lea.vmem %s1130, 2711
  %v1242 = vld [vmem:[%s1241] ss:$2 sm:$0xff]
  %s1243 = scalar_lea.vmem %s1130, 2791
  %v1244 = vld [vmem:[%s1243] ss:$2 sm:$0xff]
  %s1245 = scalar_lea.vmem %s1130, 2807
  %v1246 = vld [vmem:[%s1245] ss:$2 sm:$0xff]
  %s1247 = scalar_lea.vmem %s1130, 2887
  %v1248 = vld [vmem:[%s1247] ss:$2 sm:$0xff]
  %s1249 = scalar_lea.vmem %s1130, 2903
  %v1250 = vld [vmem:[%s1249] ss:$2 sm:$0xff]
  %s1251 = scalar_lea.vmem %s1130, 2983
  %v1252 = vld [vmem:[%s1251] ss:$2 sm:$0xff]
  %s1253 = scalar_lea.vmem %s1130, 2999
  %v1254 = vld [vmem:[%s1253] ss:$2 sm:$0xff]
  %s1255 = scalar_lea.vmem %s1130, 3079
  %v1256 = vld [vmem:[%s1255] ss:$2 sm:$0xff]
  %s1257 = scalar_lea.vmem %s1130, 3095
  %v1258 = vld [vmem:[%s1257] ss:$2 sm:$0xff]
  %1323 = vrot.lane.b32.xlu0 %v1132, 24
  %v1324 = vpop.permute.xlu0 %1323
  %1325 = vrot.lane.b32.xlu0 %v1134, 24
  %v1326 = vpop.permute.xlu0 %1325
  %1327 = vrot.lane.b32.xlu0 %v1136, 24
  %v1328 = vpop.permute.xlu0 %1327
  %1329 = vrot.lane.b32.xlu0 %v1138, 24
  %v1330 = vpop.permute.xlu0 %1329
  %1331 = vrot.lane.b32.xlu0 %v1140, 24
  %v1332 = vpop.permute.xlu0 %1331
  %1333 = vrot.lane.b32.xlu0 %v1142, 24
  %v1334 = vpop.permute.xlu0 %1333
  %1335 = vrot.lane.b32.xlu0 %v1144, 24
  %v1336 = vpop.permute.xlu0 %1335
  %1337 = vrot.lane.b32.xlu0 %v1146, 24
  %v1338 = vpop.permute.xlu0 %1337
  %1339 = vrot.lane.b32.xlu0 %v1148, 24
  %v1340 = vpop.permute.xlu0 %1339
  %1341 = vrot.lane.b32.xlu0 %v1150, 24
  %v1342 = vpop.permute.xlu0 %1341
  %1343 = vrot.lane.b32.xlu0 %v1152, 24
  %v1344 = vpop.permute.xlu0 %1343
  %1345 = vrot.lane.b32.xlu0 %v1154, 24
  %v1346 = vpop.permute.xlu0 %1345
  %1347 = vrot.lane.b32.xlu0 %v1156, 24
  %v1348 = vpop.permute.xlu0 %1347
  %1349 = vrot.lane.b32.xlu0 %v1158, 24
  %v1350 = vpop.permute.xlu0 %1349
  %1351 = vrot.lane.b32.xlu0 %v1160, 24
  %v1352 = vpop.permute.xlu0 %1351
  %1353 = vrot.lane.b32.xlu0 %v1162, 24
  %v1354 = vpop.permute.xlu0 %1353
  %1355 = vrot.lane.b32.xlu0 %v1164, 24
  %v1356 = vpop.permute.xlu0 %1355
  %1357 = vrot.lane.b32.xlu0 %v1166, 24
  %v1358 = vpop.permute.xlu0 %1357
  %1359 = vrot.lane.b32.xlu0 %v1168, 24
  %v1360 = vpop.permute.xlu0 %1359
  %1361 = vrot.lane.b32.xlu0 %v1170, 24
  %v1362 = vpop.permute.xlu0 %1361
  %1363 = vrot.lane.b32.xlu0 %v1172, 24
  %v1364 = vpop.permute.xlu0 %1363
  %1365 = vrot.lane.b32.xlu0 %v1174, 24
  %v1366 = vpop.permute.xlu0 %1365
  %1367 = vrot.lane.b32.xlu0 %v1176, 24
  %v1368 = vpop.permute.xlu0 %1367
  %1369 = vrot.lane.b32.xlu0 %v1178, 24
  %v1370 = vpop.permute.xlu0 %1369
  %1371 = vrot.lane.b32.xlu0 %v1180, 24
  %v1372 = vpop.permute.xlu0 %1371
  %1373 = vrot.lane.b32.xlu0 %v1182, 24
  %v1374 = vpop.permute.xlu0 %1373
  %1375 = vrot.lane.b32.xlu0 %v1184, 24
  %v1376 = vpop.permute.xlu0 %1375
  %1377 = vrot.lane.b32.xlu0 %v1186, 24
  %v1378 = vpop.permute.xlu0 %1377
  %1379 = vrot.lane.b32.xlu0 %v1188, 24
  %v1380 = vpop.permute.xlu0 %1379
  %1381 = vrot.lane.b32.xlu0 %v1190, 24
  %v1382 = vpop.permute.xlu0 %1381
  %1383 = vrot.lane.b32.xlu0 %v1192, 24
  %v1384 = vpop.permute.xlu0 %1383
  %1385 = vrot.lane.b32.xlu0 %v1194, 24
  %v1386 = vpop.permute.xlu0 %1385
  %1387 = vrot.lane.b32.xlu0 %v1196, 24
  %v1388 = vpop.permute.xlu0 %1387
  %1389 = vrot.lane.b32.xlu0 %v1198, 24
  %v1390 = vpop.permute.xlu0 %1389
  %1391 = vrot.lane.b32.xlu0 %v1200, 24
  %v1392 = vpop.permute.xlu0 %1391
  %1393 = vrot.lane.b32.xlu0 %v1202, 24
  %v1394 = vpop.permute.xlu0 %1393
  %1395 = vrot.lane.b32.xlu0 %v1204, 24
  %v1396 = vpop.permute.xlu0 %1395
  %1397 = vrot.lane.b32.xlu0 %v1206, 24
  %v1398 = vpop.permute.xlu0 %1397
  %1399 = vrot.lane.b32.xlu0 %v1208, 24
  %v1400 = vpop.permute.xlu0 %1399
  %1401 = vrot.lane.b32.xlu0 %v1210, 24
  %v1402 = vpop.permute.xlu0 %1401
  %1403 = vrot.lane.b32.xlu0 %v1212, 24
  %v1404 = vpop.permute.xlu0 %1403
  %1405 = vrot.lane.b32.xlu0 %v1214, 24
  %v1406 = vpop.permute.xlu0 %1405
  %1407 = vrot.lane.b32.xlu0 %v1216, 24
  %v1408 = vpop.permute.xlu0 %1407
  %1409 = vrot.lane.b32.xlu0 %v1218, 24
  %v1410 = vpop.permute.xlu0 %1409
  %1411 = vrot.lane.b32.xlu0 %v1220, 24
  %v1412 = vpop.permute.xlu0 %1411
  %1413 = vrot.lane.b32.xlu0 %v1222, 24
  %v1414 = vpop.permute.xlu0 %1413
  %1415 = vrot.lane.b32.xlu0 %v1224, 24
  %v1416 = vpop.permute.xlu0 %1415
  %1417 = vrot.lane.b32.xlu0 %v1226, 24
  %v1418 = vpop.permute.xlu0 %1417
  %1419 = vrot.lane.b32.xlu0 %v1228, 24
  %v1420 = vpop.permute.xlu0 %1419
  %1421 = vrot.lane.b32.xlu0 %v1230, 24
  %v1422 = vpop.permute.xlu0 %1421
  %1423 = vrot.lane.b32.xlu0 %v1232, 24
  %v1424 = vpop.permute.xlu0 %1423
  %1425 = vrot.lane.b32.xlu0 %v1234, 24
  %v1426 = vpop.permute.xlu0 %1425
  %1427 = vrot.lane.b32.xlu0 %v1236, 24
  %v1428 = vpop.permute.xlu0 %1427
  %1429 = vrot.lane.b32.xlu0 %v1238, 24
  %v1430 = vpop.permute.xlu0 %1429
  %1431 = vrot.lane.b32.xlu0 %v1240, 24
  %v1432 = vpop.permute.xlu0 %1431
  %1433 = vrot.lane.b32.xlu0 %v1242, 24
  %v1434 = vpop.permute.xlu0 %1433
  %1435 = vrot.lane.b32.xlu0 %v1244, 24
  %v1436 = vpop.permute.xlu0 %1435
  %1437 = vrot.lane.b32.xlu0 %v1246, 24
  %v1438 = vpop.permute.xlu0 %1437
  %1439 = vrot.lane.b32.xlu0 %v1248, 24
  %v1440 = vpop.permute.xlu0 %1439
  %1441 = vrot.lane.b32.xlu0 %v1250, 24
  %v1442 = vpop.permute.xlu0 %1441
  %1443 = vrot.lane.b32.xlu0 %v1252, 24
  %v1444 = vpop.permute.xlu0 %1443
  %1445 = vrot.lane.b32.xlu0 %v1254, 24
  %v1446 = vpop.permute.xlu0 %1445
  %1447 = vrot.lane.b32.xlu0 %v1256, 24
  %v1448 = vpop.permute.xlu0 %1447
  %1449 = vrot.lane.b32.xlu0 %v1258, 24
  %v1450 = vpop.permute.xlu0 %1449
  %vm1515 = vcmask 261312
  %1516 = vst.msk [vmem:[#allocation2] sm:$0xff] %vm1515, %v1324
  %1517 = vst.msk [vmem:[#allocation2 + $0x8] sm:$0xff] %vm1515, %v1326
  %1518 = vst.msk [vmem:[#allocation2 + $0x10] sm:$0xff] %vm1515, %v1328
  %1519 = vst.msk [vmem:[#allocation2 + $0x18] sm:$0xff] %vm1515, %v1330
  %1520 = vst.msk [vmem:[#allocation2 + $0x20] sm:$0xff] %vm1515, %v1332
  %1521 = vst.msk [vmem:[#allocation2 + $0x28] sm:$0xff] %vm1515, %v1334
  %1522 = vst.msk [vmem:[#allocation2 + $0x30] sm:$0xff] %vm1515, %v1336
  %1523 = vst.msk [vmem:[#allocation2 + $0x38] sm:$0xff] %vm1515, %v1338
  %1524 = vst.msk [vmem:[#allocation2 + $0x40] sm:$0xff] %vm1515, %v1340
  %1525 = vst.msk [vmem:[#allocation2 + $0x48] sm:$0xff] %vm1515, %v1342
  %1526 = vst.msk [vmem:[#allocation2 + $0x50] sm:$0xff] %vm1515, %v1344
  %1527 = vst.msk [vmem:[#allocation2 + $0x58] sm:$0xff] %vm1515, %v1346
  %1528 = vst.msk [vmem:[#allocation2 + $0x60] sm:$0xff] %vm1515, %v1348
  %1529 = vst.msk [vmem:[#allocation2 + $0x68] sm:$0xff] %vm1515, %v1350
  %1530 = vst.msk [vmem:[#allocation2 + $0x70] sm:$0xff] %vm1515, %v1352
  %1531 = vst.msk [vmem:[#allocation2 + $0x78] sm:$0xff] %vm1515, %v1354
  %1532 = vst.msk [vmem:[#allocation2 + $0x80] sm:$0xff] %vm1515, %v1356
  %1533 = vst.msk [vmem:[#allocation2 + $0x88] sm:$0xff] %vm1515, %v1358
  %1534 = vst.msk [vmem:[#allocation2 + $0x90] sm:$0xff] %vm1515, %v1360
  %1535 = vst.msk [vmem:[#allocation2 + $0x98] sm:$0xff] %vm1515, %v1362
  %1536 = vst.msk [vmem:[#allocation2 + $0xa0] sm:$0xff] %vm1515, %v1364
  %1537 = vst.msk [vmem:[#allocation2 + $0xa8] sm:$0xff] %vm1515, %v1366
  %1538 = vst.msk [vmem:[#allocation2 + $0xb0] sm:$0xff] %vm1515, %v1368
  %1539 = vst.msk [vmem:[#allocation2 + $0xb8] sm:$0xff] %vm1515, %v1370
  %1540 = vst.msk [vmem:[#allocation2 + $0xc0] sm:$0xff] %vm1515, %v1372
  %1541 = vst.msk [vmem:[#allocation2 + $0xc8] sm:$0xff] %vm1515, %v1374
  %1542 = vst.msk [vmem:[#allocation2 + $0xd0] sm:$0xff] %vm1515, %v1376
  %1543 = vst.msk [vmem:[#allocation2 + $0xd8] sm:$0xff] %vm1515, %v1378
  %1544 = vst.msk [vmem:[#allocation2 + $0xe0] sm:$0xff] %vm1515, %v1380
  %1545 = vst.msk [vmem:[#allocation2 + $0xe8] sm:$0xff] %vm1515, %v1382
  %1546 = vst.msk [vmem:[#allocation2 + $0xf0] sm:$0xff] %vm1515, %v1384
  %1547 = vst.msk [vmem:[#allocation2 + $0xf8] sm:$0xff] %vm1515, %v1386
  %1548 = vst.msk [vmem:[#allocation2 + $0x100] sm:$0xff] %vm1515, %v1388
  %1549 = vst.msk [vmem:[#allocation2 + $0x108] sm:$0xff] %vm1515, %v1390
  %1550 = vst.msk [vmem:[#allocation2 + $0x110] sm:$0xff] %vm1515, %v1392
  %1551 = vst.msk [vmem:[#allocation2 + $0x118] sm:$0xff] %vm1515, %v1394
  %1552 = vst.msk [vmem:[#allocation2 + $0x120] sm:$0xff] %vm1515, %v1396
  %1553 = vst.msk [vmem:[#allocation2 + $0x128] sm:$0xff] %vm1515, %v1398
  %1554 = vst.msk [vmem:[#allocation2 + $0x130] sm:$0xff] %vm1515, %v1400
  %1555 = vst.msk [vmem:[#allocation2 + $0x138] sm:$0xff] %vm1515, %v1402
  %1556 = vst.msk [vmem:[#allocation2 + $0x140] sm:$0xff] %vm1515, %v1404
  %1557 = vst.msk [vmem:[#allocation2 + $0x148] sm:$0xff] %vm1515, %v1406
  %1558 = vst.msk [vmem:[#allocation2 + $0x150] sm:$0xff] %vm1515, %v1408
  %1559 = vst.msk [vmem:[#allocation2 + $0x158] sm:$0xff] %vm1515, %v1410
  %1560 = vst.msk [vmem:[#allocation2 + $0x160] sm:$0xff] %vm1515, %v1412
  %1561 = vst.msk [vmem:[#allocation2 + $0x168] sm:$0xff] %vm1515, %v1414
  %1562 = vst.msk [vmem:[#allocation2 + $0x170] sm:$0xff] %vm1515, %v1416
  %1563 = vst.msk [vmem:[#allocation2 + $0x178] sm:$0xff] %vm1515, %v1418
  %1564 = vst.msk [vmem:[#allocation2 + $0x180] sm:$0xff] %vm1515, %v1420
  %1565 = vst.msk [vmem:[#allocation2 + $0x188] sm:$0xff] %vm1515, %v1422
  %1566 = vst.msk [vmem:[#allocation2 + $0x190] sm:$0xff] %vm1515, %v1424
  %1567 = vst.msk [vmem:[#allocation2 + $0x198] sm:$0xff] %vm1515, %v1426
  %1568 = vst.msk [vmem:[#allocation2 + $0x1a0] sm:$0xff] %vm1515, %v1428
  %1569 = vst.msk [vmem:[#allocation2 + $0x1a8] sm:$0xff] %vm1515, %v1430
  %1570 = vst.msk [vmem:[#allocation2 + $0x1b0] sm:$0xff] %vm1515, %v1432
  %1571 = vst.msk [vmem:[#allocation2 + $0x1b8] sm:$0xff] %vm1515, %v1434
  %1572 = vst.msk [vmem:[#allocation2 + $0x1c0] sm:$0xff] %vm1515, %v1436
  %1573 = vst.msk [vmem:[#allocation2 + $0x1c8] sm:$0xff] %vm1515, %v1438
  %1574 = vst.msk [vmem:[#allocation2 + $0x1d0] sm:$0xff] %vm1515, %v1440
  %1575 = vst.msk [vmem:[#allocation2 + $0x1d8] sm:$0xff] %vm1515, %v1442
  %1576 = vst.msk [vmem:[#allocation2 + $0x1e0] sm:$0xff] %vm1515, %v1444
  %1577 = vst.msk [vmem:[#allocation2 + $0x1e8] sm:$0xff] %vm1515, %v1446
  %1578 = vst.msk [vmem:[#allocation2 + $0x1f0] sm:$0xff] %vm1515, %v1448
  %1579 = vst.msk [vmem:[#allocation2 + $0x1f8] sm:$0xff] %vm1515, %v1450
  %s1580 = scalar_lea.vmem %s1130, 8
  %v1581 = vld [vmem:[%s1580] ss:$2 sm:$0xff]
  %s1582 = scalar_lea.vmem %s1130, 24
  %v1583 = vld [vmem:[%s1582] ss:$2 sm:$0xff]
  %s1584 = scalar_lea.vmem %s1130, 104
  %v1585 = vld [vmem:[%s1584] ss:$2 sm:$0xff]
  %s1586 = scalar_lea.vmem %s1130, 120
  %v1587 = vld [vmem:[%s1586] ss:$2 sm:$0xff]
  %s1588 = scalar_lea.vmem %s1130, 200
  %v1589 = vld [vmem:[%s1588] ss:$2 sm:$0xff]
  %s1590 = scalar_lea.vmem %s1130, 216
  %v1591 = vld [vmem:[%s1590] ss:$2 sm:$0xff]
  %s1592 = scalar_lea.vmem %s1130, 296
  %v1593 = vld [vmem:[%s1592] ss:$2 sm:$0xff]
  %s1594 = scalar_lea.vmem %s1130, 312
  %v1595 = vld [vmem:[%s1594] ss:$2 sm:$0xff]
  %s1596 = scalar_lea.vmem %s1130, 392
  %v1597 = vld [vmem:[%s1596] ss:$2 sm:$0xff]
  %s1598 = scalar_lea.vmem %s1130, 408
  %v1599 = vld [vmem:[%s1598] ss:$2 sm:$0xff]
  %s1600 = scalar_lea.vmem %s1130, 488
  %v1601 = vld [vmem:[%s1600] ss:$2 sm:$0xff]
  %s1602 = scalar_lea.vmem %s1130, 504
  %v1603 = vld [vmem:[%s1602] ss:$2 sm:$0xff]
  %s1604 = scalar_lea.vmem %s1130, 584
  %v1605 = vld [vmem:[%s1604] ss:$2 sm:$0xff]
  %s1606 = scalar_lea.vmem %s1130, 600
  %v1607 = vld [vmem:[%s1606] ss:$2 sm:$0xff]
  %s1608 = scalar_lea.vmem %s1130, 680
  %v1609 = vld [vmem:[%s1608] ss:$2 sm:$0xff]
  %s1610 = scalar_lea.vmem %s1130, 696
  %v1611 = vld [vmem:[%s1610] ss:$2 sm:$0xff]
  %s1612 = scalar_lea.vmem %s1130, 776
  %v1613 = vld [vmem:[%s1612] ss:$2 sm:$0xff]
  %s1614 = scalar_lea.vmem %s1130, 792
  %v1615 = vld [vmem:[%s1614] ss:$2 sm:$0xff]
  %s1616 = scalar_lea.vmem %s1130, 872
  %v1617 = vld [vmem:[%s1616] ss:$2 sm:$0xff]
  %s1618 = scalar_lea.vmem %s1130, 888
  %v1619 = vld [vmem:[%s1618] ss:$2 sm:$0xff]
  %s1620 = scalar_lea.vmem %s1130, 968
  %v1621 = vld [vmem:[%s1620] ss:$2 sm:$0xff]
  %s1622 = scalar_lea.vmem %s1130, 984
  %v1623 = vld [vmem:[%s1622] ss:$2 sm:$0xff]
  %s1624 = scalar_lea.vmem %s1130, 1064
  %v1625 = vld [vmem:[%s1624] ss:$2 sm:$0xff]
  %s1626 = scalar_lea.vmem %s1130, 1080
  %v1627 = vld [vmem:[%s1626] ss:$2 sm:$0xff]
  %s1628 = scalar_lea.vmem %s1130, 1160
  %v1629 = vld [vmem:[%s1628] ss:$2 sm:$0xff]
  %s1630 = scalar_lea.vmem %s1130, 1176
  %v1631 = vld [vmem:[%s1630] ss:$2 sm:$0xff]
  %s1632 = scalar_lea.vmem %s1130, 1256
  %v1633 = vld [vmem:[%s1632] ss:$2 sm:$0xff]
  %s1634 = scalar_lea.vmem %s1130, 1272
  %v1635 = vld [vmem:[%s1634] ss:$2 sm:$0xff]
  %s1636 = scalar_lea.vmem %s1130, 1352
  %v1637 = vld [vmem:[%s1636] ss:$2 sm:$0xff]
  %s1638 = scalar_lea.vmem %s1130, 1368
  %v1639 = vld [vmem:[%s1638] ss:$2 sm:$0xff]
  %s1640 = scalar_lea.vmem %s1130, 1448
  %v1641 = vld [vmem:[%s1640] ss:$2 sm:$0xff]
  %s1642 = scalar_lea.vmem %s1130, 1464
  %v1643 = vld [vmem:[%s1642] ss:$2 sm:$0xff]
  %s1644 = scalar_lea.vmem %s1130, 1640
  %v1645 = vld [vmem:[%s1644] ss:$2 sm:$0xff]
  %s1646 = scalar_lea.vmem %s1130, 1656
  %v1647 = vld [vmem:[%s1646] ss:$2 sm:$0xff]
  %s1648 = scalar_lea.vmem %s1130, 1736
  %v1649 = vld [vmem:[%s1648] ss:$2 sm:$0xff]
  %s1650 = scalar_lea.vmem %s1130, 1752
  %v1651 = vld [vmem:[%s1650] ss:$2 sm:$0xff]
  %s1652 = scalar_lea.vmem %s1130, 1832
  %v1653 = vld [vmem:[%s1652] ss:$2 sm:$0xff]
  %s1654 = scalar_lea.vmem %s1130, 1848
  %v1655 = vld [vmem:[%s1654] ss:$2 sm:$0xff]
  %s1656 = scalar_lea.vmem %s1130, 1928
  %v1657 = vld [vmem:[%s1656] ss:$2 sm:$0xff]
  %s1658 = scalar_lea.vmem %s1130, 1944
  %v1659 = vld [vmem:[%s1658] ss:$2 sm:$0xff]
  %s1660 = scalar_lea.vmem %s1130, 2024
  %v1661 = vld [vmem:[%s1660] ss:$2 sm:$0xff]
  %s1662 = scalar_lea.vmem %s1130, 2040
  %v1663 = vld [vmem:[%s1662] ss:$2 sm:$0xff]
  %s1664 = scalar_lea.vmem %s1130, 2120
  %v1665 = vld [vmem:[%s1664] ss:$2 sm:$0xff]
  %s1666 = scalar_lea.vmem %s1130, 2136
  %v1667 = vld [vmem:[%s1666] ss:$2 sm:$0xff]
  %s1668 = scalar_lea.vmem %s1130, 2216
  %v1669 = vld [vmem:[%s1668] ss:$2 sm:$0xff]
  %s1670 = scalar_lea.vmem %s1130, 2232
  %v1671 = vld [vmem:[%s1670] ss:$2 sm:$0xff]
  %s1672 = scalar_lea.vmem %s1130, 2312
  %v1673 = vld [vmem:[%s1672] ss:$2 sm:$0xff]
  %s1674 = scalar_lea.vmem %s1130, 2328
  %v1675 = vld [vmem:[%s1674] ss:$2 sm:$0xff]
  %s1676 = scalar_lea.vmem %s1130, 2408
  %v1677 = vld [vmem:[%s1676] ss:$2 sm:$0xff]
  %s1678 = scalar_lea.vmem %s1130, 2424
  %v1679 = vld [vmem:[%s1678] ss:$2 sm:$0xff]
  %s1680 = scalar_lea.vmem %s1130, 2504
  %v1681 = vld [vmem:[%s1680] ss:$2 sm:$0xff]
  %s1682 = scalar_lea.vmem %s1130, 2520
  %v1683 = vld [vmem:[%s1682] ss:$2 sm:$0xff]
  %s1684 = scalar_lea.vmem %s1130, 2600
  %v1685 = vld [vmem:[%s1684] ss:$2 sm:$0xff]
  %s1686 = scalar_lea.vmem %s1130, 2616
  %v1687 = vld [vmem:[%s1686] ss:$2 sm:$0xff]
  %s1688 = scalar_lea.vmem %s1130, 2696
  %v1689 = vld [vmem:[%s1688] ss:$2 sm:$0xff]
  %s1690 = scalar_lea.vmem %s1130, 2712
  %v1691 = vld [vmem:[%s1690] ss:$2 sm:$0xff]
  %s1692 = scalar_lea.vmem %s1130, 2792
  %v1693 = vld [vmem:[%s1692] ss:$2 sm:$0xff]
  %s1694 = scalar_lea.vmem %s1130, 2808
  %v1695 = vld [vmem:[%s1694] ss:$2 sm:$0xff]
  %s1696 = scalar_lea.vmem %s1130, 2888
  %v1697 = vld [vmem:[%s1696] ss:$2 sm:$0xff]
  %s1698 = scalar_lea.vmem %s1130, 2904
  %v1699 = vld [vmem:[%s1698] ss:$2 sm:$0xff]
  %s1700 = scalar_lea.vmem %s1130, 2984
  %v1701 = vld [vmem:[%s1700] ss:$2 sm:$0xff]
  %s1702 = scalar_lea.vmem %s1130, 3000
  %v1703 = vld [vmem:[%s1702] ss:$2 sm:$0xff]
  %s1704 = scalar_lea.vmem %s1130, 3080
  %v1705 = vld [vmem:[%s1704] ss:$2 sm:$0xff]
  %s1706 = scalar_lea.vmem %s1130, 3096
  %v1707 = vld [vmem:[%s1706] ss:$2 sm:$0xff]
  %1772 = vrot.lane.b32.xlu0 %v1581, 32
  %v1773 = vpop.permute.xlu0 %1772
  %1774 = vrot.lane.b32.xlu0 %v1583, 32
  %v1775 = vpop.permute.xlu0 %1774
  %1776 = vrot.lane.b32.xlu0 %v1585, 32
  %v1777 = vpop.permute.xlu0 %1776
  %1778 = vrot.lane.b32.xlu0 %v1587, 32
  %v1779 = vpop.permute.xlu0 %1778
  %1780 = vrot.lane.b32.xlu0 %v1589, 32
  %v1781 = vpop.permute.xlu0 %1780
  %1782 = vrot.lane.b32.xlu0 %v1591, 32
  %v1783 = vpop.permute.xlu0 %1782
  %1784 = vrot.lane.b32.xlu0 %v1593, 32
  %v1785 = vpop.permute.xlu0 %1784
  %1786 = vrot.lane.b32.xlu0 %v1595, 32
  %v1787 = vpop.permute.xlu0 %1786
  %1788 = vrot.lane.b32.xlu0 %v1597, 32
  %v1789 = vpop.permute.xlu0 %1788
  %1790 = vrot.lane.b32.xlu0 %v1599, 32
  %v1791 = vpop.permute.xlu0 %1790
  %1792 = vrot.lane.b32.xlu0 %v1601, 32
  %v1793 = vpop.permute.xlu0 %1792
  %1794 = vrot.lane.b32.xlu0 %v1603, 32
  %v1795 = vpop.permute.xlu0 %1794
  %1796 = vrot.lane.b32.xlu0 %v1605, 32
  %v1797 = vpop.permute.xlu0 %1796
  %1798 = vrot.lane.b32.xlu0 %v1607, 32
  %v1799 = vpop.permute.xlu0 %1798
  %1800 = vrot.lane.b32.xlu0 %v1609, 32
  %v1801 = vpop.permute.xlu0 %1800
  %1802 = vrot.lane.b32.xlu0 %v1611, 32
  %v1803 = vpop.permute.xlu0 %1802
  %1804 = vrot.lane.b32.xlu0 %v1613, 32
  %v1805 = vpop.permute.xlu0 %1804
  %1806 = vrot.lane.b32.xlu0 %v1615, 32
  %v1807 = vpop.permute.xlu0 %1806
  %1808 = vrot.lane.b32.xlu0 %v1617, 32
  %v1809 = vpop.permute.xlu0 %1808
  %1810 = vrot.lane.b32.xlu0 %v1619, 32
  %v1811 = vpop.permute.xlu0 %1810
  %1812 = vrot.lane.b32.xlu0 %v1621, 32
  %v1813 = vpop.permute.xlu0 %1812
  %1814 = vrot.lane.b32.xlu0 %v1623, 32
  %v1815 = vpop.permute.xlu0 %1814
  %1816 = vrot.lane.b32.xlu0 %v1625, 32
  %v1817 = vpop.permute.xlu0 %1816
  %1818 = vrot.lane.b32.xlu0 %v1627, 32
  %v1819 = vpop.permute.xlu0 %1818
  %1820 = vrot.lane.b32.xlu0 %v1629, 32
  %v1821 = vpop.permute.xlu0 %1820
  %1822 = vrot.lane.b32.xlu0 %v1631, 32
  %v1823 = vpop.permute.xlu0 %1822
  %1824 = vrot.lane.b32.xlu0 %v1633, 32
  %v1825 = vpop.permute.xlu0 %1824
  %1826 = vrot.lane.b32.xlu0 %v1635, 32
  %v1827 = vpop.permute.xlu0 %1826
  %1828 = vrot.lane.b32.xlu0 %v1637, 32
  %v1829 = vpop.permute.xlu0 %1828
  %1830 = vrot.lane.b32.xlu0 %v1639, 32
  %v1831 = vpop.permute.xlu0 %1830
  %1832 = vrot.lane.b32.xlu0 %v1641, 32
  %v1833 = vpop.permute.xlu0 %1832
  %1834 = vrot.lane.b32.xlu0 %v1643, 32
  %v1835 = vpop.permute.xlu0 %1834
  %1836 = vrot.lane.b32.xlu0 %v1645, 32
  %v1837 = vpop.permute.xlu0 %1836
  %1838 = vrot.lane.b32.xlu0 %v1647, 32
  %v1839 = vpop.permute.xlu0 %1838
  %1840 = vrot.lane.b32.xlu0 %v1649, 32
  %v1841 = vpop.permute.xlu0 %1840
  %1842 = vrot.lane.b32.xlu0 %v1651, 32
  %v1843 = vpop.permute.xlu0 %1842
  %1844 = vrot.lane.b32.xlu0 %v1653, 32
  %v1845 = vpop.permute.xlu0 %1844
  %1846 = vrot.lane.b32.xlu0 %v1655, 32
  %v1847 = vpop.permute.xlu0 %1846
  %1848 = vrot.lane.b32.xlu0 %v1657, 32
  %v1849 = vpop.permute.xlu0 %1848
  %1850 = vrot.lane.b32.xlu0 %v1659, 32
  %v1851 = vpop.permute.xlu0 %1850
  %1852 = vrot.lane.b32.xlu0 %v1661, 32
  %v1853 = vpop.permute.xlu0 %1852
  %1854 = vrot.lane.b32.xlu0 %v1663, 32
  %v1855 = vpop.permute.xlu0 %1854
  %1856 = vrot.lane.b32.xlu0 %v1665, 32
  %v1857 = vpop.permute.xlu0 %1856
  %1858 = vrot.lane.b32.xlu0 %v1667, 32
  %v1859 = vpop.permute.xlu0 %1858
  %1860 = vrot.lane.b32.xlu0 %v1669, 32
  %v1861 = vpop.permute.xlu0 %1860
  %1862 = vrot.lane.b32.xlu0 %v1671, 32
  %v1863 = vpop.permute.xlu0 %1862
  %1864 = vrot.lane.b32.xlu0 %v1673, 32
  %v1865 = vpop.permute.xlu0 %1864
  %1866 = vrot.lane.b32.xlu0 %v1675, 32
  %v1867 = vpop.permute.xlu0 %1866
  %1868 = vrot.lane.b32.xlu0 %v1677, 32
  %v1869 = vpop.permute.xlu0 %1868
  %1870 = vrot.lane.b32.xlu0 %v1679, 32
  %v1871 = vpop.permute.xlu0 %1870
  %1872 = vrot.lane.b32.xlu0 %v1681, 32
  %v1873 = vpop.permute.xlu0 %1872
  %1874 = vrot.lane.b32.xlu0 %v1683, 32
  %v1875 = vpop.permute.xlu0 %1874
  %1876 = vrot.lane.b32.xlu0 %v1685, 32
  %v1877 = vpop.permute.xlu0 %1876
  %1878 = vrot.lane.b32.xlu0 %v1687, 32
  %v1879 = vpop.permute.xlu0 %1878
  %1880 = vrot.lane.b32.xlu0 %v1689, 32
  %v1881 = vpop.permute.xlu0 %1880
  %1882 = vrot.lane.b32.xlu0 %v1691, 32
  %v1883 = vpop.permute.xlu0 %1882
  %1884 = vrot.lane.b32.xlu0 %v1693, 32
  %v1885 = vpop.permute.xlu0 %1884
  %1886 = vrot.lane.b32.xlu0 %v1695, 32
  %v1887 = vpop.permute.xlu0 %1886
  %1888 = vrot.lane.b32.xlu0 %v1697, 32
  %v1889 = vpop.permute.xlu0 %1888
  %1890 = vrot.lane.b32.xlu0 %v1699, 32
  %v1891 = vpop.permute.xlu0 %1890
  %1892 = vrot.lane.b32.xlu0 %v1701, 32
  %v1893 = vpop.permute.xlu0 %1892
  %1894 = vrot.lane.b32.xlu0 %v1703, 32
  %v1895 = vpop.permute.xlu0 %1894
  %1896 = vrot.lane.b32.xlu0 %v1705, 32
  %v1897 = vpop.permute.xlu0 %1896
  %1898 = vrot.lane.b32.xlu0 %v1707, 32
  %v1899 = vpop.permute.xlu0 %1898
  %vm1964 = vcmask 326912
  %1965 = vst.msk [vmem:[#allocation2] sm:$0xff] %vm1964, %v1773
  %1966 = vst.msk [vmem:[#allocation2 + $0x8] sm:$0xff] %vm1964, %v1775
  %1967 = vst.msk [vmem:[#allocation2 + $0x10] sm:$0xff] %vm1964, %v1777
  %1968 = vst.msk [vmem:[#allocation2 + $0x18] sm:$0xff] %vm1964, %v1779
  %1969 = vst.msk [vmem:[#allocation2 + $0x20] sm:$0xff] %vm1964, %v1781
  %1970 = vst.msk [vmem:[#allocation2 + $0x28] sm:$0xff] %vm1964, %v1783
  %1971 = vst.msk [vmem:[#allocation2 + $0x30] sm:$0xff] %vm1964, %v1785
  %1972 = vst.msk [vmem:[#allocation2 + $0x38] sm:$0xff] %vm1964, %v1787
  %1973 = vst.msk [vmem:[#allocation2 + $0x40] sm:$0xff] %vm1964, %v1789
  %1974 = vst.msk [vmem:[#allocation2 + $0x48] sm:$0xff] %vm1964, %v1791
  %1975 = vst.msk [vmem:[#allocation2 + $0x50] sm:$0xff] %vm1964, %v1793
  %1976 = vst.msk [vmem:[#allocation2 + $0x58] sm:$0xff] %vm1964, %v1795
  %1977 = vst.msk [vmem:[#allocation2 + $0x60] sm:$0xff] %vm1964, %v1797
  %1978 = vst.msk [vmem:[#allocation2 + $0x68] sm:$0xff] %vm1964, %v1799
  %1979 = vst.msk [vmem:[#allocation2 + $0x70] sm:$0xff] %vm1964, %v1801
  %1980 = vst.msk [vmem:[#allocation2 + $0x78] sm:$0xff] %vm1964, %v1803
  %1981 = vst.msk [vmem:[#allocation2 + $0x80] sm:$0xff] %vm1964, %v1805
  %1982 = vst.msk [vmem:[#allocation2 + $0x88] sm:$0xff] %vm1964, %v1807
  %1983 = vst.msk [vmem:[#allocation2 + $0x90] sm:$0xff] %vm1964, %v1809
  %1984 = vst.msk [vmem:[#allocation2 + $0x98] sm:$0xff] %vm1964, %v1811
  %1985 = vst.msk [vmem:[#allocation2 + $0xa0] sm:$0xff] %vm1964, %v1813
  %1986 = vst.msk [vmem:[#allocation2 + $0xa8] sm:$0xff] %vm1964, %v1815
  %1987 = vst.msk [vmem:[#allocation2 + $0xb0] sm:$0xff] %vm1964, %v1817
  %1988 = vst.msk [vmem:[#allocation2 + $0xb8] sm:$0xff] %vm1964, %v1819
  %1989 = vst.msk [vmem:[#allocation2 + $0xc0] sm:$0xff] %vm1964, %v1821
  %1990 = vst.msk [vmem:[#allocation2 + $0xc8] sm:$0xff] %vm1964, %v1823
  %1991 = vst.msk [vmem:[#allocation2 + $0xd0] sm:$0xff] %vm1964, %v1825
  %1992 = vst.msk [vmem:[#allocation2 + $0xd8] sm:$0xff] %vm1964, %v1827
  %1993 = vst.msk [vmem:[#allocation2 + $0xe0] sm:$0xff] %vm1964, %v1829
  %1994 = vst.msk [vmem:[#allocation2 + $0xe8] sm:$0xff] %vm1964, %v1831
  %1995 = vst.msk [vmem:[#allocation2 + $0xf0] sm:$0xff] %vm1964, %v1833
  %1996 = vst.msk [vmem:[#allocation2 + $0xf8] sm:$0xff] %vm1964, %v1835
  %1997 = vst.msk [vmem:[#allocation2 + $0x100] sm:$0xff] %vm1964, %v1837
  %1998 = vst.msk [vmem:[#allocation2 + $0x108] sm:$0xff] %vm1964, %v1839
  %1999 = vst.msk [vmem:[#allocation2 + $0x110] sm:$0xff] %vm1964, %v1841
  %2000 = vst.msk [vmem:[#allocation2 + $0x118] sm:$0xff] %vm1964, %v1843
  %2001 = vst.msk [vmem:[#allocation2 + $0x120] sm:$0xff] %vm1964, %v1845
  %2002 = vst.msk [vmem:[#allocation2 + $0x128] sm:$0xff] %vm1964, %v1847
  %2003 = vst.msk [vmem:[#allocation2 + $0x130] sm:$0xff] %vm1964, %v1849
  %2004 = vst.msk [vmem:[#allocation2 + $0x138] sm:$0xff] %vm1964, %v1851
  %2005 = vst.msk [vmem:[#allocation2 + $0x140] sm:$0xff] %vm1964, %v1853
  %2006 = vst.msk [vmem:[#allocation2 + $0x148] sm:$0xff] %vm1964, %v1855
  %2007 = vst.msk [vmem:[#allocation2 + $0x150] sm:$0xff] %vm1964, %v1857
  %2008 = vst.msk [vmem:[#allocation2 + $0x158] sm:$0xff] %vm1964, %v1859
  %2009 = vst.msk [vmem:[#allocation2 + $0x160] sm:$0xff] %vm1964, %v1861
  %2010 = vst.msk [vmem:[#allocation2 + $0x168] sm:$0xff] %vm1964, %v1863
  %2011 = vst.msk [vmem:[#allocation2 + $0x170] sm:$0xff] %vm1964, %v1865
  %2012 = vst.msk [vmem:[#allocation2 + $0x178] sm:$0xff] %vm1964, %v1867
  %2013 = vst.msk [vmem:[#allocation2 + $0x180] sm:$0xff] %vm1964, %v1869
  %2014 = vst.msk [vmem:[#allocation2 + $0x188] sm:$0xff] %vm1964, %v1871
  %2015 = vst.msk [vmem:[#allocation2 + $0x190] sm:$0xff] %vm1964, %v1873
  %2016 = vst.msk [vmem:[#allocation2 + $0x198] sm:$0xff] %vm1964, %v1875
  %2017 = vst.msk [vmem:[#allocation2 + $0x1a0] sm:$0xff] %vm1964, %v1877
  %2018 = vst.msk [vmem:[#allocation2 + $0x1a8] sm:$0xff] %vm1964, %v1879
  %2019 = vst.msk [vmem:[#allocation2 + $0x1b0] sm:$0xff] %vm1964, %v1881
  %2020 = vst.msk [vmem:[#allocation2 + $0x1b8] sm:$0xff] %vm1964, %v1883
  %2021 = vst.msk [vmem:[#allocation2 + $0x1c0] sm:$0xff] %vm1964, %v1885
  %2022 = vst.msk [vmem:[#allocation2 + $0x1c8] sm:$0xff] %vm1964, %v1887
  %2023 = vst.msk [vmem:[#allocation2 + $0x1d0] sm:$0xff] %vm1964, %v1889
  %2024 = vst.msk [vmem:[#allocation2 + $0x1d8] sm:$0xff] %vm1964, %v1891
  %2025 = vst.msk [vmem:[#allocation2 + $0x1e0] sm:$0xff] %vm1964, %v1893
  %2026 = vst.msk [vmem:[#allocation2 + $0x1e8] sm:$0xff] %vm1964, %v1895
  %2027 = vst.msk [vmem:[#allocation2 + $0x1f0] sm:$0xff] %vm1964, %v1897
  %2028 = vst.msk [vmem:[#allocation2 + $0x1f8] sm:$0xff] %vm1964, %v1899
  %s2029 = scalar_lea.vmem %s1130, 9
  %v2030 = vld [vmem:[%s2029] ss:$2 sm:$0xff]
  %s2031 = scalar_lea.vmem %s1130, 25
  %v2032 = vld [vmem:[%s2031] ss:$2 sm:$0xff]
  %s2033 = scalar_lea.vmem %s1130, 105
  %v2034 = vld [vmem:[%s2033] ss:$2 sm:$0xff]
  %s2035 = scalar_lea.vmem %s1130, 121
  %v2036 = vld [vmem:[%s2035] ss:$2 sm:$0xff]
  %s2037 = scalar_lea.vmem %s1130, 201
  %v2038 = vld [vmem:[%s2037] ss:$2 sm:$0xff]
  %s2039 = scalar_lea.vmem %s1130, 217
  %v2040 = vld [vmem:[%s2039] ss:$2 sm:$0xff]
  %s2041 = scalar_lea.vmem %s1130, 297
  %v2042 = vld [vmem:[%s2041] ss:$2 sm:$0xff]
  %s2043 = scalar_lea.vmem %s1130, 313
  %v2044 = vld [vmem:[%s2043] ss:$2 sm:$0xff]
  %s2045 = scalar_lea.vmem %s1130, 393
  %v2046 = vld [vmem:[%s2045] ss:$2 sm:$0xff]
  %s2047 = scalar_lea.vmem %s1130, 409
  %v2048 = vld [vmem:[%s2047] ss:$2 sm:$0xff]
  %s2049 = scalar_lea.vmem %s1130, 489
  %v2050 = vld [vmem:[%s2049] ss:$2 sm:$0xff]
  %s2051 = scalar_lea.vmem %s1130, 505
  %v2052 = vld [vmem:[%s2051] ss:$2 sm:$0xff]
  %s2053 = scalar_lea.vmem %s1130, 585
  %v2054 = vld [vmem:[%s2053] ss:$2 sm:$0xff]
  %s2055 = scalar_lea.vmem %s1130, 601
  %v2056 = vld [vmem:[%s2055] ss:$2 sm:$0xff]
  %s2057 = scalar_lea.vmem %s1130, 681
  %v2058 = vld [vmem:[%s2057] ss:$2 sm:$0xff]
  %s2059 = scalar_lea.vmem %s1130, 697
  %v2060 = vld [vmem:[%s2059] ss:$2 sm:$0xff]
  %s2061 = scalar_lea.vmem %s1130, 777
  %v2062 = vld [vmem:[%s2061] ss:$2 sm:$0xff]
  %s2063 = scalar_lea.vmem %s1130, 793
  %v2064 = vld [vmem:[%s2063] ss:$2 sm:$0xff]
  %s2065 = scalar_lea.vmem %s1130, 873
  %v2066 = vld [vmem:[%s2065] ss:$2 sm:$0xff]
  %s2067 = scalar_lea.vmem %s1130, 889
  %v2068 = vld [vmem:[%s2067] ss:$2 sm:$0xff]
  %s2069 = scalar_lea.vmem %s1130, 969
  %v2070 = vld [vmem:[%s2069] ss:$2 sm:$0xff]
  %s2071 = scalar_lea.vmem %s1130, 985
  %v2072 = vld [vmem:[%s2071] ss:$2 sm:$0xff]
  %s2073 = scalar_lea.vmem %s1130, 1065
  %v2074 = vld [vmem:[%s2073] ss:$2 sm:$0xff]
  %s2075 = scalar_lea.vmem %s1130, 1081
  %v2076 = vld [vmem:[%s2075] ss:$2 sm:$0xff]
  %s2077 = scalar_lea.vmem %s1130, 1161
  %v2078 = vld [vmem:[%s2077] ss:$2 sm:$0xff]
  %s2079 = scalar_lea.vmem %s1130, 1177
  %v2080 = vld [vmem:[%s2079] ss:$2 sm:$0xff]
  %s2081 = scalar_lea.vmem %s1130, 1257
  %v2082 = vld [vmem:[%s2081] ss:$2 sm:$0xff]
  %s2083 = scalar_lea.vmem %s1130, 1273
  %v2084 = vld [vmem:[%s2083] ss:$2 sm:$0xff]
  %s2085 = scalar_lea.vmem %s1130, 1353
  %v2086 = vld [vmem:[%s2085] ss:$2 sm:$0xff]
  %s2087 = scalar_lea.vmem %s1130, 1369
  %v2088 = vld [vmem:[%s2087] ss:$2 sm:$0xff]
  %s2089 = scalar_lea.vmem %s1130, 1449
  %v2090 = vld [vmem:[%s2089] ss:$2 sm:$0xff]
  %s2091 = scalar_lea.vmem %s1130, 1465
  %v2092 = vld [vmem:[%s2091] ss:$2 sm:$0xff]
  %s2093 = scalar_lea.vmem %s1130, 1641
  %v2094 = vld [vmem:[%s2093] ss:$2 sm:$0xff]
  %s2095 = scalar_lea.vmem %s1130, 1657
  %v2096 = vld [vmem:[%s2095] ss:$2 sm:$0xff]
  %s2097 = scalar_lea.vmem %s1130, 1737
  %v2098 = vld [vmem:[%s2097] ss:$2 sm:$0xff]
  %s2099 = scalar_lea.vmem %s1130, 1753
  %v2100 = vld [vmem:[%s2099] ss:$2 sm:$0xff]
  %s2101 = scalar_lea.vmem %s1130, 1833
  %v2102 = vld [vmem:[%s2101] ss:$2 sm:$0xff]
  %s2103 = scalar_lea.vmem %s1130, 1849
  %v2104 = vld [vmem:[%s2103] ss:$2 sm:$0xff]
  %s2105 = scalar_lea.vmem %s1130, 1929
  %v2106 = vld [vmem:[%s2105] ss:$2 sm:$0xff]
  %s2107 = scalar_lea.vmem %s1130, 1945
  %v2108 = vld [vmem:[%s2107] ss:$2 sm:$0xff]
  %s2109 = scalar_lea.vmem %s1130, 2025
  %v2110 = vld [vmem:[%s2109] ss:$2 sm:$0xff]
  %s2111 = scalar_lea.vmem %s1130, 2041
  %v2112 = vld [vmem:[%s2111] ss:$2 sm:$0xff]
  %s2113 = scalar_lea.vmem %s1130, 2121
  %v2114 = vld [vmem:[%s2113] ss:$2 sm:$0xff]
  %s2115 = scalar_lea.vmem %s1130, 2137
  %v2116 = vld [vmem:[%s2115] ss:$2 sm:$0xff]
  %s2117 = scalar_lea.vmem %s1130, 2217
  %v2118 = vld [vmem:[%s2117] ss:$2 sm:$0xff]
  %s2119 = scalar_lea.vmem %s1130, 2233
  %v2120 = vld [vmem:[%s2119] ss:$2 sm:$0xff]
  %s2121 = scalar_lea.vmem %s1130, 2313
  %v2122 = vld [vmem:[%s2121] ss:$2 sm:$0xff]
  %s2123 = scalar_lea.vmem %s1130, 2329
  %v2124 = vld [vmem:[%s2123] ss:$2 sm:$0xff]
  %s2125 = scalar_lea.vmem %s1130, 2409
  %v2126 = vld [vmem:[%s2125] ss:$2 sm:$0xff]
  %s2127 = scalar_lea.vmem %s1130, 2425
  %v2128 = vld [vmem:[%s2127] ss:$2 sm:$0xff]
  %s2129 = scalar_lea.vmem %s1130, 2505
  %v2130 = vld [vmem:[%s2129] ss:$2 sm:$0xff]
  %s2131 = scalar_lea.vmem %s1130, 2521
  %v2132 = vld [vmem:[%s2131] ss:$2 sm:$0xff]
  %s2133 = scalar_lea.vmem %s1130, 2601
  %v2134 = vld [vmem:[%s2133] ss:$2 sm:$0xff]
  %s2135 = scalar_lea.vmem %s1130, 2617
  %v2136 = vld [vmem:[%s2135] ss:$2 sm:$0xff]
  %s2137 = scalar_lea.vmem %s1130, 2697
  %v2138 = vld [vmem:[%s2137] ss:$2 sm:$0xff]
  %s2139 = scalar_lea.vmem %s1130, 2713
  %v2140 = vld [vmem:[%s2139] ss:$2 sm:$0xff]
  %s2141 = scalar_lea.vmem %s1130, 2793
  %v2142 = vld [vmem:[%s2141] ss:$2 sm:$0xff]
  %s2143 = scalar_lea.vmem %s1130, 2809
  %v2144 = vld [vmem:[%s2143] ss:$2 sm:$0xff]
  %s2145 = scalar_lea.vmem %s1130, 2889
  %v2146 = vld [vmem:[%s2145] ss:$2 sm:$0xff]
  %s2147 = scalar_lea.vmem %s1130, 2905
  %v2148 = vld [vmem:[%s2147] ss:$2 sm:$0xff]
  %s2149 = scalar_lea.vmem %s1130, 2985
  %v2150 = vld [vmem:[%s2149] ss:$2 sm:$0xff]
  %s2151 = scalar_lea.vmem %s1130, 3001
  %v2152 = vld [vmem:[%s2151] ss:$2 sm:$0xff]
  %s2153 = scalar_lea.vmem %s1130, 3081
  %v2154 = vld [vmem:[%s2153] ss:$2 sm:$0xff]
  %s2155 = scalar_lea.vmem %s1130, 3097
  %v2156 = vld [vmem:[%s2155] ss:$2 sm:$0xff]
  %2221 = vrot.lane.b32.xlu0 %v2030, 40
  %v2222 = vpop.permute.xlu0 %2221
  %2223 = vrot.lane.b32.xlu0 %v2032, 40
  %v2224 = vpop.permute.xlu0 %2223
  %2225 = vrot.lane.b32.xlu0 %v2034, 40
  %v2226 = vpop.permute.xlu0 %2225
  %2227 = vrot.lane.b32.xlu0 %v2036, 40
  %v2228 = vpop.permute.xlu0 %2227
  %2229 = vrot.lane.b32.xlu0 %v2038, 40
  %v2230 = vpop.permute.xlu0 %2229
  %2231 = vrot.lane.b32.xlu0 %v2040, 40
  %v2232 = vpop.permute.xlu0 %2231
  %2233 = vrot.lane.b32.xlu0 %v2042, 40
  %v2234 = vpop.permute.xlu0 %2233
  %2235 = vrot.lane.b32.xlu0 %v2044, 40
  %v2236 = vpop.permute.xlu0 %2235
  %2237 = vrot.lane.b32.xlu0 %v2046, 40
  %v2238 = vpop.permute.xlu0 %2237
  %2239 = vrot.lane.b32.xlu0 %v2048, 40
  %v2240 = vpop.permute.xlu0 %2239
  %2241 = vrot.lane.b32.xlu0 %v2050, 40
  %v2242 = vpop.permute.xlu0 %2241
  %2243 = vrot.lane.b32.xlu0 %v2052, 40
  %v2244 = vpop.permute.xlu0 %2243
  %2245 = vrot.lane.b32.xlu0 %v2054, 40
  %v2246 = vpop.permute.xlu0 %2245
  %2247 = vrot.lane.b32.xlu0 %v2056, 40
  %v2248 = vpop.permute.xlu0 %2247
  %2249 = vrot.lane.b32.xlu0 %v2058, 40
  %v2250 = vpop.permute.xlu0 %2249
  %2251 = vrot.lane.b32.xlu0 %v2060, 40
  %v2252 = vpop.permute.xlu0 %2251
  %2253 = vrot.lane.b32.xlu0 %v2062, 40
  %v2254 = vpop.permute.xlu0 %2253
  %2255 = vrot.lane.b32.xlu0 %v2064, 40
  %v2256 = vpop.permute.xlu0 %2255
  %2257 = vrot.lane.b32.xlu0 %v2066, 40
  %v2258 = vpop.permute.xlu0 %2257
  %2259 = vrot.lane.b32.xlu0 %v2068, 40
  %v2260 = vpop.permute.xlu0 %2259
  %2261 = vrot.lane.b32.xlu0 %v2070, 40
  %v2262 = vpop.permute.xlu0 %2261
  %2263 = vrot.lane.b32.xlu0 %v2072, 40
  %v2264 = vpop.permute.xlu0 %2263
  %2265 = vrot.lane.b32.xlu0 %v2074, 40
  %v2266 = vpop.permute.xlu0 %2265
  %2267 = vrot.lane.b32.xlu0 %v2076, 40
  %v2268 = vpop.permute.xlu0 %2267
  %2269 = vrot.lane.b32.xlu0 %v2078, 40
  %v2270 = vpop.permute.xlu0 %2269
  %2271 = vrot.lane.b32.xlu0 %v2080, 40
  %v2272 = vpop.permute.xlu0 %2271
  %2273 = vrot.lane.b32.xlu0 %v2082, 40
  %v2274 = vpop.permute.xlu0 %2273
  %2275 = vrot.lane.b32.xlu0 %v2084, 40
  %v2276 = vpop.permute.xlu0 %2275
  %2277 = vrot.lane.b32.xlu0 %v2086, 40
  %v2278 = vpop.permute.xlu0 %2277
  %2279 = vrot.lane.b32.xlu0 %v2088, 40
  %v2280 = vpop.permute.xlu0 %2279
  %2281 = vrot.lane.b32.xlu0 %v2090, 40
  %v2282 = vpop.permute.xlu0 %2281
  %2283 = vrot.lane.b32.xlu0 %v2092, 40
  %v2284 = vpop.permute.xlu0 %2283
  %2285 = vrot.lane.b32.xlu0 %v2094, 40
  %v2286 = vpop.permute.xlu0 %2285
  %2287 = vrot.lane.b32.xlu0 %v2096, 40
  %v2288 = vpop.permute.xlu0 %2287
  %2289 = vrot.lane.b32.xlu0 %v2098, 40
  %v2290 = vpop.permute.xlu0 %2289
  %2291 = vrot.lane.b32.xlu0 %v2100, 40
  %v2292 = vpop.permute.xlu0 %2291
  %2293 = vrot.lane.b32.xlu0 %v2102, 40
  %v2294 = vpop.permute.xlu0 %2293
  %2295 = vrot.lane.b32.xlu0 %v2104, 40
  %v2296 = vpop.permute.xlu0 %2295
  %2297 = vrot.lane.b32.xlu0 %v2106, 40
  %v2298 = vpop.permute.xlu0 %2297
  %2299 = vrot.lane.b32.xlu0 %v2108, 40
  %v2300 = vpop.permute.xlu0 %2299
  %2301 = vrot.lane.b32.xlu0 %v2110, 40
  %v2302 = vpop.permute.xlu0 %2301
  %2303 = vrot.lane.b32.xlu0 %v2112, 40
  %v2304 = vpop.permute.xlu0 %2303
  %2305 = vrot.lane.b32.xlu0 %v2114, 40
  %v2306 = vpop.permute.xlu0 %2305
  %2307 = vrot.lane.b32.xlu0 %v2116, 40
  %v2308 = vpop.permute.xlu0 %2307
  %2309 = vrot.lane.b32.xlu0 %v2118, 40
  %v2310 = vpop.permute.xlu0 %2309
  %2311 = vrot.lane.b32.xlu0 %v2120, 40
  %v2312 = vpop.permute.xlu0 %2311
  %2313 = vrot.lane.b32.xlu0 %v2122, 40
  %v2314 = vpop.permute.xlu0 %2313
  %2315 = vrot.lane.b32.xlu0 %v2124, 40
  %v2316 = vpop.permute.xlu0 %2315
  %2317 = vrot.lane.b32.xlu0 %v2126, 40
  %v2318 = vpop.permute.xlu0 %2317
  %2319 = vrot.lane.b32.xlu0 %v2128, 40
  %v2320 = vpop.permute.xlu0 %2319
  %2321 = vrot.lane.b32.xlu0 %v2130, 40
  %v2322 = vpop.permute.xlu0 %2321
  %2323 = vrot.lane.b32.xlu0 %v2132, 40
  %v2324 = vpop.permute.xlu0 %2323
  %2325 = vrot.lane.b32.xlu0 %v2134, 40
  %v2326 = vpop.permute.xlu0 %2325
  %2327 = vrot.lane.b32.xlu0 %v2136, 40
  %v2328 = vpop.permute.xlu0 %2327
  %2329 = vrot.lane.b32.xlu0 %v2138, 40
  %v2330 = vpop.permute.xlu0 %2329
  %2331 = vrot.lane.b32.xlu0 %v2140, 40
  %v2332 = vpop.permute.xlu0 %2331
  %2333 = vrot.lane.b32.xlu0 %v2142, 40
  %v2334 = vpop.permute.xlu0 %2333
  %2335 = vrot.lane.b32.xlu0 %v2144, 40
  %v2336 = vpop.permute.xlu0 %2335
  %2337 = vrot.lane.b32.xlu0 %v2146, 40
  %v2338 = vpop.permute.xlu0 %2337
  %2339 = vrot.lane.b32.xlu0 %v2148, 40
  %v2340 = vpop.permute.xlu0 %2339
  %2341 = vrot.lane.b32.xlu0 %v2150, 40
  %v2342 = vpop.permute.xlu0 %2341
  %2343 = vrot.lane.b32.xlu0 %v2152, 40
  %v2344 = vpop.permute.xlu0 %2343
  %2345 = vrot.lane.b32.xlu0 %v2154, 40
  %v2346 = vpop.permute.xlu0 %2345
  %2347 = vrot.lane.b32.xlu0 %v2156, 40
  %v2348 = vpop.permute.xlu0 %2347
  %vm2413 = vcmask 392512
  %2414 = vst.msk [vmem:[#allocation2] sm:$0xff] %vm2413, %v2222
  %2415 = vst.msk [vmem:[#allocation2 + $0x8] sm:$0xff] %vm2413, %v2224
  %2416 = vst.msk [vmem:[#allocation2 + $0x10] sm:$0xff] %vm2413, %v2226
  %2417 = vst.msk [vmem:[#allocation2 + $0x18] sm:$0xff] %vm2413, %v2228
  %2418 = vst.msk [vmem:[#allocation2 + $0x20] sm:$0xff] %vm2413, %v2230
  %2419 = vst.msk [vmem:[#allocation2 + $0x28] sm:$0xff] %vm2413, %v2232
  %2420 = vst.msk [vmem:[#allocation2 + $0x30] sm:$0xff] %vm2413, %v2234
  %2421 = vst.msk [vmem:[#allocation2 + $0x38] sm:$0xff] %vm2413, %v2236
  %2422 = vst.msk [vmem:[#allocation2 + $0x40] sm:$0xff] %vm2413, %v2238
  %2423 = vst.msk [vmem:[#allocation2 + $0x48] sm:$0xff] %vm2413, %v2240
  %2424 = vst.msk [vmem:[#allocation2 + $0x50] sm:$0xff] %vm2413, %v2242
  %2425 = vst.msk [vmem:[#allocation2 + $0x58] sm:$0xff] %vm2413, %v2244
  %2426 = vst.msk [vmem:[#allocation2 + $0x60] sm:$0xff] %vm2413, %v2246
  %2427 = vst.msk [vmem:[#allocation2 + $0x68] sm:$0xff] %vm2413, %v2248
  %2428 = vst.msk [vmem:[#allocation2 + $0x70] sm:$0xff] %vm2413, %v2250
  %2429 = vst.msk [vmem:[#allocation2 + $0x78] sm:$0xff] %vm2413, %v2252
  %2430 = vst.msk [vmem:[#allocation2 + $0x80] sm:$0xff] %vm2413, %v2254
  %2431 = vst.msk [vmem:[#allocation2 + $0x88] sm:$0xff] %vm2413, %v2256
  %2432 = vst.msk [vmem:[#allocation2 + $0x90] sm:$0xff] %vm2413, %v2258
  %2433 = vst.msk [vmem:[#allocation2 + $0x98] sm:$0xff] %vm2413, %v2260
  %2434 = vst.msk [vmem:[#allocation2 + $0xa0] sm:$0xff] %vm2413, %v2262
  %2435 = vst.msk [vmem:[#allocation2 + $0xa8] sm:$0xff] %vm2413, %v2264
  %2436 = vst.msk [vmem:[#allocation2 + $0xb0] sm:$0xff] %vm2413, %v2266
  %2437 = vst.msk [vmem:[#allocation2 + $0xb8] sm:$0xff] %vm2413, %v2268
  %2438 = vst.msk [vmem:[#allocation2 + $0xc0] sm:$0xff] %vm2413, %v2270
  %2439 = vst.msk [vmem:[#allocation2 + $0xc8] sm:$0xff] %vm2413, %v2272
  %2440 = vst.msk [vmem:[#allocation2 + $0xd0] sm:$0xff] %vm2413, %v2274
  %2441 = vst.msk [vmem:[#allocation2 + $0xd8] sm:$0xff] %vm2413, %v2276
  %2442 = vst.msk [vmem:[#allocation2 + $0xe0] sm:$0xff] %vm2413, %v2278
  %2443 = vst.msk [vmem:[#allocation2 + $0xe8] sm:$0xff] %vm2413, %v2280
  %2444 = vst.msk [vmem:[#allocation2 + $0xf0] sm:$0xff] %vm2413, %v2282
  %2445 = vst.msk [vmem:[#allocation2 + $0xf8] sm:$0xff] %vm2413, %v2284
  %2446 = vst.msk [vmem:[#allocation2 + $0x100] sm:$0xff] %vm2413, %v2286
  %2447 = vst.msk [vmem:[#allocation2 + $0x108] sm:$0xff] %vm2413, %v2288
  %2448 = vst.msk [vmem:[#allocation2 + $0x110] sm:$0xff] %vm2413, %v2290
  %2449 = vst.msk [vmem:[#allocation2 + $0x118] sm:$0xff] %vm2413, %v2292
  %2450 = vst.msk [vmem:[#allocation2 + $0x120] sm:$0xff] %vm2413, %v2294
  %2451 = vst.msk [vmem:[#allocation2 + $0x128] sm:$0xff] %vm2413, %v2296
  %2452 = vst.msk [vmem:[#allocation2 + $0x130] sm:$0xff] %vm2413, %v2298
  %2453 = vst.msk [vmem:[#allocation2 + $0x138] sm:$0xff] %vm2413, %v2300
  %2454 = vst.msk [vmem:[#allocation2 + $0x140] sm:$0xff] %vm2413, %v2302
  %2455 = vst.msk [vmem:[#allocation2 + $0x148] sm:$0xff] %vm2413, %v2304
  %2456 = vst.msk [vmem:[#allocation2 + $0x150] sm:$0xff] %vm2413, %v2306
  %2457 = vst.msk [vmem:[#allocation2 + $0x158] sm:$0xff] %vm2413, %v2308
  %2458 = vst.msk [vmem:[#allocation2 + $0x160] sm:$0xff] %vm2413, %v2310
  %2459 = vst.msk [vmem:[#allocation2 + $0x168] sm:$0xff] %vm2413, %v2312
  %2460 = vst.msk [vmem:[#allocation2 + $0x170] sm:$0xff] %vm2413, %v2314
  %2461 = vst.msk [vmem:[#allocation2 + $0x178] sm:$0xff] %vm2413, %v2316
  %2462 = vst.msk [vmem:[#allocation2 + $0x180] sm:$0xff] %vm2413, %v2318
  %2463 = vst.msk [vmem:[#allocation2 + $0x188] sm:$0xff] %vm2413, %v2320
  %2464 = vst.msk [vmem:[#allocation2 + $0x190] sm:$0xff] %vm2413, %v2322
  %2465 = vst.msk [vmem:[#allocation2 + $0x198] sm:$0xff] %vm2413, %v2324
  %2466 = vst.msk [vmem:[#allocation2 + $0x1a0] sm:$0xff] %vm2413, %v2326
  %2467 = vst.msk [vmem:[#allocation2 + $0x1a8] sm:$0xff] %vm2413, %v2328
  %2468 = vst.msk [vmem:[#allocation2 + $0x1b0] sm:$0xff] %vm2413, %v2330
  %2469 = vst.msk [vmem:[#allocation2 + $0x1b8] sm:$0xff] %vm2413, %v2332
  %2470 = vst.msk [vmem:[#allocation2 + $0x1c0] sm:$0xff] %vm2413, %v2334
  %2471 = vst.msk [vmem:[#allocation2 + $0x1c8] sm:$0xff] %vm2413, %v2336
  %2472 = vst.msk [vmem:[#allocation2 + $0x1d0] sm:$0xff] %vm2413, %v2338
  %2473 = vst.msk [vmem:[#allocation2 + $0x1d8] sm:$0xff] %vm2413, %v2340
  %2474 = vst.msk [vmem:[#allocation2 + $0x1e0] sm:$0xff] %vm2413, %v2342
  %2475 = vst.msk [vmem:[#allocation2 + $0x1e8] sm:$0xff] %vm2413, %v2344
  %2476 = vst.msk [vmem:[#allocation2 + $0x1f0] sm:$0xff] %vm2413, %v2346
  %2477 = vst.msk [vmem:[#allocation2 + $0x1f8] sm:$0xff] %vm2413, %v2348
  %s2478 = scalar_lea.vmem %s0, 96
  %s2479 = scalar_lea.vmem %s2478, 7
  %v2480 = vld [vmem:[%s2479] ss:$2 sm:$0xff]
  %s2481 = scalar_lea.vmem %s2478, 23
  %v2482 = vld [vmem:[%s2481] ss:$2 sm:$0xff]
  %s2483 = scalar_lea.vmem %s2478, 103
  %v2484 = vld [vmem:[%s2483] ss:$2 sm:$0xff]
  %s2485 = scalar_lea.vmem %s2478, 119
  %v2486 = vld [vmem:[%s2485] ss:$2 sm:$0xff]
  %s2487 = scalar_lea.vmem %s2478, 199
  %v2488 = vld [vmem:[%s2487] ss:$2 sm:$0xff]
  %s2489 = scalar_lea.vmem %s2478, 215
  %v2490 = vld [vmem:[%s2489] ss:$2 sm:$0xff]
  %s2491 = scalar_lea.vmem %s2478, 295
  %v2492 = vld [vmem:[%s2491] ss:$2 sm:$0xff]
  %s2493 = scalar_lea.vmem %s2478, 311
  %v2494 = vld [vmem:[%s2493] ss:$2 sm:$0xff]
  %s2495 = scalar_lea.vmem %s2478, 391
  %v2496 = vld [vmem:[%s2495] ss:$2 sm:$0xff]
  %s2497 = scalar_lea.vmem %s2478, 407
  %v2498 = vld [vmem:[%s2497] ss:$2 sm:$0xff]
  %s2499 = scalar_lea.vmem %s2478, 487
  %v2500 = vld [vmem:[%s2499] ss:$2 sm:$0xff]
  %s2501 = scalar_lea.vmem %s2478, 503
  %v2502 = vld [vmem:[%s2501] ss:$2 sm:$0xff]
  %s2503 = scalar_lea.vmem %s2478, 583
  %v2504 = vld [vmem:[%s2503] ss:$2 sm:$0xff]
  %s2505 = scalar_lea.vmem %s2478, 599
  %v2506 = vld [vmem:[%s2505] ss:$2 sm:$0xff]
  %s2507 = scalar_lea.vmem %s2478, 679
  %v2508 = vld [vmem:[%s2507] ss:$2 sm:$0xff]
  %s2509 = scalar_lea.vmem %s2478, 695
  %v2510 = vld [vmem:[%s2509] ss:$2 sm:$0xff]
  %s2511 = scalar_lea.vmem %s2478, 775
  %v2512 = vld [vmem:[%s2511] ss:$2 sm:$0xff]
  %s2513 = scalar_lea.vmem %s2478, 791
  %v2514 = vld [vmem:[%s2513] ss:$2 sm:$0xff]
  %s2515 = scalar_lea.vmem %s2478, 871
  %v2516 = vld [vmem:[%s2515] ss:$2 sm:$0xff]
  %s2517 = scalar_lea.vmem %s2478, 887
  %v2518 = vld [vmem:[%s2517] ss:$2 sm:$0xff]
  %s2519 = scalar_lea.vmem %s2478, 967
  %v2520 = vld [vmem:[%s2519] ss:$2 sm:$0xff]
  %s2521 = scalar_lea.vmem %s2478, 983
  %v2522 = vld [vmem:[%s2521] ss:$2 sm:$0xff]
  %s2523 = scalar_lea.vmem %s2478, 1063
  %v2524 = vld [vmem:[%s2523] ss:$2 sm:$0xff]
  %s2525 = scalar_lea.vmem %s2478, 1079
  %v2526 = vld [vmem:[%s2525] ss:$2 sm:$0xff]
  %s2527 = scalar_lea.vmem %s2478, 1159
  %v2528 = vld [vmem:[%s2527] ss:$2 sm:$0xff]
  %s2529 = scalar_lea.vmem %s2478, 1175
  %v2530 = vld [vmem:[%s2529] ss:$2 sm:$0xff]
  %s2531 = scalar_lea.vmem %s2478, 1255
  %v2532 = vld [vmem:[%s2531] ss:$2 sm:$0xff]
  %s2533 = scalar_lea.vmem %s2478, 1271
  %v2534 = vld [vmem:[%s2533] ss:$2 sm:$0xff]
  %s2535 = scalar_lea.vmem %s2478, 1351
  %v2536 = vld [vmem:[%s2535] ss:$2 sm:$0xff]
  %s2537 = scalar_lea.vmem %s2478, 1367
  %v2538 = vld [vmem:[%s2537] ss:$2 sm:$0xff]
  %s2539 = scalar_lea.vmem %s2478, 1447
  %v2540 = vld [vmem:[%s2539] ss:$2 sm:$0xff]
  %s2541 = scalar_lea.vmem %s2478, 1463
  %v2542 = vld [vmem:[%s2541] ss:$2 sm:$0xff]
  %s2543 = scalar_lea.vmem %s2478, 1639
  %v2544 = vld [vmem:[%s2543] ss:$2 sm:$0xff]
  %s2545 = scalar_lea.vmem %s2478, 1655
  %v2546 = vld [vmem:[%s2545] ss:$2 sm:$0xff]
  %s2547 = scalar_lea.vmem %s2478, 1735
  %v2548 = vld [vmem:[%s2547] ss:$2 sm:$0xff]
  %s2549 = scalar_lea.vmem %s2478, 1751
  %v2550 = vld [vmem:[%s2549] ss:$2 sm:$0xff]
  %s2551 = scalar_lea.vmem %s2478, 1831
  %v2552 = vld [vmem:[%s2551] ss:$2 sm:$0xff]
  %s2553 = scalar_lea.vmem %s2478, 1847
  %v2554 = vld [vmem:[%s2553] ss:$2 sm:$0xff]
  %s2555 = scalar_lea.vmem %s2478, 1927
  %v2556 = vld [vmem:[%s2555] ss:$2 sm:$0xff]
  %s2557 = scalar_lea.vmem %s2478, 1943
  %v2558 = vld [vmem:[%s2557] ss:$2 sm:$0xff]
  %s2559 = scalar_lea.vmem %s2478, 2023
  %v2560 = vld [vmem:[%s2559] ss:$2 sm:$0xff]
  %s2561 = scalar_lea.vmem %s2478, 2039
  %v2562 = vld [vmem:[%s2561] ss:$2 sm:$0xff]
  %s2563 = scalar_lea.vmem %s2478, 2119
  %v2564 = vld [vmem:[%s2563] ss:$2 sm:$0xff]
  %s2565 = scalar_lea.vmem %s2478, 2135
  %v2566 = vld [vmem:[%s2565] ss:$2 sm:$0xff]
  %s2567 = scalar_lea.vmem %s2478, 2215
  %v2568 = vld [vmem:[%s2567] ss:$2 sm:$0xff]
  %s2569 = scalar_lea.vmem %s2478, 2231
  %v2570 = vld [vmem:[%s2569] ss:$2 sm:$0xff]
  %s2571 = scalar_lea.vmem %s2478, 2311
  %v2572 = vld [vmem:[%s2571] ss:$2 sm:$0xff]
  %s2573 = scalar_lea.vmem %s2478, 2327
  %v2574 = vld [vmem:[%s2573] ss:$2 sm:$0xff]
  %s2575 = scalar_lea.vmem %s2478, 2407
  %v2576 = vld [vmem:[%s2575] ss:$2 sm:$0xff]
  %s2577 = scalar_lea.vmem %s2478, 2423
  %v2578 = vld [vmem:[%s2577] ss:$2 sm:$0xff]
  %s2579 = scalar_lea.vmem %s2478, 2503
  %v2580 = vld [vmem:[%s2579] ss:$2 sm:$0xff]
  %s2581 = scalar_lea.vmem %s2478, 2519
  %v2582 = vld [vmem:[%s2581] ss:$2 sm:$0xff]
  %s2583 = scalar_lea.vmem %s2478, 2599
  %v2584 = vld [vmem:[%s2583] ss:$2 sm:$0xff]
  %s2585 = scalar_lea.vmem %s2478, 2615
  %v2586 = vld [vmem:[%s2585] ss:$2 sm:$0xff]
  %s2587 = scalar_lea.vmem %s2478, 2695
  %v2588 = vld [vmem:[%s2587] ss:$2 sm:$0xff]
  %s2589 = scalar_lea.vmem %s2478, 2711
  %v2590 = vld [vmem:[%s2589] ss:$2 sm:$0xff]
  %s2591 = scalar_lea.vmem %s2478, 2791
  %v2592 = vld [vmem:[%s2591] ss:$2 sm:$0xff]
  %s2593 = scalar_lea.vmem %s2478, 2807
  %v2594 = vld [vmem:[%s2593] ss:$2 sm:$0xff]
  %s2595 = scalar_lea.vmem %s2478, 2887
  %v2596 = vld [vmem:[%s2595] ss:$2 sm:$0xff]
  %s2597 = scalar_lea.vmem %s2478, 2903
  %v2598 = vld [vmem:[%s2597] ss:$2 sm:$0xff]
  %s2599 = scalar_lea.vmem %s2478, 2983
  %v2600 = vld [vmem:[%s2599] ss:$2 sm:$0xff]
  %s2601 = scalar_lea.vmem %s2478, 2999
  %v2602 = vld [vmem:[%s2601] ss:$2 sm:$0xff]
  %s2603 = scalar_lea.vmem %s2478, 3079
  %v2604 = vld [vmem:[%s2603] ss:$2 sm:$0xff]
  %s2605 = scalar_lea.vmem %s2478, 3095
  %v2606 = vld [vmem:[%s2605] ss:$2 sm:$0xff]
  %2671 = vrot.lane.b32.xlu0 %v2480, 48
  %v2672 = vpop.permute.xlu0 %2671
  %2673 = vrot.lane.b32.xlu0 %v2482, 48
  %v2674 = vpop.permute.xlu0 %2673
  %2675 = vrot.lane.b32.xlu0 %v2484, 48
  %v2676 = vpop.permute.xlu0 %2675
  %2677 = vrot.lane.b32.xlu0 %v2486, 48
  %v2678 = vpop.permute.xlu0 %2677
  %2679 = vrot.lane.b32.xlu0 %v2488, 48
  %v2680 = vpop.permute.xlu0 %2679
  %2681 = vrot.lane.b32.xlu0 %v2490, 48
  %v2682 = vpop.permute.xlu0 %2681
  %2683 = vrot.lane.b32.xlu0 %v2492, 48
  %v2684 = vpop.permute.xlu0 %2683
  %2685 = vrot.lane.b32.xlu0 %v2494, 48
  %v2686 = vpop.permute.xlu0 %2685
  %2687 = vrot.lane.b32.xlu0 %v2496, 48
  %v2688 = vpop.permute.xlu0 %2687
  %2689 = vrot.lane.b32.xlu0 %v2498, 48
  %v2690 = vpop.permute.xlu0 %2689
  %2691 = vrot.lane.b32.xlu0 %v2500, 48
  %v2692 = vpop.permute.xlu0 %2691
  %2693 = vrot.lane.b32.xlu0 %v2502, 48
  %v2694 = vpop.permute.xlu0 %2693
  %2695 = vrot.lane.b32.xlu0 %v2504, 48
  %v2696 = vpop.permute.xlu0 %2695
  %2697 = vrot.lane.b32.xlu0 %v2506, 48
  %v2698 = vpop.permute.xlu0 %2697
  %2699 = vrot.lane.b32.xlu0 %v2508, 48
  %v2700 = vpop.permute.xlu0 %2699
  %2701 = vrot.lane.b32.xlu0 %v2510, 48
  %v2702 = vpop.permute.xlu0 %2701
  %2703 = vrot.lane.b32.xlu0 %v2512, 48
  %v2704 = vpop.permute.xlu0 %2703
  %2705 = vrot.lane.b32.xlu0 %v2514, 48
  %v2706 = vpop.permute.xlu0 %2705
  %2707 = vrot.lane.b32.xlu0 %v2516, 48
  %v2708 = vpop.permute.xlu0 %2707
  %2709 = vrot.lane.b32.xlu0 %v2518, 48
  %v2710 = vpop.permute.xlu0 %2709
  %2711 = vrot.lane.b32.xlu0 %v2520, 48
  %v2712 = vpop.permute.xlu0 %2711
  %2713 = vrot.lane.b32.xlu0 %v2522, 48
  %v2714 = vpop.permute.xlu0 %2713
  %2715 = vrot.lane.b32.xlu0 %v2524, 48
  %v2716 = vpop.permute.xlu0 %2715
  %2717 = vrot.lane.b32.xlu0 %v2526, 48
  %v2718 = vpop.permute.xlu0 %2717
  %2719 = vrot.lane.b32.xlu0 %v2528, 48
  %v2720 = vpop.permute.xlu0 %2719
  %2721 = vrot.lane.b32.xlu0 %v2530, 48
  %v2722 = vpop.permute.xlu0 %2721
  %2723 = vrot.lane.b32.xlu0 %v2532, 48
  %v2724 = vpop.permute.xlu0 %2723
  %2725 = vrot.lane.b32.xlu0 %v2534, 48
  %v2726 = vpop.permute.xlu0 %2725
  %2727 = vrot.lane.b32.xlu0 %v2536, 48
  %v2728 = vpop.permute.xlu0 %2727
  %2729 = vrot.lane.b32.xlu0 %v2538, 48
  %v2730 = vpop.permute.xlu0 %2729
  %2731 = vrot.lane.b32.xlu0 %v2540, 48
  %v2732 = vpop.permute.xlu0 %2731
  %2733 = vrot.lane.b32.xlu0 %v2542, 48
  %v2734 = vpop.permute.xlu0 %2733
  %2735 = vrot.lane.b32.xlu0 %v2544, 48
  %v2736 = vpop.permute.xlu0 %2735
  %2737 = vrot.lane.b32.xlu0 %v2546, 48
  %v2738 = vpop.permute.xlu0 %2737
  %2739 = vrot.lane.b32.xlu0 %v2548, 48
  %v2740 = vpop.permute.xlu0 %2739
  %2741 = vrot.lane.b32.xlu0 %v2550, 48
  %v2742 = vpop.permute.xlu0 %2741
  %2743 = vrot.lane.b32.xlu0 %v2552, 48
  %v2744 = vpop.permute.xlu0 %2743
  %2745 = vrot.lane.b32.xlu0 %v2554, 48
  %v2746 = vpop.permute.xlu0 %2745
  %2747 = vrot.lane.b32.xlu0 %v2556, 48
  %v2748 = vpop.permute.xlu0 %2747
  %2749 = vrot.lane.b32.xlu0 %v2558, 48
  %v2750 = vpop.permute.xlu0 %2749
  %2751 = vrot.lane.b32.xlu0 %v2560, 48
  %v2752 = vpop.permute.xlu0 %2751
  %2753 = vrot.lane.b32.xlu0 %v2562, 48
  %v2754 = vpop.permute.xlu0 %2753
  %2755 = vrot.lane.b32.xlu0 %v2564, 48
  %v2756 = vpop.permute.xlu0 %2755
  %2757 = vrot.lane.b32.xlu0 %v2566, 48
  %v2758 = vpop.permute.xlu0 %2757
  %2759 = vrot.lane.b32.xlu0 %v2568, 48
  %v2760 = vpop.permute.xlu0 %2759
  %2761 = vrot.lane.b32.xlu0 %v2570, 48
  %v2762 = vpop.permute.xlu0 %2761
  %2763 = vrot.lane.b32.xlu0 %v2572, 48
  %v2764 = vpop.permute.xlu0 %2763
  %2765 = vrot.lane.b32.xlu0 %v2574, 48
  %v2766 = vpop.permute.xlu0 %2765
  %2767 = vrot.lane.b32.xlu0 %v2576, 48
  %v2768 = vpop.permute.xlu0 %2767
  %2769 = vrot.lane.b32.xlu0 %v2578, 48
  %v2770 = vpop.permute.xlu0 %2769
  %2771 = vrot.lane.b32.xlu0 %v2580, 48
  %v2772 = vpop.permute.xlu0 %2771
  %2773 = vrot.lane.b32.xlu0 %v2582, 48
  %v2774 = vpop.permute.xlu0 %2773
  %2775 = vrot.lane.b32.xlu0 %v2584, 48
  %v2776 = vpop.permute.xlu0 %2775
  %2777 = vrot.lane.b32.xlu0 %v2586, 48
  %v2778 = vpop.permute.xlu0 %2777
  %2779 = vrot.lane.b32.xlu0 %v2588, 48
  %v2780 = vpop.permute.xlu0 %2779
  %2781 = vrot.lane.b32.xlu0 %v2590, 48
  %v2782 = vpop.permute.xlu0 %2781
  %2783 = vrot.lane.b32.xlu0 %v2592, 48
  %v2784 = vpop.permute.xlu0 %2783
  %2785 = vrot.lane.b32.xlu0 %v2594, 48
  %v2786 = vpop.permute.xlu0 %2785
  %2787 = vrot.lane.b32.xlu0 %v2596, 48
  %v2788 = vpop.permute.xlu0 %2787
  %2789 = vrot.lane.b32.xlu0 %v2598, 48
  %v2790 = vpop.permute.xlu0 %2789
  %2791 = vrot.lane.b32.xlu0 %v2600, 48
  %v2792 = vpop.permute.xlu0 %2791
  %2793 = vrot.lane.b32.xlu0 %v2602, 48
  %v2794 = vpop.permute.xlu0 %2793
  %2795 = vrot.lane.b32.xlu0 %v2604, 48
  %v2796 = vpop.permute.xlu0 %2795
  %2797 = vrot.lane.b32.xlu0 %v2606, 48
  %v2798 = vpop.permute.xlu0 %2797
  %vm2863 = vcmask 458112
  %2864 = vst.msk [vmem:[#allocation2] sm:$0xff] %vm2863, %v2672
  %2865 = vst.msk [vmem:[#allocation2 + $0x8] sm:$0xff] %vm2863, %v2674
  %2866 = vst.msk [vmem:[#allocation2 + $0x10] sm:$0xff] %vm2863, %v2676
  %2867 = vst.msk [vmem:[#allocation2 + $0x18] sm:$0xff] %vm2863, %v2678
  %2868 = vst.msk [vmem:[#allocation2 + $0x20] sm:$0xff] %vm2863, %v2680
  %2869 = vst.msk [vmem:[#allocation2 + $0x28] sm:$0xff] %vm2863, %v2682
  %2870 = vst.msk [vmem:[#allocation2 + $0x30] sm:$0xff] %vm2863, %v2684
  %2871 = vst.msk [vmem:[#allocation2 + $0x38] sm:$0xff] %vm2863, %v2686
  %2872 = vst.msk [vmem:[#allocation2 + $0x40] sm:$0xff] %vm2863, %v2688
  %2873 = vst.msk [vmem:[#allocation2 + $0x48] sm:$0xff] %vm2863, %v2690
  %2874 = vst.msk [vmem:[#allocation2 + $0x50] sm:$0xff] %vm2863, %v2692
  %2875 = vst.msk [vmem:[#allocation2 + $0x58] sm:$0xff] %vm2863, %v2694
  %2876 = vst.msk [vmem:[#allocation2 + $0x60] sm:$0xff] %vm2863, %v2696
  %2877 = vst.msk [vmem:[#allocation2 + $0x68] sm:$0xff] %vm2863, %v2698
  %2878 = vst.msk [vmem:[#allocation2 + $0x70] sm:$0xff] %vm2863, %v2700
  %2879 = vst.msk [vmem:[#allocation2 + $0x78] sm:$0xff] %vm2863, %v2702
  %2880 = vst.msk [vmem:[#allocation2 + $0x80] sm:$0xff] %vm2863, %v2704
  %2881 = vst.msk [vmem:[#allocation2 + $0x88] sm:$0xff] %vm2863, %v2706
  %2882 = vst.msk [vmem:[#allocation2 + $0x90] sm:$0xff] %vm2863, %v2708
  %2883 = vst.msk [vmem:[#allocation2 + $0x98] sm:$0xff] %vm2863, %v2710
  %2884 = vst.msk [vmem:[#allocation2 + $0xa0] sm:$0xff] %vm2863, %v2712
  %2885 = vst.msk [vmem:[#allocation2 + $0xa8] sm:$0xff] %vm2863, %v2714
  %2886 = vst.msk [vmem:[#allocation2 + $0xb0] sm:$0xff] %vm2863, %v2716
  %2887 = vst.msk [vmem:[#allocation2 + $0xb8] sm:$0xff] %vm2863, %v2718
  %2888 = vst.msk [vmem:[#allocation2 + $0xc0] sm:$0xff] %vm2863, %v2720
  %2889 = vst.msk [vmem:[#allocation2 + $0xc8] sm:$0xff] %vm2863, %v2722
  %2890 = vst.msk [vmem:[#allocation2 + $0xd0] sm:$0xff] %vm2863, %v2724
  %2891 = vst.msk [vmem:[#allocation2 + $0xd8] sm:$0xff] %vm2863, %v2726
  %2892 = vst.msk [vmem:[#allocation2 + $0xe0] sm:$0xff] %vm2863, %v2728
  %2893 = vst.msk [vmem:[#allocation2 + $0xe8] sm:$0xff] %vm2863, %v2730
  %2894 = vst.msk [vmem:[#allocation2 + $0xf0] sm:$0xff] %vm2863, %v2732
  %2895 = vst.msk [vmem:[#allocation2 + $0xf8] sm:$0xff] %vm2863, %v2734
  %2896 = vst.msk [vmem:[#allocation2 + $0x100] sm:$0xff] %vm2863, %v2736
  %2897 = vst.msk [vmem:[#allocation2 + $0x108] sm:$0xff] %vm2863, %v2738
  %2898 = vst.msk [vmem:[#allocation2 + $0x110] sm:$0xff] %vm2863, %v2740
  %2899 = vst.msk [vmem:[#allocation2 + $0x118] sm:$0xff] %vm2863, %v2742
  %2900 = vst.msk [vmem:[#allocation2 + $0x120] sm:$0xff] %vm2863, %v2744
  %2901 = vst.msk [vmem:[#allocation2 + $0x128] sm:$0xff] %vm2863, %v2746
  %2902 = vst.msk [vmem:[#allocation2 + $0x130] sm:$0xff] %vm2863, %v2748
  %2903 = vst.msk [vmem:[#allocation2 + $0x138] sm:$0xff] %vm2863, %v2750
  %2904 = vst.msk [vmem:[#allocation2 + $0x140] sm:$0xff] %vm2863, %v2752
  %2905 = vst.msk [vmem:[#allocation2 + $0x148] sm:$0xff] %vm2863, %v2754
  %2906 = vst.msk [vmem:[#allocation2 + $0x150] sm:$0xff] %vm2863, %v2756
  %2907 = vst.msk [vmem:[#allocation2 + $0x158] sm:$0xff] %vm2863, %v2758
  %2908 = vst.msk [vmem:[#allocation2 + $0x160] sm:$0xff] %vm2863, %v2760
  %2909 = vst.msk [vmem:[#allocation2 + $0x168] sm:$0xff] %vm2863, %v2762
  %2910 = vst.msk [vmem:[#allocation2 + $0x170] sm:$0xff] %vm2863, %v2764
  %2911 = vst.msk [vmem:[#allocation2 + $0x178] sm:$0xff] %vm2863, %v2766
  %2912 = vst.msk [vmem:[#allocation2 + $0x180] sm:$0xff] %vm2863, %v2768
  %2913 = vst.msk [vmem:[#allocation2 + $0x188] sm:$0xff] %vm2863, %v2770
  %2914 = vst.msk [vmem:[#allocation2 + $0x190] sm:$0xff] %vm2863, %v2772
  %2915 = vst.msk [vmem:[#allocation2 + $0x198] sm:$0xff] %vm2863, %v2774
  %2916 = vst.msk [vmem:[#allocation2 + $0x1a0] sm:$0xff] %vm2863, %v2776
  %2917 = vst.msk [vmem:[#allocation2 + $0x1a8] sm:$0xff] %vm2863, %v2778
  %2918 = vst.msk [vmem:[#allocation2 + $0x1b0] sm:$0xff] %vm2863, %v2780
  %2919 = vst.msk [vmem:[#allocation2 + $0x1b8] sm:$0xff] %vm2863, %v2782
  %2920 = vst.msk [vmem:[#allocation2 + $0x1c0] sm:$0xff] %vm2863, %v2784
  %2921 = vst.msk [vmem:[#allocation2 + $0x1c8] sm:$0xff] %vm2863, %v2786
  %2922 = vst.msk [vmem:[#allocation2 + $0x1d0] sm:$0xff] %vm2863, %v2788
  %2923 = vst.msk [vmem:[#allocation2 + $0x1d8] sm:$0xff] %vm2863, %v2790
  %2924 = vst.msk [vmem:[#allocation2 + $0x1e0] sm:$0xff] %vm2863, %v2792
  %2925 = vst.msk [vmem:[#allocation2 + $0x1e8] sm:$0xff] %vm2863, %v2794
  %2926 = vst.msk [vmem:[#allocation2 + $0x1f0] sm:$0xff] %vm2863, %v2796
  %2927 = vst.msk [vmem:[#allocation2 + $0x1f8] sm:$0xff] %vm2863, %v2798
  %s2928 = scalar_lea.vmem %s2478, 8
  %v2929 = vld [vmem:[%s2928] ss:$2 sm:$0xff]
  %s2930 = scalar_lea.vmem %s2478, 24
  %v2931 = vld [vmem:[%s2930] ss:$2 sm:$0xff]
  %s2932 = scalar_lea.vmem %s2478, 104
  %v2933 = vld [vmem:[%s2932] ss:$2 sm:$0xff]
  %s2934 = scalar_lea.vmem %s2478, 120
  %v2935 = vld [vmem:[%s2934] ss:$2 sm:$0xff]
  %s2936 = scalar_lea.vmem %s2478, 200
  %v2937 = vld [vmem:[%s2936] ss:$2 sm:$0xff]
  %s2938 = scalar_lea.vmem %s2478, 216
  %v2939 = vld [vmem:[%s2938] ss:$2 sm:$0xff]
  %s2940 = scalar_lea.vmem %s2478, 296
  %v2941 = vld [vmem:[%s2940] ss:$2 sm:$0xff]
  %s2942 = scalar_lea.vmem %s2478, 312
  %v2943 = vld [vmem:[%s2942] ss:$2 sm:$0xff]
  %s2944 = scalar_lea.vmem %s2478, 392
  %v2945 = vld [vmem:[%s2944] ss:$2 sm:$0xff]
  %s2946 = scalar_lea.vmem %s2478, 408
  %v2947 = vld [vmem:[%s2946] ss:$2 sm:$0xff]
  %s2948 = scalar_lea.vmem %s2478, 488
  %v2949 = vld [vmem:[%s2948] ss:$2 sm:$0xff]
  %s2950 = scalar_lea.vmem %s2478, 504
  %v2951 = vld [vmem:[%s2950] ss:$2 sm:$0xff]
  %s2952 = scalar_lea.vmem %s2478, 584
  %v2953 = vld [vmem:[%s2952] ss:$2 sm:$0xff]
  %s2954 = scalar_lea.vmem %s2478, 600
  %v2955 = vld [vmem:[%s2954] ss:$2 sm:$0xff]
  %s2956 = scalar_lea.vmem %s2478, 680
  %v2957 = vld [vmem:[%s2956] ss:$2 sm:$0xff]
  %s2958 = scalar_lea.vmem %s2478, 696
  %v2959 = vld [vmem:[%s2958] ss:$2 sm:$0xff]
  %s2960 = scalar_lea.vmem %s2478, 776
  %v2961 = vld [vmem:[%s2960] ss:$2 sm:$0xff]
  %s2962 = scalar_lea.vmem %s2478, 792
  %v2963 = vld [vmem:[%s2962] ss:$2 sm:$0xff]
  %s2964 = scalar_lea.vmem %s2478, 872
  %v2965 = vld [vmem:[%s2964] ss:$2 sm:$0xff]
  %s2966 = scalar_lea.vmem %s2478, 888
  %v2967 = vld [vmem:[%s2966] ss:$2 sm:$0xff]
  %s2968 = scalar_lea.vmem %s2478, 968
  %v2969 = vld [vmem:[%s2968] ss:$2 sm:$0xff]
  %s2970 = scalar_lea.vmem %s2478, 984
  %v2971 = vld [vmem:[%s2970] ss:$2 sm:$0xff]
  %s2972 = scalar_lea.vmem %s2478, 1064
  %v2973 = vld [vmem:[%s2972] ss:$2 sm:$0xff]
  %s2974 = scalar_lea.vmem %s2478, 1080
  %v2975 = vld [vmem:[%s2974] ss:$2 sm:$0xff]
  %s2976 = scalar_lea.vmem %s2478, 1160
  %v2977 = vld [vmem:[%s2976] ss:$2 sm:$0xff]
  %s2978 = scalar_lea.vmem %s2478, 1176
  %v2979 = vld [vmem:[%s2978] ss:$2 sm:$0xff]
  %s2980 = scalar_lea.vmem %s2478, 1256
  %v2981 = vld [vmem:[%s2980] ss:$2 sm:$0xff]
  %s2982 = scalar_lea.vmem %s2478, 1272
  %v2983 = vld [vmem:[%s2982] ss:$2 sm:$0xff]
  %s2984 = scalar_lea.vmem %s2478, 1352
  %v2985 = vld [vmem:[%s2984] ss:$2 sm:$0xff]
  %s2986 = scalar_lea.vmem %s2478, 1368
  %v2987 = vld [vmem:[%s2986] ss:$2 sm:$0xff]
  %s2988 = scalar_lea.vmem %s2478, 1448
  %v2989 = vld [vmem:[%s2988] ss:$2 sm:$0xff]
  %s2990 = scalar_lea.vmem %s2478, 1464
  %v2991 = vld [vmem:[%s2990] ss:$2 sm:$0xff]
  %s2992 = scalar_lea.vmem %s2478, 1640
  %v2993 = vld [vmem:[%s2992] ss:$2 sm:$0xff]
  %s2994 = scalar_lea.vmem %s2478, 1656
  %v2995 = vld [vmem:[%s2994] ss:$2 sm:$0xff]
  %s2996 = scalar_lea.vmem %s2478, 1736
  %v2997 = vld [vmem:[%s2996] ss:$2 sm:$0xff]
  %s2998 = scalar_lea.vmem %s2478, 1752
  %v2999 = vld [vmem:[%s2998] ss:$2 sm:$0xff]
  %s3000 = scalar_lea.vmem %s2478, 1832
  %v3001 = vld [vmem:[%s3000] ss:$2 sm:$0xff]
  %s3002 = scalar_lea.vmem %s2478, 1848
  %v3003 = vld [vmem:[%s3002] ss:$2 sm:$0xff]
  %s3004 = scalar_lea.vmem %s2478, 1928
  %v3005 = vld [vmem:[%s3004] ss:$2 sm:$0xff]
  %s3006 = scalar_lea.vmem %s2478, 1944
  %v3007 = vld [vmem:[%s3006] ss:$2 sm:$0xff]
  %s3008 = scalar_lea.vmem %s2478, 2024
  %v3009 = vld [vmem:[%s3008] ss:$2 sm:$0xff]
  %s3010 = scalar_lea.vmem %s2478, 2040
  %v3011 = vld [vmem:[%s3010] ss:$2 sm:$0xff]
  %s3012 = scalar_lea.vmem %s2478, 2120
  %v3013 = vld [vmem:[%s3012] ss:$2 sm:$0xff]
  %s3014 = scalar_lea.vmem %s2478, 2136
  %v3015 = vld [vmem:[%s3014] ss:$2 sm:$0xff]
  %s3016 = scalar_lea.vmem %s2478, 2216
  %v3017 = vld [vmem:[%s3016] ss:$2 sm:$0xff]
  %s3018 = scalar_lea.vmem %s2478, 2232
  %v3019 = vld [vmem:[%s3018] ss:$2 sm:$0xff]
  %s3020 = scalar_lea.vmem %s2478, 2312
  %v3021 = vld [vmem:[%s3020] ss:$2 sm:$0xff]
  %s3022 = scalar_lea.vmem %s2478, 2328
  %v3023 = vld [vmem:[%s3022] ss:$2 sm:$0xff]
  %s3024 = scalar_lea.vmem %s2478, 2408
  %v3025 = vld [vmem:[%s3024] ss:$2 sm:$0xff]
  %s3026 = scalar_lea.vmem %s2478, 2424
  %v3027 = vld [vmem:[%s3026] ss:$2 sm:$0xff]
  %s3028 = scalar_lea.vmem %s2478, 2504
  %v3029 = vld [vmem:[%s3028] ss:$2 sm:$0xff]
  %s3030 = scalar_lea.vmem %s2478, 2520
  %v3031 = vld [vmem:[%s3030] ss:$2 sm:$0xff]
  %s3032 = scalar_lea.vmem %s2478, 2600
  %v3033 = vld [vmem:[%s3032] ss:$2 sm:$0xff]
  %s3034 = scalar_lea.vmem %s2478, 2616
  %v3035 = vld [vmem:[%s3034] ss:$2 sm:$0xff]
  %s3036 = scalar_lea.vmem %s2478, 2696
  %v3037 = vld [vmem:[%s3036] ss:$2 sm:$0xff]
  %s3038 = scalar_lea.vmem %s2478, 2712
  %v3039 = vld [vmem:[%s3038] ss:$2 sm:$0xff]
  %s3040 = scalar_lea.vmem %s2478, 2792
  %v3041 = vld [vmem:[%s3040] ss:$2 sm:$0xff]
  %s3042 = scalar_lea.vmem %s2478, 2808
  %v3043 = vld [vmem:[%s3042] ss:$2 sm:$0xff]
  %s3044 = scalar_lea.vmem %s2478, 2888
  %v3045 = vld [vmem:[%s3044] ss:$2 sm:$0xff]
  %s3046 = scalar_lea.vmem %s2478, 2904
  %v3047 = vld [vmem:[%s3046] ss:$2 sm:$0xff]
  %s3048 = scalar_lea.vmem %s2478, 2984
  %v3049 = vld [vmem:[%s3048] ss:$2 sm:$0xff]
  %s3050 = scalar_lea.vmem %s2478, 3000
  %v3051 = vld [vmem:[%s3050] ss:$2 sm:$0xff]
  %s3052 = scalar_lea.vmem %s2478, 3080
  %v3053 = vld [vmem:[%s3052] ss:$2 sm:$0xff]
  %s3054 = scalar_lea.vmem %s2478, 3096
  %v3055 = vld [vmem:[%s3054] ss:$2 sm:$0xff]
  %3120 = vrot.lane.b32.xlu0 %v2929, 56
  %v3121 = vpop.permute.xlu0 %3120
  %3122 = vrot.lane.b32.xlu0 %v2931, 56
  %v3123 = vpop.permute.xlu0 %3122
  %3124 = vrot.lane.b32.xlu0 %v2933, 56
  %v3125 = vpop.permute.xlu0 %3124
  %3126 = vrot.lane.b32.xlu0 %v2935, 56
  %v3127 = vpop.permute.xlu0 %3126
  %3128 = vrot.lane.b32.xlu0 %v2937, 56
  %v3129 = vpop.permute.xlu0 %3128
  %3130 = vrot.lane.b32.xlu0 %v2939, 56
  %v3131 = vpop.permute.xlu0 %3130
  %3132 = vrot.lane.b32.xlu0 %v2941, 56
  %v3133 = vpop.permute.xlu0 %3132
  %3134 = vrot.lane.b32.xlu0 %v2943, 56
  %v3135 = vpop.permute.xlu0 %3134
  %3136 = vrot.lane.b32.xlu0 %v2945, 56
  %v3137 = vpop.permute.xlu0 %3136
  %3138 = vrot.lane.b32.xlu0 %v2947, 56
  %v3139 = vpop.permute.xlu0 %3138
  %3140 = vrot.lane.b32.xlu0 %v2949, 56
  %v3141 = vpop.permute.xlu0 %3140
  %3142 = vrot.lane.b32.xlu0 %v2951, 56
  %v3143 = vpop.permute.xlu0 %3142
  %3144 = vrot.lane.b32.xlu0 %v2953, 56
  %v3145 = vpop.permute.xlu0 %3144
  %3146 = vrot.lane.b32.xlu0 %v2955, 56
  %v3147 = vpop.permute.xlu0 %3146
  %3148 = vrot.lane.b32.xlu0 %v2957, 56
  %v3149 = vpop.permute.xlu0 %3148
  %3150 = vrot.lane.b32.xlu0 %v2959, 56
  %v3151 = vpop.permute.xlu0 %3150
  %3152 = vrot.lane.b32.xlu0 %v2961, 56
  %v3153 = vpop.permute.xlu0 %3152
  %3154 = vrot.lane.b32.xlu0 %v2963, 56
  %v3155 = vpop.permute.xlu0 %3154
  %3156 = vrot.lane.b32.xlu0 %v2965, 56
  %v3157 = vpop.permute.xlu0 %3156
  %3158 = vrot.lane.b32.xlu0 %v2967, 56
  %v3159 = vpop.permute.xlu0 %3158
  %3160 = vrot.lane.b32.xlu0 %v2969, 56
  %v3161 = vpop.permute.xlu0 %3160
  %3162 = vrot.lane.b32.xlu0 %v2971, 56
  %v3163 = vpop.permute.xlu0 %3162
  %3164 = vrot.lane.b32.xlu0 %v2973, 56
  %v3165 = vpop.permute.xlu0 %3164
  %3166 = vrot.lane.b32.xlu0 %v2975, 56
  %v3167 = vpop.permute.xlu0 %3166
  %3168 = vrot.lane.b32.xlu0 %v2977, 56
  %v3169 = vpop.permute.xlu0 %3168
  %3170 = vrot.lane.b32.xlu0 %v2979, 56
  %v3171 = vpop.permute.xlu0 %3170
  %3172 = vrot.lane.b32.xlu0 %v2981, 56
  %v3173 = vpop.permute.xlu0 %3172
  %3174 = vrot.lane.b32.xlu0 %v2983, 56
  %v3175 = vpop.permute.xlu0 %3174
  %3176 = vrot.lane.b32.xlu0 %v2985, 56
  %v3177 = vpop.permute.xlu0 %3176
  %3178 = vrot.lane.b32.xlu0 %v2987, 56
  %v3179 = vpop.permute.xlu0 %3178
  %3180 = vrot.lane.b32.xlu0 %v2989, 56
  %v3181 = vpop.permute.xlu0 %3180
  %3182 = vrot.lane.b32.xlu0 %v2991, 56
  %v3183 = vpop.permute.xlu0 %3182
  %3184 = vrot.lane.b32.xlu0 %v2993, 56
  %v3185 = vpop.permute.xlu0 %3184
  %3186 = vrot.lane.b32.xlu0 %v2995, 56
  %v3187 = vpop.permute.xlu0 %3186
  %3188 = vrot.lane.b32.xlu0 %v2997, 56
  %v3189 = vpop.permute.xlu0 %3188
  %3190 = vrot.lane.b32.xlu0 %v2999, 56
  %v3191 = vpop.permute.xlu0 %3190
  %3192 = vrot.lane.b32.xlu0 %v3001, 56
  %v3193 = vpop.permute.xlu0 %3192
  %3194 = vrot.lane.b32.xlu0 %v3003, 56
  %v3195 = vpop.permute.xlu0 %3194
  %3196 = vrot.lane.b32.xlu0 %v3005, 56
  %v3197 = vpop.permute.xlu0 %3196
  %3198 = vrot.lane.b32.xlu0 %v3007, 56
  %v3199 = vpop.permute.xlu0 %3198
  %3200 = vrot.lane.b32.xlu0 %v3009, 56
  %v3201 = vpop.permute.xlu0 %3200
  %3202 = vrot.lane.b32.xlu0 %v3011, 56
  %v3203 = vpop.permute.xlu0 %3202
  %3204 = vrot.lane.b32.xlu0 %v3013, 56
  %v3205 = vpop.permute.xlu0 %3204
  %3206 = vrot.lane.b32.xlu0 %v3015, 56
  %v3207 = vpop.permute.xlu0 %3206
  %3208 = vrot.lane.b32.xlu0 %v3017, 56
  %v3209 = vpop.permute.xlu0 %3208
  %3210 = vrot.lane.b32.xlu0 %v3019, 56
  %v3211 = vpop.permute.xlu0 %3210
  %3212 = vrot.lane.b32.xlu0 %v3021, 56
  %v3213 = vpop.permute.xlu0 %3212
  %3214 = vrot.lane.b32.xlu0 %v3023, 56
  %v3215 = vpop.permute.xlu0 %3214
  %3216 = vrot.lane.b32.xlu0 %v3025, 56
  %v3217 = vpop.permute.xlu0 %3216
  %3218 = vrot.lane.b32.xlu0 %v3027, 56
  %v3219 = vpop.permute.xlu0 %3218
  %3220 = vrot.lane.b32.xlu0 %v3029, 56
  %v3221 = vpop.permute.xlu0 %3220
  %3222 = vrot.lane.b32.xlu0 %v3031, 56
  %v3223 = vpop.permute.xlu0 %3222
  %3224 = vrot.lane.b32.xlu0 %v3033, 56
  %v3225 = vpop.permute.xlu0 %3224
  %3226 = vrot.lane.b32.xlu0 %v3035, 56
  %v3227 = vpop.permute.xlu0 %3226
  %3228 = vrot.lane.b32.xlu0 %v3037, 56
  %v3229 = vpop.permute.xlu0 %3228
  %3230 = vrot.lane.b32.xlu0 %v3039, 56
  %v3231 = vpop.permute.xlu0 %3230
  %3232 = vrot.lane.b32.xlu0 %v3041, 56
  %v3233 = vpop.permute.xlu0 %3232
  %3234 = vrot.lane.b32.xlu0 %v3043, 56
  %v3235 = vpop.permute.xlu0 %3234
  %3236 = vrot.lane.b32.xlu0 %v3045, 56
  %v3237 = vpop.permute.xlu0 %3236
  %3238 = vrot.lane.b32.xlu0 %v3047, 56
  %v3239 = vpop.permute.xlu0 %3238
  %3240 = vrot.lane.b32.xlu0 %v3049, 56
  %v3241 = vpop.permute.xlu0 %3240
  %3242 = vrot.lane.b32.xlu0 %v3051, 56
  %v3243 = vpop.permute.xlu0 %3242
  %3244 = vrot.lane.b32.xlu0 %v3053, 56
  %v3245 = vpop.permute.xlu0 %3244
  %3246 = vrot.lane.b32.xlu0 %v3055, 56
  %v3247 = vpop.permute.xlu0 %3246
  %vm3312 = vcmask 523712
  %3313 = vst.msk [vmem:[#allocation2] sm:$0xff] %vm3312, %v3121
  %3314 = vst.msk [vmem:[#allocation2 + $0x8] sm:$0xff] %vm3312, %v3123
  %3315 = vst.msk [vmem:[#allocation2 + $0x10] sm:$0xff] %vm3312, %v3125
  %3316 = vst.msk [vmem:[#allocation2 + $0x18] sm:$0xff] %vm3312, %v3127
  %3317 = vst.msk [vmem:[#allocation2 + $0x20] sm:$0xff] %vm3312, %v3129
  %3318 = vst.msk [vmem:[#allocation2 + $0x28] sm:$0xff] %vm3312, %v3131
  %3319 = vst.msk [vmem:[#allocation2 + $0x30] sm:$0xff] %vm3312, %v3133
  %3320 = vst.msk [vmem:[#allocation2 + $0x38] sm:$0xff] %vm3312, %v3135
  %3321 = vst.msk [vmem:[#allocation2 + $0x40] sm:$0xff] %vm3312, %v3137
  %3322 = vst.msk [vmem:[#allocation2 + $0x48] sm:$0xff] %vm3312, %v3139
  %3323 = vst.msk [vmem:[#allocation2 + $0x50] sm:$0xff] %vm3312, %v3141
  %3324 = vst.msk [vmem:[#allocation2 + $0x58] sm:$0xff] %vm3312, %v3143
  %3325 = vst.msk [vmem:[#allocation2 + $0x60] sm:$0xff] %vm3312, %v3145
  %3326 = vst.msk [vmem:[#allocation2 + $0x68] sm:$0xff] %vm3312, %v3147
  %3327 = vst.msk [vmem:[#allocation2 + $0x70] sm:$0xff] %vm3312, %v3149
  %3328 = vst.msk [vmem:[#allocation2 + $0x78] sm:$0xff] %vm3312, %v3151
  %3329 = vst.msk [vmem:[#allocation2 + $0x80] sm:$0xff] %vm3312, %v3153
  %3330 = vst.msk [vmem:[#allocation2 + $0x88] sm:$0xff] %vm3312, %v3155
  %3331 = vst.msk [vmem:[#allocation2 + $0x90] sm:$0xff] %vm3312, %v3157
  %3332 = vst.msk [vmem:[#allocation2 + $0x98] sm:$0xff] %vm3312, %v3159
  %3333 = vst.msk [vmem:[#allocation2 + $0xa0] sm:$0xff] %vm3312, %v3161
  %3334 = vst.msk [vmem:[#allocation2 + $0xa8] sm:$0xff] %vm3312, %v3163
  %3335 = vst.msk [vmem:[#allocation2 + $0xb0] sm:$0xff] %vm3312, %v3165
  %3336 = vst.msk [vmem:[#allocation2 + $0xb8] sm:$0xff] %vm3312, %v3167
  %3337 = vst.msk [vmem:[#allocation2 + $0xc0] sm:$0xff] %vm3312, %v3169
  %3338 = vst.msk [vmem:[#allocation2 + $0xc8] sm:$0xff] %vm3312, %v3171
  %3339 = vst.msk [vmem:[#allocation2 + $0xd0] sm:$0xff] %vm3312, %v3173
  %3340 = vst.msk [vmem:[#allocation2 + $0xd8] sm:$0xff] %vm3312, %v3175
  %3341 = vst.msk [vmem:[#allocation2 + $0xe0] sm:$0xff] %vm3312, %v3177
  %3342 = vst.msk [vmem:[#allocation2 + $0xe8] sm:$0xff] %vm3312, %v3179
  %3343 = vst.msk [vmem:[#allocation2 + $0xf0] sm:$0xff] %vm3312, %v3181
  %3344 = vst.msk [vmem:[#allocation2 + $0xf8] sm:$0xff] %vm3312, %v3183
  %3345 = vst.msk [vmem:[#allocation2 + $0x100] sm:$0xff] %vm3312, %v3185
  %3346 = vst.msk [vmem:[#allocation2 + $0x108] sm:$0xff] %vm3312, %v3187
  %3347 = vst.msk [vmem:[#allocation2 + $0x110] sm:$0xff] %vm3312, %v3189
  %3348 = vst.msk [vmem:[#allocation2 + $0x118] sm:$0xff] %vm3312, %v3191
  %3349 = vst.msk [vmem:[#allocation2 + $0x120] sm:$0xff] %vm3312, %v3193
  %3350 = vst.msk [vmem:[#allocation2 + $0x128] sm:$0xff] %vm3312, %v3195
  %3351 = vst.msk [vmem:[#allocation2 + $0x130] sm:$0xff] %vm3312, %v3197
  %3352 = vst.msk [vmem:[#allocation2 + $0x138] sm:$0xff] %vm3312, %v3199
  %3353 = vst.msk [vmem:[#allocation2 + $0x140] sm:$0xff] %vm3312, %v3201
  %3354 = vst.msk [vmem:[#allocation2 + $0x148] sm:$0xff] %vm3312, %v3203
  %3355 = vst.msk [vmem:[#allocation2 + $0x150] sm:$0xff] %vm3312, %v3205
  %3356 = vst.msk [vmem:[#allocation2 + $0x158] sm:$0xff] %vm3312, %v3207
  %3357 = vst.msk [vmem:[#allocation2 + $0x160] sm:$0xff] %vm3312, %v3209
  %3358 = vst.msk [vmem:[#allocation2 + $0x168] sm:$0xff] %vm3312, %v3211
  %3359 = vst.msk [vmem:[#allocation2 + $0x170] sm:$0xff] %vm3312, %v3213
  %3360 = vst.msk [vmem:[#allocation2 + $0x178] sm:$0xff] %vm3312, %v3215
  %3361 = vst.msk [vmem:[#allocation2 + $0x180] sm:$0xff] %vm3312, %v3217
  %3362 = vst.msk [vmem:[#allocation2 + $0x188] sm:$0xff] %vm3312, %v3219
  %3363 = vst.msk [vmem:[#allocation2 + $0x190] sm:$0xff] %vm3312, %v3221
  %3364 = vst.msk [vmem:[#allocation2 + $0x198] sm:$0xff] %vm3312, %v3223
  %3365 = vst.msk [vmem:[#allocation2 + $0x1a0] sm:$0xff] %vm3312, %v3225
  %3366 = vst.msk [vmem:[#allocation2 + $0x1a8] sm:$0xff] %vm3312, %v3227
  %3367 = vst.msk [vmem:[#allocation2 + $0x1b0] sm:$0xff] %vm3312, %v3229
  %3368 = vst.msk [vmem:[#allocation2 + $0x1b8] sm:$0xff] %vm3312, %v3231
  %3369 = vst.msk [vmem:[#allocation2 + $0x1c0] sm:$0xff] %vm3312, %v3233
  %3370 = vst.msk [vmem:[#allocation2 + $0x1c8] sm:$0xff] %vm3312, %v3235
  %3371 = vst.msk [vmem:[#allocation2 + $0x1d0] sm:$0xff] %vm3312, %v3237
  %3372 = vst.msk [vmem:[#allocation2 + $0x1d8] sm:$0xff] %vm3312, %v3239
  %3373 = vst.msk [vmem:[#allocation2 + $0x1e0] sm:$0xff] %vm3312, %v3241
  %3374 = vst.msk [vmem:[#allocation2 + $0x1e8] sm:$0xff] %vm3312, %v3243
  %3375 = vst.msk [vmem:[#allocation2 + $0x1f0] sm:$0xff] %vm3312, %v3245
  %3376 = vst.msk [vmem:[#allocation2 + $0x1f8] sm:$0xff] %vm3312, %v3247
  %s3377 = scalar_lea.vmem %s2478, 9
  %v3378 = vld [vmem:[%s3377] ss:$2 sm:$0xff]
  %s3379 = scalar_lea.vmem %s2478, 25
  %v3380 = vld [vmem:[%s3379] ss:$2 sm:$0xff]
  %s3381 = scalar_lea.vmem %s2478, 105
  %v3382 = vld [vmem:[%s3381] ss:$2 sm:$0xff]
  %s3383 = scalar_lea.vmem %s2478, 121
  %v3384 = vld [vmem:[%s3383] ss:$2 sm:$0xff]
  %s3385 = scalar_lea.vmem %s2478, 201
  %v3386 = vld [vmem:[%s3385] ss:$2 sm:$0xff]
  %s3387 = scalar_lea.vmem %s2478, 217
  %v3388 = vld [vmem:[%s3387] ss:$2 sm:$0xff]
  %s3389 = scalar_lea.vmem %s2478, 297
  %v3390 = vld [vmem:[%s3389] ss:$2 sm:$0xff]
  %s3391 = scalar_lea.vmem %s2478, 313
  %v3392 = vld [vmem:[%s3391] ss:$2 sm:$0xff]
  %s3393 = scalar_lea.vmem %s2478, 393
  %v3394 = vld [vmem:[%s3393] ss:$2 sm:$0xff]
  %s3395 = scalar_lea.vmem %s2478, 409
  %v3396 = vld [vmem:[%s3395] ss:$2 sm:$0xff]
  %s3397 = scalar_lea.vmem %s2478, 489
  %v3398 = vld [vmem:[%s3397] ss:$2 sm:$0xff]
  %s3399 = scalar_lea.vmem %s2478, 505
  %v3400 = vld [vmem:[%s3399] ss:$2 sm:$0xff]
  %s3401 = scalar_lea.vmem %s2478, 585
  %v3402 = vld [vmem:[%s3401] ss:$2 sm:$0xff]
  %s3403 = scalar_lea.vmem %s2478, 601
  %v3404 = vld [vmem:[%s3403] ss:$2 sm:$0xff]
  %s3405 = scalar_lea.vmem %s2478, 681
  %v3406 = vld [vmem:[%s3405] ss:$2 sm:$0xff]
  %s3407 = scalar_lea.vmem %s2478, 697
  %v3408 = vld [vmem:[%s3407] ss:$2 sm:$0xff]
  %s3409 = scalar_lea.vmem %s2478, 777
  %v3410 = vld [vmem:[%s3409] ss:$2 sm:$0xff]
  %s3411 = scalar_lea.vmem %s2478, 793
  %v3412 = vld [vmem:[%s3411] ss:$2 sm:$0xff]
  %s3413 = scalar_lea.vmem %s2478, 873
  %v3414 = vld [vmem:[%s3413] ss:$2 sm:$0xff]
  %s3415 = scalar_lea.vmem %s2478, 889
  %v3416 = vld [vmem:[%s3415] ss:$2 sm:$0xff]
  %s3417 = scalar_lea.vmem %s2478, 969
  %v3418 = vld [vmem:[%s3417] ss:$2 sm:$0xff]
  %s3419 = scalar_lea.vmem %s2478, 985
  %v3420 = vld [vmem:[%s3419] ss:$2 sm:$0xff]
  %s3421 = scalar_lea.vmem %s2478, 1065
  %v3422 = vld [vmem:[%s3421] ss:$2 sm:$0xff]
  %s3423 = scalar_lea.vmem %s2478, 1081
  %v3424 = vld [vmem:[%s3423] ss:$2 sm:$0xff]
  %s3425 = scalar_lea.vmem %s2478, 1161
  %v3426 = vld [vmem:[%s3425] ss:$2 sm:$0xff]
  %s3427 = scalar_lea.vmem %s2478, 1177
  %v3428 = vld [vmem:[%s3427] ss:$2 sm:$0xff]
  %s3429 = scalar_lea.vmem %s2478, 1257
  %v3430 = vld [vmem:[%s3429] ss:$2 sm:$0xff]
  %s3431 = scalar_lea.vmem %s2478, 1273
  %v3432 = vld [vmem:[%s3431] ss:$2 sm:$0xff]
  %s3433 = scalar_lea.vmem %s2478, 1353
  %v3434 = vld [vmem:[%s3433] ss:$2 sm:$0xff]
  %s3435 = scalar_lea.vmem %s2478, 1369
  %v3436 = vld [vmem:[%s3435] ss:$2 sm:$0xff]
  %s3437 = scalar_lea.vmem %s2478, 1449
  %v3438 = vld [vmem:[%s3437] ss:$2 sm:$0xff]
  %s3439 = scalar_lea.vmem %s2478, 1465
  %v3440 = vld [vmem:[%s3439] ss:$2 sm:$0xff]
  %s3441 = scalar_lea.vmem %s2478, 1641
  %v3442 = vld [vmem:[%s3441] ss:$2 sm:$0xff]
  %s3443 = scalar_lea.vmem %s2478, 1657
  %v3444 = vld [vmem:[%s3443] ss:$2 sm:$0xff]
  %s3445 = scalar_lea.vmem %s2478, 1737
  %v3446 = vld [vmem:[%s3445] ss:$2 sm:$0xff]
  %s3447 = scalar_lea.vmem %s2478, 1753
  %v3448 = vld [vmem:[%s3447] ss:$2 sm:$0xff]
  %s3449 = scalar_lea.vmem %s2478, 1833
  %v3450 = vld [vmem:[%s3449] ss:$2 sm:$0xff]
  %s3451 = scalar_lea.vmem %s2478, 1849
  %v3452 = vld [vmem:[%s3451] ss:$2 sm:$0xff]
  %s3453 = scalar_lea.vmem %s2478, 1929
  %v3454 = vld [vmem:[%s3453] ss:$2 sm:$0xff]
  %s3455 = scalar_lea.vmem %s2478, 1945
  %v3456 = vld [vmem:[%s3455] ss:$2 sm:$0xff]
  %s3457 = scalar_lea.vmem %s2478, 2025
  %v3458 = vld [vmem:[%s3457] ss:$2 sm:$0xff]
  %s3459 = scalar_lea.vmem %s2478, 2041
  %v3460 = vld [vmem:[%s3459] ss:$2 sm:$0xff]
  %s3461 = scalar_lea.vmem %s2478, 2121
  %v3462 = vld [vmem:[%s3461] ss:$2 sm:$0xff]
  %s3463 = scalar_lea.vmem %s2478, 2137
  %v3464 = vld [vmem:[%s3463] ss:$2 sm:$0xff]
  %s3465 = scalar_lea.vmem %s2478, 2217
  %v3466 = vld [vmem:[%s3465] ss:$2 sm:$0xff]
  %s3467 = scalar_lea.vmem %s2478, 2233
  %v3468 = vld [vmem:[%s3467] ss:$2 sm:$0xff]
  %s3469 = scalar_lea.vmem %s2478, 2313
  %v3470 = vld [vmem:[%s3469] ss:$2 sm:$0xff]
  %s3471 = scalar_lea.vmem %s2478, 2329
  %v3472 = vld [vmem:[%s3471] ss:$2 sm:$0xff]
  %s3473 = scalar_lea.vmem %s2478, 2409
  %v3474 = vld [vmem:[%s3473] ss:$2 sm:$0xff]
  %s3475 = scalar_lea.vmem %s2478, 2425
  %v3476 = vld [vmem:[%s3475] ss:$2 sm:$0xff]
  %s3477 = scalar_lea.vmem %s2478, 2505
  %v3478 = vld [vmem:[%s3477] ss:$2 sm:$0xff]
  %s3479 = scalar_lea.vmem %s2478, 2521
  %v3480 = vld [vmem:[%s3479] ss:$2 sm:$0xff]
  %s3481 = scalar_lea.vmem %s2478, 2601
  %v3482 = vld [vmem:[%s3481] ss:$2 sm:$0xff]
  %s3483 = scalar_lea.vmem %s2478, 2617
  %v3484 = vld [vmem:[%s3483] ss:$2 sm:$0xff]
  %s3485 = scalar_lea.vmem %s2478, 2697
  %v3486 = vld [vmem:[%s3485] ss:$2 sm:$0xff]
  %s3487 = scalar_lea.vmem %s2478, 2713
  %v3488 = vld [vmem:[%s3487] ss:$2 sm:$0xff]
  %s3489 = scalar_lea.vmem %s2478, 2793
  %v3490 = vld [vmem:[%s3489] ss:$2 sm:$0xff]
  %s3491 = scalar_lea.vmem %s2478, 2809
  %v3492 = vld [vmem:[%s3491] ss:$2 sm:$0xff]
  %s3493 = scalar_lea.vmem %s2478, 2889
  %v3494 = vld [vmem:[%s3493] ss:$2 sm:$0xff]
  %s3495 = scalar_lea.vmem %s2478, 2905
  %v3496 = vld [vmem:[%s3495] ss:$2 sm:$0xff]
  %s3497 = scalar_lea.vmem %s2478, 2985
  %v3498 = vld [vmem:[%s3497] ss:$2 sm:$0xff]
  %s3499 = scalar_lea.vmem %s2478, 3001
  %v3500 = vld [vmem:[%s3499] ss:$2 sm:$0xff]
  %s3501 = scalar_lea.vmem %s2478, 3081
  %v3502 = vld [vmem:[%s3501] ss:$2 sm:$0xff]
  %s3503 = scalar_lea.vmem %s2478, 3097
  %v3504 = vld [vmem:[%s3503] ss:$2 sm:$0xff]
  %3569 = vrot.lane.b32.xlu0 %v3378, 64
  %v3570 = vpop.permute.xlu0 %3569
  %3571 = vrot.lane.b32.xlu0 %v3380, 64
  %v3572 = vpop.permute.xlu0 %3571
  %3573 = vrot.lane.b32.xlu0 %v3382, 64
  %v3574 = vpop.permute.xlu0 %3573
  %3575 = vrot.lane.b32.xlu0 %v3384, 64
  %v3576 = vpop.permute.xlu0 %3575
  %3577 = vrot.lane.b32.xlu0 %v3386, 64
  %v3578 = vpop.permute.xlu0 %3577
  %3579 = vrot.lane.b32.xlu0 %v3388, 64
  %v3580 = vpop.permute.xlu0 %3579
  %3581 = vrot.lane.b32.xlu0 %v3390, 64
  %v3582 = vpop.permute.xlu0 %3581
  %3583 = vrot.lane.b32.xlu0 %v3392, 64
  %v3584 = vpop.permute.xlu0 %3583
  %3585 = vrot.lane.b32.xlu0 %v3394, 64
  %v3586 = vpop.permute.xlu0 %3585
  %3587 = vrot.lane.b32.xlu0 %v3396, 64
  %v3588 = vpop.permute.xlu0 %3587
  %3589 = vrot.lane.b32.xlu0 %v3398, 64
  %v3590 = vpop.permute.xlu0 %3589
  %3591 = vrot.lane.b32.xlu0 %v3400, 64
  %v3592 = vpop.permute.xlu0 %3591
  %3593 = vrot.lane.b32.xlu0 %v3402, 64
  %v3594 = vpop.permute.xlu0 %3593
  %3595 = vrot.lane.b32.xlu0 %v3404, 64
  %v3596 = vpop.permute.xlu0 %3595
  %3597 = vrot.lane.b32.xlu0 %v3406, 64
  %v3598 = vpop.permute.xlu0 %3597
  %3599 = vrot.lane.b32.xlu0 %v3408, 64
  %v3600 = vpop.permute.xlu0 %3599
  %3601 = vrot.lane.b32.xlu0 %v3410, 64
  %v3602 = vpop.permute.xlu0 %3601
  %3603 = vrot.lane.b32.xlu0 %v3412, 64
  %v3604 = vpop.permute.xlu0 %3603
  %3605 = vrot.lane.b32.xlu0 %v3414, 64
  %v3606 = vpop.permute.xlu0 %3605
  %3607 = vrot.lane.b32.xlu0 %v3416, 64
  %v3608 = vpop.permute.xlu0 %3607
  %3609 = vrot.lane.b32.xlu0 %v3418, 64
  %v3610 = vpop.permute.xlu0 %3609
  %3611 = vrot.lane.b32.xlu0 %v3420, 64
  %v3612 = vpop.permute.xlu0 %3611
  %3613 = vrot.lane.b32.xlu0 %v3422, 64
  %v3614 = vpop.permute.xlu0 %3613
  %3615 = vrot.lane.b32.xlu0 %v3424, 64
  %v3616 = vpop.permute.xlu0 %3615
  %3617 = vrot.lane.b32.xlu0 %v3426, 64
  %v3618 = vpop.permute.xlu0 %3617
  %3619 = vrot.lane.b32.xlu0 %v3428, 64
  %v3620 = vpop.permute.xlu0 %3619
  %3621 = vrot.lane.b32.xlu0 %v3430, 64
  %v3622 = vpop.permute.xlu0 %3621
  %3623 = vrot.lane.b32.xlu0 %v3432, 64
  %v3624 = vpop.permute.xlu0 %3623
  %3625 = vrot.lane.b32.xlu0 %v3434, 64
  %v3626 = vpop.permute.xlu0 %3625
  %3627 = vrot.lane.b32.xlu0 %v3436, 64
  %v3628 = vpop.permute.xlu0 %3627
  %3629 = vrot.lane.b32.xlu0 %v3438, 64
  %v3630 = vpop.permute.xlu0 %3629
  %3631 = vrot.lane.b32.xlu0 %v3440, 64
  %v3632 = vpop.permute.xlu0 %3631
  %3633 = vrot.lane.b32.xlu0 %v3442, 64
  %v3634 = vpop.permute.xlu0 %3633
  %3635 = vrot.lane.b32.xlu0 %v3444, 64
  %v3636 = vpop.permute.xlu0 %3635
  %3637 = vrot.lane.b32.xlu0 %v3446, 64
  %v3638 = vpop.permute.xlu0 %3637
  %3639 = vrot.lane.b32.xlu0 %v3448, 64
  %v3640 = vpop.permute.xlu0 %3639
  %3641 = vrot.lane.b32.xlu0 %v3450, 64
  %v3642 = vpop.permute.xlu0 %3641
  %3643 = vrot.lane.b32.xlu0 %v3452, 64
  %v3644 = vpop.permute.xlu0 %3643
  %3645 = vrot.lane.b32.xlu0 %v3454, 64
  %v3646 = vpop.permute.xlu0 %3645
  %3647 = vrot.lane.b32.xlu0 %v3456, 64
  %v3648 = vpop.permute.xlu0 %3647
  %3649 = vrot.lane.b32.xlu0 %v3458, 64
  %v3650 = vpop.permute.xlu0 %3649
  %3651 = vrot.lane.b32.xlu0 %v3460, 64
  %v3652 = vpop.permute.xlu0 %3651
  %3653 = vrot.lane.b32.xlu0 %v3462, 64
  %v3654 = vpop.permute.xlu0 %3653
  %3655 = vrot.lane.b32.xlu0 %v3464, 64
  %v3656 = vpop.permute.xlu0 %3655
  %3657 = vrot.lane.b32.xlu0 %v3466, 64
  %v3658 = vpop.permute.xlu0 %3657
  %3659 = vrot.lane.b32.xlu0 %v3468, 64
  %v3660 = vpop.permute.xlu0 %3659
  %3661 = vrot.lane.b32.xlu0 %v3470, 64
  %v3662 = vpop.permute.xlu0 %3661
  %3663 = vrot.lane.b32.xlu0 %v3472, 64
  %v3664 = vpop.permute.xlu0 %3663
  %3665 = vrot.lane.b32.xlu0 %v3474, 64
  %v3666 = vpop.permute.xlu0 %3665
  %3667 = vrot.lane.b32.xlu0 %v3476, 64
  %v3668 = vpop.permute.xlu0 %3667
  %3669 = vrot.lane.b32.xlu0 %v3478, 64
  %v3670 = vpop.permute.xlu0 %3669
  %3671 = vrot.lane.b32.xlu0 %v3480, 64
  %v3672 = vpop.permute.xlu0 %3671
  %3673 = vrot.lane.b32.xlu0 %v3482, 64
  %v3674 = vpop.permute.xlu0 %3673
  %3675 = vrot.lane.b32.xlu0 %v3484, 64
  %v3676 = vpop.permute.xlu0 %3675
  %3677 = vrot.lane.b32.xlu0 %v3486, 64
  %v3678 = vpop.permute.xlu0 %3677
  %3679 = vrot.lane.b32.xlu0 %v3488, 64
  %v3680 = vpop.permute.xlu0 %3679
  %3681 = vrot.lane.b32.xlu0 %v3490, 64
  %v3682 = vpop.permute.xlu0 %3681
  %3683 = vrot.lane.b32.xlu0 %v3492, 64
  %v3684 = vpop.permute.xlu0 %3683
  %3685 = vrot.lane.b32.xlu0 %v3494, 64
  %v3686 = vpop.permute.xlu0 %3685
  %3687 = vrot.lane.b32.xlu0 %v3496, 64
  %v3688 = vpop.permute.xlu0 %3687
  %3689 = vrot.lane.b32.xlu0 %v3498, 64
  %v3690 = vpop.permute.xlu0 %3689
  %3691 = vrot.lane.b32.xlu0 %v3500, 64
  %v3692 = vpop.permute.xlu0 %3691
  %3693 = vrot.lane.b32.xlu0 %v3502, 64
  %v3694 = vpop.permute.xlu0 %3693
  %3695 = vrot.lane.b32.xlu0 %v3504, 64
  %v3696 = vpop.permute.xlu0 %3695
  %vm3761 = vcmask 589312
  %3762 = vst.msk [vmem:[#allocation2] sm:$0xff] %vm3761, %v3570
  %3763 = vst.msk [vmem:[#allocation2 + $0x8] sm:$0xff] %vm3761, %v3572
  %3764 = vst.msk [vmem:[#allocation2 + $0x10] sm:$0xff] %vm3761, %v3574
  %3765 = vst.msk [vmem:[#allocation2 + $0x18] sm:$0xff] %vm3761, %v3576
  %3766 = vst.msk [vmem:[#allocation2 + $0x20] sm:$0xff] %vm3761, %v3578
  %3767 = vst.msk [vmem:[#allocation2 + $0x28] sm:$0xff] %vm3761, %v3580
  %3768 = vst.msk [vmem:[#allocation2 + $0x30] sm:$0xff] %vm3761, %v3582
  %3769 = vst.msk [vmem:[#allocation2 + $0x38] sm:$0xff] %vm3761, %v3584
  %3770 = vst.msk [vmem:[#allocation2 + $0x40] sm:$0xff] %vm3761, %v3586
  %3771 = vst.msk [vmem:[#allocation2 + $0x48] sm:$0xff] %vm3761, %v3588
  %3772 = vst.msk [vmem:[#allocation2 + $0x50] sm:$0xff] %vm3761, %v3590
  %3773 = vst.msk [vmem:[#allocation2 + $0x58] sm:$0xff] %vm3761, %v3592
  %3774 = vst.msk [vmem:[#allocation2 + $0x60] sm:$0xff] %vm3761, %v3594
  %3775 = vst.msk [vmem:[#allocation2 + $0x68] sm:$0xff] %vm3761, %v3596
  %3776 = vst.msk [vmem:[#allocation2 + $0x70] sm:$0xff] %vm3761, %v3598
  %3777 = vst.msk [vmem:[#allocation2 + $0x78] sm:$0xff] %vm3761, %v3600
  %3778 = vst.msk [vmem:[#allocation2 + $0x80] sm:$0xff] %vm3761, %v3602
  %3779 = vst.msk [vmem:[#allocation2 + $0x88] sm:$0xff] %vm3761, %v3604
  %3780 = vst.msk [vmem:[#allocation2 + $0x90] sm:$0xff] %vm3761, %v3606
  %3781 = vst.msk [vmem:[#allocation2 + $0x98] sm:$0xff] %vm3761, %v3608
  %3782 = vst.msk [vmem:[#allocation2 + $0xa0] sm:$0xff] %vm3761, %v3610
  %3783 = vst.msk [vmem:[#allocation2 + $0xa8] sm:$0xff] %vm3761, %v3612
  %3784 = vst.msk [vmem:[#allocation2 + $0xb0] sm:$0xff] %vm3761, %v3614
  %3785 = vst.msk [vmem:[#allocation2 + $0xb8] sm:$0xff] %vm3761, %v3616
  %3786 = vst.msk [vmem:[#allocation2 + $0xc0] sm:$0xff] %vm3761, %v3618
  %3787 = vst.msk [vmem:[#allocation2 + $0xc8] sm:$0xff] %vm3761, %v3620
  %3788 = vst.msk [vmem:[#allocation2 + $0xd0] sm:$0xff] %vm3761, %v3622
  %3789 = vst.msk [vmem:[#allocation2 + $0xd8] sm:$0xff] %vm3761, %v3624
  %3790 = vst.msk [vmem:[#allocation2 + $0xe0] sm:$0xff] %vm3761, %v3626
  %3791 = vst.msk [vmem:[#allocation2 + $0xe8] sm:$0xff] %vm3761, %v3628
  %3792 = vst.msk [vmem:[#allocation2 + $0xf0] sm:$0xff] %vm3761, %v3630
  %3793 = vst.msk [vmem:[#allocation2 + $0xf8] sm:$0xff] %vm3761, %v3632
  %3794 = vst.msk [vmem:[#allocation2 + $0x100] sm:$0xff] %vm3761, %v3634
  %3795 = vst.msk [vmem:[#allocation2 + $0x108] sm:$0xff] %vm3761, %v3636
  %3796 = vst.msk [vmem:[#allocation2 + $0x110] sm:$0xff] %vm3761, %v3638
  %3797 = vst.msk [vmem:[#allocation2 + $0x118] sm:$0xff] %vm3761, %v3640
  %3798 = vst.msk [vmem:[#allocation2 + $0x120] sm:$0xff] %vm3761, %v3642
  %3799 = vst.msk [vmem:[#allocation2 + $0x128] sm:$0xff] %vm3761, %v3644
  %3800 = vst.msk [vmem:[#allocation2 + $0x130] sm:$0xff] %vm3761, %v3646
  %3801 = vst.msk [vmem:[#allocation2 + $0x138] sm:$0xff] %vm3761, %v3648
  %3802 = vst.msk [vmem:[#allocation2 + $0x140] sm:$0xff] %vm3761, %v3650
  %3803 = vst.msk [vmem:[#allocation2 + $0x148] sm:$0xff] %vm3761, %v3652
  %3804 = vst.msk [vmem:[#allocation2 + $0x150] sm:$0xff] %vm3761, %v3654
  %3805 = vst.msk [vmem:[#allocation2 + $0x158] sm:$0xff] %vm3761, %v3656
  %3806 = vst.msk [vmem:[#allocation2 + $0x160] sm:$0xff] %vm3761, %v3658
  %3807 = vst.msk [vmem:[#allocation2 + $0x168] sm:$0xff] %vm3761, %v3660
  %3808 = vst.msk [vmem:[#allocation2 + $0x170] sm:$0xff] %vm3761, %v3662
  %3809 = vst.msk [vmem:[#allocation2 + $0x178] sm:$0xff] %vm3761, %v3664
  %3810 = vst.msk [vmem:[#allocation2 + $0x180] sm:$0xff] %vm3761, %v3666
  %3811 = vst.msk [vmem:[#allocation2 + $0x188] sm:$0xff] %vm3761, %v3668
  %3812 = vst.msk [vmem:[#allocation2 + $0x190] sm:$0xff] %vm3761, %v3670
  %3813 = vst.msk [vmem:[#allocation2 + $0x198] sm:$0xff] %vm3761, %v3672
  %3814 = vst.msk [vmem:[#allocation2 + $0x1a0] sm:$0xff] %vm3761, %v3674
  %3815 = vst.msk [vmem:[#allocation2 + $0x1a8] sm:$0xff] %vm3761, %v3676
  %3816 = vst.msk [vmem:[#allocation2 + $0x1b0] sm:$0xff] %vm3761, %v3678
  %3817 = vst.msk [vmem:[#allocation2 + $0x1b8] sm:$0xff] %vm3761, %v3680
  %3818 = vst.msk [vmem:[#allocation2 + $0x1c0] sm:$0xff] %vm3761, %v3682
  %3819 = vst.msk [vmem:[#allocation2 + $0x1c8] sm:$0xff] %vm3761, %v3684
  %3820 = vst.msk [vmem:[#allocation2 + $0x1d0] sm:$0xff] %vm3761, %v3686
  %3821 = vst.msk [vmem:[#allocation2 + $0x1d8] sm:$0xff] %vm3761, %v3688
  %3822 = vst.msk [vmem:[#allocation2 + $0x1e0] sm:$0xff] %vm3761, %v3690
  %3823 = vst.msk [vmem:[#allocation2 + $0x1e8] sm:$0xff] %vm3761, %v3692
  %3824 = vst.msk [vmem:[#allocation2 + $0x1f0] sm:$0xff] %vm3761, %v3694
  %3825 = vst.msk [vmem:[#allocation2 + $0x1f8] sm:$0xff] %vm3761, %v3696
  %v3826 = vld [vmem:[#allocation2] sm:$0xff]
  %v3827 = vld [vmem:[#allocation2 + $0x8] sm:$0xff]
  %v3828 = vld [vmem:[#allocation2 + $0x10] sm:$0xff]
  %v3829 = vld [vmem:[#allocation2 + $0x18] sm:$0xff]
  %v3830 = vld [vmem:[#allocation2 + $0x20] sm:$0xff]
  %v3831 = vld [vmem:[#allocation2 + $0x28] sm:$0xff]
  %v3832 = vld [vmem:[#allocation2 + $0x30] sm:$0xff]
  %v3833 = vld [vmem:[#allocation2 + $0x38] sm:$0xff]
  %v3834 = vld [vmem:[#allocation2 + $0x40] sm:$0xff]
  %v3835 = vld [vmem:[#allocation2 + $0x48] sm:$0xff]
  %v3836 = vld [vmem:[#allocation2 + $0x50] sm:$0xff]
  %v3837 = vld [vmem:[#allocation2 + $0x58] sm:$0xff]
  %v3838 = vld [vmem:[#allocation2 + $0x60] sm:$0xff]
  %v3839 = vld [vmem:[#allocation2 + $0x68] sm:$0xff]
  %v3840 = vld [vmem:[#allocation2 + $0x70] sm:$0xff]
  %v3841 = vld [vmem:[#allocation2 + $0x78] sm:$0xff]
  %v3842 = vld [vmem:[#allocation2 + $0x80] sm:$0xff]
  %v3843 = vld [vmem:[#allocation2 + $0x88] sm:$0xff]
  %v3844 = vld [vmem:[#allocation2 + $0x90] sm:$0xff]
  %v3845 = vld [vmem:[#allocation2 + $0x98] sm:$0xff]
  %v3846 = vld [vmem:[#allocation2 + $0xa0] sm:$0xff]
  %v3847 = vld [vmem:[#allocation2 + $0xa8] sm:$0xff]
  %v3848 = vld [vmem:[#allocation2 + $0xb0] sm:$0xff]
  %v3849 = vld [vmem:[#allocation2 + $0xb8] sm:$0xff]
  %v3850 = vld [vmem:[#allocation2 + $0xc0] sm:$0xff]
  %v3851 = vld [vmem:[#allocation2 + $0xc8] sm:$0xff]
  %v3852 = vld [vmem:[#allocation2 + $0xd0] sm:$0xff]
  %v3853 = vld [vmem:[#allocation2 + $0xd8] sm:$0xff]
  %v3854 = vld [vmem:[#allocation2 + $0xe0] sm:$0xff]
  %v3855 = vld [vmem:[#allocation2 + $0xe8] sm:$0xff]
  %v3856 = vld [vmem:[#allocation2 + $0xf0] sm:$0xff]
  %v3857 = vld [vmem:[#allocation2 + $0xf8] sm:$0xff]
  %v3858 = vld [vmem:[#allocation2 + $0x100] sm:$0xff]
  %v3859 = vld [vmem:[#allocation2 + $0x108] sm:$0xff]
  %v3860 = vld [vmem:[#allocation2 + $0x110] sm:$0xff]
  %v3861 = vld [vmem:[#allocation2 + $0x118] sm:$0xff]
  %v3862 = vld [vmem:[#allocation2 + $0x120] sm:$0xff]
  %v3863 = vld [vmem:[#allocation2 + $0x128] sm:$0xff]
  %v3864 = vld [vmem:[#allocation2 + $0x130] sm:$0xff]
  %v3865 = vld [vmem:[#allocation2 + $0x138] sm:$0xff]
  %v3866 = vld [vmem:[#allocation2 + $0x140] sm:$0xff]
  %v3867 = vld [vmem:[#allocation2 + $0x148] sm:$0xff]
  %v3868 = vld [vmem:[#allocation2 + $0x150] sm:$0xff]
  %v3869 = vld [vmem:[#allocation2 + $0x158] sm:$0xff]
  %v3870 = vld [vmem:[#allocation2 + $0x160] sm:$0xff]
  %v3871 = vld [vmem:[#allocation2 + $0x168] sm:$0xff]
  %v3872 = vld [vmem:[#allocation2 + $0x170] sm:$0xff]
  %v3873 = vld [vmem:[#allocation2 + $0x178] sm:$0xff]
  %v3874 = vld [vmem:[#allocation2 + $0x180] sm:$0xff]
  %v3875 = vld [vmem:[#allocation2 + $0x188] sm:$0xff]
  %v3876 = vld [vmem:[#allocation2 + $0x190] sm:$0xff]
  %v3877 = vld [vmem:[#allocation2 + $0x198] sm:$0xff]
  %v3878 = vld [vmem:[#allocation2 + $0x1a0] sm:$0xff]
  %v3879 = vld [vmem:[#allocation2 + $0x1a8] sm:$0xff]
  %v3880 = vld [vmem:[#allocation2 + $0x1b0] sm:$0xff]
  %v3881 = vld [vmem:[#allocation2 + $0x1b8] sm:$0xff]
  %v3882 = vld [vmem:[#allocation2 + $0x1c0] sm:$0xff]
  %v3883 = vld [vmem:[#allocation2 + $0x1c8] sm:$0xff]
  %v3884 = vld [vmem:[#allocation2 + $0x1d0] sm:$0xff]
  %v3885 = vld [vmem:[#allocation2 + $0x1d8] sm:$0xff]
  %v3886 = vld [vmem:[#allocation2 + $0x1e0] sm:$0xff]
  %v3887 = vld [vmem:[#allocation2 + $0x1e8] sm:$0xff]
  %v3888 = vld [vmem:[#allocation2 + $0x1f0] sm:$0xff]
  %v3889 = vld [vmem:[#allocation2 + $0x1f8] sm:$0xff]
  %v3890 = vpack.c.bf16 %v3827, %v3826
  %v3891 = vpack.c.bf16 %v3829, %v3828
  %v3892 = vpack.c.bf16 %v3831, %v3830
  %v3893 = vpack.c.bf16 %v3833, %v3832
  %v3894 = vpack.c.bf16 %v3835, %v3834
  %v3895 = vpack.c.bf16 %v3837, %v3836
  %v3896 = vpack.c.bf16 %v3839, %v3838
  %v3897 = vpack.c.bf16 %v3841, %v3840
  %v3898 = vpack.c.bf16 %v3843, %v3842
  %v3899 = vpack.c.bf16 %v3845, %v3844
  %v3900 = vpack.c.bf16 %v3847, %v3846
  %v3901 = vpack.c.bf16 %v3849, %v3848
  %v3902 = vpack.c.bf16 %v3851, %v3850
  %v3903 = vpack.c.bf16 %v3853, %v3852
  %v3904 = vpack.c.bf16 %v3855, %v3854
  %v3905 = vpack.c.bf16 %v3857, %v3856
  %v3906 = vpack.c.bf16 %v3859, %v3858
  %v3907 = vpack.c.bf16 %v3861, %v3860
  %v3908 = vpack.c.bf16 %v3863, %v3862
  %v3909 = vpack.c.bf16 %v3865, %v3864
  %v3910 = vpack.c.bf16 %v3867, %v3866
  %v3911 = vpack.c.bf16 %v3869, %v3868
  %v3912 = vpack.c.bf16 %v3871, %v3870
  %v3913 = vpack.c.bf16 %v3873, %v3872
  %v3914 = vpack.c.bf16 %v3875, %v3874
  %v3915 = vpack.c.bf16 %v3877, %v3876
  %v3916 = vpack.c.bf16 %v3879, %v3878
  %v3917 = vpack.c.bf16 %v3881, %v3880
  %v3918 = vpack.c.bf16 %v3883, %v3882
  %v3919 = vpack.c.bf16 %v3885, %v3884
  %v3920 = vpack.c.bf16 %v3887, %v3886
  %v3921 = vpack.c.bf16 %v3889, %v3888
  %v3922 = vld [vmem:[%s1] sm:$0xf]
  %v3923 = vld [vmem:[%s1 + $0x4] sm:$0xf]
  %v3924 = vld [vmem:[%s1 + $0x8] sm:$0xf]
  %v3925 = vld [vmem:[%s1 + $0xc] sm:$0xf]
  %v3926 = vld [vmem:[%s1 + $0x10] sm:$0xf]
  %v3927 = vld [vmem:[%s1 + $0x14] sm:$0xf]
  %v3928 = vld [vmem:[%s1 + $0x18] sm:$0xf]
  %v3929 = vld [vmem:[%s1 + $0x1c] sm:$0xf]
  %v3930 = vld [vmem:[%s1 + $0x20] sm:$0xf]
  %v3931 = vld [vmem:[%s5] sm:$0x1]
  %v3932 = vlaneseq
  %v3933 = vshrl.u32 %v3932, 7
  %v3934 = vsub.s32 0, %v3933
  %v3935 = vrot.slane %v3931, %v3934
  %v3945 = vunpack.c.l.b16 %v3922
  %v3946 = vunpack.c.l.b16 %v3923
  %v3947 = vunpack.c.l.b16 %v3924
  %v3948 = vunpack.c.l.b16 %v3925
  %v3949 = vunpack.c.l.b16 %v3926
  %v3950 = vunpack.c.l.b16 %v3927
  %v3951 = vunpack.c.l.b16 %v3928
  %v3952 = vunpack.c.l.b16 %v3929
  %v3953 = vunpack.c.l.b16 %v3930
  %v3954 = vpack.c.b16 %v3946, %v3945
  %v3955 = vpack.c.b16 %v3948, %v3947
  %v3956 = vpack.c.b16 %v3950, %v3949
  %v3957 = vpack.c.b16 %v3952, %v3951
  %v3958 = vpack.c.b16 %v3953, %v3953
  %vm3963 = vcmask 588800
  %v3965 = vsel %vm3963, %v3890, 0
  %v3968 = vsel %vm3963, %v3891, 0
  %v3971 = vsel %vm3963, %v3892, 0
  %v3974 = vsel %vm3963, %v3893, 0
  %v3977 = vsel %vm3963, %v3894, 0
  %v3980 = vsel %vm3963, %v3895, 0
  %v3983 = vsel %vm3963, %v3896, 0
  %v3986 = vsel %vm3963, %v3897, 0
  %v3989 = vsel %vm3963, %v3898, 0
  %v3992 = vsel %vm3963, %v3899, 0
  %v3995 = vsel %vm3963, %v3900, 0
  %v3998 = vsel %vm3963, %v3901, 0
  %v4001 = vsel %vm3963, %v3902, 0
  %v4004 = vsel %vm3963, %v3903, 0
  %v4007 = vsel %vm3963, %v3904, 0
  %v4010 = vsel %vm3963, %v3905, 0
  %v4013 = vsel %vm3963, %v3906, 0
  %v4016 = vsel %vm3963, %v3907, 0
  %v4019 = vsel %vm3963, %v3908, 0
  %v4022 = vsel %vm3963, %v3909, 0
  %v4025 = vsel %vm3963, %v3910, 0
  %v4028 = vsel %vm3963, %v3911, 0
  %v4031 = vsel %vm3963, %v3912, 0
  %v4034 = vsel %vm3963, %v3913, 0
  %v4037 = vsel %vm3963, %v3914, 0
  %v4040 = vsel %vm3963, %v3915, 0
  %v4043 = vsel %vm3963, %v3916, 0
  %v4046 = vsel %vm3963, %v3917, 0
  %v4049 = vsel %vm3963, %v3918, 0
  %v4052 = vsel %vm3963, %v3919, 0
  %v4055 = vsel %vm3963, %v3920, 0
  %v4058 = vsel %vm3963, %v3921, 0
  %vm4060 = vcmask 1043456
  %v4062 = vsel %vm4060, %v3958, 0
  %4064 = vmatprep.subr.bf16.mxu0 0
  %4065 = vmatpush1.bf16.msra.mxu0 0
  %4066 = vmatprep.subr.bf16.mxu0 0
  %4067 = vmatpush1.bf16.msra.mxu0 0
  %4068 = vmatprep.subr.bf16.mxu0 0
  %4069 = vmatpush1.bf16.msra.mxu0 0
  %4070 = vmatprep.subr.bf16.mxu0 0
  %4071 = vmatpush1.bf16.msra.mxu0 %v4062
  %4072 = vmatprep.subr.bf16.mxu0 0
  %4073 = vmatpush1.bf16.msra.mxu0 %v3957
  %4074 = vmatprep.subr.bf16.mxu0 0
  %4075 = vmatpush1.bf16.msra.mxu0 %v3956
  %4076 = vmatprep.subr.bf16.mxu0 0
  %4077 = vmatpush1.bf16.msra.mxu0 %v3955
  %4078 = vmatprep.subr.bf16.mxu0 0
  %4079 = vmatpush1.bf16.msra.mxu0 %v3954
  %4080 = vmatprep.subr.bf16.mxu0 0
  %4081 = vmatpush2.bf16.msra.mxu0 0
  %4082 = vmatprep.subr.bf16.mxu0 0
  %4083 = vmatpush2.bf16.msra.mxu0 0
  %4084 = vmatprep.subr.bf16.mxu0 0
  %4085 = vmatpush2.bf16.msra.mxu0 0
  %4086 = vmatprep.subr.bf16.mxu0 0
  %4087 = vmatpush2.bf16.msra.mxu0 0
  %4088 = vmatprep.subr.bf16.mxu0 0
  %4089 = vmatpush2.bf16.msra.mxu0 0
  %4090 = vmatprep.subr.bf16.mxu0 0
  %4091 = vmatpush2.bf16.msra.mxu0 0
  %4092 = vmatprep.subr.bf16.mxu0 0
  %4093 = vmatpush2.bf16.msra.mxu0 0
  %4094 = vmatprep.subr.bf16.mxu0 0
  %4095 = vmatpush2.bf16.msra.mxu0 0
  %4096 = vmatprep.mubr.bf16.mxu0 0
  %4097 = vmatmul.mubr.bf16.gmra.mxu0 %v3965
  %v4098 = vpop.f32.mrf.mxu0
  %v4099 = vadd.f32 %v3935, %v4098
  %v4100 = vpop.f32.mrf.mxu0
  %v4101 = vpop.f32.mrf.mxu0
  %v4102 = vadd.f32 %v3935, %v4101
  %v4103 = vpop.f32.mrf.mxu0
  %4104 = vmatprep.mubr.bf16.mxu0 0
  %4105 = vmatmul.mubr.bf16.gmra.mxu0 %v3968
  %v4106 = vpop.f32.mrf.mxu0
  %v4107 = vadd.f32 %v3935, %v4106
  %v4108 = vpop.f32.mrf.mxu0
  %v4109 = vpop.f32.mrf.mxu0
  %v4110 = vadd.f32 %v3935, %v4109
  %v4111 = vpop.f32.mrf.mxu0
  %4112 = vmatprep.mubr.bf16.mxu0 0
  %4113 = vmatmul.mubr.bf16.gmra.mxu0 %v3971
  %v4114 = vpop.f32.mrf.mxu0
  %v4115 = vadd.f32 %v3935, %v4114
  %v4116 = vpop.f32.mrf.mxu0
  %v4117 = vpop.f32.mrf.mxu0
  %v4118 = vadd.f32 %v3935, %v4117
  %v4119 = vpop.f32.mrf.mxu0
  %4120 = vmatprep.mubr.bf16.mxu0 0
  %4121 = vmatmul.mubr.bf16.gmra.mxu0 %v3974
  %v4122 = vpop.f32.mrf.mxu0
  %v4123 = vadd.f32 %v3935, %v4122
  %v4124 = vpop.f32.mrf.mxu0
  %v4125 = vpop.f32.mrf.mxu0
  %v4126 = vadd.f32 %v3935, %v4125
  %v4127 = vpop.f32.mrf.mxu0
  %4128 = vmatprep.mubr.bf16.mxu0 0
  %4129 = vmatmul.mubr.bf16.gmra.mxu0 %v3977
  %v4130 = vpop.f32.mrf.mxu0
  %v4131 = vadd.f32 %v3935, %v4130
  %v4132 = vpop.f32.mrf.mxu0
  %v4133 = vpop.f32.mrf.mxu0
  %v4134 = vadd.f32 %v3935, %v4133
  %v4135 = vpop.f32.mrf.mxu0
  %4136 = vmatprep.mubr.bf16.mxu0 0
  %4137 = vmatmul.mubr.bf16.gmra.mxu0 %v3980
  %v4138 = vpop.f32.mrf.mxu0
  %v4139 = vadd.f32 %v3935, %v4138
  %v4140 = vpop.f32.mrf.mxu0
  %v4141 = vpop.f32.mrf.mxu0
  %v4142 = vadd.f32 %v3935, %v4141
  %v4143 = vpop.f32.mrf.mxu0
  %4144 = vmatprep.mubr.bf16.mxu0 0
  %4145 = vmatmul.mubr.bf16.gmra.mxu0 %v3983
  %v4146 = vpop.f32.mrf.mxu0
  %v4147 = vadd.f32 %v3935, %v4146
  %v4148 = vpop.f32.mrf.mxu0
  %v4149 = vpop.f32.mrf.mxu0
  %v4150 = vadd.f32 %v3935, %v4149
  %v4151 = vpop.f32.mrf.mxu0
  %4152 = vmatprep.mubr.bf16.mxu0 0
  %4153 = vmatmul.mubr.bf16.gmra.mxu0 %v3986
  %v4154 = vpop.f32.mrf.mxu0
  %v4155 = vadd.f32 %v3935, %v4154
  %v4156 = vpop.f32.mrf.mxu0
  %v4157 = vpop.f32.mrf.mxu0
  %v4158 = vadd.f32 %v3935, %v4157
  %v4159 = vpop.f32.mrf.mxu0
  %4160 = vmatprep.mubr.bf16.mxu0 0
  %4161 = vmatmul.mubr.bf16.gmra.mxu0 %v3989
  %v4162 = vpop.f32.mrf.mxu0
  %v4163 = vadd.f32 %v3935, %v4162
  %v4164 = vpop.f32.mrf.mxu0
  %v4165 = vpop.f32.mrf.mxu0
  %v4166 = vadd.f32 %v3935, %v4165
  %v4167 = vpop.f32.mrf.mxu0
  %4168 = vmatprep.mubr.bf16.mxu0 0
  %4169 = vmatmul.mubr.bf16.gmra.mxu0 %v3992
  %v4170 = vpop.f32.mrf.mxu0
  %v4171 = vadd.f32 %v3935, %v4170
  %v4172 = vpop.f32.mrf.mxu0
  %v4173 = vpop.f32.mrf.mxu0
  %v4174 = vadd.f32 %v3935, %v4173
  %v4175 = vpop.f32.mrf.mxu0
  %4176 = vmatprep.mubr.bf16.mxu0 0
  %4177 = vmatmul.mubr.bf16.gmra.mxu0 %v3995
  %v4178 = vpop.f32.mrf.mxu0
  %v4179 = vadd.f32 %v3935, %v4178
  %v4180 = vpop.f32.mrf.mxu0
  %v4181 = vpop.f32.mrf.mxu0
  %v4182 = vadd.f32 %v3935, %v4181
  %v4183 = vpop.f32.mrf.mxu0
  %4184 = vmatprep.mubr.bf16.mxu0 0
  %4185 = vmatmul.mubr.bf16.gmra.mxu0 %v3998
  %v4186 = vpop.f32.mrf.mxu0
  %v4187 = vadd.f32 %v3935, %v4186
  %v4188 = vpop.f32.mrf.mxu0
  %v4189 = vpop.f32.mrf.mxu0
  %v4190 = vadd.f32 %v3935, %v4189
  %v4191 = vpop.f32.mrf.mxu0
  %4192 = vmatprep.mubr.bf16.mxu0 0
  %4193 = vmatmul.mubr.bf16.gmra.mxu0 %v4001
  %v4194 = vpop.f32.mrf.mxu0
  %v4195 = vadd.f32 %v3935, %v4194
  %v4196 = vpop.f32.mrf.mxu0
  %v4197 = vpop.f32.mrf.mxu0
  %v4198 = vadd.f32 %v3935, %v4197
  %v4199 = vpop.f32.mrf.mxu0
  %4200 = vmatprep.mubr.bf16.mxu0 0
  %4201 = vmatmul.mubr.bf16.gmra.mxu0 %v4004
  %v4202 = vpop.f32.mrf.mxu0
  %v4203 = vadd.f32 %v3935, %v4202
  %v4204 = vpop.f32.mrf.mxu0
  %v4205 = vpop.f32.mrf.mxu0
  %v4206 = vadd.f32 %v3935, %v4205
  %v4207 = vpop.f32.mrf.mxu0
  %4208 = vmatprep.mubr.bf16.mxu0 0
  %4209 = vmatmul.mubr.bf16.gmra.mxu0 %v4007
  %v4210 = vpop.f32.mrf.mxu0
  %v4211 = vadd.f32 %v3935, %v4210
  %v4212 = vpop.f32.mrf.mxu0
  %v4213 = vpop.f32.mrf.mxu0
  %v4214 = vadd.f32 %v3935, %v4213
  %v4215 = vpop.f32.mrf.mxu0
  %4216 = vmatprep.mubr.bf16.mxu0 0
  %4217 = vmatmul.mubr.bf16.gmra.mxu0 %v4010
  %v4218 = vpop.f32.mrf.mxu0
  %v4219 = vadd.f32 %v3935, %v4218
  %v4220 = vpop.f32.mrf.mxu0
  %v4221 = vpop.f32.mrf.mxu0
  %v4222 = vadd.f32 %v3935, %v4221
  %v4223 = vpop.f32.mrf.mxu0
  %4224 = vmatprep.mubr.bf16.mxu0 0
  %4225 = vmatmul.mubr.bf16.gmra.mxu0 %v4013
  %v4226 = vpop.f32.mrf.mxu0
  %v4227 = vadd.f32 %v3935, %v4226
  %v4228 = vpop.f32.mrf.mxu0
  %v4229 = vpop.f32.mrf.mxu0
  %v4230 = vadd.f32 %v3935, %v4229
  %v4231 = vpop.f32.mrf.mxu0
  %4232 = vmatprep.mubr.bf16.mxu0 0
  %4233 = vmatmul.mubr.bf16.gmra.mxu0 %v4016
  %v4234 = vpop.f32.mrf.mxu0
  %v4235 = vadd.f32 %v3935, %v4234
  %v4236 = vpop.f32.mrf.mxu0
  %v4237 = vpop.f32.mrf.mxu0
  %v4238 = vadd.f32 %v3935, %v4237
  %v4239 = vpop.f32.mrf.mxu0
  %4240 = vmatprep.mubr.bf16.mxu0 0
  %4241 = vmatmul.mubr.bf16.gmra.mxu0 %v4019
  %v4242 = vpop.f32.mrf.mxu0
  %v4243 = vadd.f32 %v3935, %v4242
  %v4244 = vpop.f32.mrf.mxu0
  %v4245 = vpop.f32.mrf.mxu0
  %v4246 = vadd.f32 %v3935, %v4245
  %v4247 = vpop.f32.mrf.mxu0
  %4248 = vmatprep.mubr.bf16.mxu0 0
  %4249 = vmatmul.mubr.bf16.gmra.mxu0 %v4022
  %v4250 = vpop.f32.mrf.mxu0
  %v4251 = vadd.f32 %v3935, %v4250
  %v4252 = vpop.f32.mrf.mxu0
  %v4253 = vpop.f32.mrf.mxu0
  %v4254 = vadd.f32 %v3935, %v4253
  %v4255 = vpop.f32.mrf.mxu0
  %4256 = vmatprep.mubr.bf16.mxu0 0
  %4257 = vmatmul.mubr.bf16.gmra.mxu0 %v4025
  %v4258 = vpop.f32.mrf.mxu0
  %v4259 = vadd.f32 %v3935, %v4258
  %v4260 = vpop.f32.mrf.mxu0
  %v4261 = vpop.f32.mrf.mxu0
  %v4262 = vadd.f32 %v3935, %v4261
  %v4263 = vpop.f32.mrf.mxu0
  %4264 = vmatprep.mubr.bf16.mxu0 0
  %4265 = vmatmul.mubr.bf16.gmra.mxu0 %v4028
  %v4266 = vpop.f32.mrf.mxu0
  %v4267 = vadd.f32 %v3935, %v4266
  %v4268 = vpop.f32.mrf.mxu0
  %v4269 = vpop.f32.mrf.mxu0
  %v4270 = vadd.f32 %v3935, %v4269
  %v4271 = vpop.f32.mrf.mxu0
  %4272 = vmatprep.mubr.bf16.mxu0 0
  %4273 = vmatmul.mubr.bf16.gmra.mxu0 %v4031
  %v4274 = vpop.f32.mrf.mxu0
  %v4275 = vadd.f32 %v3935, %v4274
  %v4276 = vpop.f32.mrf.mxu0
  %v4277 = vpop.f32.mrf.mxu0
  %v4278 = vadd.f32 %v3935, %v4277
  %v4279 = vpop.f32.mrf.mxu0
  %4280 = vmatprep.mubr.bf16.mxu0 0
  %4281 = vmatmul.mubr.bf16.gmra.mxu0 %v4034
  %v4282 = vpop.f32.mrf.mxu0
  %v4283 = vadd.f32 %v3935, %v4282
  %v4284 = vpop.f32.mrf.mxu0
  %v4285 = vpop.f32.mrf.mxu0
  %v4286 = vadd.f32 %v3935, %v4285
  %v4287 = vpop.f32.mrf.mxu0
  %4288 = vmatprep.mubr.bf16.mxu0 0
  %4289 = vmatmul.mubr.bf16.gmra.mxu0 %v4037
  %v4290 = vpop.f32.mrf.mxu0
  %v4291 = vadd.f32 %v3935, %v4290
  %v4292 = vpop.f32.mrf.mxu0
  %v4293 = vpop.f32.mrf.mxu0
  %v4294 = vadd.f32 %v3935, %v4293
  %v4295 = vpop.f32.mrf.mxu0
  %4296 = vmatprep.mubr.bf16.mxu0 0
  %4297 = vmatmul.mubr.bf16.gmra.mxu0 %v4040
  %v4298 = vpop.f32.mrf.mxu0
  %v4299 = vadd.f32 %v3935, %v4298
  %v4300 = vpop.f32.mrf.mxu0
  %v4301 = vpop.f32.mrf.mxu0
  %v4302 = vadd.f32 %v3935, %v4301
  %v4303 = vpop.f32.mrf.mxu0
  %4304 = vmatprep.mubr.bf16.mxu0 0
  %4305 = vmatmul.mubr.bf16.gmra.mxu0 %v4043
  %v4306 = vpop.f32.mrf.mxu0
  %v4307 = vadd.f32 %v3935, %v4306
  %v4308 = vpop.f32.mrf.mxu0
  %v4309 = vpop.f32.mrf.mxu0
  %v4310 = vadd.f32 %v3935, %v4309
  %v4311 = vpop.f32.mrf.mxu0
  %4312 = vmatprep.mubr.bf16.mxu0 0
  %4313 = vmatmul.mubr.bf16.gmra.mxu0 %v4046
  %v4314 = vpop.f32.mrf.mxu0
  %v4315 = vadd.f32 %v3935, %v4314
  %v4316 = vpop.f32.mrf.mxu0
  %v4317 = vpop.f32.mrf.mxu0
  %v4318 = vadd.f32 %v3935, %v4317
  %v4319 = vpop.f32.mrf.mxu0
  %4320 = vmatprep.mubr.bf16.mxu0 0
  %4321 = vmatmul.mubr.bf16.gmra.mxu0 %v4049
  %v4322 = vpop.f32.mrf.mxu0
  %v4323 = vadd.f32 %v3935, %v4322
  %v4324 = vpop.f32.mrf.mxu0
  %v4325 = vpop.f32.mrf.mxu0
  %v4326 = vadd.f32 %v3935, %v4325
  %v4327 = vpop.f32.mrf.mxu0
  %4328 = vmatprep.mubr.bf16.mxu0 0
  %4329 = vmatmul.mubr.bf16.gmra.mxu0 %v4052
  %v4330 = vpop.f32.mrf.mxu0
  %v4331 = vadd.f32 %v3935, %v4330
  %v4332 = vpop.f32.mrf.mxu0
  %v4333 = vpop.f32.mrf.mxu0
  %v4334 = vadd.f32 %v3935, %v4333
  %v4335 = vpop.f32.mrf.mxu0
  %4336 = vmatprep.mubr.bf16.mxu0 0
  %4337 = vmatmul.mubr.bf16.gmra.mxu0 %v4055
  %v4338 = vpop.f32.mrf.mxu0
  %v4339 = vadd.f32 %v3935, %v4338
  %v4340 = vpop.f32.mrf.mxu0
  %v4341 = vpop.f32.mrf.mxu0
  %v4342 = vadd.f32 %v3935, %v4341
  %v4343 = vpop.f32.mrf.mxu0
  %4344 = vmatprep.mubr.bf16.mxu0 0
  %4345 = vmatmul.mubr.bf16.gmra.mxu0 %v4058
  %v4346 = vpop.f32.mrf.mxu0
  %v4347 = vadd.f32 %v3935, %v4346
  %v4348 = vpop.f32.mrf.mxu0
  %v4349 = vpop.f32.mrf.mxu0
  %v4350 = vadd.f32 %v3935, %v4349
  %v4351 = vpop.f32.mrf.mxu0
  %4352 = vdwg.mxu0
  %vm4353 = vcmp.gt.f32.partialorder %v4099, 0.0
  %vm4354 = vcmp.gt.f32.partialorder %v4102, 0.0
  %vm4355 = vcmp.gt.f32.partialorder %v4107, 0.0
  %vm4356 = vcmp.gt.f32.partialorder %v4110, 0.0
  %vm4357 = vcmp.gt.f32.partialorder %v4115, 0.0
  %vm4358 = vcmp.gt.f32.partialorder %v4118, 0.0
  %vm4359 = vcmp.gt.f32.partialorder %v4123, 0.0
  %vm4360 = vcmp.gt.f32.partialorder %v4126, 0.0
  %vm4361 = vcmp.gt.f32.partialorder %v4131, 0.0
  %vm4362 = vcmp.gt.f32.partialorder %v4134, 0.0
  %vm4363 = vcmp.gt.f32.partialorder %v4139, 0.0
  %vm4364 = vcmp.gt.f32.partialorder %v4142, 0.0
  %vm4365 = vcmp.gt.f32.partialorder %v4147, 0.0
  %vm4366 = vcmp.gt.f32.partialorder %v4150, 0.0
  %vm4367 = vcmp.gt.f32.partialorder %v4155, 0.0
  %vm4368 = vcmp.gt.f32.partialorder %v4158, 0.0
  %vm4369 = vcmp.gt.f32.partialorder %v4163, 0.0
  %vm4370 = vcmp.gt.f32.partialorder %v4166, 0.0
  %vm4371 = vcmp.gt.f32.partialorder %v4171, 0.0
  %vm4372 = vcmp.gt.f32.partialorder %v4174, 0.0
  %vm4373 = vcmp.gt.f32.partialorder %v4179, 0.0
  %vm4374 = vcmp.gt.f32.partialorder %v4182, 0.0
  %vm4375 = vcmp.gt.f32.partialorder %v4187, 0.0
  %vm4376 = vcmp.gt.f32.partialorder %v4190, 0.0
  %vm4377 = vcmp.gt.f32.partialorder %v4195, 0.0
  %vm4378 = vcmp.gt.f32.partialorder %v4198, 0.0
  %vm4379 = vcmp.gt.f32.partialorder %v4203, 0.0
  %vm4380 = vcmp.gt.f32.partialorder %v4206, 0.0
  %vm4381 = vcmp.gt.f32.partialorder %v4211, 0.0
  %vm4382 = vcmp.gt.f32.partialorder %v4214, 0.0
  %vm4383 = vcmp.gt.f32.partialorder %v4219, 0.0
  %vm4384 = vcmp.gt.f32.partialorder %v4222, 0.0
  %vm4385 = vcmp.gt.f32.partialorder %v4227, 0.0
  %vm4386 = vcmp.gt.f32.partialorder %v4230, 0.0
  %vm4387 = vcmp.gt.f32.partialorder %v4235, 0.0
  %vm4388 = vcmp.gt.f32.partialorder %v4238, 0.0
  %vm4389 = vcmp.gt.f32.partialorder %v4243, 0.0
  %vm4390 = vcmp.gt.f32.partialorder %v4246, 0.0
  %vm4391 = vcmp.gt.f32.partialorder %v4251, 0.0
  %vm4392 = vcmp.gt.f32.partialorder %v4254, 0.0
  %vm4393 = vcmp.gt.f32.partialorder %v4259, 0.0
  %vm4394 = vcmp.gt.f32.partialorder %v4262, 0.0
  %vm4395 = vcmp.gt.f32.partialorder %v4267, 0.0
  %vm4396 = vcmp.gt.f32.partialorder %v4270, 0.0
  %vm4397 = vcmp.gt.f32.partialorder %v4275, 0.0
  %vm4398 = vcmp.gt.f32.partialorder %v4278, 0.0
  %vm4399 = vcmp.gt.f32.partialorder %v4283, 0.0
  %vm4400 = vcmp.gt.f32.partialorder %v4286, 0.0
  %vm4401 = vcmp.gt.f32.partialorder %v4291, 0.0
  %vm4402 = vcmp.gt.f32.partialorder %v4294, 0.0
  %vm4403 = vcmp.gt.f32.partialorder %v4299, 0.0
  %vm4404 = vcmp.gt.f32.partialorder %v4302, 0.0
  %vm4405 = vcmp.gt.f32.partialorder %v4307, 0.0
  %vm4406 = vcmp.gt.f32.partialorder %v4310, 0.0
  %vm4407 = vcmp.gt.f32.partialorder %v4315, 0.0
  %vm4408 = vcmp.gt.f32.partialorder %v4318, 0.0
  %vm4409 = vcmp.gt.f32.partialorder %v4323, 0.0
  %vm4410 = vcmp.gt.f32.partialorder %v4326, 0.0
  %vm4411 = vcmp.gt.f32.partialorder %v4331, 0.0
  %vm4412 = vcmp.gt.f32.partialorder %v4334, 0.0
  %vm4413 = vcmp.gt.f32.partialorder %v4339, 0.0
  %vm4414 = vcmp.gt.f32.partialorder %v4342, 0.0
  %vm4415 = vcmp.gt.f32.partialorder %v4347, 0.0
  %vm4416 = vcmp.gt.f32.partialorder %v4350, 0.0
  %v4417 = vmul.f32 %v4099, 0.2
  %v4418 = vmul.f32 %v4102, 0.2
  %v4419 = vmul.f32 %v4107, 0.2
  %v4420 = vmul.f32 %v4110, 0.2
  %v4421 = vmul.f32 %v4115, 0.2
  %v4422 = vmul.f32 %v4118, 0.2
  %v4423 = vmul.f32 %v4123, 0.2
  %v4424 = vmul.f32 %v4126, 0.2
  %v4425 = vmul.f32 %v4131, 0.2
  %v4426 = vmul.f32 %v4134, 0.2
  %v4427 = vmul.f32 %v4139, 0.2
  %v4428 = vmul.f32 %v4142, 0.2
  %v4429 = vmul.f32 %v4147, 0.2
  %v4430 = vmul.f32 %v4150, 0.2
  %v4431 = vmul.f32 %v4155, 0.2
  %v4432 = vmul.f32 %v4158, 0.2
  %v4433 = vmul.f32 %v4163, 0.2
  %v4434 = vmul.f32 %v4166, 0.2
  %v4435 = vmul.f32 %v4171, 0.2
  %v4436 = vmul.f32 %v4174, 0.2
  %v4437 = vmul.f32 %v4179, 0.2
  %v4438 = vmul.f32 %v4182, 0.2
  %v4439 = vmul.f32 %v4187, 0.2
  %v4440 = vmul.f32 %v4190, 0.2
  %v4441 = vmul.f32 %v4195, 0.2
  %v4442 = vmul.f32 %v4198, 0.2
  %v4443 = vmul.f32 %v4203, 0.2
  %v4444 = vmul.f32 %v4206, 0.2
  %v4445 = vmul.f32 %v4211, 0.2
  %v4446 = vmul.f32 %v4214, 0.2
  %v4447 = vmul.f32 %v4219, 0.2
  %v4448 = vmul.f32 %v4222, 0.2
  %v4449 = vmul.f32 %v4227, 0.2
  %v4450 = vmul.f32 %v4230, 0.2
  %v4451 = vmul.f32 %v4235, 0.2
  %v4452 = vmul.f32 %v4238, 0.2
  %v4453 = vmul.f32 %v4243, 0.2
  %v4454 = vmul.f32 %v4246, 0.2
  %v4455 = vmul.f32 %v4251, 0.2
  %v4456 = vmul.f32 %v4254, 0.2
  %v4457 = vmul.f32 %v4259, 0.2
  %v4458 = vmul.f32 %v4262, 0.2
  %v4459 = vmul.f32 %v4267, 0.2
  %v4460 = vmul.f32 %v4270, 0.2
  %v4461 = vmul.f32 %v4275, 0.2
  %v4462 = vmul.f32 %v4278, 0.2
  %v4463 = vmul.f32 %v4283, 0.2
  %v4464 = vmul.f32 %v4286, 0.2
  %v4465 = vmul.f32 %v4291, 0.2
  %v4466 = vmul.f32 %v4294, 0.2
  %v4467 = vmul.f32 %v4299, 0.2
  %v4468 = vmul.f32 %v4302, 0.2
  %v4469 = vmul.f32 %v4307, 0.2
  %v4470 = vmul.f32 %v4310, 0.2
  %v4471 = vmul.f32 %v4315, 0.2
  %v4472 = vmul.f32 %v4318, 0.2
  %v4473 = vmul.f32 %v4323, 0.2
  %v4474 = vmul.f32 %v4326, 0.2
  %v4475 = vmul.f32 %v4331, 0.2
  %v4476 = vmul.f32 %v4334, 0.2
  %v4477 = vmul.f32 %v4339, 0.2
  %v4478 = vmul.f32 %v4342, 0.2
  %v4479 = vmul.f32 %v4347, 0.2
  %v4480 = vmul.f32 %v4350, 0.2
  %v4481 = vsel %vm4353, %v4099, %v4417
  %v4482 = vsel %vm4354, %v4102, %v4418
  %v4483 = vsel %vm4355, %v4107, %v4419
  %v4484 = vsel %vm4356, %v4110, %v4420
  %v4485 = vsel %vm4357, %v4115, %v4421
  %v4486 = vsel %vm4358, %v4118, %v4422
  %v4487 = vsel %vm4359, %v4123, %v4423
  %v4488 = vsel %vm4360, %v4126, %v4424
  %v4489 = vsel %vm4361, %v4131, %v4425
  %v4490 = vsel %vm4362, %v4134, %v4426
  %v4491 = vsel %vm4363, %v4139, %v4427
  %v4492 = vsel %vm4364, %v4142, %v4428
  %v4493 = vsel %vm4365, %v4147, %v4429
  %v4494 = vsel %vm4366, %v4150, %v4430
  %v4495 = vsel %vm4367, %v4155, %v4431
  %v4496 = vsel %vm4368, %v4158, %v4432
  %v4497 = vsel %vm4369, %v4163, %v4433
  %v4498 = vsel %vm4370, %v4166, %v4434
  %v4499 = vsel %vm4371, %v4171, %v4435
  %v4500 = vsel %vm4372, %v4174, %v4436
  %v4501 = vsel %vm4373, %v4179, %v4437
  %v4502 = vsel %vm4374, %v4182, %v4438
  %v4503 = vsel %vm4375, %v4187, %v4439
  %v4504 = vsel %vm4376, %v4190, %v4440
  %v4505 = vsel %vm4377, %v4195, %v4441
  %v4506 = vsel %vm4378, %v4198, %v4442
  %v4507 = vsel %vm4379, %v4203, %v4443
  %v4508 = vsel %vm4380, %v4206, %v4444
  %v4509 = vsel %vm4381, %v4211, %v4445
  %v4510 = vsel %vm4382, %v4214, %v4446
  %v4511 = vsel %vm4383, %v4219, %v4447
  %v4512 = vsel %vm4384, %v4222, %v4448
  %v4513 = vsel %vm4385, %v4227, %v4449
  %v4514 = vsel %vm4386, %v4230, %v4450
  %v4515 = vsel %vm4387, %v4235, %v4451
  %v4516 = vsel %vm4388, %v4238, %v4452
  %v4517 = vsel %vm4389, %v4243, %v4453
  %v4518 = vsel %vm4390, %v4246, %v4454
  %v4519 = vsel %vm4391, %v4251, %v4455
  %v4520 = vsel %vm4392, %v4254, %v4456
  %v4521 = vsel %vm4393, %v4259, %v4457
  %v4522 = vsel %vm4394, %v4262, %v4458
  %v4523 = vsel %vm4395, %v4267, %v4459
  %v4524 = vsel %vm4396, %v4270, %v4460
  %v4525 = vsel %vm4397, %v4275, %v4461
  %v4526 = vsel %vm4398, %v4278, %v4462
  %v4527 = vsel %vm4399, %v4283, %v4463
  %v4528 = vsel %vm4400, %v4286, %v4464
  %v4529 = vsel %vm4401, %v4291, %v4465
  %v4530 = vsel %vm4402, %v4294, %v4466
  %v4531 = vsel %vm4403, %v4299, %v4467
  %v4532 = vsel %vm4404, %v4302, %v4468
  %v4533 = vsel %vm4405, %v4307, %v4469
  %v4534 = vsel %vm4406, %v4310, %v4470
  %v4535 = vsel %vm4407, %v4315, %v4471
  %v4536 = vsel %vm4408, %v4318, %v4472
  %v4537 = vsel %vm4409, %v4323, %v4473
  %v4538 = vsel %vm4410, %v4326, %v4474
  %v4539 = vsel %vm4411, %v4331, %v4475
  %v4540 = vsel %vm4412, %v4334, %v4476
  %v4541 = vsel %vm4413, %v4339, %v4477
  %v4542 = vsel %vm4414, %v4342, %v4478
  %v4543 = vsel %vm4415, %v4347, %v4479
  %v4544 = vsel %vm4416, %v4350, %v4480
  %v4545 = vld [vmem:[%s5 + $0x1] sm:$0x1]
  %v4546 = vlaneseq
  %v4547 = vshrl.u32 %v4546, 7
  %v4548 = vsub.s32 0, %v4547
  %v4549 = vrot.slane %v4545, %v4548
  %v4550 = vmul.f32 %v4481, %v4549
  %v4551 = vmul.f32 %v4482, %v4549
  %v4552 = vmul.f32 %v4483, %v4549
  %v4553 = vmul.f32 %v4484, %v4549
  %v4554 = vmul.f32 %v4485, %v4549
  %v4555 = vmul.f32 %v4486, %v4549
  %v4556 = vmul.f32 %v4487, %v4549
  %v4557 = vmul.f32 %v4488, %v4549
  %v4558 = vmul.f32 %v4489, %v4549
  %v4559 = vmul.f32 %v4490, %v4549
  %v4560 = vmul.f32 %v4491, %v4549
  %v4561 = vmul.f32 %v4492, %v4549
  %v4562 = vmul.f32 %v4493, %v4549
  %v4563 = vmul.f32 %v4494, %v4549
  %v4564 = vmul.f32 %v4495, %v4549
  %v4565 = vmul.f32 %v4496, %v4549
  %v4566 = vmul.f32 %v4497, %v4549
  %v4567 = vmul.f32 %v4498, %v4549
  %v4568 = vmul.f32 %v4499, %v4549
  %v4569 = vmul.f32 %v4500, %v4549
  %v4570 = vmul.f32 %v4501, %v4549
  %v4571 = vmul.f32 %v4502, %v4549
  %v4572 = vmul.f32 %v4503, %v4549
  %v4573 = vmul.f32 %v4504, %v4549
  %v4574 = vmul.f32 %v4505, %v4549
  %v4575 = vmul.f32 %v4506, %v4549
  %v4576 = vmul.f32 %v4507, %v4549
  %v4577 = vmul.f32 %v4508, %v4549
  %v4578 = vmul.f32 %v4509, %v4549
  %v4579 = vmul.f32 %v4510, %v4549
  %v4580 = vmul.f32 %v4511, %v4549
  %v4581 = vmul.f32 %v4512, %v4549
  %v4582 = vmul.f32 %v4513, %v4549
  %v4583 = vmul.f32 %v4514, %v4549
  %v4584 = vmul.f32 %v4515, %v4549
  %v4585 = vmul.f32 %v4516, %v4549
  %v4586 = vmul.f32 %v4517, %v4549
  %v4587 = vmul.f32 %v4518, %v4549
  %v4588 = vmul.f32 %v4519, %v4549
  %v4589 = vmul.f32 %v4520, %v4549
  %v4590 = vmul.f32 %v4521, %v4549
  %v4591 = vmul.f32 %v4522, %v4549
  %v4592 = vmul.f32 %v4523, %v4549
  %v4593 = vmul.f32 %v4524, %v4549
  %v4594 = vmul.f32 %v4525, %v4549
  %v4595 = vmul.f32 %v4526, %v4549
  %v4596 = vmul.f32 %v4527, %v4549
  %v4597 = vmul.f32 %v4528, %v4549
  %v4598 = vmul.f32 %v4529, %v4549
  %v4599 = vmul.f32 %v4530, %v4549
  %v4600 = vmul.f32 %v4531, %v4549
  %v4601 = vmul.f32 %v4532, %v4549
  %v4602 = vmul.f32 %v4533, %v4549
  %v4603 = vmul.f32 %v4534, %v4549
  %v4604 = vmul.f32 %v4535, %v4549
  %v4605 = vmul.f32 %v4536, %v4549
  %v4606 = vmul.f32 %v4537, %v4549
  %v4607 = vmul.f32 %v4538, %v4549
  %v4608 = vmul.f32 %v4539, %v4549
  %v4609 = vmul.f32 %v4540, %v4549
  %v4610 = vmul.f32 %v4541, %v4549
  %v4611 = vmul.f32 %v4542, %v4549
  %v4612 = vmul.f32 %v4543, %v4549
  %v4613 = vmul.f32 %v4544, %v4549
  %v4614 = vld [vmem:[%s5 + $0x2] sm:$0x1]
  %v4615 = vlaneseq
  %v4616 = vshrl.u32 %v4615, 7
  %v4617 = vsub.s32 0, %v4616
  %v4618 = vrot.slane %v4614, %v4617
  %v4619 = vadd.f32 %v4550, %v4618
  %v4620 = vadd.f32 %v4551, %v4618
  %v4621 = vadd.f32 %v4552, %v4618
  %v4622 = vadd.f32 %v4553, %v4618
  %v4623 = vadd.f32 %v4554, %v4618
  %v4624 = vadd.f32 %v4555, %v4618
  %v4625 = vadd.f32 %v4556, %v4618
  %v4626 = vadd.f32 %v4557, %v4618
  %v4627 = vadd.f32 %v4558, %v4618
  %v4628 = vadd.f32 %v4559, %v4618
  %v4629 = vadd.f32 %v4560, %v4618
  %v4630 = vadd.f32 %v4561, %v4618
  %v4631 = vadd.f32 %v4562, %v4618
  %v4632 = vadd.f32 %v4563, %v4618
  %v4633 = vadd.f32 %v4564, %v4618
  %v4634 = vadd.f32 %v4565, %v4618
  %v4635 = vadd.f32 %v4566, %v4618
  %v4636 = vadd.f32 %v4567, %v4618
  %v4637 = vadd.f32 %v4568, %v4618
  %v4638 = vadd.f32 %v4569, %v4618
  %v4639 = vadd.f32 %v4570, %v4618
  %v4640 = vadd.f32 %v4571, %v4618
  %v4641 = vadd.f32 %v4572, %v4618
  %v4642 = vadd.f32 %v4573, %v4618
  %v4643 = vadd.f32 %v4574, %v4618
  %v4644 = vadd.f32 %v4575, %v4618
  %v4645 = vadd.f32 %v4576, %v4618
  %v4646 = vadd.f32 %v4577, %v4618
  %v4647 = vadd.f32 %v4578, %v4618
  %v4648 = vadd.f32 %v4579, %v4618
  %v4649 = vadd.f32 %v4580, %v4618
  %v4650 = vadd.f32 %v4581, %v4618
  %v4651 = vadd.f32 %v4582, %v4618
  %v4652 = vadd.f32 %v4583, %v4618
  %v4653 = vadd.f32 %v4584, %v4618
  %v4654 = vadd.f32 %v4585, %v4618
  %v4655 = vadd.f32 %v4586, %v4618
  %v4656 = vadd.f32 %v4587, %v4618
  %v4657 = vadd.f32 %v4588, %v4618
  %v4658 = vadd.f32 %v4589, %v4618
  %v4659 = vadd.f32 %v4590, %v4618
  %v4660 = vadd.f32 %v4591, %v4618
  %v4661 = vadd.f32 %v4592, %v4618
  %v4662 = vadd.f32 %v4593, %v4618
  %v4663 = vadd.f32 %v4594, %v4618
  %v4664 = vadd.f32 %v4595, %v4618
  %v4665 = vadd.f32 %v4596, %v4618
  %v4666 = vadd.f32 %v4597, %v4618
  %v4667 = vadd.f32 %v4598, %v4618
  %v4668 = vadd.f32 %v4599, %v4618
  %v4669 = vadd.f32 %v4600, %v4618
  %v4670 = vadd.f32 %v4601, %v4618
  %v4671 = vadd.f32 %v4602, %v4618
  %v4672 = vadd.f32 %v4603, %v4618
  %v4673 = vadd.f32 %v4604, %v4618
  %v4674 = vadd.f32 %v4605, %v4618
  %v4675 = vadd.f32 %v4606, %v4618
  %v4676 = vadd.f32 %v4607, %v4618
  %v4677 = vadd.f32 %v4608, %v4618
  %v4678 = vadd.f32 %v4609, %v4618
  %v4679 = vadd.f32 %v4610, %v4618
  %v4680 = vadd.f32 %v4611, %v4618
  %v4681 = vadd.f32 %v4612, %v4618
  %v4682 = vadd.f32 %v4613, %v4618
  %vm4683 = vcmask 130048
  %4684 = vst.msk [vmem:[#allocation6] sm:$0xff] %vm4683, 0.0
  %4685 = vst.msk [vmem:[#allocation6 + $0x8] sm:$0xff] %vm4683, 0.0
  %4686 = vst.msk [vmem:[#allocation6 + $0x10] sm:$0xff] %vm4683, 0.0
  %vm4687 = vcmask 122880
  %4688 = vst.msk [vmem:[#allocation6 + $0x18] sm:$0x1] %vm4687, 0.0
  %4689 = vst.msk [vmem:[#allocation6 + $0x240] sm:$0xff] %vm4683, 0.0
  %4690 = vst.msk [vmem:[#allocation6 + $0x248] sm:$0xff] %vm4683, 0.0
  %4691 = vst.msk [vmem:[#allocation6 + $0x250] sm:$0xff] %vm4683, 0.0
  %4692 = vst.msk [vmem:[#allocation6 + $0x258] sm:$0x1] %vm4687, 0.0
  %4693 = vst.msk [vmem:[#allocation6 + $0x7] sm:$0x1] %vm4687, 0.0
  %4694 = vst.msk [vmem:[#allocation6 + $0x27] sm:$0x1] %vm4687, 0.0
  %4695 = vst.msk [vmem:[#allocation6 + $0x47] sm:$0x1] %vm4687, 0.0
  %4696 = vst.msk [vmem:[#allocation6 + $0x67] sm:$0x1] %vm4687, 0.0
  %4697 = vst.msk [vmem:[#allocation6 + $0x87] sm:$0x1] %vm4687, 0.0
  %4698 = vst.msk [vmem:[#allocation6 + $0xa7] sm:$0x1] %vm4687, 0.0
  %4699 = vst.msk [vmem:[#allocation6 + $0xc7] sm:$0x1] %vm4687, 0.0
  %4700 = vst.msk [vmem:[#allocation6 + $0xe7] sm:$0x1] %vm4687, 0.0
  %4701 = vst.msk [vmem:[#allocation6 + $0x107] sm:$0x1] %vm4687, 0.0
  %4702 = vst.msk [vmem:[#allocation6 + $0x127] sm:$0x1] %vm4687, 0.0
  %4703 = vst.msk [vmem:[#allocation6 + $0x147] sm:$0x1] %vm4687, 0.0
  %4704 = vst.msk [vmem:[#allocation6 + $0x167] sm:$0x1] %vm4687, 0.0
  %4705 = vst.msk [vmem:[#allocation6 + $0x187] sm:$0x1] %vm4687, 0.0
  %4706 = vst.msk [vmem:[#allocation6 + $0x1a7] sm:$0x1] %vm4687, 0.0
  %4707 = vst.msk [vmem:[#allocation6 + $0x1c7] sm:$0x1] %vm4687, 0.0
  %4708 = vst.msk [vmem:[#allocation6 + $0x1e7] sm:$0x1] %vm4687, 0.0
  %4709 = vst.msk [vmem:[#allocation6 + $0x207] sm:$0x1] %vm4687, 0.0
  %4710 = vst.msk [vmem:[#allocation6 + $0x227] sm:$0x1] %vm4687, 0.0
  %4711 = vst.msk [vmem:[#allocation6 + $0x247] sm:$0x1] %vm4687, 0.0
  %4712 = vst.msk [vmem:[#allocation6 + $0x267] sm:$0x1] %vm4687, 0.0
  %4713 = vst.msk [vmem:[#allocation6 + $0x287] sm:$0x1] %vm4687, 0.0
  %4714 = vst.msk [vmem:[#allocation6 + $0x2a7] sm:$0x1] %vm4687, 0.0
  %4715 = vst.msk [vmem:[#allocation6 + $0x2c7] sm:$0x1] %vm4687, 0.0
  %4716 = vst.msk [vmem:[#allocation6 + $0x2e7] sm:$0x1] %vm4687, 0.0
  %4717 = vst.msk [vmem:[#allocation6 + $0x307] sm:$0x1] %vm4687, 0.0
  %4718 = vst.msk [vmem:[#allocation6 + $0x327] sm:$0x1] %vm4687, 0.0
  %4719 = vst.msk [vmem:[#allocation6 + $0x347] sm:$0x1] %vm4687, 0.0
  %4720 = vst.msk [vmem:[#allocation6 + $0x367] sm:$0x1] %vm4687, 0.0
  %4721 = vst.msk [vmem:[#allocation6 + $0x387] sm:$0x1] %vm4687, 0.0
  %4722 = vst.msk [vmem:[#allocation6 + $0x3a7] sm:$0x1] %vm4687, 0.0
  %4723 = vst.msk [vmem:[#allocation6 + $0x3c7] sm:$0x1] %vm4687, 0.0
  %4724 = vst.msk [vmem:[#allocation6 + $0x3e7] sm:$0x1] %vm4687, 0.0
  %4725 = vst.msk [vmem:[#allocation6 + $0x407] sm:$0x1] %vm4687, 0.0
  %4726 = vst.msk [vmem:[#allocation6 + $0x427] sm:$0x1] %vm4687, 0.0
  %4727 = vst.msk [vmem:[#allocation6 + $0x447] sm:$0x1] %vm4687, 0.0
  %4728 = vst.msk [vmem:[#allocation6 + $0x467] sm:$0x1] %vm4687, 0.0
  %s4729 = scalar_lea.vmem [#allocation6], 32
  %4730 = vst.msk [vmem:[%s4729 + $0x8] sm:$0xff] %vm4683, %v4619
  %4731 = vst.msk [vmem:[%s4729 + $0x10] sm:$0xff] %vm4683, %v4620
  %4732 = vst.msk [vmem:[%s4729 + $0x28] sm:$0xff] %vm4683, %v4621
  %4733 = vst.msk [vmem:[%s4729 + $0x30] sm:$0xff] %vm4683, %v4622
  %4734 = vst.msk [vmem:[%s4729 + $0x48] sm:$0xff] %vm4683, %v4623
  %4735 = vst.msk [vmem:[%s4729 + $0x50] sm:$0xff] %vm4683, %v4624
  %4736 = vst.msk [vmem:[%s4729 + $0x68] sm:$0xff] %vm4683, %v4625
  %4737 = vst.msk [vmem:[%s4729 + $0x70] sm:$0xff] %vm4683, %v4626
  %4738 = vst.msk [vmem:[%s4729 + $0x88] sm:$0xff] %vm4683, %v4627
  %4739 = vst.msk [vmem:[%s4729 + $0x90] sm:$0xff] %vm4683, %v4628
  %4740 = vst.msk [vmem:[%s4729 + $0xa8] sm:$0xff] %vm4683, %v4629
  %4741 = vst.msk [vmem:[%s4729 + $0xb0] sm:$0xff] %vm4683, %v4630
  %4742 = vst.msk [vmem:[%s4729 + $0xc8] sm:$0xff] %vm4683, %v4631
  %4743 = vst.msk [vmem:[%s4729 + $0xd0] sm:$0xff] %vm4683, %v4632
  %4744 = vst.msk [vmem:[%s4729 + $0xe8] sm:$0xff] %vm4683, %v4633
  %4745 = vst.msk [vmem:[%s4729 + $0xf0] sm:$0xff] %vm4683, %v4634
  %4746 = vst.msk [vmem:[%s4729 + $0x108] sm:$0xff] %vm4683, %v4635
  %4747 = vst.msk [vmem:[%s4729 + $0x110] sm:$0xff] %vm4683, %v4636
  %4748 = vst.msk [vmem:[%s4729 + $0x128] sm:$0xff] %vm4683, %v4637
  %4749 = vst.msk [vmem:[%s4729 + $0x130] sm:$0xff] %vm4683, %v4638
  %4750 = vst.msk [vmem:[%s4729 + $0x148] sm:$0xff] %vm4683, %v4639
  %4751 = vst.msk [vmem:[%s4729 + $0x150] sm:$0xff] %vm4683, %v4640
  %4752 = vst.msk [vmem:[%s4729 + $0x168] sm:$0xff] %vm4683, %v4641
  %4753 = vst.msk [vmem:[%s4729 + $0x170] sm:$0xff] %vm4683, %v4642
  %4754 = vst.msk [vmem:[%s4729 + $0x188] sm:$0xff] %vm4683, %v4643
  %4755 = vst.msk [vmem:[%s4729 + $0x190] sm:$0xff] %vm4683, %v4644
  %4756 = vst.msk [vmem:[%s4729 + $0x1a8] sm:$0xff] %vm4683, %v4645
  %4757 = vst.msk [vmem:[%s4729 + $0x1b0] sm:$0xff] %vm4683, %v4646
  %4758 = vst.msk [vmem:[%s4729 + $0x1c8] sm:$0xff] %vm4683, %v4647
  %4759 = vst.msk [vmem:[%s4729 + $0x1d0] sm:$0xff] %vm4683, %v4648
  %4760 = vst.msk [vmem:[%s4729 + $0x1e8] sm:$0xff] %vm4683, %v4649
  %4761 = vst.msk [vmem:[%s4729 + $0x1f0] sm:$0xff] %vm4683, %v4650
  %4762 = vst.msk [vmem:[%s4729 + $0x248] sm:$0xff] %vm4683, %v4651
  %4763 = vst.msk [vmem:[%s4729 + $0x250] sm:$0xff] %vm4683, %v4652
  %4764 = vst.msk [vmem:[%s4729 + $0x268] sm:$0xff] %vm4683, %v4653
  %4765 = vst.msk [vmem:[%s4729 + $0x270] sm:$0xff] %vm4683, %v4654
  %4766 = vst.msk [vmem:[%s4729 + $0x288] sm:$0xff] %vm4683, %v4655
  %4767 = vst.msk [vmem:[%s4729 + $0x290] sm:$0xff] %vm4683, %v4656
  %4768 = vst.msk [vmem:[%s4729 + $0x2a8] sm:$0xff] %vm4683, %v4657
  %4769 = vst.msk [vmem:[%s4729 + $0x2b0] sm:$0xff] %vm4683, %v4658
  %4770 = vst.msk [vmem:[%s4729 + $0x2c8] sm:$0xff] %vm4683, %v4659
  %4771 = vst.msk [vmem:[%s4729 + $0x2d0] sm:$0xff] %vm4683, %v4660
  %4772 = vst.msk [vmem:[%s4729 + $0x2e8] sm:$0xff] %vm4683, %v4661
  %4773 = vst.msk [vmem:[%s4729 + $0x2f0] sm:$0xff] %vm4683, %v4662
  %4774 = vst.msk [vmem:[%s4729 + $0x308] sm:$0xff] %vm4683, %v4663
  %4775 = vst.msk [vmem:[%s4729 + $0x310] sm:$0xff] %vm4683, %v4664
  %4776 = vst.msk [vmem:[%s4729 + $0x328] sm:$0xff] %vm4683, %v4665
  %4777 = vst.msk [vmem:[%s4729 + $0x330] sm:$0xff] %vm4683, %v4666
  %4778 = vst.msk [vmem:[%s4729 + $0x348] sm:$0xff] %vm4683, %v4667
  %4779 = vst.msk [vmem:[%s4729 + $0x350] sm:$0xff] %vm4683, %v4668
  %4780 = vst.msk [vmem:[%s4729 + $0x368] sm:$0xff] %vm4683, %v4669
  %4781 = vst.msk [vmem:[%s4729 + $0x370] sm:$0xff] %vm4683, %v4670
  %4782 = vst.msk [vmem:[%s4729 + $0x388] sm:$0xff] %vm4683, %v4671
  %4783 = vst.msk [vmem:[%s4729 + $0x390] sm:$0xff] %vm4683, %v4672
  %4784 = vst.msk [vmem:[%s4729 + $0x3a8] sm:$0xff] %vm4683, %v4673
  %4785 = vst.msk [vmem:[%s4729 + $0x3b0] sm:$0xff] %vm4683, %v4674
  %4786 = vst.msk [vmem:[%s4729 + $0x3c8] sm:$0xff] %vm4683, %v4675
  %4787 = vst.msk [vmem:[%s4729 + $0x3d0] sm:$0xff] %vm4683, %v4676
  %4788 = vst.msk [vmem:[%s4729 + $0x3e8] sm:$0xff] %vm4683, %v4677
  %4789 = vst.msk [vmem:[%s4729 + $0x3f0] sm:$0xff] %vm4683, %v4678
  %4790 = vst.msk [vmem:[%s4729 + $0x408] sm:$0xff] %vm4683, %v4679
  %4791 = vst.msk [vmem:[%s4729 + $0x410] sm:$0xff] %vm4683, %v4680
  %4792 = vst.msk [vmem:[%s4729 + $0x428] sm:$0xff] %vm4683, %v4681
  %4793 = vst.msk [vmem:[%s4729 + $0x430] sm:$0xff] %vm4683, %v4682
  %s4794 = scalar_lea.vmem [#allocation6], 7
  %v4795 = vld [vmem:[%s4794] ss:$2 sm:$0xff]
  %s4796 = scalar_lea.vmem [#allocation6], 71
  %v4797 = vld [vmem:[%s4796] ss:$2 sm:$0xff]
  %s4798 = scalar_lea.vmem [#allocation6], 135
  %v4799 = vld [vmem:[%s4798] ss:$2 sm:$0xff]
  %s4800 = scalar_lea.vmem [#allocation6], 199
  %v4801 = vld [vmem:[%s4800] ss:$2 sm:$0xff]
  %s4802 = scalar_lea.vmem [#allocation6], 263
  %v4803 = vld [vmem:[%s4802] ss:$2 sm:$0xff]
  %s4804 = scalar_lea.vmem [#allocation6], 327
  %v4805 = vld [vmem:[%s4804] ss:$2 sm:$0xff]
  %s4806 = scalar_lea.vmem [#allocation6], 391
  %v4807 = vld [vmem:[%s4806] ss:$2 sm:$0xff]
  %s4808 = scalar_lea.vmem [#allocation6], 455
  %v4809 = vld [vmem:[%s4808] ss:$2 sm:$0xff]
  %s4810 = scalar_lea.vmem [#allocation6], 583
  %v4811 = vld [vmem:[%s4810] ss:$2 sm:$0xff]
  %s4812 = scalar_lea.vmem [#allocation6], 647
  %v4813 = vld [vmem:[%s4812] ss:$2 sm:$0xff]
  %s4814 = scalar_lea.vmem [#allocation6], 711
  %v4815 = vld [vmem:[%s4814] ss:$2 sm:$0xff]
  %s4816 = scalar_lea.vmem [#allocation6], 775
  %v4817 = vld [vmem:[%s4816] ss:$2 sm:$0xff]
  %s4818 = scalar_lea.vmem [#allocation6], 839
  %v4819 = vld [vmem:[%s4818] ss:$2 sm:$0xff]
  %s4820 = scalar_lea.vmem [#allocation6], 903
  %v4821 = vld [vmem:[%s4820] ss:$2 sm:$0xff]
  %s4822 = scalar_lea.vmem [#allocation6], 967
  %v4823 = vld [vmem:[%s4822] ss:$2 sm:$0xff]
  %s4824 = scalar_lea.vmem [#allocation6], 1031
  %v4825 = vld [vmem:[%s4824] ss:$2 sm:$0xff]
  %4826 = vst.msk [vmem:[#allocation3] sm:$0xff] %vm4683, %v4795
  %4827 = vst.msk [vmem:[#allocation3 + $0x10] sm:$0xff] %vm4683, %v4797
  %4828 = vst.msk [vmem:[#allocation3 + $0x20] sm:$0xff] %vm4683, %v4799
  %4829 = vst.msk [vmem:[#allocation3 + $0x30] sm:$0xff] %vm4683, %v4801
  %4830 = vst.msk [vmem:[#allocation3 + $0x40] sm:$0xff] %vm4683, %v4803
  %4831 = vst.msk [vmem:[#allocation3 + $0x50] sm:$0xff] %vm4683, %v4805
  %4832 = vst.msk [vmem:[#allocation3 + $0x60] sm:$0xff] %vm4683, %v4807
  %4833 = vst.msk [vmem:[#allocation3 + $0x70] sm:$0xff] %vm4683, %v4809
  %4834 = vst.msk [vmem:[#allocation3 + $0x80] sm:$0xff] %vm4683, %v4811
  %4835 = vst.msk [vmem:[#allocation3 + $0x90] sm:$0xff] %vm4683, %v4813
  %4836 = vst.msk [vmem:[#allocation3 + $0xa0] sm:$0xff] %vm4683, %v4815
  %4837 = vst.msk [vmem:[#allocation3 + $0xb0] sm:$0xff] %vm4683, %v4817
  %4838 = vst.msk [vmem:[#allocation3 + $0xc0] sm:$0xff] %vm4683, %v4819
  %4839 = vst.msk [vmem:[#allocation3 + $0xd0] sm:$0xff] %vm4683, %v4821
  %4840 = vst.msk [vmem:[#allocation3 + $0xe0] sm:$0xff] %vm4683, %v4823
  %4841 = vst.msk [vmem:[#allocation3 + $0xf0] sm:$0xff] %vm4683, %v4825
  %s4842 = scalar_lea.vmem [#allocation6], 8
  %v4843 = vld [vmem:[%s4842] ss:$2 sm:$0xff]
  %s4844 = scalar_lea.vmem [#allocation6], 72
  %v4845 = vld [vmem:[%s4844] ss:$2 sm:$0xff]
  %s4846 = scalar_lea.vmem [#allocation6], 136
  %v4847 = vld [vmem:[%s4846] ss:$2 sm:$0xff]
  %s4848 = scalar_lea.vmem [#allocation6], 200
  %v4849 = vld [vmem:[%s4848] ss:$2 sm:$0xff]
  %s4850 = scalar_lea.vmem [#allocation6], 264
  %v4851 = vld [vmem:[%s4850] ss:$2 sm:$0xff]
  %s4852 = scalar_lea.vmem [#allocation6], 328
  %v4853 = vld [vmem:[%s4852] ss:$2 sm:$0xff]
  %s4854 = scalar_lea.vmem [#allocation6], 392
  %v4855 = vld [vmem:[%s4854] ss:$2 sm:$0xff]
  %s4856 = scalar_lea.vmem [#allocation6], 456
  %v4857 = vld [vmem:[%s4856] ss:$2 sm:$0xff]
  %s4858 = scalar_lea.vmem [#allocation6], 584
  %v4859 = vld [vmem:[%s4858] ss:$2 sm:$0xff]
  %s4860 = scalar_lea.vmem [#allocation6], 648
  %v4861 = vld [vmem:[%s4860] ss:$2 sm:$0xff]
  %s4862 = scalar_lea.vmem [#allocation6], 712
  %v4863 = vld [vmem:[%s4862] ss:$2 sm:$0xff]
  %s4864 = scalar_lea.vmem [#allocation6], 776
  %v4865 = vld [vmem:[%s4864] ss:$2 sm:$0xff]
  %s4866 = scalar_lea.vmem [#allocation6], 840
  %v4867 = vld [vmem:[%s4866] ss:$2 sm:$0xff]
  %s4868 = scalar_lea.vmem [#allocation6], 904
  %v4869 = vld [vmem:[%s4868] ss:$2 sm:$0xff]
  %s4870 = scalar_lea.vmem [#allocation6], 968
  %v4871 = vld [vmem:[%s4870] ss:$2 sm:$0xff]
  %s4872 = scalar_lea.vmem [#allocation6], 1032
  %v4873 = vld [vmem:[%s4872] ss:$2 sm:$0xff]
  %4890 = vrot.lane.b32.xlu0 %v4843, 16
  %v4891 = vpop.permute.xlu0 %4890
  %4892 = vrot.lane.b32.xlu0 %v4845, 16
  %v4893 = vpop.permute.xlu0 %4892
  %4894 = vrot.lane.b32.xlu0 %v4847, 16
  %v4895 = vpop.permute.xlu0 %4894
  %4896 = vrot.lane.b32.xlu0 %v4849, 16
  %v4897 = vpop.permute.xlu0 %4896
  %4898 = vrot.lane.b32.xlu0 %v4851, 16
  %v4899 = vpop.permute.xlu0 %4898
  %4900 = vrot.lane.b32.xlu0 %v4853, 16
  %v4901 = vpop.permute.xlu0 %4900
  %4902 = vrot.lane.b32.xlu0 %v4855, 16
  %v4903 = vpop.permute.xlu0 %4902
  %4904 = vrot.lane.b32.xlu0 %v4857, 16
  %v4905 = vpop.permute.xlu0 %4904
  %4906 = vrot.lane.b32.xlu0 %v4859, 16
  %v4907 = vpop.permute.xlu0 %4906
  %4908 = vrot.lane.b32.xlu0 %v4861, 16
  %v4909 = vpop.permute.xlu0 %4908
  %4910 = vrot.lane.b32.xlu0 %v4863, 16
  %v4911 = vpop.permute.xlu0 %4910
  %4912 = vrot.lane.b32.xlu0 %v4865, 16
  %v4913 = vpop.permute.xlu0 %4912
  %4914 = vrot.lane.b32.xlu0 %v4867, 16
  %v4915 = vpop.permute.xlu0 %4914
  %4916 = vrot.lane.b32.xlu0 %v4869, 16
  %v4917 = vpop.permute.xlu0 %4916
  %4918 = vrot.lane.b32.xlu0 %v4871, 16
  %v4919 = vpop.permute.xlu0 %4918
  %4920 = vrot.lane.b32.xlu0 %v4873, 16
  %v4921 = vpop.permute.xlu0 %4920
  %vm4938 = vcmask 261248
  %4939 = vst.msk [vmem:[#allocation3] sm:$0xff] %vm4938, %v4891
  %4940 = vst.msk [vmem:[#allocation3 + $0x10] sm:$0xff] %vm4938, %v4893
  %4941 = vst.msk [vmem:[#allocation3 + $0x20] sm:$0xff] %vm4938, %v4895
  %4942 = vst.msk [vmem:[#allocation3 + $0x30] sm:$0xff] %vm4938, %v4897
  %4943 = vst.msk [vmem:[#allocation3 + $0x40] sm:$0xff] %vm4938, %v4899
  %4944 = vst.msk [vmem:[#allocation3 + $0x50] sm:$0xff] %vm4938, %v4901
  %4945 = vst.msk [vmem:[#allocation3 + $0x60] sm:$0xff] %vm4938, %v4903
  %4946 = vst.msk [vmem:[#allocation3 + $0x70] sm:$0xff] %vm4938, %v4905
  %4947 = vst.msk [vmem:[#allocation3 + $0x80] sm:$0xff] %vm4938, %v4907
  %4948 = vst.msk [vmem:[#allocation3 + $0x90] sm:$0xff] %vm4938, %v4909
  %4949 = vst.msk [vmem:[#allocation3 + $0xa0] sm:$0xff] %vm4938, %v4911
  %4950 = vst.msk [vmem:[#allocation3 + $0xb0] sm:$0xff] %vm4938, %v4913
  %4951 = vst.msk [vmem:[#allocation3 + $0xc0] sm:$0xff] %vm4938, %v4915
  %4952 = vst.msk [vmem:[#allocation3 + $0xd0] sm:$0xff] %vm4938, %v4917
  %4953 = vst.msk [vmem:[#allocation3 + $0xe0] sm:$0xff] %vm4938, %v4919
  %4954 = vst.msk [vmem:[#allocation3 + $0xf0] sm:$0xff] %vm4938, %v4921
  %s4955 = scalar_lea.vmem [#allocation6], 9
  %v4956 = vld [vmem:[%s4955] ss:$2 sm:$0xff]
  %s4957 = scalar_lea.vmem [#allocation6], 73
  %v4958 = vld [vmem:[%s4957] ss:$2 sm:$0xff]
  %s4959 = scalar_lea.vmem [#allocation6], 137
  %v4960 = vld [vmem:[%s4959] ss:$2 sm:$0xff]
  %s4961 = scalar_lea.vmem [#allocation6], 201
  %v4962 = vld [vmem:[%s4961] ss:$2 sm:$0xff]
  %s4963 = scalar_lea.vmem [#allocation6], 265
  %v4964 = vld [vmem:[%s4963] ss:$2 sm:$0xff]
  %s4965 = scalar_lea.vmem [#allocation6], 329
  %v4966 = vld [vmem:[%s4965] ss:$2 sm:$0xff]
  %s4967 = scalar_lea.vmem [#allocation6], 393
  %v4968 = vld [vmem:[%s4967] ss:$2 sm:$0xff]
  %s4969 = scalar_lea.vmem [#allocation6], 457
  %v4970 = vld [vmem:[%s4969] ss:$2 sm:$0xff]
  %s4971 = scalar_lea.vmem [#allocation6], 585
  %v4972 = vld [vmem:[%s4971] ss:$2 sm:$0xff]
  %s4973 = scalar_lea.vmem [#allocation6], 649
  %v4974 = vld [vmem:[%s4973] ss:$2 sm:$0xff]
  %s4975 = scalar_lea.vmem [#allocation6], 713
  %v4976 = vld [vmem:[%s4975] ss:$2 sm:$0xff]
  %s4977 = scalar_lea.vmem [#allocation6], 777
  %v4978 = vld [vmem:[%s4977] ss:$2 sm:$0xff]
  %s4979 = scalar_lea.vmem [#allocation6], 841
  %v4980 = vld [vmem:[%s4979] ss:$2 sm:$0xff]
  %s4981 = scalar_lea.vmem [#allocation6], 905
  %v4982 = vld [vmem:[%s4981] ss:$2 sm:$0xff]
  %s4983 = scalar_lea.vmem [#allocation6], 969
  %v4984 = vld [vmem:[%s4983] ss:$2 sm:$0xff]
  %s4985 = scalar_lea.vmem [#allocation6], 1033
  %v4986 = vld [vmem:[%s4985] ss:$2 sm:$0xff]
  %5003 = vrot.lane.b32.xlu0 %v4956, 32
  %v5004 = vpop.permute.xlu0 %5003
  %5005 = vrot.lane.b32.xlu0 %v4958, 32
  %v5006 = vpop.permute.xlu0 %5005
  %5007 = vrot.lane.b32.xlu0 %v4960, 32
  %v5008 = vpop.permute.xlu0 %5007
  %5009 = vrot.lane.b32.xlu0 %v4962, 32
  %v5010 = vpop.permute.xlu0 %5009
  %5011 = vrot.lane.b32.xlu0 %v4964, 32
  %v5012 = vpop.permute.xlu0 %5011
  %5013 = vrot.lane.b32.xlu0 %v4966, 32
  %v5014 = vpop.permute.xlu0 %5013
  %5015 = vrot.lane.b32.xlu0 %v4968, 32
  %v5016 = vpop.permute.xlu0 %5015
  %5017 = vrot.lane.b32.xlu0 %v4970, 32
  %v5018 = vpop.permute.xlu0 %5017
  %5019 = vrot.lane.b32.xlu0 %v4972, 32
  %v5020 = vpop.permute.xlu0 %5019
  %5021 = vrot.lane.b32.xlu0 %v4974, 32
  %v5022 = vpop.permute.xlu0 %5021
  %5023 = vrot.lane.b32.xlu0 %v4976, 32
  %v5024 = vpop.permute.xlu0 %5023
  %5025 = vrot.lane.b32.xlu0 %v4978, 32
  %v5026 = vpop.permute.xlu0 %5025
  %5027 = vrot.lane.b32.xlu0 %v4980, 32
  %v5028 = vpop.permute.xlu0 %5027
  %5029 = vrot.lane.b32.xlu0 %v4982, 32
  %v5030 = vpop.permute.xlu0 %5029
  %5031 = vrot.lane.b32.xlu0 %v4984, 32
  %v5032 = vpop.permute.xlu0 %5031
  %5033 = vrot.lane.b32.xlu0 %v4986, 32
  %v5034 = vpop.permute.xlu0 %5033
  %vm5051 = vcmask 392448
  %5052 = vst.msk [vmem:[#allocation3] sm:$0xff] %vm5051, %v5004
  %5053 = vst.msk [vmem:[#allocation3 + $0x10] sm:$0xff] %vm5051, %v5006
  %5054 = vst.msk [vmem:[#allocation3 + $0x20] sm:$0xff] %vm5051, %v5008
  %5055 = vst.msk [vmem:[#allocation3 + $0x30] sm:$0xff] %vm5051, %v5010
  %5056 = vst.msk [vmem:[#allocation3 + $0x40] sm:$0xff] %vm5051, %v5012
  %5057 = vst.msk [vmem:[#allocation3 + $0x50] sm:$0xff] %vm5051, %v5014
  %5058 = vst.msk [vmem:[#allocation3 + $0x60] sm:$0xff] %vm5051, %v5016
  %5059 = vst.msk [vmem:[#allocation3 + $0x70] sm:$0xff] %vm5051, %v5018
  %5060 = vst.msk [vmem:[#allocation3 + $0x80] sm:$0xff] %vm5051, %v5020
  %5061 = vst.msk [vmem:[#allocation3 + $0x90] sm:$0xff] %vm5051, %v5022
  %5062 = vst.msk [vmem:[#allocation3 + $0xa0] sm:$0xff] %vm5051, %v5024
  %5063 = vst.msk [vmem:[#allocation3 + $0xb0] sm:$0xff] %vm5051, %v5026
  %5064 = vst.msk [vmem:[#allocation3 + $0xc0] sm:$0xff] %vm5051, %v5028
  %5065 = vst.msk [vmem:[#allocation3 + $0xd0] sm:$0xff] %vm5051, %v5030
  %5066 = vst.msk [vmem:[#allocation3 + $0xe0] sm:$0xff] %vm5051, %v5032
  %5067 = vst.msk [vmem:[#allocation3 + $0xf0] sm:$0xff] %vm5051, %v5034
  %s5068 = scalar_lea.vmem %s4729, 7 [#allocation6]
  %v5069 = vld [vmem:[%s5068] ss:$2 sm:$0xff]
  %s5070 = scalar_lea.vmem %s4729, 71 [#allocation6]
  %v5071 = vld [vmem:[%s5070] ss:$2 sm:$0xff]
  %s5072 = scalar_lea.vmem %s4729, 135 [#allocation6]
  %v5073 = vld [vmem:[%s5072] ss:$2 sm:$0xff]
  %s5074 = scalar_lea.vmem %s4729, 199 [#allocation6]
  %v5075 = vld [vmem:[%s5074] ss:$2 sm:$0xff]
  %s5076 = scalar_lea.vmem %s4729, 263 [#allocation6]
  %v5077 = vld [vmem:[%s5076] ss:$2 sm:$0xff]
  %s5078 = scalar_lea.vmem %s4729, 327 [#allocation6]
  %v5079 = vld [vmem:[%s5078] ss:$2 sm:$0xff]
  %s5080 = scalar_lea.vmem %s4729, 391 [#allocation6]
  %v5081 = vld [vmem:[%s5080] ss:$2 sm:$0xff]
  %s5082 = scalar_lea.vmem %s4729, 455 [#allocation6]
  %v5083 = vld [vmem:[%s5082] ss:$2 sm:$0xff]
  %s5084 = scalar_lea.vmem %s4729, 583 [#allocation6]
  %v5085 = vld [vmem:[%s5084] ss:$2 sm:$0xff]
  %s5086 = scalar_lea.vmem %s4729, 647 [#allocation6]
  %v5087 = vld [vmem:[%s5086] ss:$2 sm:$0xff]
  %s5088 = scalar_lea.vmem %s4729, 711 [#allocation6]
  %v5089 = vld [vmem:[%s5088] ss:$2 sm:$0xff]
  %s5090 = scalar_lea.vmem %s4729, 775 [#allocation6]
  %v5091 = vld [vmem:[%s5090] ss:$2 sm:$0xff]
  %s5092 = scalar_lea.vmem %s4729, 839 [#allocation6]
  %v5093 = vld [vmem:[%s5092] ss:$2 sm:$0xff]
  %s5094 = scalar_lea.vmem %s4729, 903 [#allocation6]
  %v5095 = vld [vmem:[%s5094] ss:$2 sm:$0xff]
  %s5096 = scalar_lea.vmem %s4729, 967 [#allocation6]
  %v5097 = vld [vmem:[%s5096] ss:$2 sm:$0xff]
  %s5098 = scalar_lea.vmem %s4729, 1031 [#allocation6]
  %v5099 = vld [vmem:[%s5098] ss:$2 sm:$0xff]
  %5116 = vrot.lane.b32.xlu0 %v5069, 48
  %v5117 = vpop.permute.xlu0 %5116
  %5118 = vrot.lane.b32.xlu0 %v5071, 48
  %v5119 = vpop.permute.xlu0 %5118
  %5120 = vrot.lane.b32.xlu0 %v5073, 48
  %v5121 = vpop.permute.xlu0 %5120
  %5122 = vrot.lane.b32.xlu0 %v5075, 48
  %v5123 = vpop.permute.xlu0 %5122
  %5124 = vrot.lane.b32.xlu0 %v5077, 48
  %v5125 = vpop.permute.xlu0 %5124
  %5126 = vrot.lane.b32.xlu0 %v5079, 48
  %v5127 = vpop.permute.xlu0 %5126
  %5128 = vrot.lane.b32.xlu0 %v5081, 48
  %v5129 = vpop.permute.xlu0 %5128
  %5130 = vrot.lane.b32.xlu0 %v5083, 48
  %v5131 = vpop.permute.xlu0 %5130
  %5132 = vrot.lane.b32.xlu0 %v5085, 48
  %v5133 = vpop.permute.xlu0 %5132
  %5134 = vrot.lane.b32.xlu0 %v5087, 48
  %v5135 = vpop.permute.xlu0 %5134
  %5136 = vrot.lane.b32.xlu0 %v5089, 48
  %v5137 = vpop.permute.xlu0 %5136
  %5138 = vrot.lane.b32.xlu0 %v5091, 48
  %v5139 = vpop.permute.xlu0 %5138
  %5140 = vrot.lane.b32.xlu0 %v5093, 48
  %v5141 = vpop.permute.xlu0 %5140
  %5142 = vrot.lane.b32.xlu0 %v5095, 48
  %v5143 = vpop.permute.xlu0 %5142
  %5144 = vrot.lane.b32.xlu0 %v5097, 48
  %v5145 = vpop.permute.xlu0 %5144
  %5146 = vrot.lane.b32.xlu0 %v5099, 48
  %v5147 = vpop.permute.xlu0 %5146
  %vm5164 = vcmask 523648
  %5165 = vst.msk [vmem:[#allocation3] sm:$0xff] %vm5164, %v5117
  %5166 = vst.msk [vmem:[#allocation3 + $0x10] sm:$0xff] %vm5164, %v5119
  %5167 = vst.msk [vmem:[#allocation3 + $0x20] sm:$0xff] %vm5164, %v5121
  %5168 = vst.msk [vmem:[#allocation3 + $0x30] sm:$0xff] %vm5164, %v5123
  %5169 = vst.msk [vmem:[#allocation3 + $0x40] sm:$0xff] %vm5164, %v5125
  %5170 = vst.msk [vmem:[#allocation3 + $0x50] sm:$0xff] %vm5164, %v5127
  %5171 = vst.msk [vmem:[#allocation3 + $0x60] sm:$0xff] %vm5164, %v5129
  %5172 = vst.msk [vmem:[#allocation3 + $0x70] sm:$0xff] %vm5164, %v5131
  %5173 = vst.msk [vmem:[#allocation3 + $0x80] sm:$0xff] %vm5164, %v5133
  %5174 = vst.msk [vmem:[#allocation3 + $0x90] sm:$0xff] %vm5164, %v5135
  %5175 = vst.msk [vmem:[#allocation3 + $0xa0] sm:$0xff] %vm5164, %v5137
  %5176 = vst.msk [vmem:[#allocation3 + $0xb0] sm:$0xff] %vm5164, %v5139
  %5177 = vst.msk [vmem:[#allocation3 + $0xc0] sm:$0xff] %vm5164, %v5141
  %5178 = vst.msk [vmem:[#allocation3 + $0xd0] sm:$0xff] %vm5164, %v5143
  %5179 = vst.msk [vmem:[#allocation3 + $0xe0] sm:$0xff] %vm5164, %v5145
  %5180 = vst.msk [vmem:[#allocation3 + $0xf0] sm:$0xff] %vm5164, %v5147
  %s5181 = scalar_lea.vmem %s4729, 8 [#allocation6]
  %v5182 = vld [vmem:[%s5181] ss:$2 sm:$0xff]
  %s5183 = scalar_lea.vmem %s4729, 72 [#allocation6]
  %v5184 = vld [vmem:[%s5183] ss:$2 sm:$0xff]
  %s5185 = scalar_lea.vmem %s4729, 136 [#allocation6]
  %v5186 = vld [vmem:[%s5185] ss:$2 sm:$0xff]
  %s5187 = scalar_lea.vmem %s4729, 200 [#allocation6]
  %v5188 = vld [vmem:[%s5187] ss:$2 sm:$0xff]
  %s5189 = scalar_lea.vmem %s4729, 264 [#allocation6]
  %v5190 = vld [vmem:[%s5189] ss:$2 sm:$0xff]
  %s5191 = scalar_lea.vmem %s4729, 328 [#allocation6]
  %v5192 = vld [vmem:[%s5191] ss:$2 sm:$0xff]
  %s5193 = scalar_lea.vmem %s4729, 392 [#allocation6]
  %v5194 = vld [vmem:[%s5193] ss:$2 sm:$0xff]
  %s5195 = scalar_lea.vmem %s4729, 456 [#allocation6]
  %v5196 = vld [vmem:[%s5195] ss:$2 sm:$0xff]
  %s5197 = scalar_lea.vmem %s4729, 584 [#allocation6]
  %v5198 = vld [vmem:[%s5197] ss:$2 sm:$0xff]
  %s5199 = scalar_lea.vmem %s4729, 648 [#allocation6]
  %v5200 = vld [vmem:[%s5199] ss:$2 sm:$0xff]
  %s5201 = scalar_lea.vmem %s4729, 712 [#allocation6]
  %v5202 = vld [vmem:[%s5201] ss:$2 sm:$0xff]
  %s5203 = scalar_lea.vmem %s4729, 776 [#allocation6]
  %v5204 = vld [vmem:[%s5203] ss:$2 sm:$0xff]
  %s5205 = scalar_lea.vmem %s4729, 840 [#allocation6]
  %v5206 = vld [vmem:[%s5205] ss:$2 sm:$0xff]
  %s5207 = scalar_lea.vmem %s4729, 904 [#allocation6]
  %v5208 = vld [vmem:[%s5207] ss:$2 sm:$0xff]
  %s5209 = scalar_lea.vmem %s4729, 968 [#allocation6]
  %v5210 = vld [vmem:[%s5209] ss:$2 sm:$0xff]
  %s5211 = scalar_lea.vmem %s4729, 1032 [#allocation6]
  %v5212 = vld [vmem:[%s5211] ss:$2 sm:$0xff]
  %5229 = vrot.lane.b32.xlu0 %v5182, 64
  %v5230 = vpop.permute.xlu0 %5229
  %5231 = vrot.lane.b32.xlu0 %v5184, 64
  %v5232 = vpop.permute.xlu0 %5231
  %5233 = vrot.lane.b32.xlu0 %v5186, 64
  %v5234 = vpop.permute.xlu0 %5233
  %5235 = vrot.lane.b32.xlu0 %v5188, 64
  %v5236 = vpop.permute.xlu0 %5235
  %5237 = vrot.lane.b32.xlu0 %v5190, 64
  %v5238 = vpop.permute.xlu0 %5237
  %5239 = vrot.lane.b32.xlu0 %v5192, 64
  %v5240 = vpop.permute.xlu0 %5239
  %5241 = vrot.lane.b32.xlu0 %v5194, 64
  %v5242 = vpop.permute.xlu0 %5241
  %5243 = vrot.lane.b32.xlu0 %v5196, 64
  %v5244 = vpop.permute.xlu0 %5243
  %5245 = vrot.lane.b32.xlu0 %v5198, 64
  %v5246 = vpop.permute.xlu0 %5245
  %5247 = vrot.lane.b32.xlu0 %v5200, 64
  %v5248 = vpop.permute.xlu0 %5247
  %5249 = vrot.lane.b32.xlu0 %v5202, 64
  %v5250 = vpop.permute.xlu0 %5249
  %5251 = vrot.lane.b32.xlu0 %v5204, 64
  %v5252 = vpop.permute.xlu0 %5251
  %5253 = vrot.lane.b32.xlu0 %v5206, 64
  %v5254 = vpop.permute.xlu0 %5253
  %5255 = vrot.lane.b32.xlu0 %v5208, 64
  %v5256 = vpop.permute.xlu0 %5255
  %5257 = vrot.lane.b32.xlu0 %v5210, 64
  %v5258 = vpop.permute.xlu0 %5257
  %5259 = vrot.lane.b32.xlu0 %v5212, 64
  %v5260 = vpop.permute.xlu0 %5259
  %vm5277 = vcmask 654848
  %5278 = vst.msk [vmem:[#allocation3] sm:$0xff] %vm5277, %v5230
  %5279 = vst.msk [vmem:[#allocation3 + $0x10] sm:$0xff] %vm5277, %v5232
  %5280 = vst.msk [vmem:[#allocation3 + $0x20] sm:$0xff] %vm5277, %v5234
  %5281 = vst.msk [vmem:[#allocation3 + $0x30] sm:$0xff] %vm5277, %v5236
  %5282 = vst.msk [vmem:[#allocation3 + $0x40] sm:$0xff] %vm5277, %v5238
  %5283 = vst.msk [vmem:[#allocation3 + $0x50] sm:$0xff] %vm5277, %v5240
  %5284 = vst.msk [vmem:[#allocation3 + $0x60] sm:$0xff] %vm5277, %v5242
  %5285 = vst.msk [vmem:[#allocation3 + $0x70] sm:$0xff] %vm5277, %v5244
  %5286 = vst.msk [vmem:[#allocation3 + $0x80] sm:$0xff] %vm5277, %v5246
  %5287 = vst.msk [vmem:[#allocation3 + $0x90] sm:$0xff] %vm5277, %v5248
  %5288 = vst.msk [vmem:[#allocation3 + $0xa0] sm:$0xff] %vm5277, %v5250
  %5289 = vst.msk [vmem:[#allocation3 + $0xb0] sm:$0xff] %vm5277, %v5252
  %5290 = vst.msk [vmem:[#allocation3 + $0xc0] sm:$0xff] %vm5277, %v5254
  %5291 = vst.msk [vmem:[#allocation3 + $0xd0] sm:$0xff] %vm5277, %v5256
  %5292 = vst.msk [vmem:[#allocation3 + $0xe0] sm:$0xff] %vm5277, %v5258
  %5293 = vst.msk [vmem:[#allocation3 + $0xf0] sm:$0xff] %vm5277, %v5260
  %s5294 = scalar_lea.vmem %s4729, 9 [#allocation6]
  %v5295 = vld [vmem:[%s5294] ss:$2 sm:$0xff]
  %s5296 = scalar_lea.vmem %s4729, 73 [#allocation6]
  %v5297 = vld [vmem:[%s5296] ss:$2 sm:$0xff]
  %s5298 = scalar_lea.vmem %s4729, 137 [#allocation6]
  %v5299 = vld [vmem:[%s5298] ss:$2 sm:$0xff]
  %s5300 = scalar_lea.vmem %s4729, 201 [#allocation6]
  %v5301 = vld [vmem:[%s5300] ss:$2 sm:$0xff]
  %s5302 = scalar_lea.vmem %s4729, 265 [#allocation6]
  %v5303 = vld [vmem:[%s5302] ss:$2 sm:$0xff]
  %s5304 = scalar_lea.vmem %s4729, 329 [#allocation6]
  %v5305 = vld [vmem:[%s5304] ss:$2 sm:$0xff]
  %s5306 = scalar_lea.vmem %s4729, 393 [#allocation6]
  %v5307 = vld [vmem:[%s5306] ss:$2 sm:$0xff]
  %s5308 = scalar_lea.vmem %s4729, 457 [#allocation6]
  %v5309 = vld [vmem:[%s5308] ss:$2 sm:$0xff]
  %s5310 = scalar_lea.vmem %s4729, 585 [#allocation6]
  %v5311 = vld [vmem:[%s5310] ss:$2 sm:$0xff]
  %s5312 = scalar_lea.vmem %s4729, 649 [#allocation6]
  %v5313 = vld [vmem:[%s5312] ss:$2 sm:$0xff]
  %s5314 = scalar_lea.vmem %s4729, 713 [#allocation6]
  %v5315 = vld [vmem:[%s5314] ss:$2 sm:$0xff]
  %s5316 = scalar_lea.vmem %s4729, 777 [#allocation6]
  %v5317 = vld [vmem:[%s5316] ss:$2 sm:$0xff]
  %s5318 = scalar_lea.vmem %s4729, 841 [#allocation6]
  %v5319 = vld [vmem:[%s5318] ss:$2 sm:$0xff]
  %s5320 = scalar_lea.vmem %s4729, 905 [#allocation6]
  %v5321 = vld [vmem:[%s5320] ss:$2 sm:$0xff]
  %s5322 = scalar_lea.vmem %s4729, 969 [#allocation6]
  %v5323 = vld [vmem:[%s5322] ss:$2 sm:$0xff]
  %s5324 = scalar_lea.vmem %s4729, 1033 [#allocation6]
  %v5325 = vld [vmem:[%s5324] ss:$2 sm:$0xff]
  %5342 = vrot.lane.b32.xlu0 %v5295, 80
  %v5343 = vpop.permute.xlu0 %5342
  %5344 = vrot.lane.b32.xlu0 %v5297, 80
  %v5345 = vpop.permute.xlu0 %5344
  %5346 = vrot.lane.b32.xlu0 %v5299, 80
  %v5347 = vpop.permute.xlu0 %5346
  %5348 = vrot.lane.b32.xlu0 %v5301, 80
  %v5349 = vpop.permute.xlu0 %5348
  %5350 = vrot.lane.b32.xlu0 %v5303, 80
  %v5351 = vpop.permute.xlu0 %5350
  %5352 = vrot.lane.b32.xlu0 %v5305, 80
  %v5353 = vpop.permute.xlu0 %5352
  %5354 = vrot.lane.b32.xlu0 %v5307, 80
  %v5355 = vpop.permute.xlu0 %5354
  %5356 = vrot.lane.b32.xlu0 %v5309, 80
  %v5357 = vpop.permute.xlu0 %5356
  %5358 = vrot.lane.b32.xlu0 %v5311, 80
  %v5359 = vpop.permute.xlu0 %5358
  %5360 = vrot.lane.b32.xlu0 %v5313, 80
  %v5361 = vpop.permute.xlu0 %5360
  %5362 = vrot.lane.b32.xlu0 %v5315, 80
  %v5363 = vpop.permute.xlu0 %5362
  %5364 = vrot.lane.b32.xlu0 %v5317, 80
  %v5365 = vpop.permute.xlu0 %5364
  %5366 = vrot.lane.b32.xlu0 %v5319, 80
  %v5367 = vpop.permute.xlu0 %5366
  %5368 = vrot.lane.b32.xlu0 %v5321, 80
  %v5369 = vpop.permute.xlu0 %5368
  %5370 = vrot.lane.b32.xlu0 %v5323, 80
  %v5371 = vpop.permute.xlu0 %5370
  %5372 = vrot.lane.b32.xlu0 %v5325, 80
  %v5373 = vpop.permute.xlu0 %5372
  %vm5390 = vcmask 786048
  %5391 = vst.msk [vmem:[#allocation3] sm:$0xff] %vm5390, %v5343
  %5392 = vst.msk [vmem:[#allocation3 + $0x10] sm:$0xff] %vm5390, %v5345
  %5393 = vst.msk [vmem:[#allocation3 + $0x20] sm:$0xff] %vm5390, %v5347
  %5394 = vst.msk [vmem:[#allocation3 + $0x30] sm:$0xff] %vm5390, %v5349
  %5395 = vst.msk [vmem:[#allocation3 + $0x40] sm:$0xff] %vm5390, %v5351
  %5396 = vst.msk [vmem:[#allocation3 + $0x50] sm:$0xff] %vm5390, %v5353
  %5397 = vst.msk [vmem:[#allocation3 + $0x60] sm:$0xff] %vm5390, %v5355
  %5398 = vst.msk [vmem:[#allocation3 + $0x70] sm:$0xff] %vm5390, %v5357
  %5399 = vst.msk [vmem:[#allocation3 + $0x80] sm:$0xff] %vm5390, %v5359
  %5400 = vst.msk [vmem:[#allocation3 + $0x90] sm:$0xff] %vm5390, %v5361
  %5401 = vst.msk [vmem:[#allocation3 + $0xa0] sm:$0xff] %vm5390, %v5363
  %5402 = vst.msk [vmem:[#allocation3 + $0xb0] sm:$0xff] %vm5390, %v5365
  %5403 = vst.msk [vmem:[#allocation3 + $0xc0] sm:$0xff] %vm5390, %v5367
  %5404 = vst.msk [vmem:[#allocation3 + $0xd0] sm:$0xff] %vm5390, %v5369
  %5405 = vst.msk [vmem:[#allocation3 + $0xe0] sm:$0xff] %vm5390, %v5371
  %5406 = vst.msk [vmem:[#allocation3 + $0xf0] sm:$0xff] %vm5390, %v5373
  %s5407 = scalar_lea.vmem [#allocation6], 64
  %s5408 = scalar_lea.vmem %s5407, 7 [#allocation6]
  %v5409 = vld [vmem:[%s5408] ss:$2 sm:$0xff]
  %s5410 = scalar_lea.vmem %s5407, 71 [#allocation6]
  %v5411 = vld [vmem:[%s5410] ss:$2 sm:$0xff]
  %s5412 = scalar_lea.vmem %s5407, 135 [#allocation6]
  %v5413 = vld [vmem:[%s5412] ss:$2 sm:$0xff]
  %s5414 = scalar_lea.vmem %s5407, 199 [#allocation6]
  %v5415 = vld [vmem:[%s5414] ss:$2 sm:$0xff]
  %s5416 = scalar_lea.vmem %s5407, 263 [#allocation6]
  %v5417 = vld [vmem:[%s5416] ss:$2 sm:$0xff]
  %s5418 = scalar_lea.vmem %s5407, 327 [#allocation6]
  %v5419 = vld [vmem:[%s5418] ss:$2 sm:$0xff]
  %s5420 = scalar_lea.vmem %s5407, 391 [#allocation6]
  %v5421 = vld [vmem:[%s5420] ss:$2 sm:$0xff]
  %s5422 = scalar_lea.vmem %s5407, 455 [#allocation6]
  %v5423 = vld [vmem:[%s5422] ss:$2 sm:$0xff]
  %s5424 = scalar_lea.vmem %s5407, 583 [#allocation6]
  %v5425 = vld [vmem:[%s5424] ss:$2 sm:$0xff]
  %s5426 = scalar_lea.vmem %s5407, 647 [#allocation6]
  %v5427 = vld [vmem:[%s5426] ss:$2 sm:$0xff]
  %s5428 = scalar_lea.vmem %s5407, 711 [#allocation6]
  %v5429 = vld [vmem:[%s5428] ss:$2 sm:$0xff]
  %s5430 = scalar_lea.vmem %s5407, 775 [#allocation6]
  %v5431 = vld [vmem:[%s5430] ss:$2 sm:$0xff]
  %s5432 = scalar_lea.vmem %s5407, 839 [#allocation6]
  %v5433 = vld [vmem:[%s5432] ss:$2 sm:$0xff]
  %s5434 = scalar_lea.vmem %s5407, 903 [#allocation6]
  %v5435 = vld [vmem:[%s5434] ss:$2 sm:$0xff]
  %s5436 = scalar_lea.vmem %s5407, 967 [#allocation6]
  %v5437 = vld [vmem:[%s5436] ss:$2 sm:$0xff]
  %s5438 = scalar_lea.vmem %s5407, 1031 [#allocation6]
  %v5439 = vld [vmem:[%s5438] ss:$2 sm:$0xff]
  %5456 = vrot.lane.b32.xlu0 %v5409, 96
  %v5457 = vpop.permute.xlu0 %5456
  %5458 = vrot.lane.b32.xlu0 %v5411, 96
  %v5459 = vpop.permute.xlu0 %5458
  %5460 = vrot.lane.b32.xlu0 %v5413, 96
  %v5461 = vpop.permute.xlu0 %5460
  %5462 = vrot.lane.b32.xlu0 %v5415, 96
  %v5463 = vpop.permute.xlu0 %5462
  %5464 = vrot.lane.b32.xlu0 %v5417, 96
  %v5465 = vpop.permute.xlu0 %5464
  %5466 = vrot.lane.b32.xlu0 %v5419, 96
  %v5467 = vpop.permute.xlu0 %5466
  %5468 = vrot.lane.b32.xlu0 %v5421, 96
  %v5469 = vpop.permute.xlu0 %5468
  %5470 = vrot.lane.b32.xlu0 %v5423, 96
  %v5471 = vpop.permute.xlu0 %5470
  %5472 = vrot.lane.b32.xlu0 %v5425, 96
  %v5473 = vpop.permute.xlu0 %5472
  %5474 = vrot.lane.b32.xlu0 %v5427, 96
  %v5475 = vpop.permute.xlu0 %5474
  %5476 = vrot.lane.b32.xlu0 %v5429, 96
  %v5477 = vpop.permute.xlu0 %5476
  %5478 = vrot.lane.b32.xlu0 %v5431, 96
  %v5479 = vpop.permute.xlu0 %5478
  %5480 = vrot.lane.b32.xlu0 %v5433, 96
  %v5481 = vpop.permute.xlu0 %5480
  %5482 = vrot.lane.b32.xlu0 %v5435, 96
  %v5483 = vpop.permute.xlu0 %5482
  %5484 = vrot.lane.b32.xlu0 %v5437, 96
  %v5485 = vpop.permute.xlu0 %5484
  %5486 = vrot.lane.b32.xlu0 %v5439, 96
  %v5487 = vpop.permute.xlu0 %5486
  %vm5504 = vcmask 917248
  %5505 = vst.msk [vmem:[#allocation3] sm:$0xff] %vm5504, %v5457
  %5506 = vst.msk [vmem:[#allocation3 + $0x10] sm:$0xff] %vm5504, %v5459
  %5507 = vst.msk [vmem:[#allocation3 + $0x20] sm:$0xff] %vm5504, %v5461
  %5508 = vst.msk [vmem:[#allocation3 + $0x30] sm:$0xff] %vm5504, %v5463
  %5509 = vst.msk [vmem:[#allocation3 + $0x40] sm:$0xff] %vm5504, %v5465
  %5510 = vst.msk [vmem:[#allocation3 + $0x50] sm:$0xff] %vm5504, %v5467
  %5511 = vst.msk [vmem:[#allocation3 + $0x60] sm:$0xff] %vm5504, %v5469
  %5512 = vst.msk [vmem:[#allocation3 + $0x70] sm:$0xff] %vm5504, %v5471
  %5513 = vst.msk [vmem:[#allocation3 + $0x80] sm:$0xff] %vm5504, %v5473
  %5514 = vst.msk [vmem:[#allocation3 + $0x90] sm:$0xff] %vm5504, %v5475
  %5515 = vst.msk [vmem:[#allocation3 + $0xa0] sm:$0xff] %vm5504, %v5477
  %5516 = vst.msk [vmem:[#allocation3 + $0xb0] sm:$0xff] %vm5504, %v5479
  %5517 = vst.msk [vmem:[#allocation3 + $0xc0] sm:$0xff] %vm5504, %v5481
  %5518 = vst.msk [vmem:[#allocation3 + $0xd0] sm:$0xff] %vm5504, %v5483
  %5519 = vst.msk [vmem:[#allocation3 + $0xe0] sm:$0xff] %vm5504, %v5485
  %5520 = vst.msk [vmem:[#allocation3 + $0xf0] sm:$0xff] %vm5504, %v5487
  %s5521 = scalar_lea.vmem %s5407, 8 [#allocation6]
  %v5522 = vld [vmem:[%s5521] ss:$2 sm:$0xff]
  %s5523 = scalar_lea.vmem %s5407, 72 [#allocation6]
  %v5524 = vld [vmem:[%s5523] ss:$2 sm:$0xff]
  %s5525 = scalar_lea.vmem %s5407, 136 [#allocation6]
  %v5526 = vld [vmem:[%s5525] ss:$2 sm:$0xff]
  %s5527 = scalar_lea.vmem %s5407, 200 [#allocation6]
  %v5528 = vld [vmem:[%s5527] ss:$2 sm:$0xff]
  %s5529 = scalar_lea.vmem %s5407, 264 [#allocation6]
  %v5530 = vld [vmem:[%s5529] ss:$2 sm:$0xff]
  %s5531 = scalar_lea.vmem %s5407, 328 [#allocation6]
  %v5532 = vld [vmem:[%s5531] ss:$2 sm:$0xff]
  %s5533 = scalar_lea.vmem %s5407, 392 [#allocation6]
  %v5534 = vld [vmem:[%s5533] ss:$2 sm:$0xff]
  %s5535 = scalar_lea.vmem %s5407, 456 [#allocation6]
  %v5536 = vld [vmem:[%s5535] ss:$2 sm:$0xff]
  %s5537 = scalar_lea.vmem %s5407, 584 [#allocation6]
  %v5538 = vld [vmem:[%s5537] ss:$2 sm:$0xff]
  %s5539 = scalar_lea.vmem %s5407, 648 [#allocation6]
  %v5540 = vld [vmem:[%s5539] ss:$2 sm:$0xff]
  %s5541 = scalar_lea.vmem %s5407, 712 [#allocation6]
  %v5542 = vld [vmem:[%s5541] ss:$2 sm:$0xff]
  %s5543 = scalar_lea.vmem %s5407, 776 [#allocation6]
  %v5544 = vld [vmem:[%s5543] ss:$2 sm:$0xff]
  %s5545 = scalar_lea.vmem %s5407, 840 [#allocation6]
  %v5546 = vld [vmem:[%s5545] ss:$2 sm:$0xff]
  %s5547 = scalar_lea.vmem %s5407, 904 [#allocation6]
  %v5548 = vld [vmem:[%s5547] ss:$2 sm:$0xff]
  %s5549 = scalar_lea.vmem %s5407, 968 [#allocation6]
  %v5550 = vld [vmem:[%s5549] ss:$2 sm:$0xff]
  %s5551 = scalar_lea.vmem %s5407, 1032 [#allocation6]
  %v5552 = vld [vmem:[%s5551] ss:$2 sm:$0xff]
  %5569 = vrot.lane.b32.xlu0 %v5522, 112
  %v5570 = vpop.permute.xlu0 %5569
  %5571 = vrot.lane.b32.xlu0 %v5524, 112
  %v5572 = vpop.permute.xlu0 %5571
  %5573 = vrot.lane.b32.xlu0 %v5526, 112
  %v5574 = vpop.permute.xlu0 %5573
  %5575 = vrot.lane.b32.xlu0 %v5528, 112
  %v5576 = vpop.permute.xlu0 %5575
  %5577 = vrot.lane.b32.xlu0 %v5530, 112
  %v5578 = vpop.permute.xlu0 %5577
  %5579 = vrot.lane.b32.xlu0 %v5532, 112
  %v5580 = vpop.permute.xlu0 %5579
  %5581 = vrot.lane.b32.xlu0 %v5534, 112
  %v5582 = vpop.permute.xlu0 %5581
  %5583 = vrot.lane.b32.xlu0 %v5536, 112
  %v5584 = vpop.permute.xlu0 %5583
  %5585 = vrot.lane.b32.xlu0 %v5538, 112
  %v5586 = vpop.permute.xlu0 %5585
  %5587 = vrot.lane.b32.xlu0 %v5540, 112
  %v5588 = vpop.permute.xlu0 %5587
  %5589 = vrot.lane.b32.xlu0 %v5542, 112
  %v5590 = vpop.permute.xlu0 %5589
  %5591 = vrot.lane.b32.xlu0 %v5544, 112
  %v5592 = vpop.permute.xlu0 %5591
  %5593 = vrot.lane.b32.xlu0 %v5546, 112
  %v5594 = vpop.permute.xlu0 %5593
  %5595 = vrot.lane.b32.xlu0 %v5548, 112
  %v5596 = vpop.permute.xlu0 %5595
  %5597 = vrot.lane.b32.xlu0 %v5550, 112
  %v5598 = vpop.permute.xlu0 %5597
  %5599 = vrot.lane.b32.xlu0 %v5552, 112
  %v5600 = vpop.permute.xlu0 %5599
  %vm5617 = vcmask 1048448
  %5618 = vst.msk [vmem:[#allocation3] sm:$0xff] %vm5617, %v5570
  %5619 = vst.msk [vmem:[#allocation3 + $0x10] sm:$0xff] %vm5617, %v5572
  %5620 = vst.msk [vmem:[#allocation3 + $0x20] sm:$0xff] %vm5617, %v5574
  %5621 = vst.msk [vmem:[#allocation3 + $0x30] sm:$0xff] %vm5617, %v5576
  %5622 = vst.msk [vmem:[#allocation3 + $0x40] sm:$0xff] %vm5617, %v5578
  %5623 = vst.msk [vmem:[#allocation3 + $0x50] sm:$0xff] %vm5617, %v5580
  %5624 = vst.msk [vmem:[#allocation3 + $0x60] sm:$0xff] %vm5617, %v5582
  %5625 = vst.msk [vmem:[#allocation3 + $0x70] sm:$0xff] %vm5617, %v5584
  %5626 = vst.msk [vmem:[#allocation3 + $0x80] sm:$0xff] %vm5617, %v5586
  %5627 = vst.msk [vmem:[#allocation3 + $0x90] sm:$0xff] %vm5617, %v5588
  %5628 = vst.msk [vmem:[#allocation3 + $0xa0] sm:$0xff] %vm5617, %v5590
  %5629 = vst.msk [vmem:[#allocation3 + $0xb0] sm:$0xff] %vm5617, %v5592
  %5630 = vst.msk [vmem:[#allocation3 + $0xc0] sm:$0xff] %vm5617, %v5594
  %5631 = vst.msk [vmem:[#allocation3 + $0xd0] sm:$0xff] %vm5617, %v5596
  %5632 = vst.msk [vmem:[#allocation3 + $0xe0] sm:$0xff] %vm5617, %v5598
  %5633 = vst.msk [vmem:[#allocation3 + $0xf0] sm:$0xff] %vm5617, %v5600
  %s5634 = scalar_lea.vmem %s5407, 9 [#allocation6]
  %v5635 = vld [vmem:[%s5634] ss:$2 sm:$0xff]
  %s5636 = scalar_lea.vmem %s5407, 73 [#allocation6]
  %v5637 = vld [vmem:[%s5636] ss:$2 sm:$0xff]
  %s5638 = scalar_lea.vmem %s5407, 137 [#allocation6]
  %v5639 = vld [vmem:[%s5638] ss:$2 sm:$0xff]
  %s5640 = scalar_lea.vmem %s5407, 201 [#allocation6]
  %v5641 = vld [vmem:[%s5640] ss:$2 sm:$0xff]
  %s5642 = scalar_lea.vmem %s5407, 265 [#allocation6]
  %v5643 = vld [vmem:[%s5642] ss:$2 sm:$0xff]
  %s5644 = scalar_lea.vmem %s5407, 329 [#allocation6]
  %v5645 = vld [vmem:[%s5644] ss:$2 sm:$0xff]
  %s5646 = scalar_lea.vmem %s5407, 393 [#allocation6]
  %v5647 = vld [vmem:[%s5646] ss:$2 sm:$0xff]
  %s5648 = scalar_lea.vmem %s5407, 457 [#allocation6]
  %v5649 = vld [vmem:[%s5648] ss:$2 sm:$0xff]
  %s5650 = scalar_lea.vmem %s5407, 585 [#allocation6]
  %v5651 = vld [vmem:[%s5650] ss:$2 sm:$0xff]
  %s5652 = scalar_lea.vmem %s5407, 649 [#allocation6]
  %v5653 = vld [vmem:[%s5652] ss:$2 sm:$0xff]
  %s5654 = scalar_lea.vmem %s5407, 713 [#allocation6]
  %v5655 = vld [vmem:[%s5654] ss:$2 sm:$0xff]
  %s5656 = scalar_lea.vmem %s5407, 777 [#allocation6]
  %v5657 = vld [vmem:[%s5656] ss:$2 sm:$0xff]
  %s5658 = scalar_lea.vmem %s5407, 841 [#allocation6]
  %v5659 = vld [vmem:[%s5658] ss:$2 sm:$0xff]
  %s5660 = scalar_lea.vmem %s5407, 905 [#allocation6]
  %v5661 = vld [vmem:[%s5660] ss:$2 sm:$0xff]
  %s5662 = scalar_lea.vmem %s5407, 969 [#allocation6]
  %v5663 = vld [vmem:[%s5662] ss:$2 sm:$0xff]
  %s5664 = scalar_lea.vmem %s5407, 1033 [#allocation6]
  %v5665 = vld [vmem:[%s5664] ss:$2 sm:$0xff]
  %5666 = vst.msk [vmem:[#allocation3 + $0x8] sm:$0xff] %vm4683, %v5635
  %5667 = vst.msk [vmem:[#allocation3 + $0x18] sm:$0xff] %vm4683, %v5637
  %5668 = vst.msk [vmem:[#allocation3 + $0x28] sm:$0xff] %vm4683, %v5639
  %5669 = vst.msk [vmem:[#allocation3 + $0x38] sm:$0xff] %vm4683, %v5641
  %5670 = vst.msk [vmem:[#allocation3 + $0x48] sm:$0xff] %vm4683, %v5643
  %5671 = vst.msk [vmem:[#allocation3 + $0x58] sm:$0xff] %vm4683, %v5645
  %5672 = vst.msk [vmem:[#allocation3 + $0x68] sm:$0xff] %vm4683, %v5647
  %5673 = vst.msk [vmem:[#allocation3 + $0x78] sm:$0xff] %vm4683, %v5649
  %5674 = vst.msk [vmem:[#allocation3 + $0x88] sm:$0xff] %vm4683, %v5651
  %5675 = vst.msk [vmem:[#allocation3 + $0x98] sm:$0xff] %vm4683, %v5653
  %5676 = vst.msk [vmem:[#allocation3 + $0xa8] sm:$0xff] %vm4683, %v5655
  %5677 = vst.msk [vmem:[#allocation3 + $0xb8] sm:$0xff] %vm4683, %v5657
  %5678 = vst.msk [vmem:[#allocation3 + $0xc8] sm:$0xff] %vm4683, %v5659
  %5679 = vst.msk [vmem:[#allocation3 + $0xd8] sm:$0xff] %vm4683, %v5661
  %5680 = vst.msk [vmem:[#allocation3 + $0xe8] sm:$0xff] %vm4683, %v5663
  %5681 = vst.msk [vmem:[#allocation3 + $0xf8] sm:$0xff] %vm4683, %v5665
  %v5682 = vld [vmem:[#allocation3] sm:$0xff]
  %v5683 = vld [vmem:[#allocation3 + $0x8] sm:$0xff]
  %v5684 = vld [vmem:[#allocation3 + $0x10] sm:$0xff]
  %v5685 = vld [vmem:[#allocation3 + $0x18] sm:$0xff]
  %v5686 = vld [vmem:[#allocation3 + $0x20] sm:$0xff]
  %v5687 = vld [vmem:[#allocation3 + $0x28] sm:$0xff]
  %v5688 = vld [vmem:[#allocation3 + $0x30] sm:$0xff]
  %v5689 = vld [vmem:[#allocation3 + $0x38] sm:$0xff]
  %v5690 = vld [vmem:[#allocation3 + $0x40] sm:$0xff]
  %v5691 = vld [vmem:[#allocation3 + $0x48] sm:$0xff]
  %v5692 = vld [vmem:[#allocation3 + $0x50] sm:$0xff]
  %v5693 = vld [vmem:[#allocation3 + $0x58] sm:$0xff]
  %v5694 = vld [vmem:[#allocation3 + $0x60] sm:$0xff]
  %v5695 = vld [vmem:[#allocation3 + $0x68] sm:$0xff]
  %v5696 = vld [vmem:[#allocation3 + $0x70] sm:$0xff]
  %v5697 = vld [vmem:[#allocation3 + $0x78] sm:$0xff]
  %v5698 = vld [vmem:[#allocation3 + $0x80] sm:$0xff]
  %v5699 = vld [vmem:[#allocation3 + $0x88] sm:$0xff]
  %v5700 = vld [vmem:[#allocation3 + $0x90] sm:$0xff]
  %v5701 = vld [vmem:[#allocation3 + $0x98] sm:$0xff]
  %v5702 = vld [vmem:[#allocation3 + $0xa0] sm:$0xff]
  %v5703 = vld [vmem:[#allocation3 + $0xa8] sm:$0xff]
  %v5704 = vld [vmem:[#allocation3 + $0xb0] sm:$0xff]
  %v5705 = vld [vmem:[#allocation3 + $0xb8] sm:$0xff]
  %v5706 = vld [vmem:[#allocation3 + $0xc0] sm:$0xff]
  %v5707 = vld [vmem:[#allocation3 + $0xc8] sm:$0xff]
  %v5708 = vld [vmem:[#allocation3 + $0xd0] sm:$0xff]
  %v5709 = vld [vmem:[#allocation3 + $0xd8] sm:$0xff]
  %v5710 = vld [vmem:[#allocation3 + $0xe0] sm:$0xff]
  %v5711 = vld [vmem:[#allocation3 + $0xe8] sm:$0xff]
  %v5712 = vld [vmem:[#allocation3 + $0xf0] sm:$0xff]
  %v5713 = vld [vmem:[#allocation3 + $0xf8] sm:$0xff]
  %v5714 = vpack.c.bf16 %v5684, %v5682
  %v5715 = vpack.c.bf16 %v5685, %v5683
  %v5716 = vpack.c.bf16 %v5688, %v5686
  %v5717 = vpack.c.bf16 %v5689, %v5687
  %v5718 = vpack.c.bf16 %v5692, %v5690
  %v5719 = vpack.c.bf16 %v5693, %v5691
  %v5720 = vpack.c.bf16 %v5696, %v5694
  %v5721 = vpack.c.bf16 %v5697, %v5695
  %v5722 = vpack.c.bf16 %v5700, %v5698
  %v5723 = vpack.c.bf16 %v5701, %v5699
  %v5724 = vpack.c.bf16 %v5704, %v5702
  %v5725 = vpack.c.bf16 %v5705, %v5703
  %v5726 = vpack.c.bf16 %v5708, %v5706
  %v5727 = vpack.c.bf16 %v5709, %v5707
  %v5728 = vpack.c.bf16 %v5712, %v5710
  %v5729 = vpack.c.bf16 %v5713, %v5711
  %v5730 = vld [vmem:[%s2] sm:$0xf]
  %v5731 = vld [vmem:[%s2 + $0x4] sm:$0xf]
  %v5732 = vld [vmem:[%s2 + $0x8] sm:$0xf]
  %v5733 = vld [vmem:[%s2 + $0xc] sm:$0xf]
  %v5734 = vld [vmem:[%s2 + $0x10] sm:$0xf]
  %v5735 = vld [vmem:[%s2 + $0x14] sm:$0xf]
  %v5736 = vld [vmem:[%s2 + $0x18] sm:$0xf]
  %v5737 = vld [vmem:[%s2 + $0x1c] sm:$0xf]
  %v5738 = vld [vmem:[%s2 + $0x20] sm:$0xf]
  %v5739 = vld [vmem:[%s2 + $0x24] sm:$0xf]
  %v5740 = vld [vmem:[%s2 + $0x28] sm:$0xf]
  %v5741 = vld [vmem:[%s2 + $0x2c] sm:$0xf]
  %v5742 = vld [vmem:[%s2 + $0x30] sm:$0xf]
  %v5743 = vld [vmem:[%s2 + $0x34] sm:$0xf]
  %v5744 = vld [vmem:[%s2 + $0x38] sm:$0xf]
  %v5745 = vld [vmem:[%s2 + $0x3c] sm:$0xf]
  %v5746 = vld [vmem:[%s2 + $0x40] sm:$0xf]
  %v5747 = vld [vmem:[%s2 + $0x44] sm:$0xf]
  %v5748 = vld [vmem:[%s6] sm:$0x1]
  %v5749 = vlaneseq
  %v5750 = vshrl.u32 %v5749, 7
  %v5751 = vsub.s32 0, %v5750
  %v5752 = vrot.slane %v5748, %v5751
  %v5771 = vunpack.c.l.b16 %v5730
  %v5772 = vunpack.c.l.b16 %v5731
  %v5773 = vunpack.c.l.b16 %v5732
  %v5774 = vunpack.c.l.b16 %v5733
  %v5775 = vunpack.c.l.b16 %v5734
  %v5776 = vunpack.c.l.b16 %v5735
  %v5777 = vunpack.c.l.b16 %v5736
  %v5778 = vunpack.c.l.b16 %v5737
  %v5779 = vunpack.c.l.b16 %v5738
  %v5780 = vunpack.c.l.b16 %v5739
  %v5781 = vunpack.c.l.b16 %v5740
  %v5782 = vunpack.c.l.b16 %v5741
  %v5783 = vunpack.c.l.b16 %v5742
  %v5784 = vunpack.c.l.b16 %v5743
  %v5785 = vunpack.c.l.b16 %v5744
  %v5786 = vunpack.c.l.b16 %v5745
  %v5787 = vunpack.c.l.b16 %v5746
  %v5788 = vunpack.c.l.b16 %v5747
  %v5789 = vpack.c.b16 %v5772, %v5771
  %v5790 = vpack.c.b16 %v5774, %v5773
  %v5791 = vpack.c.b16 %v5776, %v5775
  %v5792 = vpack.c.b16 %v5778, %v5777
  %v5793 = vpack.c.b16 %v5780, %v5779
  %v5794 = vpack.c.b16 %v5782, %v5781
  %v5795 = vpack.c.b16 %v5784, %v5783
  %v5796 = vpack.c.b16 %v5786, %v5785
  %v5797 = vpack.c.b16 %v5788, %v5787
  %v5808 = vsel %vm4683, %v5715, 0
  %v5811 = vsel %vm4683, %v5717, 0
  %v5814 = vsel %vm4683, %v5719, 0
  %v5817 = vsel %vm4683, %v5721, 0
  %v5820 = vsel %vm4683, %v5723, 0
  %v5823 = vsel %vm4683, %v5725, 0
  %v5826 = vsel %vm4683, %v5727, 0
  %v5829 = vsel %vm4683, %v5729, 0
  %5831 = vmatprep.subr.bf16.mxu0 0
  %5832 = vmatpush1.bf16.msra.mxu0 %v5796
  %5833 = vmatprep.subr.bf16.mxu0 0
  %5834 = vmatpush1.bf16.msra.mxu0 %v5795
  %5835 = vmatprep.subr.bf16.mxu0 0
  %5836 = vmatpush1.bf16.msra.mxu0 %v5794
  %5837 = vmatprep.subr.bf16.mxu0 0
  %5838 = vmatpush1.bf16.msra.mxu0 %v5793
  %5839 = vmatprep.subr.bf16.mxu0 0
  %5840 = vmatpush1.bf16.msra.mxu0 %v5792
  %5841 = vmatprep.subr.bf16.mxu0 0
  %5842 = vmatpush1.bf16.msra.mxu0 %v5791
  %5843 = vmatprep.subr.bf16.mxu0 0
  %5844 = vmatpush1.bf16.msra.mxu0 %v5790
  %5845 = vmatprep.subr.bf16.mxu0 0
  %5846 = vmatpush1.bf16.msra.mxu0 %v5789
  %5847 = vmatprep.subr.bf16.mxu0 0
  %5848 = vmatpush2.bf16.msra.mxu0 0
  %5849 = vmatprep.subr.bf16.mxu0 0
  %5850 = vmatpush2.bf16.msra.mxu0 0
  %5851 = vmatprep.subr.bf16.mxu0 0
  %5852 = vmatpush2.bf16.msra.mxu0 0
  %5853 = vmatprep.subr.bf16.mxu0 0
  %5854 = vmatpush2.bf16.msra.mxu0 0
  %5855 = vmatprep.subr.bf16.mxu0 0
  %5856 = vmatpush2.bf16.msra.mxu0 0
  %5857 = vmatprep.subr.bf16.mxu0 0
  %5858 = vmatpush2.bf16.msra.mxu0 0
  %5859 = vmatprep.subr.bf16.mxu0 0
  %5860 = vmatpush2.bf16.msra.mxu0 0
  %5861 = vmatprep.subr.bf16.mxu0 0
  %5862 = vmatpush2.bf16.msra.mxu0 %v5797
  %5863 = vmatprep.mubr.bf16.mxu0 %v5808
  %5864 = vmatmul.mubr.bf16.gmra.mxu0 %v5714
  %v5865 = vpop.f32.mrf.mxu0
  %v5866 = vadd.f32 %v5752, %v5865
  %v5867 = vpop.f32.mrf.mxu0
  %v5868 = vpop.f32.mrf.mxu0
  %v5869 = vadd.f32 %v5752, %v5868
  %v5870 = vpop.f32.mrf.mxu0
  %5871 = vmatprep.mubr.bf16.mxu0 %v5811
  %5872 = vmatmul.mubr.bf16.gmra.mxu0 %v5716
  %v5873 = vpop.f32.mrf.mxu0
  %v5874 = vadd.f32 %v5752, %v5873
  %v5875 = vpop.f32.mrf.mxu0
  %v5876 = vpop.f32.mrf.mxu0
  %v5877 = vadd.f32 %v5752, %v5876
  %v5878 = vpop.f32.mrf.mxu0
  %5879 = vmatprep.mubr.bf16.mxu0 %v5814
  %5880 = vmatmul.mubr.bf16.gmra.mxu0 %v5718
  %v5881 = vpop.f32.mrf.mxu0
  %v5882 = vadd.f32 %v5752, %v5881
  %v5883 = vpop.f32.mrf.mxu0
  %v5884 = vpop.f32.mrf.mxu0
  %v5885 = vadd.f32 %v5752, %v5884
  %v5886 = vpop.f32.mrf.mxu0
  %5887 = vmatprep.mubr.bf16.mxu0 %v5817
  %5888 = vmatmul.mubr.bf16.gmra.mxu0 %v5720
  %v5889 = vpop.f32.mrf.mxu0
  %v5890 = vadd.f32 %v5752, %v5889
  %v5891 = vpop.f32.mrf.mxu0
  %v5892 = vpop.f32.mrf.mxu0
  %v5893 = vadd.f32 %v5752, %v5892
  %v5894 = vpop.f32.mrf.mxu0
  %5895 = vmatprep.mubr.bf16.mxu0 %v5820
  %5896 = vmatmul.mubr.bf16.gmra.mxu0 %v5722
  %v5897 = vpop.f32.mrf.mxu0
  %v5898 = vadd.f32 %v5752, %v5897
  %v5899 = vpop.f32.mrf.mxu0
  %v5900 = vpop.f32.mrf.mxu0
  %v5901 = vadd.f32 %v5752, %v5900
  %v5902 = vpop.f32.mrf.mxu0
  %5903 = vmatprep.mubr.bf16.mxu0 %v5823
  %5904 = vmatmul.mubr.bf16.gmra.mxu0 %v5724
  %v5905 = vpop.f32.mrf.mxu0
  %v5906 = vadd.f32 %v5752, %v5905
  %v5907 = vpop.f32.mrf.mxu0
  %v5908 = vpop.f32.mrf.mxu0
  %v5909 = vadd.f32 %v5752, %v5908
  %v5910 = vpop.f32.mrf.mxu0
  %5911 = vmatprep.mubr.bf16.mxu0 %v5826
  %5912 = vmatmul.mubr.bf16.gmra.mxu0 %v5726
  %v5913 = vpop.f32.mrf.mxu0
  %v5914 = vadd.f32 %v5752, %v5913
  %v5915 = vpop.f32.mrf.mxu0
  %v5916 = vpop.f32.mrf.mxu0
  %v5917 = vadd.f32 %v5752, %v5916
  %v5918 = vpop.f32.mrf.mxu0
  %5919 = vmatprep.mubr.bf16.mxu0 %v5829
  %5920 = vmatmul.mubr.bf16.gmra.mxu0 %v5728
  %v5921 = vpop.f32.mrf.mxu0
  %v5922 = vadd.f32 %v5752, %v5921
  %v5923 = vpop.f32.mrf.mxu0
  %v5924 = vpop.f32.mrf.mxu0
  %v5925 = vadd.f32 %v5752, %v5924
  %v5926 = vpop.f32.mrf.mxu0
  %5927 = vdwg.mxu0
  %vm5928 = vcmp.gt.f32.partialorder %v5866, 0.0
  %vm5929 = vcmp.gt.f32.partialorder %v5869, 0.0
  %vm5930 = vcmp.gt.f32.partialorder %v5874, 0.0
  %vm5931 = vcmp.gt.f32.partialorder %v5877, 0.0
  %vm5932 = vcmp.gt.f32.partialorder %v5882, 0.0
  %vm5933 = vcmp.gt.f32.partialorder %v5885, 0.0
  %vm5934 = vcmp.gt.f32.partialorder %v5890, 0.0
  %vm5935 = vcmp.gt.f32.partialorder %v5893, 0.0
  %vm5936 = vcmp.gt.f32.partialorder %v5898, 0.0
  %vm5937 = vcmp.gt.f32.partialorder %v5901, 0.0
  %vm5938 = vcmp.gt.f32.partialorder %v5906, 0.0
  %vm5939 = vcmp.gt.f32.partialorder %v5909, 0.0
  %vm5940 = vcmp.gt.f32.partialorder %v5914, 0.0
  %vm5941 = vcmp.gt.f32.partialorder %v5917, 0.0
  %vm5942 = vcmp.gt.f32.partialorder %v5922, 0.0
  %vm5943 = vcmp.gt.f32.partialorder %v5925, 0.0
  %v5944 = vmul.f32 %v5866, 0.2
  %v5945 = vmul.f32 %v5869, 0.2
  %v5946 = vmul.f32 %v5874, 0.2
  %v5947 = vmul.f32 %v5877, 0.2
  %v5948 = vmul.f32 %v5882, 0.2
  %v5949 = vmul.f32 %v5885, 0.2
  %v5950 = vmul.f32 %v5890, 0.2
  %v5951 = vmul.f32 %v5893, 0.2
  %v5952 = vmul.f32 %v5898, 0.2
  %v5953 = vmul.f32 %v5901, 0.2
  %v5954 = vmul.f32 %v5906, 0.2
  %v5955 = vmul.f32 %v5909, 0.2
  %v5956 = vmul.f32 %v5914, 0.2
  %v5957 = vmul.f32 %v5917, 0.2
  %v5958 = vmul.f32 %v5922, 0.2
  %v5959 = vmul.f32 %v5925, 0.2
  %v5960 = vsel %vm5928, %v5866, %v5944
  %v5961 = vsel %vm5929, %v5869, %v5945
  %v5962 = vsel %vm5930, %v5874, %v5946
  %v5963 = vsel %vm5931, %v5877, %v5947
  %v5964 = vsel %vm5932, %v5882, %v5948
  %v5965 = vsel %vm5933, %v5885, %v5949
  %v5966 = vsel %vm5934, %v5890, %v5950
  %v5967 = vsel %vm5935, %v5893, %v5951
  %v5968 = vsel %vm5936, %v5898, %v5952
  %v5969 = vsel %vm5937, %v5901, %v5953
  %v5970 = vsel %vm5938, %v5906, %v5954
  %v5971 = vsel %vm5939, %v5909, %v5955
  %v5972 = vsel %vm5940, %v5914, %v5956
  %v5973 = vsel %vm5941, %v5917, %v5957
  %v5974 = vsel %vm5942, %v5922, %v5958
  %v5975 = vsel %vm5943, %v5925, %v5959
  %v5976 = vld [vmem:[%s6 + $0x1] sm:$0x1]
  %v5977 = vlaneseq
  %v5978 = vshrl.u32 %v5977, 7
  %v5979 = vsub.s32 0, %v5978
  %v5980 = vrot.slane %v5976, %v5979
  %v5981 = vmul.f32 %v5960, %v5980
  %v5982 = vmul.f32 %v5961, %v5980
  %v5983 = vmul.f32 %v5962, %v5980
  %v5984 = vmul.f32 %v5963, %v5980
  %v5985 = vmul.f32 %v5964, %v5980
  %v5986 = vmul.f32 %v5965, %v5980
  %v5987 = vmul.f32 %v5966, %v5980
  %v5988 = vmul.f32 %v5967, %v5980
  %v5989 = vmul.f32 %v5968, %v5980
  %v5990 = vmul.f32 %v5969, %v5980
  %v5991 = vmul.f32 %v5970, %v5980
  %v5992 = vmul.f32 %v5971, %v5980
  %v5993 = vmul.f32 %v5972, %v5980
  %v5994 = vmul.f32 %v5973, %v5980
  %v5995 = vmul.f32 %v5974, %v5980
  %v5996 = vmul.f32 %v5975, %v5980
  %v5997 = vld [vmem:[%s6 + $0x2] sm:$0x1]
  %v5998 = vlaneseq
  %v5999 = vshrl.u32 %v5998, 7
  %v6000 = vsub.s32 0, %v5999
  %v6001 = vrot.slane %v5997, %v6000
  %v6002 = vadd.f32 %v5981, %v6001
  %v6003 = vadd.f32 %v5982, %v6001
  %v6004 = vadd.f32 %v5983, %v6001
  %v6005 = vadd.f32 %v5984, %v6001
  %v6006 = vadd.f32 %v5985, %v6001
  %v6007 = vadd.f32 %v5986, %v6001
  %v6008 = vadd.f32 %v5987, %v6001
  %v6009 = vadd.f32 %v5988, %v6001
  %v6010 = vadd.f32 %v5989, %v6001
  %v6011 = vadd.f32 %v5990, %v6001
  %v6012 = vadd.f32 %v5991, %v6001
  %v6013 = vadd.f32 %v5992, %v6001
  %v6014 = vadd.f32 %v5993, %v6001
  %v6015 = vadd.f32 %v5994, %v6001
  %v6016 = vadd.f32 %v5995, %v6001
  %v6017 = vadd.f32 %v5996, %v6001
  %vm6018 = vcmask 261120
  %6019 = vst.msk [vmem:[#allocation7] sm:$0xff] %vm6018, 0.0
  %6020 = vst.msk [vmem:[#allocation7 + $0x8] sm:$0xff] %vm6018, 0.0
  %vm6021 = vcmask 253952
  %6022 = vst.msk [vmem:[#allocation7 + $0x10] sm:$0x1] %vm6021, 0.0
  %6023 = vst.msk [vmem:[#allocation7 + $0xf0] sm:$0xff] %vm6018, 0.0
  %6024 = vst.msk [vmem:[#allocation7 + $0xf8] sm:$0xff] %vm6018, 0.0
  %6025 = vst.msk [vmem:[#allocation7 + $0x100] sm:$0x1] %vm6021, 0.0
  %6026 = vst.msk [vmem:[#allocation7 + $0x7] sm:$0x1] %vm6021, 0.0
  %6027 = vst.msk [vmem:[#allocation7 + $0x1f] sm:$0x1] %vm6021, 0.0
  %6028 = vst.msk [vmem:[#allocation7 + $0x37] sm:$0x1] %vm6021, 0.0
  %6029 = vst.msk [vmem:[#allocation7 + $0x4f] sm:$0x1] %vm6021, 0.0
  %6030 = vst.msk [vmem:[#allocation7 + $0x67] sm:$0x1] %vm6021, 0.0
  %6031 = vst.msk [vmem:[#allocation7 + $0x7f] sm:$0x1] %vm6021, 0.0
  %6032 = vst.msk [vmem:[#allocation7 + $0x97] sm:$0x1] %vm6021, 0.0
  %6033 = vst.msk [vmem:[#allocation7 + $0xaf] sm:$0x1] %vm6021, 0.0
  %6034 = vst.msk [vmem:[#allocation7 + $0xc7] sm:$0x1] %vm6021, 0.0
  %6035 = vst.msk [vmem:[#allocation7 + $0xdf] sm:$0x1] %vm6021, 0.0
  %6036 = vst.msk [vmem:[#allocation7 + $0xf7] sm:$0x1] %vm6021, 0.0
  %6037 = vst.msk [vmem:[#allocation7 + $0x10f] sm:$0x1] %vm6021, 0.0
  %6038 = vst.msk [vmem:[#allocation7 + $0x127] sm:$0x1] %vm6021, 0.0
  %6039 = vst.msk [vmem:[#allocation7 + $0x13f] sm:$0x1] %vm6021, 0.0
  %6040 = vst.msk [vmem:[#allocation7 + $0x157] sm:$0x1] %vm6021, 0.0
  %6041 = vst.msk [vmem:[#allocation7 + $0x16f] sm:$0x1] %vm6021, 0.0
  %6042 = vst.msk [vmem:[#allocation7 + $0x187] sm:$0x1] %vm6021, 0.0
  %6043 = vst.msk [vmem:[#allocation7 + $0x19f] sm:$0x1] %vm6021, 0.0
  %6044 = vst.msk [vmem:[#allocation7 + $0x1b7] sm:$0x1] %vm6021, 0.0
  %6045 = vst.msk [vmem:[#allocation7 + $0x1cf] sm:$0x1] %vm6021, 0.0
  %s6046 = scalar_lea.vmem [#allocation7], 24
  %6047 = vst.msk [vmem:[%s6046 + $0x8] sm:$0xff] %vm6018, %v6002
  %6048 = vst.msk [vmem:[%s6046 + $0x20] sm:$0xff] %vm6018, %v6003
  %6049 = vst.msk [vmem:[%s6046 + $0x38] sm:$0xff] %vm6018, %v6004
  %6050 = vst.msk [vmem:[%s6046 + $0x50] sm:$0xff] %vm6018, %v6005
  %6051 = vst.msk [vmem:[%s6046 + $0x68] sm:$0xff] %vm6018, %v6006
  %6052 = vst.msk [vmem:[%s6046 + $0x80] sm:$0xff] %vm6018, %v6007
  %6053 = vst.msk [vmem:[%s6046 + $0x98] sm:$0xff] %vm6018, %v6008
  %6054 = vst.msk [vmem:[%s6046 + $0xb0] sm:$0xff] %vm6018, %v6009
  %6055 = vst.msk [vmem:[%s6046 + $0xf8] sm:$0xff] %vm6018, %v6010
  %6056 = vst.msk [vmem:[%s6046 + $0x110] sm:$0xff] %vm6018, %v6011
  %6057 = vst.msk [vmem:[%s6046 + $0x128] sm:$0xff] %vm6018, %v6012
  %6058 = vst.msk [vmem:[%s6046 + $0x140] sm:$0xff] %vm6018, %v6013
  %6059 = vst.msk [vmem:[%s6046 + $0x158] sm:$0xff] %vm6018, %v6014
  %6060 = vst.msk [vmem:[%s6046 + $0x170] sm:$0xff] %vm6018, %v6015
  %6061 = vst.msk [vmem:[%s6046 + $0x188] sm:$0xff] %vm6018, %v6016
  %6062 = vst.msk [vmem:[%s6046 + $0x1a0] sm:$0xff] %vm6018, %v6017
  %s6063 = scalar_lea.vmem [#allocation7], 7
  %v6064 = vld [vmem:[%s6063] ss:$2 sm:$0xf]
  %s6065 = scalar_lea.vmem [#allocation7], 55
  %v6066 = vld [vmem:[%s6065] ss:$2 sm:$0xf]
  %s6067 = scalar_lea.vmem [#allocation7], 103
  %v6068 = vld [vmem:[%s6067] ss:$2 sm:$0xf]
  %s6069 = scalar_lea.vmem [#allocation7], 151
  %v6070 = vld [vmem:[%s6069] ss:$2 sm:$0xf]
  %s6071 = scalar_lea.vmem [#allocation7], 247
  %v6072 = vld [vmem:[%s6071] ss:$2 sm:$0xf]
  %s6073 = scalar_lea.vmem [#allocation7], 295
  %v6074 = vld [vmem:[%s6073] ss:$2 sm:$0xf]
  %s6075 = scalar_lea.vmem [#allocation7], 343
  %v6076 = vld [vmem:[%s6075] ss:$2 sm:$0xf]
  %s6077 = scalar_lea.vmem [#allocation7], 391
  %v6078 = vld [vmem:[%s6077] ss:$2 sm:$0xf]
  %vm6079 = vcmask 257024
  %6080 = vst.msk [vmem:[#allocation4] sm:$0xf] %vm6079, %v6064
  %6081 = vst.msk [vmem:[#allocation4 + $0xc] sm:$0xf] %vm6079, %v6066
  %6082 = vst.msk [vmem:[#allocation4 + $0x18] sm:$0xf] %vm6079, %v6068
  %6083 = vst.msk [vmem:[#allocation4 + $0x24] sm:$0xf] %vm6079, %v6070
  %6084 = vst.msk [vmem:[#allocation4 + $0x30] sm:$0xf] %vm6079, %v6072
  %6085 = vst.msk [vmem:[#allocation4 + $0x3c] sm:$0xf] %vm6079, %v6074
  %6086 = vst.msk [vmem:[#allocation4 + $0x48] sm:$0xf] %vm6079, %v6076
  %6087 = vst.msk [vmem:[#allocation4 + $0x54] sm:$0xf] %vm6079, %v6078
  %s6088 = scalar_lea.vmem [#allocation7], 8
  %v6089 = vld [vmem:[%s6088] ss:$2 sm:$0xf]
  %s6090 = scalar_lea.vmem [#allocation7], 56
  %v6091 = vld [vmem:[%s6090] ss:$2 sm:$0xf]
  %s6092 = scalar_lea.vmem [#allocation7], 104
  %v6093 = vld [vmem:[%s6092] ss:$2 sm:$0xf]
  %s6094 = scalar_lea.vmem [#allocation7], 152
  %v6095 = vld [vmem:[%s6094] ss:$2 sm:$0xf]
  %s6096 = scalar_lea.vmem [#allocation7], 248
  %v6097 = vld [vmem:[%s6096] ss:$2 sm:$0xf]
  %s6098 = scalar_lea.vmem [#allocation7], 296
  %v6099 = vld [vmem:[%s6098] ss:$2 sm:$0xf]
  %s6100 = scalar_lea.vmem [#allocation7], 344
  %v6101 = vld [vmem:[%s6100] ss:$2 sm:$0xf]
  %s6102 = scalar_lea.vmem [#allocation7], 392
  %v6103 = vld [vmem:[%s6102] ss:$2 sm:$0xf]
  %6112 = vrot.lane.b32.xlu0 %v6089, 32
  %v6113 = vpop.permute.xlu0 %6112
  %6114 = vrot.lane.b32.xlu0 %v6091, 32
  %v6115 = vpop.permute.xlu0 %6114
  %6116 = vrot.lane.b32.xlu0 %v6093, 32
  %v6117 = vpop.permute.xlu0 %6116
  %6118 = vrot.lane.b32.xlu0 %v6095, 32
  %v6119 = vpop.permute.xlu0 %6118
  %6120 = vrot.lane.b32.xlu0 %v6097, 32
  %v6121 = vpop.permute.xlu0 %6120
  %6122 = vrot.lane.b32.xlu0 %v6099, 32
  %v6123 = vpop.permute.xlu0 %6122
  %6124 = vrot.lane.b32.xlu0 %v6101, 32
  %v6125 = vpop.permute.xlu0 %6124
  %6126 = vrot.lane.b32.xlu0 %v6103, 32
  %v6127 = vpop.permute.xlu0 %6126
  %vm6136 = vcmask 519424
  %6137 = vst.msk [vmem:[#allocation4] sm:$0xf] %vm6136, %v6113
  %6138 = vst.msk [vmem:[#allocation4 + $0xc] sm:$0xf] %vm6136, %v6115
  %6139 = vst.msk [vmem:[#allocation4 + $0x18] sm:$0xf] %vm6136, %v6117
  %6140 = vst.msk [vmem:[#allocation4 + $0x24] sm:$0xf] %vm6136, %v6119
  %6141 = vst.msk [vmem:[#allocation4 + $0x30] sm:$0xf] %vm6136, %v6121
  %6142 = vst.msk [vmem:[#allocation4 + $0x3c] sm:$0xf] %vm6136, %v6123
  %6143 = vst.msk [vmem:[#allocation4 + $0x48] sm:$0xf] %vm6136, %v6125
  %6144 = vst.msk [vmem:[#allocation4 + $0x54] sm:$0xf] %vm6136, %v6127
  %s6145 = scalar_lea.vmem [#allocation7], 9
  %v6146 = vld [vmem:[%s6145] ss:$2 sm:$0xf]
  %s6147 = scalar_lea.vmem [#allocation7], 57
  %v6148 = vld [vmem:[%s6147] ss:$2 sm:$0xf]
  %s6149 = scalar_lea.vmem [#allocation7], 105
  %v6150 = vld [vmem:[%s6149] ss:$2 sm:$0xf]
  %s6151 = scalar_lea.vmem [#allocation7], 153
  %v6152 = vld [vmem:[%s6151] ss:$2 sm:$0xf]
  %s6153 = scalar_lea.vmem [#allocation7], 249
  %v6154 = vld [vmem:[%s6153] ss:$2 sm:$0xf]
  %s6155 = scalar_lea.vmem [#allocation7], 297
  %v6156 = vld [vmem:[%s6155] ss:$2 sm:$0xf]
  %s6157 = scalar_lea.vmem [#allocation7], 345
  %v6158 = vld [vmem:[%s6157] ss:$2 sm:$0xf]
  %s6159 = scalar_lea.vmem [#allocation7], 393
  %v6160 = vld [vmem:[%s6159] ss:$2 sm:$0xf]
  %6169 = vrot.lane.b32.xlu0 %v6146, 64
  %v6170 = vpop.permute.xlu0 %6169
  %6171 = vrot.lane.b32.xlu0 %v6148, 64
  %v6172 = vpop.permute.xlu0 %6171
  %6173 = vrot.lane.b32.xlu0 %v6150, 64
  %v6174 = vpop.permute.xlu0 %6173
  %6175 = vrot.lane.b32.xlu0 %v6152, 64
  %v6176 = vpop.permute.xlu0 %6175
  %6177 = vrot.lane.b32.xlu0 %v6154, 64
  %v6178 = vpop.permute.xlu0 %6177
  %6179 = vrot.lane.b32.xlu0 %v6156, 64
  %v6180 = vpop.permute.xlu0 %6179
  %6181 = vrot.lane.b32.xlu0 %v6158, 64
  %v6182 = vpop.permute.xlu0 %6181
  %6183 = vrot.lane.b32.xlu0 %v6160, 64
  %v6184 = vpop.permute.xlu0 %6183
  %vm6193 = vcmask 781824
  %6194 = vst.msk [vmem:[#allocation4] sm:$0xf] %vm6193, %v6170
  %6195 = vst.msk [vmem:[#allocation4 + $0xc] sm:$0xf] %vm6193, %v6172
  %6196 = vst.msk [vmem:[#allocation4 + $0x18] sm:$0xf] %vm6193, %v6174
  %6197 = vst.msk [vmem:[#allocation4 + $0x24] sm:$0xf] %vm6193, %v6176
  %6198 = vst.msk [vmem:[#allocation4 + $0x30] sm:$0xf] %vm6193, %v6178
  %6199 = vst.msk [vmem:[#allocation4 + $0x3c] sm:$0xf] %vm6193, %v6180
  %6200 = vst.msk [vmem:[#allocation4 + $0x48] sm:$0xf] %vm6193, %v6182
  %6201 = vst.msk [vmem:[#allocation4 + $0x54] sm:$0xf] %vm6193, %v6184
  %s6202 = scalar_lea.vmem %s6046, 7 [#allocation7]
  %v6203 = vld [vmem:[%s6202] ss:$2 sm:$0xf]
  %s6204 = scalar_lea.vmem %s6046, 55 [#allocation7]
  %v6205 = vld [vmem:[%s6204] ss:$2 sm:$0xf]
  %s6206 = scalar_lea.vmem %s6046, 103 [#allocation7]
  %v6207 = vld [vmem:[%s6206] ss:$2 sm:$0xf]
  %s6208 = scalar_lea.vmem %s6046, 151 [#allocation7]
  %v6209 = vld [vmem:[%s6208] ss:$2 sm:$0xf]
  %s6210 = scalar_lea.vmem %s6046, 247 [#allocation7]
  %v6211 = vld [vmem:[%s6210] ss:$2 sm:$0xf]
  %s6212 = scalar_lea.vmem %s6046, 295 [#allocation7]
  %v6213 = vld [vmem:[%s6212] ss:$2 sm:$0xf]
  %s6214 = scalar_lea.vmem %s6046, 343 [#allocation7]
  %v6215 = vld [vmem:[%s6214] ss:$2 sm:$0xf]
  %s6216 = scalar_lea.vmem %s6046, 391 [#allocation7]
  %v6217 = vld [vmem:[%s6216] ss:$2 sm:$0xf]
  %6226 = vrot.lane.b32.xlu0 %v6203, 96
  %v6227 = vpop.permute.xlu0 %6226
  %6228 = vrot.lane.b32.xlu0 %v6205, 96
  %v6229 = vpop.permute.xlu0 %6228
  %6230 = vrot.lane.b32.xlu0 %v6207, 96
  %v6231 = vpop.permute.xlu0 %6230
  %6232 = vrot.lane.b32.xlu0 %v6209, 96
  %v6233 = vpop.permute.xlu0 %6232
  %6234 = vrot.lane.b32.xlu0 %v6211, 96
  %v6235 = vpop.permute.xlu0 %6234
  %6236 = vrot.lane.b32.xlu0 %v6213, 96
  %v6237 = vpop.permute.xlu0 %6236
  %6238 = vrot.lane.b32.xlu0 %v6215, 96
  %v6239 = vpop.permute.xlu0 %6238
  %6240 = vrot.lane.b32.xlu0 %v6217, 96
  %v6241 = vpop.permute.xlu0 %6240
  %vm6250 = vcmask 1044224
  %6251 = vst.msk [vmem:[#allocation4] sm:$0xf] %vm6250, %v6227
  %6252 = vst.msk [vmem:[#allocation4 + $0xc] sm:$0xf] %vm6250, %v6229
  %6253 = vst.msk [vmem:[#allocation4 + $0x18] sm:$0xf] %vm6250, %v6231
  %6254 = vst.msk [vmem:[#allocation4 + $0x24] sm:$0xf] %vm6250, %v6233
  %6255 = vst.msk [vmem:[#allocation4 + $0x30] sm:$0xf] %vm6250, %v6235
  %6256 = vst.msk [vmem:[#allocation4 + $0x3c] sm:$0xf] %vm6250, %v6237
  %6257 = vst.msk [vmem:[#allocation4 + $0x48] sm:$0xf] %vm6250, %v6239
  %6258 = vst.msk [vmem:[#allocation4 + $0x54] sm:$0xf] %vm6250, %v6241
  %s6259 = scalar_lea.vmem %s6046, 8 [#allocation7]
  %v6260 = vld [vmem:[%s6259] ss:$2 sm:$0xf]
  %s6261 = scalar_lea.vmem %s6046, 56 [#allocation7]
  %v6262 = vld [vmem:[%s6261] ss:$2 sm:$0xf]
  %s6263 = scalar_lea.vmem %s6046, 104 [#allocation7]
  %v6264 = vld [vmem:[%s6263] ss:$2 sm:$0xf]
  %s6265 = scalar_lea.vmem %s6046, 152 [#allocation7]
  %v6266 = vld [vmem:[%s6265] ss:$2 sm:$0xf]
  %s6267 = scalar_lea.vmem %s6046, 248 [#allocation7]
  %v6268 = vld [vmem:[%s6267] ss:$2 sm:$0xf]
  %s6269 = scalar_lea.vmem %s6046, 296 [#allocation7]
  %v6270 = vld [vmem:[%s6269] ss:$2 sm:$0xf]
  %s6271 = scalar_lea.vmem %s6046, 344 [#allocation7]
  %v6272 = vld [vmem:[%s6271] ss:$2 sm:$0xf]
  %s6273 = scalar_lea.vmem %s6046, 392 [#allocation7]
  %v6274 = vld [vmem:[%s6273] ss:$2 sm:$0xf]
  %6275 = vst.msk [vmem:[#allocation4 + $0x4] sm:$0xf] %vm6079, %v6260
  %6276 = vst.msk [vmem:[#allocation4 + $0x10] sm:$0xf] %vm6079, %v6262
  %6277 = vst.msk [vmem:[#allocation4 + $0x1c] sm:$0xf] %vm6079, %v6264
  %6278 = vst.msk [vmem:[#allocation4 + $0x28] sm:$0xf] %vm6079, %v6266
  %6279 = vst.msk [vmem:[#allocation4 + $0x34] sm:$0xf] %vm6079, %v6268
  %6280 = vst.msk [vmem:[#allocation4 + $0x40] sm:$0xf] %vm6079, %v6270
  %6281 = vst.msk [vmem:[#allocation4 + $0x4c] sm:$0xf] %vm6079, %v6272
  %6282 = vst.msk [vmem:[#allocation4 + $0x58] sm:$0xf] %vm6079, %v6274
  %s6283 = scalar_lea.vmem %s6046, 9 [#allocation7]
  %v6284 = vld [vmem:[%s6283] ss:$2 sm:$0xf]
  %s6285 = scalar_lea.vmem %s6046, 57 [#allocation7]
  %v6286 = vld [vmem:[%s6285] ss:$2 sm:$0xf]
  %s6287 = scalar_lea.vmem %s6046, 105 [#allocation7]
  %v6288 = vld [vmem:[%s6287] ss:$2 sm:$0xf]
  %s6289 = scalar_lea.vmem %s6046, 153 [#allocation7]
  %v6290 = vld [vmem:[%s6289] ss:$2 sm:$0xf]
  %s6291 = scalar_lea.vmem %s6046, 249 [#allocation7]
  %v6292 = vld [vmem:[%s6291] ss:$2 sm:$0xf]
  %s6293 = scalar_lea.vmem %s6046, 297 [#allocation7]
  %v6294 = vld [vmem:[%s6293] ss:$2 sm:$0xf]
  %s6295 = scalar_lea.vmem %s6046, 345 [#allocation7]
  %v6296 = vld [vmem:[%s6295] ss:$2 sm:$0xf]
  %s6297 = scalar_lea.vmem %s6046, 393 [#allocation7]
  %v6298 = vld [vmem:[%s6297] ss:$2 sm:$0xf]
  %6307 = vrot.lane.b32.xlu0 %v6284, 32
  %v6308 = vpop.permute.xlu0 %6307
  %6309 = vrot.lane.b32.xlu0 %v6286, 32
  %v6310 = vpop.permute.xlu0 %6309
  %6311 = vrot.lane.b32.xlu0 %v6288, 32
  %v6312 = vpop.permute.xlu0 %6311
  %6313 = vrot.lane.b32.xlu0 %v6290, 32
  %v6314 = vpop.permute.xlu0 %6313
  %6315 = vrot.lane.b32.xlu0 %v6292, 32
  %v6316 = vpop.permute.xlu0 %6315
  %6317 = vrot.lane.b32.xlu0 %v6294, 32
  %v6318 = vpop.permute.xlu0 %6317
  %6319 = vrot.lane.b32.xlu0 %v6296, 32
  %v6320 = vpop.permute.xlu0 %6319
  %6321 = vrot.lane.b32.xlu0 %v6298, 32
  %v6322 = vpop.permute.xlu0 %6321
  %6331 = vst.msk [vmem:[#allocation4 + $0x4] sm:$0xf] %vm6136, %v6308
  %6332 = vst.msk [vmem:[#allocation4 + $0x10] sm:$0xf] %vm6136, %v6310
  %6333 = vst.msk [vmem:[#allocation4 + $0x1c] sm:$0xf] %vm6136, %v6312
  %6334 = vst.msk [vmem:[#allocation4 + $0x28] sm:$0xf] %vm6136, %v6314
  %6335 = vst.msk [vmem:[#allocation4 + $0x34] sm:$0xf] %vm6136, %v6316
  %6336 = vst.msk [vmem:[#allocation4 + $0x40] sm:$0xf] %vm6136, %v6318
  %6337 = vst.msk [vmem:[#allocation4 + $0x4c] sm:$0xf] %vm6136, %v6320
  %6338 = vst.msk [vmem:[#allocation4 + $0x58] sm:$0xf] %vm6136, %v6322
  %s6339 = scalar_lea.vmem [#allocation7], 48
  %s6340 = scalar_lea.vmem %s6339, 7 [#allocation7]
  %v6341 = vld [vmem:[%s6340] ss:$2 sm:$0xf]
  %s6342 = scalar_lea.vmem %s6339, 55 [#allocation7]
  %v6343 = vld [vmem:[%s6342] ss:$2 sm:$0xf]
  %s6344 = scalar_lea.vmem %s6339, 103 [#allocation7]
  %v6345 = vld [vmem:[%s6344] ss:$2 sm:$0xf]
  %s6346 = scalar_lea.vmem %s6339, 151 [#allocation7]
  %v6347 = vld [vmem:[%s6346] ss:$2 sm:$0xf]
  %s6348 = scalar_lea.vmem %s6339, 247 [#allocation7]
  %v6349 = vld [vmem:[%s6348] ss:$2 sm:$0xf]
  %s6350 = scalar_lea.vmem %s6339, 295 [#allocation7]
  %v6351 = vld [vmem:[%s6350] ss:$2 sm:$0xf]
  %s6352 = scalar_lea.vmem %s6339, 343 [#allocation7]
  %v6353 = vld [vmem:[%s6352] ss:$2 sm:$0xf]
  %s6354 = scalar_lea.vmem %s6339, 391 [#allocation7]
  %v6355 = vld [vmem:[%s6354] ss:$2 sm:$0xf]
  %6364 = vrot.lane.b32.xlu0 %v6341, 64
  %v6365 = vpop.permute.xlu0 %6364
  %6366 = vrot.lane.b32.xlu0 %v6343, 64
  %v6367 = vpop.permute.xlu0 %6366
  %6368 = vrot.lane.b32.xlu0 %v6345, 64
  %v6369 = vpop.permute.xlu0 %6368
  %6370 = vrot.lane.b32.xlu0 %v6347, 64
  %v6371 = vpop.permute.xlu0 %6370
  %6372 = vrot.lane.b32.xlu0 %v6349, 64
  %v6373 = vpop.permute.xlu0 %6372
  %6374 = vrot.lane.b32.xlu0 %v6351, 64
  %v6375 = vpop.permute.xlu0 %6374
  %6376 = vrot.lane.b32.xlu0 %v6353, 64
  %v6377 = vpop.permute.xlu0 %6376
  %6378 = vrot.lane.b32.xlu0 %v6355, 64
  %v6379 = vpop.permute.xlu0 %6378
  %6388 = vst.msk [vmem:[#allocation4 + $0x4] sm:$0xf] %vm6193, %v6365
  %6389 = vst.msk [vmem:[#allocation4 + $0x10] sm:$0xf] %vm6193, %v6367
  %6390 = vst.msk [vmem:[#allocation4 + $0x1c] sm:$0xf] %vm6193, %v6369
  %6391 = vst.msk [vmem:[#allocation4 + $0x28] sm:$0xf] %vm6193, %v6371
  %6392 = vst.msk [vmem:[#allocation4 + $0x34] sm:$0xf] %vm6193, %v6373
  %6393 = vst.msk [vmem:[#allocation4 + $0x40] sm:$0xf] %vm6193, %v6375
  %6394 = vst.msk [vmem:[#allocation4 + $0x4c] sm:$0xf] %vm6193, %v6377
  %6395 = vst.msk [vmem:[#allocation4 + $0x58] sm:$0xf] %vm6193, %v6379
  %s6396 = scalar_lea.vmem %s6339, 8 [#allocation7]
  %v6397 = vld [vmem:[%s6396] ss:$2 sm:$0xf]
  %s6398 = scalar_lea.vmem %s6339, 56 [#allocation7]
  %v6399 = vld [vmem:[%s6398] ss:$2 sm:$0xf]
  %s6400 = scalar_lea.vmem %s6339, 104 [#allocation7]
  %v6401 = vld [vmem:[%s6400] ss:$2 sm:$0xf]
  %s6402 = scalar_lea.vmem %s6339, 152 [#allocation7]
  %v6403 = vld [vmem:[%s6402] ss:$2 sm:$0xf]
  %s6404 = scalar_lea.vmem %s6339, 248 [#allocation7]
  %v6405 = vld [vmem:[%s6404] ss:$2 sm:$0xf]
  %s6406 = scalar_lea.vmem %s6339, 296 [#allocation7]
  %v6407 = vld [vmem:[%s6406] ss:$2 sm:$0xf]
  %s6408 = scalar_lea.vmem %s6339, 344 [#allocation7]
  %v6409 = vld [vmem:[%s6408] ss:$2 sm:$0xf]
  %s6410 = scalar_lea.vmem %s6339, 392 [#allocation7]
  %v6411 = vld [vmem:[%s6410] ss:$2 sm:$0xf]
  %6420 = vrot.lane.b32.xlu0 %v6397, 96
  %v6421 = vpop.permute.xlu0 %6420
  %6422 = vrot.lane.b32.xlu0 %v6399, 96
  %v6423 = vpop.permute.xlu0 %6422
  %6424 = vrot.lane.b32.xlu0 %v6401, 96
  %v6425 = vpop.permute.xlu0 %6424
  %6426 = vrot.lane.b32.xlu0 %v6403, 96
  %v6427 = vpop.permute.xlu0 %6426
  %6428 = vrot.lane.b32.xlu0 %v6405, 96
  %v6429 = vpop.permute.xlu0 %6428
  %6430 = vrot.lane.b32.xlu0 %v6407, 96
  %v6431 = vpop.permute.xlu0 %6430
  %6432 = vrot.lane.b32.xlu0 %v6409, 96
  %v6433 = vpop.permute.xlu0 %6432
  %6434 = vrot.lane.b32.xlu0 %v6411, 96
  %v6435 = vpop.permute.xlu0 %6434
  %6444 = vst.msk [vmem:[#allocation4 + $0x4] sm:$0xf] %vm6250, %v6421
  %6445 = vst.msk [vmem:[#allocation4 + $0x10] sm:$0xf] %vm6250, %v6423
  %6446 = vst.msk [vmem:[#allocation4 + $0x1c] sm:$0xf] %vm6250, %v6425
  %6447 = vst.msk [vmem:[#allocation4 + $0x28] sm:$0xf] %vm6250, %v6427
  %6448 = vst.msk [vmem:[#allocation4 + $0x34] sm:$0xf] %vm6250, %v6429
  %6449 = vst.msk [vmem:[#allocation4 + $0x40] sm:$0xf] %vm6250, %v6431
  %6450 = vst.msk [vmem:[#allocation4 + $0x4c] sm:$0xf] %vm6250, %v6433
  %6451 = vst.msk [vmem:[#allocation4 + $0x58] sm:$0xf] %vm6250, %v6435
  %s6452 = scalar_lea.vmem %s6339, 9 [#allocation7]
  %v6453 = vld [vmem:[%s6452] ss:$2 sm:$0xf]
  %s6454 = scalar_lea.vmem %s6339, 57 [#allocation7]
  %v6455 = vld [vmem:[%s6454] ss:$2 sm:$0xf]
  %s6456 = scalar_lea.vmem %s6339, 105 [#allocation7]
  %v6457 = vld [vmem:[%s6456] ss:$2 sm:$0xf]
  %s6458 = scalar_lea.vmem %s6339, 153 [#allocation7]
  %v6459 = vld [vmem:[%s6458] ss:$2 sm:$0xf]
  %s6460 = scalar_lea.vmem %s6339, 249 [#allocation7]
  %v6461 = vld [vmem:[%s6460] ss:$2 sm:$0xf]
  %s6462 = scalar_lea.vmem %s6339, 297 [#allocation7]
  %v6463 = vld [vmem:[%s6462] ss:$2 sm:$0xf]
  %s6464 = scalar_lea.vmem %s6339, 345 [#allocation7]
  %v6465 = vld [vmem:[%s6464] ss:$2 sm:$0xf]
  %s6466 = scalar_lea.vmem %s6339, 393 [#allocation7]
  %v6467 = vld [vmem:[%s6466] ss:$2 sm:$0xf]
  %6468 = vst.msk [vmem:[#allocation4 + $0x8] sm:$0xf] %vm6079, %v6453
  %6469 = vst.msk [vmem:[#allocation4 + $0x14] sm:$0xf] %vm6079, %v6455
  %6470 = vst.msk [vmem:[#allocation4 + $0x20] sm:$0xf] %vm6079, %v6457
  %6471 = vst.msk [vmem:[#allocation4 + $0x2c] sm:$0xf] %vm6079, %v6459
  %6472 = vst.msk [vmem:[#allocation4 + $0x38] sm:$0xf] %vm6079, %v6461
  %6473 = vst.msk [vmem:[#allocation4 + $0x44] sm:$0xf] %vm6079, %v6463
  %6474 = vst.msk [vmem:[#allocation4 + $0x50] sm:$0xf] %vm6079, %v6465
  %6475 = vst.msk [vmem:[#allocation4 + $0x5c] sm:$0xf] %vm6079, %v6467
  %v6476 = vld [vmem:[#allocation4] sm:$0xff]
  %v6477 = vld [vmem:[#allocation4 + $0x8] sm:$0xf]
  %v6478 = vld [vmem:[#allocation4 + $0xc] sm:$0xff]
  %v6479 = vld [vmem:[#allocation4 + $0x14] sm:$0xf]
  %v6480 = vld [vmem:[#allocation4 + $0x18] sm:$0xff]
  %v6481 = vld [vmem:[#allocation4 + $0x20] sm:$0xf]
  %v6482 = vld [vmem:[#allocation4 + $0x24] sm:$0xff]
  %v6483 = vld [vmem:[#allocation4 + $0x2c] sm:$0xf]
  %v6484 = vld [vmem:[#allocation4 + $0x30] sm:$0xff]
  %v6485 = vld [vmem:[#allocation4 + $0x38] sm:$0xf]
  %v6486 = vld [vmem:[#allocation4 + $0x3c] sm:$0xff]
  %v6487 = vld [vmem:[#allocation4 + $0x44] sm:$0xf]
  %v6488 = vld [vmem:[#allocation4 + $0x48] sm:$0xff]
  %v6489 = vld [vmem:[#allocation4 + $0x50] sm:$0xf]
  %v6490 = vld [vmem:[#allocation4 + $0x54] sm:$0xff]
  %v6491 = vld [vmem:[#allocation4 + $0x5c] sm:$0xf]
  %v6508 = vcombine.low %v6476, %v6478
  %v6509 = vcombine.high %v6476, %v6478
  %v6510 = vcombine.low %v6477, %v6479
  %v6511 = vcombine.low %v6480, %v6482
  %v6512 = vcombine.high %v6480, %v6482
  %v6513 = vcombine.low %v6481, %v6483
  %v6514 = vcombine.low %v6484, %v6486
  %v6515 = vcombine.high %v6484, %v6486
  %v6516 = vcombine.low %v6485, %v6487
  %v6517 = vcombine.low %v6488, %v6490
  %v6518 = vcombine.high %v6488, %v6490
  %v6519 = vcombine.low %v6489, %v6491
  %v6532 = vpack.c.bf16 %v6511, %v6508
  %v6533 = vpack.c.bf16 %v6512, %v6509
  %v6534 = vpack.c.bf16 %v6513, %v6510
  %v6535 = vpack.c.bf16 %v6517, %v6514
  %v6536 = vpack.c.bf16 %v6518, %v6515
  %v6537 = vpack.c.bf16 %v6519, %v6516
  %v6538 = vld [vmem:[%s3] sm:$0xf]
  %v6539 = vld [vmem:[%s3 + $0x4] sm:$0xf]
  %v6540 = vld [vmem:[%s3 + $0x8] sm:$0xf]
  %v6541 = vld [vmem:[%s3 + $0xc] sm:$0xf]
  %v6542 = vld [vmem:[%s3 + $0x10] sm:$0xf]
  %v6543 = vld [vmem:[%s3 + $0x14] sm:$0xf]
  %v6544 = vld [vmem:[%s3 + $0x18] sm:$0xf]
  %v6545 = vld [vmem:[%s3 + $0x1c] sm:$0xf]
  %v6546 = vld [vmem:[%s3 + $0x20] sm:$0xf]
  %v6547 = vld [vmem:[%s3 + $0x24] sm:$0xf]
  %v6548 = vld [vmem:[%s3 + $0x28] sm:$0xf]
  %v6549 = vld [vmem:[%s3 + $0x2c] sm:$0xf]
  %v6550 = vld [vmem:[%s3 + $0x30] sm:$0xf]
  %v6551 = vld [vmem:[%s3 + $0x34] sm:$0xf]
  %v6552 = vld [vmem:[%s3 + $0x38] sm:$0xf]
  %v6553 = vld [vmem:[%s3 + $0x3c] sm:$0xf]
  %v6554 = vld [vmem:[%s3 + $0x40] sm:$0xf]
  %v6555 = vld [vmem:[%s3 + $0x44] sm:$0xf]
  %v6556 = vld [vmem:[%s3 + $0x48] sm:$0xf]
  %v6557 = vld [vmem:[%s3 + $0x4c] sm:$0xf]
  %v6558 = vld [vmem:[%s3 + $0x50] sm:$0xf]
  %v6559 = vld [vmem:[%s3 + $0x54] sm:$0xf]
  %v6560 = vld [vmem:[%s3 + $0x58] sm:$0xf]
  %v6561 = vld [vmem:[%s3 + $0x5c] sm:$0xf]
  %v6562 = vld [vmem:[%s3 + $0x60] sm:$0xf]
  %v6563 = vld [vmem:[%s3 + $0x64] sm:$0xf]
  %v6564 = vld [vmem:[%s3 + $0x68] sm:$0xf]
  %v6565 = vld [vmem:[%s3 + $0x6c] sm:$0xf]
  %v6566 = vld [vmem:[%s3 + $0x70] sm:$0xf]
  %v6567 = vld [vmem:[%s3 + $0x74] sm:$0xf]
  %v6568 = vld [vmem:[%s3 + $0x78] sm:$0xf]
  %v6569 = vld [vmem:[%s3 + $0x7c] sm:$0xf]
  %v6570 = vld [vmem:[%s3 + $0x80] sm:$0xf]
  %v6571 = vld [vmem:[%s3 + $0x84] sm:$0xf]
  %v6572 = vld [vmem:[%s3 + $0x88] sm:$0xf]
  %v6573 = vld [vmem:[%s3 + $0x8c] sm:$0xf]
  %v6574 = vld [vmem:[%s7] sm:$0x1]
  %v6575 = vlaneseq
  %v6576 = vshrl.u32 %v6575, 7
  %v6577 = vsub.s32 0, %v6576
  %v6578 = vrot.slane %v6574, %v6577
  %v6615 = vunpack.c.l.b16 %v6538
  %v6616 = vunpack.c.l.b16 %v6539
  %v6617 = vunpack.c.l.b16 %v6540
  %v6618 = vunpack.c.l.b16 %v6541
  %v6619 = vunpack.c.l.b16 %v6542
  %v6620 = vunpack.c.l.b16 %v6543
  %v6621 = vunpack.c.l.b16 %v6544
  %v6622 = vunpack.c.l.b16 %v6545
  %v6623 = vunpack.c.l.b16 %v6546
  %v6624 = vunpack.c.l.b16 %v6547
  %v6625 = vunpack.c.l.b16 %v6548
  %v6626 = vunpack.c.l.b16 %v6549
  %v6627 = vunpack.c.l.b16 %v6550
  %v6628 = vunpack.c.l.b16 %v6551
  %v6629 = vunpack.c.l.b16 %v6552
  %v6630 = vunpack.c.l.b16 %v6553
  %v6631 = vunpack.c.l.b16 %v6554
  %v6632 = vunpack.c.l.b16 %v6555
  %v6633 = vunpack.c.l.b16 %v6556
  %v6634 = vunpack.c.l.b16 %v6557
  %v6635 = vunpack.c.l.b16 %v6558
  %v6636 = vunpack.c.l.b16 %v6559
  %v6637 = vunpack.c.l.b16 %v6560
  %v6638 = vunpack.c.l.b16 %v6561
  %v6639 = vunpack.c.l.b16 %v6562
  %v6640 = vunpack.c.l.b16 %v6563
  %v6641 = vunpack.c.l.b16 %v6564
  %v6642 = vunpack.c.l.b16 %v6565
  %v6643 = vunpack.c.l.b16 %v6566
  %v6644 = vunpack.c.l.b16 %v6567
  %v6645 = vunpack.c.l.b16 %v6568
  %v6646 = vunpack.c.l.b16 %v6569
  %v6647 = vunpack.c.l.b16 %v6570
  %v6648 = vunpack.c.l.b16 %v6571
  %v6649 = vunpack.c.l.b16 %v6572
  %v6650 = vunpack.c.l.b16 %v6573
  %v6651 = vpack.c.b16 %v6616, %v6615
  %v6652 = vpack.c.b16 %v6618, %v6617
  %v6653 = vpack.c.b16 %v6620, %v6619
  %v6654 = vpack.c.b16 %v6622, %v6621
  %v6655 = vpack.c.b16 %v6624, %v6623
  %v6656 = vpack.c.b16 %v6626, %v6625
  %v6657 = vpack.c.b16 %v6628, %v6627
  %v6658 = vpack.c.b16 %v6630, %v6629
  %v6659 = vpack.c.b16 %v6632, %v6631
  %v6660 = vpack.c.b16 %v6634, %v6633
  %v6661 = vpack.c.b16 %v6636, %v6635
  %v6662 = vpack.c.b16 %v6638, %v6637
  %v6663 = vpack.c.b16 %v6640, %v6639
  %v6664 = vpack.c.b16 %v6642, %v6641
  %v6665 = vpack.c.b16 %v6644, %v6643
  %v6666 = vpack.c.b16 %v6646, %v6645
  %v6667 = vpack.c.b16 %v6648, %v6647
  %v6668 = vpack.c.b16 %v6650, %v6649
  %v6688 = vsel %vm6018, %v6534, 0
  %v6691 = vsel %vm6018, %v6537, 0
  %6693 = vmatprep.subr.bf16.mxu0 0
  %6694 = vmatpush1.bf16.msra.mxu0 %v6658
  %6695 = vmatprep.subr.bf16.mxu0 0
  %6696 = vmatpush1.bf16.msra.mxu0 %v6657
  %6697 = vmatprep.subr.bf16.mxu0 0
  %6698 = vmatpush1.bf16.msra.mxu0 %v6656
  %6699 = vmatprep.subr.bf16.mxu0 0
  %6700 = vmatpush1.bf16.msra.mxu0 %v6655
  %6701 = vmatprep.subr.bf16.mxu0 0
  %6702 = vmatpush1.bf16.msra.mxu0 %v6654
  %6703 = vmatprep.subr.bf16.mxu0 0
  %6704 = vmatpush1.bf16.msra.mxu0 %v6653
  %6705 = vmatprep.subr.bf16.mxu0 0
  %6706 = vmatpush1.bf16.msra.mxu0 %v6652
  %6707 = vmatprep.subr.bf16.mxu0 0
  %6708 = vmatpush1.bf16.msra.mxu0 %v6651
  %6709 = vmatprep.subr.bf16.mxu0 0
  %6710 = vmatpush2.bf16.msra.mxu0 %v6666
  %6711 = vmatprep.subr.bf16.mxu0 0
  %6712 = vmatpush2.bf16.msra.mxu0 %v6665
  %6713 = vmatprep.subr.bf16.mxu0 0
  %6714 = vmatpush2.bf16.msra.mxu0 %v6664
  %6715 = vmatprep.subr.bf16.mxu0 0
  %6716 = vmatpush2.bf16.msra.mxu0 %v6663
  %6717 = vmatprep.subr.bf16.mxu0 0
  %6718 = vmatpush2.bf16.msra.mxu0 %v6662
  %6719 = vmatprep.subr.bf16.mxu0 0
  %6720 = vmatpush2.bf16.msra.mxu0 %v6661
  %6721 = vmatprep.subr.bf16.mxu0 0
  %6722 = vmatpush2.bf16.msra.mxu0 %v6660
  %6723 = vmatprep.subr.bf16.mxu0 0
  %6724 = vmatpush2.bf16.msra.mxu0 %v6659
  %6725 = vmatprep.mubr.bf16.mxu0 %v6533
  %6726 = vmatmul.mubr.bf16.gmra.mxu0 %v6532
  %v6727 = vpop.f32.mrf.mxu0
  %v6728 = vadd.f32 %v6578, %v6727
  %v6729 = vpop.f32.mrf.mxu0
  %v6730 = vpop.f32.mrf.mxu0
  %v6731 = vadd.f32 %v6578, %v6730
  %v6732 = vpop.f32.mrf.mxu0
  %6733 = vmatprep.mubr.bf16.mxu0 %v6536
  %6734 = vmatmul.mubr.bf16.gmra.mxu0 %v6535
  %v6735 = vpop.f32.mrf.mxu0
  %v6736 = vadd.f32 %v6578, %v6735
  %v6737 = vpop.f32.mrf.mxu0
  %v6738 = vpop.f32.mrf.mxu0
  %v6739 = vadd.f32 %v6578, %v6738
  %v6740 = vpop.f32.mrf.mxu0
  %6741 = vdwg.mxu0
  %6742 = vmatprep.subr.bf16.mxu0 0
  %6743 = vmatpush1.bf16.msra.mxu0 0
  %6744 = vmatprep.subr.bf16.mxu0 0
  %6745 = vmatpush1.bf16.msra.mxu0 0
  %6746 = vmatprep.subr.bf16.mxu0 0
  %6747 = vmatpush1.bf16.msra.mxu0 0
  %6748 = vmatprep.subr.bf16.mxu0 0
  %6749 = vmatpush1.bf16.msra.mxu0 0
  %6750 = vmatprep.subr.bf16.mxu0 0
  %6751 = vmatpush1.bf16.msra.mxu0 0
  %6752 = vmatprep.subr.bf16.mxu0 0
  %6753 = vmatpush1.bf16.msra.mxu0 0
  %6754 = vmatprep.subr.bf16.mxu0 0
  %6755 = vmatpush1.bf16.msra.mxu0 %v6668
  %6756 = vmatprep.subr.bf16.mxu0 0
  %6757 = vmatpush1.bf16.msra.mxu0 %v6667
  %6758 = vmatprep.subr.bf16.mxu0 0
  %6759 = vmatpush2.bf16.msra.mxu0 0
  %6760 = vmatprep.subr.bf16.mxu0 0
  %6761 = vmatpush2.bf16.msra.mxu0 0
  %6762 = vmatprep.subr.bf16.mxu0 0
  %6763 = vmatpush2.bf16.msra.mxu0 0
  %6764 = vmatprep.subr.bf16.mxu0 0
  %6765 = vmatpush2.bf16.msra.mxu0 0
  %6766 = vmatprep.subr.bf16.mxu0 0
  %6767 = vmatpush2.bf16.msra.mxu0 0
  %6768 = vmatprep.subr.bf16.mxu0 0
  %6769 = vmatpush2.bf16.msra.mxu0 0
  %6770 = vmatprep.subr.bf16.mxu0 0
  %6771 = vmatpush2.bf16.msra.mxu0 0
  %6772 = vmatprep.subr.bf16.mxu0 0
  %6773 = vmatpush2.bf16.msra.mxu0 0
  %6774 = vmatprep.mubr.bf16.mxu0 0
  %6775 = vmatmul.mubr.bf16.gmra.mxu0 %v6688
  %v6776 = vpop.f32.mrf.mxu0
  %v6777 = vadd.f32 %v6728, %v6776
  %v6778 = vpop.f32.mrf.mxu0
  %v6779 = vpop.f32.mrf.mxu0
  %v6780 = vadd.f32 %v6731, %v6779
  %v6781 = vpop.f32.mrf.mxu0
  %6782 = vmatprep.mubr.bf16.mxu0 0
  %6783 = vmatmul.mubr.bf16.gmra.mxu0 %v6691
  %v6784 = vpop.f32.mrf.mxu0
  %v6785 = vadd.f32 %v6736, %v6784
  %v6786 = vpop.f32.mrf.mxu0
  %v6787 = vpop.f32.mrf.mxu0
  %v6788 = vadd.f32 %v6739, %v6787
  %v6789 = vpop.f32.mrf.mxu0
  %6790 = vdwg.mxu0
  %vm6791 = vcmp.gt.f32.partialorder %v6777, 0.0
  %vm6792 = vcmp.gt.f32.partialorder %v6780, 0.0
  %vm6793 = vcmp.gt.f32.partialorder %v6785, 0.0
  %vm6794 = vcmp.gt.f32.partialorder %v6788, 0.0
  %v6795 = vmul.f32 %v6777, 0.2
  %v6796 = vmul.f32 %v6780, 0.2
  %v6797 = vmul.f32 %v6785, 0.2
  %v6798 = vmul.f32 %v6788, 0.2
  %v6799 = vsel %vm6791, %v6777, %v6795
  %v6800 = vsel %vm6792, %v6780, %v6796
  %v6801 = vsel %vm6793, %v6785, %v6797
  %v6802 = vsel %vm6794, %v6788, %v6798
  %v6803 = vld [vmem:[%s7 + $0x1] sm:$0x1]
  %v6804 = vlaneseq
  %v6805 = vshrl.u32 %v6804, 7
  %v6806 = vsub.s32 0, %v6805
  %v6807 = vrot.slane %v6803, %v6806
  %v6808 = vmul.f32 %v6799, %v6807
  %v6809 = vmul.f32 %v6800, %v6807
  %v6810 = vmul.f32 %v6801, %v6807
  %v6811 = vmul.f32 %v6802, %v6807
  %v6812 = vld [vmem:[%s7 + $0x2] sm:$0x1]
  %v6813 = vlaneseq
  %v6814 = vshrl.u32 %v6813, 7
  %v6815 = vsub.s32 0, %v6814
  %v6816 = vrot.slane %v6812, %v6815
  %v6817 = vadd.f32 %v6808, %v6816
  %v6818 = vadd.f32 %v6809, %v6816
  %v6819 = vadd.f32 %v6810, %v6816
  %v6820 = vadd.f32 %v6811, %v6816
  %vm6821 = vcmask 523264
  %6822 = vst.msk [vmem:[#allocation8] sm:$0xff] %vm6821, 0.0
  %vm6823 = vcmask 520192
  %6824 = vst.msk [vmem:[#allocation8 + $0x8] sm:$0x1f] %vm6823, 0.0
  %6825 = vst.msk [vmem:[#allocation8 + $0x60] sm:$0xff] %vm6821, 0.0
  %6826 = vst.msk [vmem:[#allocation8 + $0x68] sm:$0x1f] %vm6823, 0.0
  %vm6827 = vcmask 516096
  %6828 = vst.msk [vmem:[#allocation8 + $0x7] sm:$0x1] %vm6827, 0.0
  %6829 = vst.msk [vmem:[#allocation8 + $0x17] sm:$0x1] %vm6827, 0.0
  %6830 = vst.msk [vmem:[#allocation8 + $0x27] sm:$0x1] %vm6827, 0.0
  %6831 = vst.msk [vmem:[#allocation8 + $0x37] sm:$0x1] %vm6827, 0.0
  %6832 = vst.msk [vmem:[#allocation8 + $0x47] sm:$0x1] %vm6827, 0.0
  %6833 = vst.msk [vmem:[#allocation8 + $0x57] sm:$0x1] %vm6827, 0.0
  %6834 = vst.msk [vmem:[#allocation8 + $0x67] sm:$0x1] %vm6827, 0.0
  %6835 = vst.msk [vmem:[#allocation8 + $0x77] sm:$0x1] %vm6827, 0.0
  %6836 = vst.msk [vmem:[#allocation8 + $0x87] sm:$0x1] %vm6827, 0.0
  %6837 = vst.msk [vmem:[#allocation8 + $0x97] sm:$0x1] %vm6827, 0.0
  %6838 = vst.msk [vmem:[#allocation8 + $0xa7] sm:$0x1] %vm6827, 0.0
  %6839 = vst.msk [vmem:[#allocation8 + $0xb7] sm:$0x1] %vm6827, 0.0
  %v6844 = vcombine.high %v6817, %v6817
  %v6845 = vcombine.high %v6818, %v6818
  %v6846 = vcombine.high %v6819, %v6819
  %v6847 = vcombine.high %v6820, %v6820
  %s6852 = scalar_lea.vmem [#allocation8], 16
  %vm6853 = vcmask 519168
  %6854 = vst.msk [vmem:[%s6852 + $0x8] sm:$0xf] %vm6853, %v6817
  %6855 = vst.msk [vmem:[%s6852 + $0x18] sm:$0xf] %vm6853, %v6844
  %6856 = vst.msk [vmem:[%s6852 + $0x28] sm:$0xf] %vm6853, %v6818
  %6857 = vst.msk [vmem:[%s6852 + $0x38] sm:$0xf] %vm6853, %v6845
  %6858 = vst.msk [vmem:[%s6852 + $0x68] sm:$0xf] %vm6853, %v6819
  %6859 = vst.msk [vmem:[%s6852 + $0x78] sm:$0xf] %vm6853, %v6846
  %6860 = vst.msk [vmem:[%s6852 + $0x88] sm:$0xf] %vm6853, %v6820
  %6861 = vst.msk [vmem:[%s6852 + $0x98] sm:$0xf] %vm6853, %v6847
  %s6862 = scalar_lea.vmem [#allocation8], 7
  %v6863 = vld [vmem:[%s6862] ss:$2 sm:$0x3]
  %s6864 = scalar_lea.vmem [#allocation8], 39
  %v6865 = vld [vmem:[%s6864] ss:$2 sm:$0x3]
  %s6866 = scalar_lea.vmem [#allocation8], 103
  %v6867 = vld [vmem:[%s6866] ss:$2 sm:$0x3]
  %s6868 = scalar_lea.vmem [#allocation8], 135
  %v6869 = vld [vmem:[%s6868] ss:$2 sm:$0x3]
  %vm6870 = vcmask 517120
  %6871 = vst.msk [vmem:[#allocation5] sm:$0x3] %vm6870, %v6863
  %6872 = vst.msk [vmem:[#allocation5 + $0xa] sm:$0x3] %vm6870, %v6865
  %6873 = vst.msk [vmem:[#allocation5 + $0x14] sm:$0x3] %vm6870, %v6867
  %6874 = vst.msk [vmem:[#allocation5 + $0x1e] sm:$0x3] %vm6870, %v6869
  %s6875 = scalar_lea.vmem [#allocation8], 8
  %v6876 = vld [vmem:[%s6875] ss:$2 sm:$0x3]
  %s6877 = scalar_lea.vmem [#allocation8], 40
  %v6878 = vld [vmem:[%s6877] ss:$2 sm:$0x3]
  %s6879 = scalar_lea.vmem [#allocation8], 104
  %v6880 = vld [vmem:[%s6879] ss:$2 sm:$0x3]
  %s6881 = scalar_lea.vmem [#allocation8], 136
  %v6882 = vld [vmem:[%s6881] ss:$2 sm:$0x3]
  %v6888 = vunpack.c.l.s4 1983009808
  %v6889 = vunpack.c.0.s8 %v6888
  %v6890 = vlaneseq
  %v6891 = vshrl.u32 %v6890, 7
  %v6892 = vsub.s32 %v6889, %v6891
  %v6893 = vrot.slane %v6876, %v6892
  %v6895 = vunpack.c.l.s4 1983009808
  %v6896 = vunpack.c.0.s8 %v6895
  %v6897 = vlaneseq
  %v6898 = vshrl.u32 %v6897, 7
  %v6899 = vsub.s32 %v6896, %v6898
  %v6900 = vrot.slane %v6878, %v6899
  %v6902 = vunpack.c.l.s4 1983009808
  %v6903 = vunpack.c.0.s8 %v6902
  %v6904 = vlaneseq
  %v6905 = vshrl.u32 %v6904, 7
  %v6906 = vsub.s32 %v6903, %v6905
  %v6907 = vrot.slane %v6880, %v6906
  %v6909 = vunpack.c.l.s4 1983009808
  %v6910 = vunpack.c.0.s8 %v6909
  %v6911 = vlaneseq
  %v6912 = vshrl.u32 %v6911, 7
  %v6913 = vsub.s32 %v6910, %v6912
  %v6914 = vrot.slane %v6882, %v6913
  %6915 = vrot.lane.b32.xlu0 %v6893, 64
  %v6916 = vpop.permute.xlu0 %6915
  %6917 = vrot.lane.b32.xlu0 %v6900, 64
  %v6918 = vpop.permute.xlu0 %6917
  %6919 = vrot.lane.b32.xlu0 %v6907, 64
  %v6920 = vpop.permute.xlu0 %6919
  %6921 = vrot.lane.b32.xlu0 %v6914, 64
  %v6922 = vpop.permute.xlu0 %6921
  %vm6927 = vcmask 1041920
  %6928 = vst.msk [vmem:[#allocation5] sm:$0x3] %vm6927, %v6916
  %6929 = vst.msk [vmem:[#allocation5 + $0xa] sm:$0x3] %vm6927, %v6918
  %6930 = vst.msk [vmem:[#allocation5 + $0x14] sm:$0x3] %vm6927, %v6920
  %6931 = vst.msk [vmem:[#allocation5 + $0x1e] sm:$0x3] %vm6927, %v6922
  %s6932 = scalar_lea.vmem [#allocation8], 9
  %v6933 = vld [vmem:[%s6932] ss:$2 sm:$0x3]
  %s6934 = scalar_lea.vmem [#allocation8], 41
  %v6935 = vld [vmem:[%s6934] ss:$2 sm:$0x3]
  %s6936 = scalar_lea.vmem [#allocation8], 105
  %v6937 = vld [vmem:[%s6936] ss:$2 sm:$0x3]
  %s6938 = scalar_lea.vmem [#allocation8], 137
  %v6939 = vld [vmem:[%s6938] ss:$2 sm:$0x3]
  %6940 = vst.msk [vmem:[#allocation5 + $0x2] sm:$0x3] %vm6870, %v6933
  %6941 = vst.msk [vmem:[#allocation5 + $0xc] sm:$0x3] %vm6870, %v6935
  %6942 = vst.msk [vmem:[#allocation5 + $0x16] sm:$0x3] %vm6870, %v6937
  %6943 = vst.msk [vmem:[#allocation5 + $0x20] sm:$0x3] %vm6870, %v6939
  %s6944 = scalar_lea.vmem %s6852, 7 [#allocation8]
  %v6945 = vld [vmem:[%s6944] ss:$2 sm:$0x3]
  %s6946 = scalar_lea.vmem %s6852, 39 [#allocation8]
  %v6947 = vld [vmem:[%s6946] ss:$2 sm:$0x3]
  %s6948 = scalar_lea.vmem %s6852, 103 [#allocation8]
  %v6949 = vld [vmem:[%s6948] ss:$2 sm:$0x3]
  %s6950 = scalar_lea.vmem %s6852, 135 [#allocation8]
  %v6951 = vld [vmem:[%s6950] ss:$2 sm:$0x3]
  %v6957 = vunpack.c.l.s4 1983009808
  %v6958 = vunpack.c.0.s8 %v6957
  %v6959 = vlaneseq
  %v6960 = vshrl.u32 %v6959, 7
  %v6961 = vsub.s32 %v6958, %v6960
  %v6962 = vrot.slane %v6945, %v6961
  %v6964 = vunpack.c.l.s4 1983009808
  %v6965 = vunpack.c.0.s8 %v6964
  %v6966 = vlaneseq
  %v6967 = vshrl.u32 %v6966, 7
  %v6968 = vsub.s32 %v6965, %v6967
  %v6969 = vrot.slane %v6947, %v6968
  %v6971 = vunpack.c.l.s4 1983009808
  %v6972 = vunpack.c.0.s8 %v6971
  %v6973 = vlaneseq
  %v6974 = vshrl.u32 %v6973, 7
  %v6975 = vsub.s32 %v6972, %v6974
  %v6976 = vrot.slane %v6949, %v6975
  %v6978 = vunpack.c.l.s4 1983009808
  %v6979 = vunpack.c.0.s8 %v6978
  %v6980 = vlaneseq
  %v6981 = vshrl.u32 %v6980, 7
  %v6982 = vsub.s32 %v6979, %v6981
  %v6983 = vrot.slane %v6951, %v6982
  %6984 = vrot.lane.b32.xlu0 %v6962, 64
  %v6985 = vpop.permute.xlu0 %6984
  %6986 = vrot.lane.b32.xlu0 %v6969, 64
  %v6987 = vpop.permute.xlu0 %6986
  %6988 = vrot.lane.b32.xlu0 %v6976, 64
  %v6989 = vpop.permute.xlu0 %6988
  %6990 = vrot.lane.b32.xlu0 %v6983, 64
  %v6991 = vpop.permute.xlu0 %6990
  %6996 = vst.msk [vmem:[#allocation5 + $0x2] sm:$0x3] %vm6927, %v6985
  %6997 = vst.msk [vmem:[#allocation5 + $0xc] sm:$0x3] %vm6927, %v6987
  %6998 = vst.msk [vmem:[#allocation5 + $0x16] sm:$0x3] %vm6927, %v6989
  %6999 = vst.msk [vmem:[#allocation5 + $0x20] sm:$0x3] %vm6927, %v6991
  %s7000 = scalar_lea.vmem %s6852, 8 [#allocation8]
  %v7001 = vld [vmem:[%s7000] ss:$2 sm:$0x3]
  %s7002 = scalar_lea.vmem %s6852, 40 [#allocation8]
  %v7003 = vld [vmem:[%s7002] ss:$2 sm:$0x3]
  %s7004 = scalar_lea.vmem %s6852, 104 [#allocation8]
  %v7005 = vld [vmem:[%s7004] ss:$2 sm:$0x3]
  %s7006 = scalar_lea.vmem %s6852, 136 [#allocation8]
  %v7007 = vld [vmem:[%s7006] ss:$2 sm:$0x3]
  %7008 = vst.msk [vmem:[#allocation5 + $0x4] sm:$0x3] %vm6870, %v7001
  %7009 = vst.msk [vmem:[#allocation5 + $0xe] sm:$0x3] %vm6870, %v7003
  %7010 = vst.msk [vmem:[#allocation5 + $0x18] sm:$0x3] %vm6870, %v7005
  %7011 = vst.msk [vmem:[#allocation5 + $0x22] sm:$0x3] %vm6870, %v7007
  %s7012 = scalar_lea.vmem %s6852, 9 [#allocation8]
  %v7013 = vld [vmem:[%s7012] ss:$2 sm:$0x3]
  %s7014 = scalar_lea.vmem %s6852, 41 [#allocation8]
  %v7015 = vld [vmem:[%s7014] ss:$2 sm:$0x3]
  %s7016 = scalar_lea.vmem %s6852, 105 [#allocation8]
  %v7017 = vld [vmem:[%s7016] ss:$2 sm:$0x3]
  %s7018 = scalar_lea.vmem %s6852, 137 [#allocation8]
  %v7019 = vld [vmem:[%s7018] ss:$2 sm:$0x3]
  %v7025 = vunpack.c.l.s4 1983009808
  %v7026 = vunpack.c.0.s8 %v7025
  %v7027 = vlaneseq
  %v7028 = vshrl.u32 %v7027, 7
  %v7029 = vsub.s32 %v7026, %v7028
  %v7030 = vrot.slane %v7013, %v7029
  %v7032 = vunpack.c.l.s4 1983009808
  %v7033 = vunpack.c.0.s8 %v7032
  %v7034 = vlaneseq
  %v7035 = vshrl.u32 %v7034, 7
  %v7036 = vsub.s32 %v7033, %v7035
  %v7037 = vrot.slane %v7015, %v7036
  %v7039 = vunpack.c.l.s4 1983009808
  %v7040 = vunpack.c.0.s8 %v7039
  %v7041 = vlaneseq
  %v7042 = vshrl.u32 %v7041, 7
  %v7043 = vsub.s32 %v7040, %v7042
  %v7044 = vrot.slane %v7017, %v7043
  %v7046 = vunpack.c.l.s4 1983009808
  %v7047 = vunpack.c.0.s8 %v7046
  %v7048 = vlaneseq
  %v7049 = vshrl.u32 %v7048, 7
  %v7050 = vsub.s32 %v7047, %v7049
  %v7051 = vrot.slane %v7019, %v7050
  %7052 = vrot.lane.b32.xlu0 %v7030, 64
  %v7053 = vpop.permute.xlu0 %7052
  %7054 = vrot.lane.b32.xlu0 %v7037, 64
  %v7055 = vpop.permute.xlu0 %7054
  %7056 = vrot.lane.b32.xlu0 %v7044, 64
  %v7057 = vpop.permute.xlu0 %7056
  %7058 = vrot.lane.b32.xlu0 %v7051, 64
  %v7059 = vpop.permute.xlu0 %7058
  %7064 = vst.msk [vmem:[#allocation5 + $0x4] sm:$0x3] %vm6927, %v7053
  %7065 = vst.msk [vmem:[#allocation5 + $0xe] sm:$0x3] %vm6927, %v7055
  %7066 = vst.msk [vmem:[#allocation5 + $0x18] sm:$0x3] %vm6927, %v7057
  %7067 = vst.msk [vmem:[#allocation5 + $0x22] sm:$0x3] %vm6927, %v7059
  %s7068 = scalar_lea.vmem [#allocation8], 32
  %s7069 = scalar_lea.vmem %s7068, 7 [#allocation8]
  %v7070 = vld [vmem:[%s7069] ss:$2 sm:$0x3]
  %s7071 = scalar_lea.vmem %s7068, 39 [#allocation8]
  %v7072 = vld [vmem:[%s7071] ss:$2 sm:$0x3]
  %s7073 = scalar_lea.vmem %s7068, 103 [#allocation8]
  %v7074 = vld [vmem:[%s7073] ss:$2 sm:$0x3]
  %s7075 = scalar_lea.vmem %s7068, 135 [#allocation8]
  %v7076 = vld [vmem:[%s7075] ss:$2 sm:$0x3]
  %7077 = vst.msk [vmem:[#allocation5 + $0x6] sm:$0x3] %vm6870, %v7070
  %7078 = vst.msk [vmem:[#allocation5 + $0x10] sm:$0x3] %vm6870, %v7072
  %7079 = vst.msk [vmem:[#allocation5 + $0x1a] sm:$0x3] %vm6870, %v7074
  %7080 = vst.msk [vmem:[#allocation5 + $0x24] sm:$0x3] %vm6870, %v7076
  %s7081 = scalar_lea.vmem %s7068, 8 [#allocation8]
  %v7082 = vld [vmem:[%s7081] ss:$2 sm:$0x3]
  %s7083 = scalar_lea.vmem %s7068, 40 [#allocation8]
  %v7084 = vld [vmem:[%s7083] ss:$2 sm:$0x3]
  %s7085 = scalar_lea.vmem %s7068, 104 [#allocation8]
  %v7086 = vld [vmem:[%s7085] ss:$2 sm:$0x3]
  %s7087 = scalar_lea.vmem %s7068, 136 [#allocation8]
  %v7088 = vld [vmem:[%s7087] ss:$2 sm:$0x3]
  %v7094 = vunpack.c.l.s4 1983009808
  %v7095 = vunpack.c.0.s8 %v7094
  %v7096 = vlaneseq
  %v7097 = vshrl.u32 %v7096, 7
  %v7098 = vsub.s32 %v7095, %v7097
  %v7099 = vrot.slane %v7082, %v7098
  %v7101 = vunpack.c.l.s4 1983009808
  %v7102 = vunpack.c.0.s8 %v7101
  %v7103 = vlaneseq
  %v7104 = vshrl.u32 %v7103, 7
  %v7105 = vsub.s32 %v7102, %v7104
  %v7106 = vrot.slane %v7084, %v7105
  %v7108 = vunpack.c.l.s4 1983009808
  %v7109 = vunpack.c.0.s8 %v7108
  %v7110 = vlaneseq
  %v7111 = vshrl.u32 %v7110, 7
  %v7112 = vsub.s32 %v7109, %v7111
  %v7113 = vrot.slane %v7086, %v7112
  %v7115 = vunpack.c.l.s4 1983009808
  %v7116 = vunpack.c.0.s8 %v7115
  %v7117 = vlaneseq
  %v7118 = vshrl.u32 %v7117, 7
  %v7119 = vsub.s32 %v7116, %v7118
  %v7120 = vrot.slane %v7088, %v7119
  %7121 = vrot.lane.b32.xlu0 %v7099, 64
  %v7122 = vpop.permute.xlu0 %7121
  %7123 = vrot.lane.b32.xlu0 %v7106, 64
  %v7124 = vpop.permute.xlu0 %7123
  %7125 = vrot.lane.b32.xlu0 %v7113, 64
  %v7126 = vpop.permute.xlu0 %7125
  %7127 = vrot.lane.b32.xlu0 %v7120, 64
  %v7128 = vpop.permute.xlu0 %7127
  %7133 = vst.msk [vmem:[#allocation5 + $0x6] sm:$0x3] %vm6927, %v7122
  %7134 = vst.msk [vmem:[#allocation5 + $0x10] sm:$0x3] %vm6927, %v7124
  %7135 = vst.msk [vmem:[#allocation5 + $0x1a] sm:$0x3] %vm6927, %v7126
  %7136 = vst.msk [vmem:[#allocation5 + $0x24] sm:$0x3] %vm6927, %v7128
  %s7137 = scalar_lea.vmem %s7068, 9 [#allocation8]
  %v7138 = vld [vmem:[%s7137] ss:$2 sm:$0x3]
  %s7139 = scalar_lea.vmem %s7068, 41 [#allocation8]
  %v7140 = vld [vmem:[%s7139] ss:$2 sm:$0x3]
  %s7141 = scalar_lea.vmem %s7068, 105 [#allocation8]
  %v7142 = vld [vmem:[%s7141] ss:$2 sm:$0x3]
  %s7143 = scalar_lea.vmem %s7068, 137 [#allocation8]
  %v7144 = vld [vmem:[%s7143] ss:$2 sm:$0x3]
  %7145 = vst.msk [vmem:[#allocation5 + $0x8] sm:$0x3] %vm6870, %v7138
  %7146 = vst.msk [vmem:[#allocation5 + $0x12] sm:$0x3] %vm6870, %v7140
  %7147 = vst.msk [vmem:[#allocation5 + $0x1c] sm:$0x3] %vm6870, %v7142
  %7148 = vst.msk [vmem:[#allocation5 + $0x26] sm:$0x3] %vm6870, %v7144
  %v7149 = vld [vmem:[#allocation5] sm:$0xff]
  %v7150 = vld [vmem:[#allocation5 + $0x8] sm:$0x3]
  %v7151 = vld [vmem:[#allocation5 + $0xa] sm:$0xff]
  %v7152 = vld [vmem:[#allocation5 + $0x12] sm:$0x3]
  %v7153 = vld [vmem:[#allocation5 + $0x14] sm:$0xff]
  %v7154 = vld [vmem:[#allocation5 + $0x1c] sm:$0x3]
  %v7155 = vld [vmem:[#allocation5 + $0x1e] sm:$0xff]
  %v7156 = vld [vmem:[#allocation5 + $0x26] sm:$0x3]
  %v7165 = vcombine.low %v7149, %v7151
  %v7166 = vcombine.high %v7149, %v7151
  %v7167 = vcombine.low %v7153, %v7155
  %v7168 = vcombine.high %v7153, %v7155
  %v7170 = vunpack.c.l.s4 1983009808
  %v7171 = vunpack.c.0.s8 %v7170
  %v7172 = vlaneseq
  %v7173 = vshrl.u32 %v7172, 7
  %v7174 = vsub.s32 %v7171, %v7173
  %v7175 = vrot.slane %v7165, %v7174
  %v7177 = vunpack.c.l.s4 1983009808
  %v7178 = vunpack.c.0.s8 %v7177
  %v7179 = vlaneseq
  %v7180 = vshrl.u32 %v7179, 7
  %v7181 = vsub.s32 %v7178, %v7180
  %v7182 = vrot.slane %v7166, %v7181
  %v7184 = vunpack.c.l.s4 1983009808
  %v7185 = vunpack.c.0.s8 %v7184
  %v7186 = vlaneseq
  %v7187 = vshrl.u32 %v7186, 7
  %v7188 = vsub.s32 %v7185, %v7187
  %v7189 = vrot.slane %v7167, %v7188
  %v7191 = vunpack.c.l.s4 1983009808
  %v7192 = vunpack.c.0.s8 %v7191
  %v7193 = vlaneseq
  %v7194 = vshrl.u32 %v7193, 7
  %v7195 = vsub.s32 %v7192, %v7194
  %v7196 = vrot.slane %v7168, %v7195
  %v7197 = vcombine.low %v7175, %v7189
  %v7198 = vcombine.high %v7175, %v7189
  %v7199 = vcombine.low %v7182, %v7196
  %v7200 = vcombine.high %v7182, %v7196
  %v7201 = vcombine.low %v7150, %v7152
  %v7202 = vcombine.low %v7154, %v7156
  %v7204 = vunpack.c.l.s4 1983009808
  %v7205 = vunpack.c.0.s8 %v7204
  %v7206 = vlaneseq
  %v7207 = vshrl.u32 %v7206, 7
  %v7208 = vsub.s32 %v7205, %v7207
  %v7209 = vrot.slane %v7201, %v7208
  %v7211 = vunpack.c.l.s4 1983009808
  %v7212 = vunpack.c.0.s8 %v7211
  %v7213 = vlaneseq
  %v7214 = vshrl.u32 %v7213, 7
  %v7215 = vsub.s32 %v7212, %v7214
  %v7216 = vrot.slane %v7202, %v7215
  %v7217 = vcombine.low %v7209, %v7216
  %v7223 = vpack.c.bf16 %v7197, %v7197
  %v7224 = vpack.c.bf16 %v7198, %v7198
  %v7225 = vpack.c.bf16 %v7199, %v7199
  %v7226 = vpack.c.bf16 %v7200, %v7200
  %v7227 = vpack.c.bf16 %v7217, %v7217
  %v7228 = vld [vmem:[%s4] sm:$0xf]
  %v7229 = vld [vmem:[%s4 + $0x4] sm:$0xf]
  %v7230 = vld [vmem:[%s4 + $0x8] sm:$0xf]
  %v7231 = vld [vmem:[%s4 + $0xc] sm:$0xf]
  %v7232 = vld [vmem:[%s4 + $0x10] sm:$0xf]
  %v7233 = vld [vmem:[%s4 + $0x14] sm:$0xf]
  %v7234 = vld [vmem:[%s4 + $0x18] sm:$0xf]
  %v7235 = vld [vmem:[%s4 + $0x1c] sm:$0xf]
  %v7236 = vld [vmem:[%s4 + $0x20] sm:$0xf]
  %v7237 = vld [vmem:[%s4 + $0x24] sm:$0xf]
  %v7238 = vld [vmem:[%s4 + $0x28] sm:$0xf]
  %v7239 = vld [vmem:[%s4 + $0x2c] sm:$0xf]
  %v7240 = vld [vmem:[%s4 + $0x30] sm:$0xf]
  %v7241 = vld [vmem:[%s4 + $0x34] sm:$0xf]
  %v7242 = vld [vmem:[%s4 + $0x38] sm:$0xf]
  %v7243 = vld [vmem:[%s4 + $0x3c] sm:$0xf]
  %v7244 = vld [vmem:[%s4 + $0x40] sm:$0xf]
  %v7245 = vld [vmem:[%s4 + $0x44] sm:$0xf]
  %v7246 = vld [vmem:[%s4 + $0x48] sm:$0xf]
  %v7247 = vld [vmem:[%s4 + $0x4c] sm:$0xf]
  %v7248 = vld [vmem:[%s4 + $0x50] sm:$0xf]
  %v7249 = vld [vmem:[%s4 + $0x54] sm:$0xf]
  %v7250 = vld [vmem:[%s4 + $0x58] sm:$0xf]
  %v7251 = vld [vmem:[%s4 + $0x5c] sm:$0xf]
  %v7252 = vld [vmem:[%s4 + $0x60] sm:$0xf]
  %v7253 = vld [vmem:[%s4 + $0x64] sm:$0xf]
  %v7254 = vld [vmem:[%s4 + $0x68] sm:$0xf]
  %v7255 = vld [vmem:[%s4 + $0x6c] sm:$0xf]
  %v7256 = vld [vmem:[%s4 + $0x70] sm:$0xf]
  %v7257 = vld [vmem:[%s4 + $0x74] sm:$0xf]
  %v7258 = vld [vmem:[%s4 + $0x78] sm:$0xf]
  %v7259 = vld [vmem:[%s4 + $0x7c] sm:$0xf]
  %v7260 = vld [vmem:[%s4 + $0x80] sm:$0xf]
  %v7261 = vld [vmem:[%s4 + $0x84] sm:$0xf]
  %v7262 = vld [vmem:[%s4 + $0x88] sm:$0xf]
  %v7263 = vld [vmem:[%s4 + $0x8c] sm:$0xf]
  %v7264 = vld [vmem:[%s4 + $0x90] sm:$0xf]
  %v7265 = vld [vmem:[%s4 + $0x94] sm:$0xf]
  %v7266 = vld [vmem:[%s4 + $0x98] sm:$0xf]
  %v7267 = vld [vmem:[%s4 + $0x9c] sm:$0xf]
  %v7268 = vld [vmem:[%s4 + $0xa0] sm:$0xf]
  %v7269 = vld [vmem:[%s4 + $0xa4] sm:$0xf]
  %v7270 = vld [vmem:[%s4 + $0xa8] sm:$0xf]
  %v7271 = vld [vmem:[%s4 + $0xac] sm:$0xf]
  %v7272 = vld [vmem:[%s4 + $0xb0] sm:$0xf]
  %v7273 = vld [vmem:[%s4 + $0xb4] sm:$0xf]
  %v7274 = vld [vmem:[%s4 + $0xb8] sm:$0xf]
  %v7275 = vld [vmem:[%s4 + $0xbc] sm:$0xf]
  %v7276 = vld [vmem:[%s4 + $0xc0] sm:$0xf]
  %v7277 = vld [vmem:[%s4 + $0xc4] sm:$0xf]
  %v7278 = vld [vmem:[%s4 + $0xc8] sm:$0xf]
  %v7279 = vld [vmem:[%s4 + $0xcc] sm:$0xf]
  %v7280 = vld [vmem:[%s4 + $0xd0] sm:$0xf]
  %v7281 = vld [vmem:[%s4 + $0xd4] sm:$0xf]
  %v7282 = vld [vmem:[%s4 + $0xd8] sm:$0xf]
  %v7283 = vld [vmem:[%s4 + $0xdc] sm:$0xf]
  %v7284 = vld [vmem:[%s4 + $0xe0] sm:$0xf]
  %v7285 = vld [vmem:[%s4 + $0xe4] sm:$0xf]
  %v7286 = vld [vmem:[%s4 + $0xe8] sm:$0xf]
  %v7287 = vld [vmem:[%s4 + $0xec] sm:$0xf]
  %v7288 = vld [vmem:[%s4 + $0xf0] sm:$0xf]
  %v7289 = vld [vmem:[%s4 + $0xf4] sm:$0xf]
  %v7290 = vld [vmem:[%s4 + $0xf8] sm:$0xf]
  %v7291 = vld [vmem:[%s4 + $0xfc] sm:$0xf]
  %v7292 = vld [vmem:[%s4 + $0x100] sm:$0xf]
  %v7293 = vld [vmem:[%s4 + $0x104] sm:$0xf]
  %v7294 = vld [vmem:[%s4 + $0x108] sm:$0xf]
  %v7295 = vld [vmem:[%s4 + $0x10c] sm:$0xf]
  %v7296 = vld [vmem:[%s4 + $0x110] sm:$0xf]
  %v7297 = vld [vmem:[%s4 + $0x114] sm:$0xf]
  %v7298 = vld [vmem:[%s4 + $0x118] sm:$0xf]
  %v7299 = vld [vmem:[%s4 + $0x11c] sm:$0xf]
  %v7300 = vld [vmem:[%s8] sm:$0x1]
  %v7301 = vlaneseq
  %v7302 = vshrl.u32 %v7301, 7
  %v7303 = vsub.s32 0, %v7302
  %v7304 = vrot.slane %v7300, %v7303
  %v7377 = vunpack.c.l.b16 %v7228
  %v7378 = vunpack.c.l.b16 %v7229
  %v7379 = vunpack.c.l.b16 %v7230
  %v7380 = vunpack.c.l.b16 %v7231
  %v7381 = vunpack.c.l.b16 %v7232
  %v7382 = vunpack.c.l.b16 %v7233
  %v7383 = vunpack.c.l.b16 %v7234
  %v7384 = vunpack.c.l.b16 %v7235
  %v7385 = vunpack.c.l.b16 %v7236
  %v7386 = vunpack.c.l.b16 %v7237
  %v7387 = vunpack.c.l.b16 %v7238
  %v7388 = vunpack.c.l.b16 %v7239
  %v7389 = vunpack.c.l.b16 %v7240
  %v7390 = vunpack.c.l.b16 %v7241
  %v7391 = vunpack.c.l.b16 %v7242
  %v7392 = vunpack.c.l.b16 %v7243
  %v7393 = vunpack.c.l.b16 %v7244
  %v7394 = vunpack.c.l.b16 %v7245
  %v7395 = vunpack.c.l.b16 %v7246
  %v7396 = vunpack.c.l.b16 %v7247
  %v7397 = vunpack.c.l.b16 %v7248
  %v7398 = vunpack.c.l.b16 %v7249
  %v7399 = vunpack.c.l.b16 %v7250
  %v7400 = vunpack.c.l.b16 %v7251
  %v7401 = vunpack.c.l.b16 %v7252
  %v7402 = vunpack.c.l.b16 %v7253
  %v7403 = vunpack.c.l.b16 %v7254
  %v7404 = vunpack.c.l.b16 %v7255
  %v7405 = vunpack.c.l.b16 %v7256
  %v7406 = vunpack.c.l.b16 %v7257
  %v7407 = vunpack.c.l.b16 %v7258
  %v7408 = vunpack.c.l.b16 %v7259
  %v7409 = vunpack.c.l.b16 %v7260
  %v7410 = vunpack.c.l.b16 %v7261
  %v7411 = vunpack.c.l.b16 %v7262
  %v7412 = vunpack.c.l.b16 %v7263
  %v7413 = vunpack.c.l.b16 %v7264
  %v7414 = vunpack.c.l.b16 %v7265
  %v7415 = vunpack.c.l.b16 %v7266
  %v7416 = vunpack.c.l.b16 %v7267
  %v7417 = vunpack.c.l.b16 %v7268
  %v7418 = vunpack.c.l.b16 %v7269
  %v7419 = vunpack.c.l.b16 %v7270
  %v7420 = vunpack.c.l.b16 %v7271
  %v7421 = vunpack.c.l.b16 %v7272
  %v7422 = vunpack.c.l.b16 %v7273
  %v7423 = vunpack.c.l.b16 %v7274
  %v7424 = vunpack.c.l.b16 %v7275
  %v7425 = vunpack.c.l.b16 %v7276
  %v7426 = vunpack.c.l.b16 %v7277
  %v7427 = vunpack.c.l.b16 %v7278
  %v7428 = vunpack.c.l.b16 %v7279
  %v7429 = vunpack.c.l.b16 %v7280
  %v7430 = vunpack.c.l.b16 %v7281
  %v7431 = vunpack.c.l.b16 %v7282
  %v7432 = vunpack.c.l.b16 %v7283
  %v7433 = vunpack.c.l.b16 %v7284
  %v7434 = vunpack.c.l.b16 %v7285
  %v7435 = vunpack.c.l.b16 %v7286
  %v7436 = vunpack.c.l.b16 %v7287
  %v7437 = vunpack.c.l.b16 %v7288
  %v7438 = vunpack.c.l.b16 %v7289
  %v7439 = vunpack.c.l.b16 %v7290
  %v7440 = vunpack.c.l.b16 %v7291
  %v7441 = vunpack.c.l.b16 %v7292
  %v7442 = vunpack.c.l.b16 %v7293
  %v7443 = vunpack.c.l.b16 %v7294
  %v7444 = vunpack.c.l.b16 %v7295
  %v7445 = vunpack.c.l.b16 %v7296
  %v7446 = vunpack.c.l.b16 %v7297
  %v7447 = vunpack.c.l.b16 %v7298
  %v7448 = vunpack.c.l.b16 %v7299
  %v7449 = vpack.c.b16 %v7378, %v7377
  %v7450 = vpack.c.b16 %v7380, %v7379
  %v7451 = vpack.c.b16 %v7382, %v7381
  %v7452 = vpack.c.b16 %v7384, %v7383
  %v7453 = vpack.c.b16 %v7386, %v7385
  %v7454 = vpack.c.b16 %v7388, %v7387
  %v7455 = vpack.c.b16 %v7390, %v7389
  %v7456 = vpack.c.b16 %v7392, %v7391
  %v7457 = vpack.c.b16 %v7394, %v7393
  %v7458 = vpack.c.b16 %v7396, %v7395
  %v7459 = vpack.c.b16 %v7398, %v7397
  %v7460 = vpack.c.b16 %v7400, %v7399
  %v7461 = vpack.c.b16 %v7402, %v7401
  %v7462 = vpack.c.b16 %v7404, %v7403
  %v7463 = vpack.c.b16 %v7406, %v7405
  %v7464 = vpack.c.b16 %v7408, %v7407
  %v7465 = vpack.c.b16 %v7410, %v7409
  %v7466 = vpack.c.b16 %v7412, %v7411
  %v7467 = vpack.c.b16 %v7414, %v7413
  %v7468 = vpack.c.b16 %v7416, %v7415
  %v7469 = vpack.c.b16 %v7418, %v7417
  %v7470 = vpack.c.b16 %v7420, %v7419
  %v7471 = vpack.c.b16 %v7422, %v7421
  %v7472 = vpack.c.b16 %v7424, %v7423
  %v7473 = vpack.c.b16 %v7426, %v7425
  %v7474 = vpack.c.b16 %v7428, %v7427
  %v7475 = vpack.c.b16 %v7430, %v7429
  %v7476 = vpack.c.b16 %v7432, %v7431
  %v7477 = vpack.c.b16 %v7434, %v7433
  %v7478 = vpack.c.b16 %v7436, %v7435
  %v7479 = vpack.c.b16 %v7438, %v7437
  %v7480 = vpack.c.b16 %v7440, %v7439
  %v7481 = vpack.c.b16 %v7442, %v7441
  %v7482 = vpack.c.b16 %v7444, %v7443
  %v7483 = vpack.c.b16 %v7446, %v7445
  %v7484 = vpack.c.b16 %v7448, %v7447
  %v7522 = vsel %vm6821, %v7227, 0
  %7524 = vmatprep.subr.bf16.mxu0 0
  %7525 = vmatpush1.bf16.msra.mxu0 %v7456
  %7526 = vmatprep.subr.bf16.mxu0 0
  %7527 = vmatpush1.bf16.msra.mxu0 %v7455
  %7528 = vmatprep.subr.bf16.mxu0 0
  %7529 = vmatpush1.bf16.msra.mxu0 %v7454
  %7530 = vmatprep.subr.bf16.mxu0 0
  %7531 = vmatpush1.bf16.msra.mxu0 %v7453
  %7532 = vmatprep.subr.bf16.mxu0 0
  %7533 = vmatpush1.bf16.msra.mxu0 %v7452
  %7534 = vmatprep.subr.bf16.mxu0 0
  %7535 = vmatpush1.bf16.msra.mxu0 %v7451
  %7536 = vmatprep.subr.bf16.mxu0 0
  %7537 = vmatpush1.bf16.msra.mxu0 %v7450
  %7538 = vmatprep.subr.bf16.mxu0 0
  %7539 = vmatpush1.bf16.msra.mxu0 %v7449
  %7540 = vmatprep.subr.bf16.mxu0 0
  %7541 = vmatpush2.bf16.msra.mxu0 %v7464
  %7542 = vmatprep.subr.bf16.mxu0 0
  %7543 = vmatpush2.bf16.msra.mxu0 %v7463
  %7544 = vmatprep.subr.bf16.mxu0 0
  %7545 = vmatpush2.bf16.msra.mxu0 %v7462
  %7546 = vmatprep.subr.bf16.mxu0 0
  %7547 = vmatpush2.bf16.msra.mxu0 %v7461
  %7548 = vmatprep.subr.bf16.mxu0 0
  %7549 = vmatpush2.bf16.msra.mxu0 %v7460
  %7550 = vmatprep.subr.bf16.mxu0 0
  %7551 = vmatpush2.bf16.msra.mxu0 %v7459
  %7552 = vmatprep.subr.bf16.mxu0 0
  %7553 = vmatpush2.bf16.msra.mxu0 %v7458
  %7554 = vmatprep.subr.bf16.mxu0 0
  %7555 = vmatpush2.bf16.msra.mxu0 %v7457
  %7556 = vmatprep.mubr.bf16.mxu0 %v7224
  %7557 = vmatmul.mubr.bf16.gmra.mxu0 %v7223
  %v7558 = vpop.f32.mrf.mxu0
  %v7559 = vadd.f32 %v7304, %v7558
  %v7560 = vpop.f32.mrf.mxu0
  %v7561 = vpop.f32.mrf.mxu0
  %v7562 = vpop.f32.mrf.mxu0
  %7563 = vdwg.mxu0
  %7564 = vmatprep.subr.bf16.mxu0 0
  %7565 = vmatpush1.bf16.msra.mxu0 %v7472
  %7566 = vmatprep.subr.bf16.mxu0 0
  %7567 = vmatpush1.bf16.msra.mxu0 %v7471
  %7568 = vmatprep.subr.bf16.mxu0 0
  %7569 = vmatpush1.bf16.msra.mxu0 %v7470
  %7570 = vmatprep.subr.bf16.mxu0 0
  %7571 = vmatpush1.bf16.msra.mxu0 %v7469
  %7572 = vmatprep.subr.bf16.mxu0 0
  %7573 = vmatpush1.bf16.msra.mxu0 %v7468
  %7574 = vmatprep.subr.bf16.mxu0 0
  %7575 = vmatpush1.bf16.msra.mxu0 %v7467
  %7576 = vmatprep.subr.bf16.mxu0 0
  %7577 = vmatpush1.bf16.msra.mxu0 %v7466
  %7578 = vmatprep.subr.bf16.mxu0 0
  %7579 = vmatpush1.bf16.msra.mxu0 %v7465
  %7580 = vmatprep.subr.bf16.mxu0 0
  %7581 = vmatpush2.bf16.msra.mxu0 %v7480
  %7582 = vmatprep.subr.bf16.mxu0 0
  %7583 = vmatpush2.bf16.msra.mxu0 %v7479
  %7584 = vmatprep.subr.bf16.mxu0 0
  %7585 = vmatpush2.bf16.msra.mxu0 %v7478
  %7586 = vmatprep.subr.bf16.mxu0 0
  %7587 = vmatpush2.bf16.msra.mxu0 %v7477
  %7588 = vmatprep.subr.bf16.mxu0 0
  %7589 = vmatpush2.bf16.msra.mxu0 %v7476
  %7590 = vmatprep.subr.bf16.mxu0 0
  %7591 = vmatpush2.bf16.msra.mxu0 %v7475
  %7592 = vmatprep.subr.bf16.mxu0 0
  %7593 = vmatpush2.bf16.msra.mxu0 %v7474
  %7594 = vmatprep.subr.bf16.mxu0 0
  %7595 = vmatpush2.bf16.msra.mxu0 %v7473
  %7596 = vmatprep.mubr.bf16.mxu0 %v7226
  %7597 = vmatmul.mubr.bf16.gmra.mxu0 %v7225
  %v7598 = vpop.f32.mrf.mxu0
  %v7599 = vadd.f32 %v7559, %v7598
  %v7600 = vpop.f32.mrf.mxu0
  %v7601 = vpop.f32.mrf.mxu0
  %v7602 = vpop.f32.mrf.mxu0
  %7603 = vdwg.mxu0
  %7604 = vmatprep.subr.bf16.mxu0 0
  %7605 = vmatpush1.bf16.msra.mxu0 0
  %7606 = vmatprep.subr.bf16.mxu0 0
  %7607 = vmatpush1.bf16.msra.mxu0 0
  %7608 = vmatprep.subr.bf16.mxu0 0
  %7609 = vmatpush1.bf16.msra.mxu0 0
  %7610 = vmatprep.subr.bf16.mxu0 0
  %7611 = vmatpush1.bf16.msra.mxu0 0
  %7612 = vmatprep.subr.bf16.mxu0 0
  %7613 = vmatpush1.bf16.msra.mxu0 %v7484
  %7614 = vmatprep.subr.bf16.mxu0 0
  %7615 = vmatpush1.bf16.msra.mxu0 %v7483
  %7616 = vmatprep.subr.bf16.mxu0 0
  %7617 = vmatpush1.bf16.msra.mxu0 %v7482
  %7618 = vmatprep.subr.bf16.mxu0 0
  %7619 = vmatpush1.bf16.msra.mxu0 %v7481
  %7620 = vmatprep.subr.bf16.mxu0 0
  %7621 = vmatpush2.bf16.msra.mxu0 0
  %7622 = vmatprep.subr.bf16.mxu0 0
  %7623 = vmatpush2.bf16.msra.mxu0 0
  %7624 = vmatprep.subr.bf16.mxu0 0
  %7625 = vmatpush2.bf16.msra.mxu0 0
  %7626 = vmatprep.subr.bf16.mxu0 0
  %7627 = vmatpush2.bf16.msra.mxu0 0
  %7628 = vmatprep.subr.bf16.mxu0 0
  %7629 = vmatpush2.bf16.msra.mxu0 0
  %7630 = vmatprep.subr.bf16.mxu0 0
  %7631 = vmatpush2.bf16.msra.mxu0 0
  %7632 = vmatprep.subr.bf16.mxu0 0
  %7633 = vmatpush2.bf16.msra.mxu0 0
  %7634 = vmatprep.subr.bf16.mxu0 0
  %7635 = vmatpush2.bf16.msra.mxu0 0
  %7636 = vmatprep.mubr.bf16.mxu0 0
  %7637 = vmatmul.mubr.bf16.gmra.mxu0 %v7522
  %v7638 = vpop.f32.mrf.mxu0
  %v7639 = vadd.f32 %v7599, %v7638
  %v7640 = vpop.f32.mrf.mxu0
  %v7641 = vpop.f32.mrf.mxu0
  %v7642 = vpop.f32.mrf.mxu0
  %7643 = vdwg.mxu0
  %vm7644 = vcmp.gt.f32.partialorder %v7639, 0.0
  %v7645 = vmul.f32 %v7639, 0.2
  %v7646 = vsel %vm7644, %v7639, %v7645
  %v7647 = vld [vmem:[%s8 + $0x1] sm:$0x1]
  %v7648 = vlaneseq
  %v7649 = vshrl.u32 %v7648, 7
  %v7650 = vsub.s32 0, %v7649
  %v7651 = vrot.slane %v7647, %v7650
  %v7652 = vmul.f32 %v7646, %v7651
  %v7653 = vld [vmem:[%s8 + $0x2] sm:$0x1]
  %v7654 = vlaneseq
  %v7655 = vshrl.u32 %v7654, 7
  %v7656 = vsub.s32 0, %v7655
  %v7657 = vrot.slane %v7653, %v7656
  %v7658 = vadd.f32 %v7652, %v7657
  %v7660 = vcombine.high %v7658, %v7658
  %v7661 = vlaneseq
  %v7662 = vshrl.u32 %v7661, 7
  %v7663 = vsub.s32 0, %v7662
  %v7664 = vrot.slane %v7658, %v7663
  %v7665 = vlaneseq
  %v7666 = vshrl.u32 %v7665, 7
  %v7667 = vsub.s32 0, %v7666
  %v7668 = vrot.slane %v7660, %v7667
  %vm7669 = vcmask 1041409
  %v7670 = vsel %vm7669, %v7668, %v7664
  %v7672 = vlaneseq
  %v7673 = vshrl.u32 %v7672, 7
  %v7674 = vsub.s32 1, %v7673
  %v7675 = vrot.slane %v7658, %v7674
  %v7676 = vlaneseq
  %v7677 = vshrl.u32 %v7676, 7
  %v7678 = vsub.s32 1, %v7677
  %v7679 = vrot.slane %v7660, %v7678
  %v7680 = vsel %vm7669, %v7679, %v7675
  %v7682 = vlaneseq
  %v7683 = vshrl.u32 %v7682, 7
  %v7684 = vsub.s32 2, %v7683
  %v7685 = vrot.slane %v7658, %v7684
  %v7686 = vlaneseq
  %v7687 = vshrl.u32 %v7686, 7
  %v7688 = vsub.s32 2, %v7687
  %v7689 = vrot.slane %v7660, %v7688
  %v7690 = vsel %vm7669, %v7689, %v7685
  %v7692 = vlaneseq
  %v7693 = vshrl.u32 %v7692, 7
  %v7694 = vsub.s32 3, %v7693
  %v7695 = vrot.slane %v7658, %v7694
  %v7696 = vlaneseq
  %v7697 = vshrl.u32 %v7696, 7
  %v7698 = vsub.s32 3, %v7697
  %v7699 = vrot.slane %v7660, %v7698
  %v7700 = vsel %vm7669, %v7699, %v7695
  %v7702 = vpack.c.bf16 %v7670, %v7670
  %v7703 = vpack.c.bf16 %v7680, %v7680
  %v7704 = vpack.c.bf16 %v7690, %v7690
  %v7705 = vpack.c.bf16 %v7700, %v7700
  %v7706 = vld [vmem:[%s9] sm:$0xf]
  %v7707 = vld [vmem:[%s9 + $0x4] sm:$0xf]
  %v7708 = vld [vmem:[%s9 + $0x8] sm:$0xf]
  %v7709 = vld [vmem:[%s9 + $0xc] sm:$0xf]
  %v7710 = vld [vmem:[%s9 + $0x10] sm:$0xf]
  %v7711 = vld [vmem:[%s9 + $0x14] sm:$0xf]
  %v7712 = vld [vmem:[%s9 + $0x18] sm:$0xf]
  %v7713 = vld [vmem:[%s9 + $0x1c] sm:$0xf]
  %v7714 = vld [vmem:[%s9 + $0x20] sm:$0xf]
  %v7715 = vld [vmem:[%s9 + $0x24] sm:$0xf]
  %v7716 = vld [vmem:[%s9 + $0x28] sm:$0xf]
  %v7717 = vld [vmem:[%s9 + $0x2c] sm:$0xf]
  %v7718 = vld [vmem:[%s9 + $0x30] sm:$0xf]
  %v7719 = vld [vmem:[%s9 + $0x34] sm:$0xf]
  %v7720 = vld [vmem:[%s9 + $0x38] sm:$0xf]
  %v7721 = vld [vmem:[%s9 + $0x3c] sm:$0xf]
  %v7722 = vld [vmem:[%s9 + $0x40] sm:$0xf]
  %v7723 = vld [vmem:[%s9 + $0x44] sm:$0xf]
  %v7724 = vld [vmem:[%s9 + $0x48] sm:$0xf]
  %v7725 = vld [vmem:[%s9 + $0x4c] sm:$0xf]
  %v7726 = vld [vmem:[%s9 + $0x50] sm:$0xf]
  %v7727 = vld [vmem:[%s9 + $0x54] sm:$0xf]
  %v7728 = vld [vmem:[%s9 + $0x58] sm:$0xf]
  %v7729 = vld [vmem:[%s9 + $0x5c] sm:$0xf]
  %v7730 = vld [vmem:[%s9 + $0x60] sm:$0xf]
  %v7731 = vld [vmem:[%s9 + $0x64] sm:$0xf]
  %v7732 = vld [vmem:[%s9 + $0x68] sm:$0xf]
  %v7733 = vld [vmem:[%s9 + $0x6c] sm:$0xf]
  %v7734 = vld [vmem:[%s9 + $0x70] sm:$0xf]
  %v7735 = vld [vmem:[%s9 + $0x74] sm:$0xf]
  %v7736 = vld [vmem:[%s9 + $0x78] sm:$0xf]
  %v7737 = vld [vmem:[%s9 + $0x7c] sm:$0xf]
  %v7738 = vld [vmem:[%s9 + $0x80] sm:$0xf]
  %v7739 = vld [vmem:[%s9 + $0x84] sm:$0xf]
  %v7740 = vld [vmem:[%s9 + $0x88] sm:$0xf]
  %v7741 = vld [vmem:[%s9 + $0x8c] sm:$0xf]
  %v7742 = vld [vmem:[%s9 + $0x90] sm:$0xf]
  %v7743 = vld [vmem:[%s9 + $0x94] sm:$0xf]
  %v7744 = vld [vmem:[%s9 + $0x98] sm:$0xf]
  %v7745 = vld [vmem:[%s9 + $0x9c] sm:$0xf]
  %v7746 = vld [vmem:[%s9 + $0xa0] sm:$0xf]
  %v7747 = vld [vmem:[%s9 + $0xa4] sm:$0xf]
  %v7748 = vld [vmem:[%s9 + $0xa8] sm:$0xf]
  %v7749 = vld [vmem:[%s9 + $0xac] sm:$0xf]
  %v7750 = vld [vmem:[%s9 + $0xb0] sm:$0xf]
  %v7751 = vld [vmem:[%s9 + $0xb4] sm:$0xf]
  %v7752 = vld [vmem:[%s9 + $0xb8] sm:$0xf]
  %v7753 = vld [vmem:[%s9 + $0xbc] sm:$0xf]
  %v7754 = vld [vmem:[%s9 + $0xc0] sm:$0xf]
  %v7755 = vld [vmem:[%s9 + $0xc4] sm:$0xf]
  %v7756 = vld [vmem:[%s9 + $0xc8] sm:$0xf]
  %v7757 = vld [vmem:[%s9 + $0xcc] sm:$0xf]
  %v7758 = vld [vmem:[%s9 + $0xd0] sm:$0xf]
  %v7759 = vld [vmem:[%s9 + $0xd4] sm:$0xf]
  %v7760 = vld [vmem:[%s9 + $0xd8] sm:$0xf]
  %v7761 = vld [vmem:[%s9 + $0xdc] sm:$0xf]
  %v7762 = vld [vmem:[%s9 + $0xe0] sm:$0xf]
  %v7763 = vld [vmem:[%s9 + $0xe4] sm:$0xf]
  %v7764 = vld [vmem:[%s9 + $0xe8] sm:$0xf]
  %v7765 = vld [vmem:[%s9 + $0xec] sm:$0xf]
  %v7766 = vld [vmem:[%s9 + $0xf0] sm:$0xf]
  %v7767 = vld [vmem:[%s9 + $0xf4] sm:$0xf]
  %v7768 = vld [vmem:[%s9 + $0xf8] sm:$0xf]
  %v7769 = vld [vmem:[%s9 + $0xfc] sm:$0xf]
  %v7770 = vld [vmem:[%s10] sm:$0x1]
  %v7772 = vlaneseq
  %v7773 = vshrl.u32 %v7772, 7
  %v7774 = vsub.s32 0, %v7773
  %v7775 = vrot.slane %v7770, %v7774
  %v7841 = vunpack.c.l.b16 %v7706
  %v7842 = vunpack.c.l.b16 %v7707
  %v7843 = vunpack.c.l.b16 %v7708
  %v7844 = vunpack.c.l.b16 %v7709
  %v7845 = vunpack.c.l.b16 %v7710
  %v7846 = vunpack.c.l.b16 %v7711
  %v7847 = vunpack.c.l.b16 %v7712
  %v7848 = vunpack.c.l.b16 %v7713
  %v7849 = vunpack.c.l.b16 %v7714
  %v7850 = vunpack.c.l.b16 %v7715
  %v7851 = vunpack.c.l.b16 %v7716
  %v7852 = vunpack.c.l.b16 %v7717
  %v7853 = vunpack.c.l.b16 %v7718
  %v7854 = vunpack.c.l.b16 %v7719
  %v7855 = vunpack.c.l.b16 %v7720
  %v7856 = vunpack.c.l.b16 %v7721
  %v7857 = vunpack.c.l.b16 %v7722
  %v7858 = vunpack.c.l.b16 %v7723
  %v7859 = vunpack.c.l.b16 %v7724
  %v7860 = vunpack.c.l.b16 %v7725
  %v7861 = vunpack.c.l.b16 %v7726
  %v7862 = vunpack.c.l.b16 %v7727
  %v7863 = vunpack.c.l.b16 %v7728
  %v7864 = vunpack.c.l.b16 %v7729
  %v7865 = vunpack.c.l.b16 %v7730
  %v7866 = vunpack.c.l.b16 %v7731
  %v7867 = vunpack.c.l.b16 %v7732
  %v7868 = vunpack.c.l.b16 %v7733
  %v7869 = vunpack.c.l.b16 %v7734
  %v7870 = vunpack.c.l.b16 %v7735
  %v7871 = vunpack.c.l.b16 %v7736
  %v7872 = vunpack.c.l.b16 %v7737
  %v7873 = vunpack.c.l.b16 %v7738
  %v7874 = vunpack.c.l.b16 %v7739
  %v7875 = vunpack.c.l.b16 %v7740
  %v7876 = vunpack.c.l.b16 %v7741
  %v7877 = vunpack.c.l.b16 %v7742
  %v7878 = vunpack.c.l.b16 %v7743
  %v7879 = vunpack.c.l.b16 %v7744
  %v7880 = vunpack.c.l.b16 %v7745
  %v7881 = vunpack.c.l.b16 %v7746
  %v7882 = vunpack.c.l.b16 %v7747
  %v7883 = vunpack.c.l.b16 %v7748
  %v7884 = vunpack.c.l.b16 %v7749
  %v7885 = vunpack.c.l.b16 %v7750
  %v7886 = vunpack.c.l.b16 %v7751
  %v7887 = vunpack.c.l.b16 %v7752
  %v7888 = vunpack.c.l.b16 %v7753
  %v7889 = vunpack.c.l.b16 %v7754
  %v7890 = vunpack.c.l.b16 %v7755
  %v7891 = vunpack.c.l.b16 %v7756
  %v7892 = vunpack.c.l.b16 %v7757
  %v7893 = vunpack.c.l.b16 %v7758
  %v7894 = vunpack.c.l.b16 %v7759
  %v7895 = vunpack.c.l.b16 %v7760
  %v7896 = vunpack.c.l.b16 %v7761
  %v7897 = vunpack.c.l.b16 %v7762
  %v7898 = vunpack.c.l.b16 %v7763
  %v7899 = vunpack.c.l.b16 %v7764
  %v7900 = vunpack.c.l.b16 %v7765
  %v7901 = vunpack.c.l.b16 %v7766
  %v7902 = vunpack.c.l.b16 %v7767
  %v7903 = vunpack.c.l.b16 %v7768
  %v7904 = vunpack.c.l.b16 %v7769
  %v7905 = vpack.c.b16 %v7842, %v7841
  %v7906 = vpack.c.b16 %v7844, %v7843
  %v7907 = vpack.c.b16 %v7846, %v7845
  %v7908 = vpack.c.b16 %v7848, %v7847
  %v7909 = vpack.c.b16 %v7850, %v7849
  %v7910 = vpack.c.b16 %v7852, %v7851
  %v7911 = vpack.c.b16 %v7854, %v7853
  %v7912 = vpack.c.b16 %v7856, %v7855
  %v7913 = vpack.c.b16 %v7858, %v7857
  %v7914 = vpack.c.b16 %v7860, %v7859
  %v7915 = vpack.c.b16 %v7862, %v7861
  %v7916 = vpack.c.b16 %v7864, %v7863
  %v7917 = vpack.c.b16 %v7866, %v7865
  %v7918 = vpack.c.b16 %v7868, %v7867
  %v7919 = vpack.c.b16 %v7870, %v7869
  %v7920 = vpack.c.b16 %v7872, %v7871
  %v7921 = vpack.c.b16 %v7874, %v7873
  %v7922 = vpack.c.b16 %v7876, %v7875
  %v7923 = vpack.c.b16 %v7878, %v7877
  %v7924 = vpack.c.b16 %v7880, %v7879
  %v7925 = vpack.c.b16 %v7882, %v7881
  %v7926 = vpack.c.b16 %v7884, %v7883
  %v7927 = vpack.c.b16 %v7886, %v7885
  %v7928 = vpack.c.b16 %v7888, %v7887
  %v7929 = vpack.c.b16 %v7890, %v7889
  %v7930 = vpack.c.b16 %v7892, %v7891
  %v7931 = vpack.c.b16 %v7894, %v7893
  %v7932 = vpack.c.b16 %v7896, %v7895
  %v7933 = vpack.c.b16 %v7898, %v7897
  %v7934 = vpack.c.b16 %v7900, %v7899
  %v7935 = vpack.c.b16 %v7902, %v7901
  %v7936 = vpack.c.b16 %v7904, %v7903
  %7969 = vmatprep.subr.bf16.mxu0 0
  %7970 = vmatpush1.bf16.msra.mxu0 %v7912
  %7971 = vmatprep.subr.bf16.mxu0 0
  %7972 = vmatpush1.bf16.msra.mxu0 %v7911
  %7973 = vmatprep.subr.bf16.mxu0 0
  %7974 = vmatpush1.bf16.msra.mxu0 %v7910
  %7975 = vmatprep.subr.bf16.mxu0 0
  %7976 = vmatpush1.bf16.msra.mxu0 %v7909
  %7977 = vmatprep.subr.bf16.mxu0 0
  %7978 = vmatpush1.bf16.msra.mxu0 %v7908
  %7979 = vmatprep.subr.bf16.mxu0 0
  %7980 = vmatpush1.bf16.msra.mxu0 %v7907
  %7981 = vmatprep.subr.bf16.mxu0 0
  %7982 = vmatpush1.bf16.msra.mxu0 %v7906
  %7983 = vmatprep.subr.bf16.mxu0 0
  %7984 = vmatpush1.bf16.msra.mxu0 %v7905
  %7985 = vmatprep.subr.bf16.mxu0 0
  %7986 = vmatpush2.bf16.msra.mxu0 %v7920
  %7987 = vmatprep.subr.bf16.mxu0 0
  %7988 = vmatpush2.bf16.msra.mxu0 %v7919
  %7989 = vmatprep.subr.bf16.mxu0 0
  %7990 = vmatpush2.bf16.msra.mxu0 %v7918
  %7991 = vmatprep.subr.bf16.mxu0 0
  %7992 = vmatpush2.bf16.msra.mxu0 %v7917
  %7993 = vmatprep.subr.bf16.mxu0 0
  %7994 = vmatpush2.bf16.msra.mxu0 %v7916
  %7995 = vmatprep.subr.bf16.mxu0 0
  %7996 = vmatpush2.bf16.msra.mxu0 %v7915
  %7997 = vmatprep.subr.bf16.mxu0 0
  %7998 = vmatpush2.bf16.msra.mxu0 %v7914
  %7999 = vmatprep.subr.bf16.mxu0 0
  %8000 = vmatpush2.bf16.msra.mxu0 %v7913
  %8001 = vmatprep.mubr.bf16.mxu0 %v7703
  %8002 = vmatmul.mubr.bf16.gmra.mxu0 %v7702
  %v8003 = vpop.f32.mrf.mxu0
  %v8004 = vadd.f32 %v7775, %v8003
  %v8005 = vpop.f32.mrf.mxu0
  %v8006 = vpop.f32.mrf.mxu0
  %v8007 = vpop.f32.mrf.mxu0
  %8008 = vdwg.mxu0
  %8009 = vmatprep.subr.bf16.mxu0 0
  %8010 = vmatpush1.bf16.msra.mxu0 %v7928
  %8011 = vmatprep.subr.bf16.mxu0 0
  %8012 = vmatpush1.bf16.msra.mxu0 %v7927
  %8013 = vmatprep.subr.bf16.mxu0 0
  %8014 = vmatpush1.bf16.msra.mxu0 %v7926
  %8015 = vmatprep.subr.bf16.mxu0 0
  %8016 = vmatpush1.bf16.msra.mxu0 %v7925
  %8017 = vmatprep.subr.bf16.mxu0 0
  %8018 = vmatpush1.bf16.msra.mxu0 %v7924
  %8019 = vmatprep.subr.bf16.mxu0 0
  %8020 = vmatpush1.bf16.msra.mxu0 %v7923
  %8021 = vmatprep.subr.bf16.mxu0 0
  %8022 = vmatpush1.bf16.msra.mxu0 %v7922
  %8023 = vmatprep.subr.bf16.mxu0 0
  %8024 = vmatpush1.bf16.msra.mxu0 %v7921
  %8025 = vmatprep.subr.bf16.mxu0 0
  %8026 = vmatpush2.bf16.msra.mxu0 %v7936
  %8027 = vmatprep.subr.bf16.mxu0 0
  %8028 = vmatpush2.bf16.msra.mxu0 %v7935
  %8029 = vmatprep.subr.bf16.mxu0 0
  %8030 = vmatpush2.bf16.msra.mxu0 %v7934
  %8031 = vmatprep.subr.bf16.mxu0 0
  %8032 = vmatpush2.bf16.msra.mxu0 %v7933
  %8033 = vmatprep.subr.bf16.mxu0 0
  %8034 = vmatpush2.bf16.msra.mxu0 %v7932
  %8035 = vmatprep.subr.bf16.mxu0 0
  %8036 = vmatpush2.bf16.msra.mxu0 %v7931
  %8037 = vmatprep.subr.bf16.mxu0 0
  %8038 = vmatpush2.bf16.msra.mxu0 %v7930
  %8039 = vmatprep.subr.bf16.mxu0 0
  %8040 = vmatpush2.bf16.msra.mxu0 %v7929
  %8041 = vmatprep.mubr.bf16.mxu0 %v7705
  %8042 = vmatmul.mubr.bf16.gmra.mxu0 %v7704
  %v8043 = vpop.f32.mrf.mxu0
  %v8044 = vadd.f32 %v8004, %v8043
  %v8045 = vpop.f32.mrf.mxu0
  %v8046 = vpop.f32.mrf.mxu0
  %v8047 = vpop.f32.mrf.mxu0
  %8048 = vdwg.mxu0
  %v8049 = vlaneseq
  %v8050 = vand.u32 %v8049, 127
  %vm8051 = vcmp.ge.s32.totalorder %v8050, 1
  %vm8052 = vcmp.lt.s32.totalorder %v8050, 11
  %vm8053 = vmand %vm8051, %vm8052
  %v8054 = vsub.f32 0.0, %v8044
  %v8055 = vmul.f32 %v8054, 1.442695
  %v8056 = vpow.pop %v8055
  %v8057 = vadd.f32 %v8056, 1.0
  %v8058 = vrcp.pop %v8057
  %v8059 = vmul.f32 1.0, %v8058
  %v8060 = vsel %vm8053, %v8044, -1e+30
  %vm8061 = vcmask 1041408
  %v8062 = vsel %vm8061, %v8060, -inf
  %8063 = vmax.xlane.f32.xlu0 %v8062
  %v8064 = vpop.xlane.xlu0 %8063
  %v8065 = vsub.f32 %v8060, %v8064
  %v8066 = vmul.f32 %v8065, 1.442695
  %v8067 = vpow.pop %v8066
  %v8068 = vsel %vm8053, %v8067, 0.0
  %v8069 = vsel %vm8061, %v8068, 0.0
  %8070 = vadd.xlane.f32.xlu0 %v8069
  %v8071 = vpop.xlane.xlu0 %8070
  %v8072 = vrcp.pop %v8071
  %v8073 = vmul.f32 %v8068, %v8072
  %vm8074 = vcmp.eq.s32.totalorder %v8050, 0
  %v8075 = vsel %vm8053, %v8073, 0.0
  %v8076 = vsel %vm8074, %v8059, %v8075
  %8077 = vst [vmem:[%s11] sm:$0x3] %v8076
  // Predicated region
  $region46: #{discriminator_forward.1} parent=0 // pred_check
    _
  $region47: #{discriminator_forward.1} parent=0 // pred_check_branch
    %8079 = sbr.rel (0) target = $region49
  $region48: #{discriminator_forward.1} parent=0 // pred_region
    _
  $region49: #{discriminator_forward.1} parent=0 // pred_fallthru
    _
  // Predicated region
  $region50: #{discriminator_forward.1} parent=0 // pred_check
    _
  $region51: #{discriminator_forward.1} parent=0 // pred_check_branch
    %8081 = sbr.rel (0) target = $region53
  $region52: #{discriminator_forward.1} parent=0 // pred_region
    _
  $region53: #{discriminator_forward.1} parent=0 // pred_fallthru
    _

</llo_original>
